<compile_context>
chip_gen: v5e
topology: v5e:2x2
jax: 0.10.0
libtpu: 0.0.40
codegen_flags: <defaults>
</compile_context>

<pallas_src>
from collections import namedtuple
from functools import partial

import jax
import jax.numpy as jnp
from jax import lax
from jax.experimental import pallas as pl
from jax.experimental.pallas import tpu as pltpu

NSTEPS = 8  # fixed RK4 steps over [t0, t1]

# Minimal stand-in for the torch_geometric-style data object `z`.
GraphData = namedtuple("GraphData", ["x", "edge_index", "pos", "edge_attr"])


def _round_up(x, m):
    return ((x + m - 1) // m) * m


def _cnf_kernel(times_ref, x_ref, logp_ref, w1_ref, b1_ref, w2aug_ref,
                x_out_ref, logp_out_ref, *, tile_n, d):
    """Integrate (x, logp) from times[0] to times[1] with RK4, fully in VMEM."""
    t0 = times_ref[0]
    t1 = times_ref[1]
    dt = (t1 - t0) / jnp.float32(NSTEPS)
    half_dt = 0.5 * dt
    sixth = dt / 6.0

    w1 = w1_ref[...]        # [D, HP]    (padded hidden dim, lane-dense)
    b1 = b1_ref[...]        # [1, HP]
    w2aug = w2aug_ref[...]  # [HP, D+1]  = [W2 | -dvec^T], padded rows are zero

    def odefunc(bt, x):
        # bt = b1 + t, precomputed per stage at [1, HP] (broadcast in the add).
        h = jnp.dot(x, w1, preferred_element_type=jnp.float32) + bt   # [TN, HP]
        th = jnp.tanh(h)                                              # EUP
        # Fused MXU call: rows [:TN] -> dx, rows [TN:] -> -divergence.
        stacked = jnp.concatenate([th, 1.0 - th * th], axis=0)        # [2TN, HP]
        out = jnp.dot(stacked, w2aug,
                      preferred_element_type=jnp.float32)             # [2TN, D+1]
        return out[:tile_n, :d], out[tile_n:, d:]                     # dx, dlogp

    def rk4_step(i, carry):
        x, lp = carry
        t = t0 + dt * i
        bt_a = b1 + t                  # scalar folded into the [1, HP] bias
        bt_b = b1 + (t + half_dt)
        bt_c = b1 + (t + dt)
        k1x, k1l = odefunc(bt_a, x)
        k2x, k2l = odefunc(bt_b, x + half_dt * k1x)
        k3x, k3l = odefunc(bt_b, x + half_dt * k2x)
        k4x, k4l = odefunc(bt_c, x + dt * k3x)
        x = x + sixth * (k1x + 2.0 * k2x + 2.0 * k3x + k4x)
        lp = lp + sixth * (k1l + 2.0 * k2l + 2.0 * k3l + k4l)
        return x, lp

    # NSTEPS is static -> fully unroll so adjacent RK4 stages interleave.
    x_fin, lp_fin = lax.fori_loop(0, NSTEPS, rk4_step,
                                  (x_ref[...], logp_ref[...]),
                                  unroll=True)
    x_out_ref[...] = x_fin
    logp_out_ref[...] = lp_fin


def _cnf_integrate(times, feats, logp, w1p, b1p, w2aug):
    n, d = feats.shape
    hp = w1p.shape[1]
    da = w2aug.shape[1]

    # Row tiling: independent rows -> pipelined, "parallel" grid axis.
    tile_n = min(_round_up(n, 8), 256)
    n_pad = _round_up(n, tile_n)
    if n_pad != n:
        feats = jnp.pad(feats, ((0, n_pad - n), (0, 0)))
        logp = jnp.pad(logp, ((0, n_pad - n), (0, 0)))
    grid = (n_pad // tile_n,)

    x_out, lp_out = pl.pallas_call(
        partial(_cnf_kernel, tile_n=tile_n, d=d),
        out_shape=(jax.ShapeDtypeStruct((n_pad, d), jnp.float32),
                   jax.ShapeDtypeStruct((n_pad, 1), jnp.float32)),
        grid=grid,
        in_specs=[
            pl.BlockSpec(memory_space=pltpu.MemorySpace.SMEM),   # times [2]
            pl.BlockSpec((tile_n, d), lambda i: (i, 0)),         # x
            pl.BlockSpec((tile_n, 1), lambda i: (i, 0)),         # logp
            pl.BlockSpec((d, hp), lambda i: (0, 0)),             # W1 (padded)
            pl.BlockSpec((1, hp), lambda i: (0, 0)),             # b1 (padded)
            pl.BlockSpec((hp, da), lambda i: (0, 0)),            # [W2 | -dvec^T]
        ],
        out_specs=(pl.BlockSpec((tile_n, d), lambda i: (i, 0)),
                   pl.BlockSpec((tile_n, 1), lambda i: (i, 0))),
        compiler_params=pltpu.CompilerParams(
            dimension_semantics=("parallel",)),
    )(times, feats, logp, w1p, b1p, w2aug)
    return x_out[:n], lp_out[:n]


class CNF:
    """JAX/Pallas re-implementation of the PyTorch CNF forward pass."""

    def __init__(self, params, T=1.0, train_T=False, solver="dopri5",
                 atol=1e-5, rtol=1e-5):
        self.sqrt_end_time = jnp.sqrt(jnp.float32(T))
        self.params = params          # dict with W1, b1, W2 (the odefunc params)
        self.nreg = 0
        self.solver = solver
        self.atol = atol
        self.rtol = rtol

        w1 = params["W1"].astype(jnp.float32)              # [D, H]
        b1 = params["b1"].astype(jnp.float32).reshape(1, -1)  # [1, H]
        w2 = params["W2"].astype(jnp.float32)              # [H, D]
        d, h = w1.shape
        hp = _round_up(h, 128)                             # lane-dense hidden dim

        # exact-divergence vector: dvec[k] = sum_i W1[i,k] * W2[k,i]
        dvec = jnp.sum(w1 * w2.T, axis=0)                  # [H]

        # Zero-padded params.  Padded W2 rows and dvec entries are exactly zero,
        # so padded hidden lanes (which see h = t, tanh(t) != 0) contribute
        # nothing and the result stays exact.
        self._w1p = jnp.zeros((d, hp), jnp.float32).at[:, :h].set(w1)
        self._b1p = jnp.zeros((1, hp), jnp.float32).at[:, :h].set(b1)
        w2aug = jnp.zeros((hp, d + 1), jnp.float32)
        w2aug = w2aug.at[:h, :d].set(w2)
        w2aug = w2aug.at[:h, d].set(-dvec)                 # minus sign baked in
        self._w2aug = w2aug

    def forward(self, z, logpz=None, integration_times=None, reverse=False):
        feats = z.x
        if logpz is None:
            _logpz = jnp.zeros((feats.shape[0], 1), dtype=feats.dtype)
        else:
            _logpz = logpz
        if integration_times is None:
            integration_times = jnp.array(
                [0.0, self.sqrt_end_time * self.sqrt_end_time],
                dtype=jnp.float32)
        if reverse:
            integration_times = integration_times[::-1]  # _flip(times, 0)

        # TODO(synk): edge_index / pos / edge_attr are carried through odeint
        # unchanged in the original; the synthetic odefunc uses only node feats.
        # TODO(synk): dopri5 adaptive stepping (atol/rtol) replaced by fixed RK4.
        z_t, logpz_t = _cnf_integrate(
            integration_times.astype(jnp.float32),
            feats.astype(jnp.float32),
            _logpz.astype(jnp.float32),
            self._w1p, self._b1p, self._w2aug)

        if logpz is not None:
            return z_t, logpz_t
        return z_t


if __name__ == "__main__":
    key = jax.random.PRNGKey(0)
    N, D, H = 64, 8, 32  # nodes, feature dim, hidden dim

    kx, kw1, kw2, kp, ke = jax.random.split(key, 5)
    params = {
        "W1": (jax.random.normal(kw1, (D, H), dtype=jnp.float32) * 0.1),
        "b1": jnp.zeros((1, H), dtype=jnp.float32),
        "W2": (jax.random.normal(kw2, (H, D), dtype=jnp.float32) * 0.1),
    }

    feats = jax.random.normal(kx, (N, D), dtype=jnp.float32)
    pos = jax.random.normal(kp, (N, 3), dtype=jnp.float32)
    edge_index = jnp.stack([jnp.arange(N, dtype=jnp.int32),
                            jnp.roll(jnp.arange(N, dtype=jnp.int32), 1)])
    edge_attr = jax.random.normal(ke, (N, 4), dtype=jnp.float32)
    z = GraphData(x=feats, edge_index=edge_index, pos=pos, edge_attr=edge_attr)

    cnf = CNF(params, T=1.0)

    # forward with logpz provided -> returns (z_t, logpz_t)
    logpz0 = jnp.zeros((N, 1), dtype=jnp.float32)
    z_t, logpz_t = cnf.forward(z, logpz=logpz0)
    jax.block_until_ready((z_t, logpz_t))

    # forward without logpz (returns z_t only), and reverse-direction run
    z_fwd = cnf.forward(z)
    z_rev = cnf.forward(GraphData(x=z_t, edge_index=edge_index, pos=pos,
                                  edge_attr=edge_attr), reverse=True)
    jax.block_until_ready((z_fwd, z_rev))

    assert z_t.shape == (N, D) and logpz_t.shape == (N, 1)
    assert bool(jnp.all(jnp.isfinite(z_t))) and bool(jnp.all(jnp.isfinite(logpz_t)))
    # reverse integration of the forward result should roughly recover the input
    assert bool(jnp.max(jnp.abs(z_rev - feats)) < 1e-2)
    print("KERNEL_OK")
</pallas_src>

<mosaic_0001>
module attributes {stable_mosaic.version = 11 : i64} {
  func.func @_cnf_kernel(%arg0: i32, %arg1: memref<2xf32, #tpu.memory_space<smem>>, %arg2: memref<64x8xf32, #tpu.memory_space<vmem>>, %arg3: memref<64x1xf32, #tpu.memory_space<vmem>>, %arg4: memref<8x128xf32, #tpu.memory_space<vmem>>, %arg5: memref<1x128xf32, #tpu.memory_space<vmem>>, %arg6: memref<128x9xf32, #tpu.memory_space<vmem>>, %arg7: memref<64x8xf32, #tpu.memory_space<vmem>>, %arg8: memref<64x1xf32, #tpu.memory_space<vmem>>) attributes {dimension_semantics = [#tpu.dimension_semantics<parallel>], iteration_bounds = array<i64: 1>, scalar_prefetch = 0 : i64, scratch_operands = 0 : i64, tpu.core_type = #tpu.core_type<tc>, window_params = [{transform_indices = @transform_0, window_bounds = array<i64: 2>}, {transform_indices = @transform_1, window_bounds = array<i64: 64, 8>}, {transform_indices = @transform_2, window_bounds = array<i64: 64, 1>}, {pipeline_mode = #tpu.pipeline_mode<synchronous>, transform_indices = @transform_3, window_bounds = array<i64: 8, 128>}, {pipeline_mode = #tpu.pipeline_mode<synchronous>, transform_indices = @transform_4, window_bounds = array<i64: 1, 128>}, {pipeline_mode = #tpu.pipeline_mode<synchronous>, transform_indices = @transform_5, window_bounds = array<i64: 128, 9>}, {transform_indices = @transform_6, window_bounds = array<i64: 64, 8>}, {transform_indices = @transform_7, window_bounds = array<i64: 64, 1>}]} {
    %c0 = arith.constant 0 : index
    %0 = memref.load %arg1[%c0] : memref<2xf32, #tpu.memory_space<smem>>
    %c1 = arith.constant 1 : index
    %1 = memref.load %arg1[%c1] : memref<2xf32, #tpu.memory_space<smem>>
    %2 = arith.subf %1, %0 : f32
    %cst = arith.constant 8.000000e+00 : f32
    %3 = arith.divf %2, %cst : f32
    %cst_0 = arith.constant 5.000000e-01 : f32
    %4 = arith.mulf %cst_0, %3 : f32
    %cst_1 = arith.constant 6.000000e+00 : f32
    %5 = arith.divf %3, %cst_1 : f32
    %c0_2 = arith.constant 0 : index
    %c0_3 = arith.constant 0 : index
    %6 = vector.load %arg4[%c0_2, %c0_3] : memref<8x128xf32, #tpu.memory_space<vmem>>, vector<8x128xf32>
    %c0_4 = arith.constant 0 : index
    %c0_5 = arith.constant 0 : index
    %7 = vector.load %arg5[%c0_4, %c0_5] : memref<1x128xf32, #tpu.memory_space<vmem>>, vector<1x128xf32>
    %c0_6 = arith.constant 0 : index
    %c0_7 = arith.constant 0 : index
    %8 = vector.load %arg6[%c0_6, %c0_7] : memref<128x9xf32, #tpu.memory_space<vmem>>, vector<128x9xf32>
    %c0_8 = arith.constant 0 : index
    %c0_9 = arith.constant 0 : index
    %9 = vector.load %arg2[%c0_8, %c0_9] : memref<64x8xf32, #tpu.memory_space<vmem>>, vector<64x8xf32>
    %c0_10 = arith.constant 0 : index
    %c0_11 = arith.constant 0 : index
    %10 = vector.load %arg3[%c0_10, %c0_11] : memref<64x1xf32, #tpu.memory_space<vmem>>, vector<64x1xf32>
    %c0_i32 = arith.constant 0 : i32
    %11 = arith.sitofp %c0_i32 : i32 to f32
    %12 = arith.mulf %3, %11 : f32
    %13 = arith.addf %0, %12 : f32
    %14 = vector.broadcast %13 : f32 to vector<1x128xf32>
    %15 = arith.addf %7, %14 : vector<1x128xf32>
    %16 = arith.addf %13, %4 : f32
    %17 = vector.broadcast %16 : f32 to vector<1x128xf32>
    %18 = arith.addf %7, %17 : vector<1x128xf32>
    %19 = arith.addf %13, %3 : f32
    %20 = vector.broadcast %19 : f32 to vector<1x128xf32>
    %21 = arith.addf %7, %20 : vector<1x128xf32>
    %cst_12 = arith.constant dense<0.000000e+00> : vector<64x128xf32>
    %22 = tpu.matmul %9, %6, %cst_12 {dimension_numbers = #tpu.dot_dimension_numbers<[1], [0], [0], [1], [0, 0, 1, 1], [], []>} : vector<64x8xf32>, vector<8x128xf32>, vector<64x128xf32> -> vector<64x128xf32>
    %23 = vector.broadcast %15 : vector<1x128xf32> to vector<64x128xf32>
    %24 = arith.addf %22, %23 : vector<64x128xf32>
    %25 = math.tanh %24 : vector<64x128xf32>
    %26 = arith.mulf %25, %25 : vector<64x128xf32>
    %cst_13 = arith.constant 1.000000e+00 : f32
    %27 = vector.broadcast %cst_13 : f32 to vector<64x128xf32>
    %28 = arith.subf %27, %26 : vector<64x128xf32>
    %29 = tpu.concatenate %25, %28 in 0 : vector<64x128xf32>, vector<64x128xf32> -> vector<128x128xf32>
    %cst_14 = arith.constant dense<0.000000e+00> : vector<128x9xf32>
    %30 = tpu.matmul %29, %8, %cst_14 {dimension_numbers = #tpu.dot_dimension_numbers<[1], [0], [0], [1], [0, 0, 1, 1], [], []>} : vector<128x128xf32>, vector<128x9xf32>, vector<128x9xf32> -> vector<128x9xf32>
    %31 = vector.extract_strided_slice %30 {offsets = [0, 0], sizes = [64, 8], strides = [1, 1]} : vector<128x9xf32> to vector<64x8xf32>
    %32 = vector.extract_strided_slice %30 {offsets = [64, 8], sizes = [64, 1], strides = [1, 1]} : vector<128x9xf32> to vector<64x1xf32>
    %33 = vector.broadcast %4 : f32 to vector<64x8xf32>
    %34 = arith.mulf %33, %31 : vector<64x8xf32>
    %35 = arith.addf %9, %34 : vector<64x8xf32>
    %cst_15 = arith.constant dense<0.000000e+00> : vector<64x128xf32>
    %36 = tpu.matmul %35, %6, %cst_15 {dimension_numbers = #tpu.dot_dimension_numbers<[1], [0], [0], [1], [0, 0, 1, 1], [], []>} : vector<64x8xf32>, vector<8x128xf32>, vector<64x128xf32> -> vector<64x128xf32>
    %37 = vector.broadcast %18 : vector<1x128xf32> to vector<64x128xf32>
    %38 = arith.addf %36, %37 : vector<64x128xf32>
    %39 = math.tanh %38 : vector<64x128xf32>
    %40 = arith.mulf %39, %39 : vector<64x128xf32>
    %cst_16 = arith.constant 1.000000e+00 : f32
    %41 = vector.broadcast %cst_16 : f32 to vector<64x128xf32>
    %42 = arith.subf %41, %40 : vector<64x128xf32>
    %43 = tpu.concatenate %39, %42 in 0 : vector<64x128xf32>, vector<64x128xf32> -> vector<128x128xf32>
    %cst_17 = arith.constant dense<0.000000e+00> : vector<128x9xf32>
    %44 = tpu.matmul %43, %8, %cst_17 {dimension_numbers = #tpu.dot_dimension_numbers<[1], [0], [0], [1], [0, 0, 1, 1], [], []>} : vector<128x128xf32>, vector<128x9xf32>, vector<128x9xf32> -> vector<128x9xf32>
    %45 = vector.extract_strided_slice %44 {offsets = [0, 0], sizes = [64, 8], strides = [1, 1]} : vector<128x9xf32> to vector<64x8xf32>
    %46 = vector.extract_strided_slice %44 {offsets = [64, 8], sizes = [64, 1], strides = [1, 1]} : vector<128x9xf32> to vector<64x1xf32>
    %47 = vector.broadcast %4 : f32 to vector<64x8xf32>
    %48 = arith.mulf %47, %45 : vector<64x8xf32>
    %49 = arith.addf %9, %48 : vector<64x8xf32>
    %cst_18 = arith.constant dense<0.000000e+00> : vector<64x128xf32>
    %50 = tpu.matmul %49, %6, %cst_18 {dimension_numbers = #tpu.dot_dimension_numbers<[1], [0], [0], [1], [0, 0, 1, 1], [], []>} : vector<64x8xf32>, vector<8x128xf32>, vector<64x128xf32> -> vector<64x128xf32>
    %51 = vector.broadcast %18 : vector<1x128xf32> to vector<64x128xf32>
    %52 = arith.addf %50, %51 : vector<64x128xf32>
    %53 = math.tanh %52 : vector<64x128xf32>
    %54 = arith.mulf %53, %53 : vector<64x128xf32>
    %cst_19 = arith.constant 1.000000e+00 : f32
    %55 = vector.broadcast %cst_19 : f32 to vector<64x128xf32>
    %56 = arith.subf %55, %54 : vector<64x128xf32>
    %57 = tpu.concatenate %53, %56 in 0 : vector<64x128xf32>, vector<64x128xf32> -> vector<128x128xf32>
    %cst_20 = arith.constant dense<0.000000e+00> : vector<128x9xf32>
    %58 = tpu.matmul %57, %8, %cst_20 {dimension_numbers = #tpu.dot_dimension_numbers<[1], [0], [0], [1], [0, 0, 1, 1], [], []>} : vector<128x128xf32>, vector<128x9xf32>, vector<128x9xf32> -> vector<128x9xf32>
    %59 = vector.extract_strided_slice %58 {offsets = [0, 0], sizes = [64, 8], strides = [1, 1]} : vector<128x9xf32> to vector<64x8xf32>
    %60 = vector.extract_strided_slice %58 {offsets = [64, 8], sizes = [64, 1], strides = [1, 1]} : vector<128x9xf32> to vector<64x1xf32>
    %61 = vector.broadcast %3 : f32 to vector<64x8xf32>
    %62 = arith.mulf %61, %59 : vector<64x8xf32>
    %63 = arith.addf %9, %62 : vector<64x8xf32>
    %cst_21 = arith.constant dense<0.000000e+00> : vector<64x128xf32>
    %64 = tpu.matmul %63, %6, %cst_21 {dimension_numbers = #tpu.dot_dimension_numbers<[1], [0], [0], [1], [0, 0, 1, 1], [], []>} : vector<64x8xf32>, vector<8x128xf32>, vector<64x128xf32> -> vector<64x128xf32>
    %65 = vector.broadcast %21 : vector<1x128xf32> to vector<64x128xf32>
    %66 = arith.addf %64, %65 : vector<64x128xf32>
    %67 = math.tanh %66 : vector<64x128xf32>
    %68 = arith.mulf %67, %67 : vector<64x128xf32>
    %cst_22 = arith.constant 1.000000e+00 : f32
    %69 = vector.broadcast %cst_22 : f32 to vector<64x128xf32>
    %70 = arith.subf %69, %68 : vector<64x128xf32>
    %71 = tpu.concatenate %67, %70 in 0 : vector<64x128xf32>, vector<64x128xf32> -> vector<128x128xf32>
    %cst_23 = arith.constant dense<0.000000e+00> : vector<128x9xf32>
    %72 = tpu.matmul %71, %8, %cst_23 {dimension_numbers = #tpu.dot_dimension_numbers<[1], [0], [0], [1], [0, 0, 1, 1], [], []>} : vector<128x128xf32>, vector<128x9xf32>, vector<128x9xf32> -> vector<128x9xf32>
    %73 = vector.extract_strided_slice %72 {offsets = [0, 0], sizes = [64, 8], strides = [1, 1]} : vector<128x9xf32> to vector<64x8xf32>
    %74 = vector.extract_strided_slice %72 {offsets = [64, 8], sizes = [64, 1], strides = [1, 1]} : vector<128x9xf32> to vector<64x1xf32>
    %cst_24 = arith.constant 2.000000e+00 : f32
    %75 = vector.broadcast %cst_24 : f32 to vector<64x8xf32>
    %76 = arith.mulf %75, %45 : vector<64x8xf32>
    %77 = arith.addf %31, %76 : vector<64x8xf32>
    %cst_25 = arith.constant 2.000000e+00 : f32
    %78 = vector.broadcast %cst_25 : f32 to vector<64x8xf32>
    %79 = arith.mulf %78, %59 : vector<64x8xf32>
    %80 = arith.addf %77, %79 : vector<64x8xf32>
    %81 = arith.addf %80, %73 : vector<64x8xf32>
    %82 = vector.broadcast %5 : f32 to vector<64x8xf32>
    %83 = arith.mulf %82, %81 : vector<64x8xf32>
    %84 = arith.addf %9, %83 : vector<64x8xf32>
    %cst_26 = arith.constant 2.000000e+00 : f32
    %85 = vector.broadcast %cst_26 : f32 to vector<64x1xf32>
    %86 = arith.mulf %85, %46 : vector<64x1xf32>
    %87 = arith.addf %32, %86 : vector<64x1xf32>
    %cst_27 = arith.constant 2.000000e+00 : f32
    %88 = vector.broadcast %cst_27 : f32 to vector<64x1xf32>
    %89 = arith.mulf %88, %60 : vector<64x1xf32>
    %90 = arith.addf %87, %89 : vector<64x1xf32>
    %91 = arith.addf %90, %74 : vector<64x1xf32>
    %92 = vector.broadcast %5 : f32 to vector<64x1xf32>
    %93 = arith.mulf %92, %91 : vector<64x1xf32>
    %94 = arith.addf %10, %93 : vector<64x1xf32>
    %c1_i32 = arith.constant 1 : i32
    %95 = arith.sitofp %c1_i32 : i32 to f32
    %96 = arith.mulf %3, %95 : f32
    %97 = arith.addf %0, %96 : f32
    %98 = vector.broadcast %97 : f32 to vector<1x128xf32>
    %99 = arith.addf %7, %98 : vector<1x128xf32>
    %100 = arith.addf %97, %4 : f32
    %101 = vector.broadcast %100 : f32 to vector<1x128xf32>
    %102 = arith.addf %7, %101 : vector<1x128xf32>
    %103 = arith.addf %97, %3 : f32
    %104 = vector.broadcast %103 : f32 to vector<1x128xf32>
    %105 = arith.addf %7, %104 : vector<1x128xf32>
    %cst_28 = arith.constant dense<0.000000e+00> : vector<64x128xf32>
    %106 = tpu.matmul %84, %6, %cst_28 {dimension_numbers = #tpu.dot_dimension_numbers<[1], [0], [0], [1], [0, 0, 1, 1], [], []>} : vector<64x8xf32>, vector<8x128xf32>, vector<64x128xf32> -> vector<64x128xf32>
    %107 = vector.broadcast %99 : vector<1x128xf32> to vector<64x128xf32>
    %108 = arith.addf %106, %107 : vector<64x128xf32>
    %109 = math.tanh %108 : vector<64x128xf32>
    %110 = arith.mulf %109, %109 : vector<64x128xf32>
    %cst_29 = arith.constant 1.000000e+00 : f32
    %111 = vector.broadcast %cst_29 : f32 to vector<64x128xf32>
    %112 = arith.subf %111, %110 : vector<64x128xf32>
    %113 = tpu.concatenate %109, %112 in 0 : vector<64x128xf32>, vector<64x128xf32> -> vector<128x128xf32>
    %cst_30 = arith.constant dense<0.000000e+00> : vector<128x9xf32>
    %114 = tpu.matmul %113, %8, %cst_30 {dimension_numbers = #tpu.dot_dimension_numbers<[1], [0], [0], [1], [0, 0, 1, 1], [], []>} : vector<128x128xf32>, vector<128x9xf32>, vector<128x9xf32> -> vector<128x9xf32>
    %115 = vector.extract_strided_slice %114 {offsets = [0, 0], sizes = [64, 8], strides = [1, 1]} : vector<128x9xf32> to vector<64x8xf32>
    %116 = vector.extract_strided_slice %114 {offsets = [64, 8], sizes = [64, 1], strides = [1, 1]} : vector<128x9xf32> to vector<64x1xf32>
    %117 = vector.broadcast %4 : f32 to vector<64x8xf32>
    %118 = arith.mulf %117, %115 : vector<64x8xf32>
    %119 = arith.addf %84, %118 : vector<64x8xf32>
    %cst_31 = arith.constant dense<0.000000e+00> : vector<64x128xf32>
    %120 = tpu.matmul %119, %6, %cst_31 {dimension_numbers = #tpu.dot_dimension_numbers<[1], [0], [0], [1], [0, 0, 1, 1], [], []>} : vector<64x8xf32>, vector<8x128xf32>, vector<64x128xf32> -> vector<64x128xf32>
    %121 = vector.broadcast %102 : vector<1x128xf32> to vector<64x128xf32>
    %122 = arith.addf %120, %121 : vector<64x128xf32>
    %123 = math.tanh %122 : vector<64x128xf32>
    %124 = arith.mulf %123, %123 : vector<64x128xf32>
    %cst_32 = arith.constant 1.000000e+00 : f32
    %125 = vector.broadcast %cst_32 : f32 to vector<64x128xf32>
    %126 = arith.subf %125, %124 : vector<64x128xf32>
    %127 = tpu.concatenate %123, %126 in 0 : vector<64x128xf32>, vector<64x128xf32> -> vector<128x128xf32>
    %cst_33 = arith.constant dense<0.000000e+00> : vector<128x9xf32>
    %128 = tpu.matmul %127, %8, %cst_33 {dimension_numbers = #tpu.dot_dimension_numbers<[1], [0], [0], [1], [0, 0, 1, 1], [], []>} : vector<128x128xf32>, vector<128x9xf32>, vector<128x9xf32> -> vector<128x9xf32>
    %129 = vector.extract_strided_slice %128 {offsets = [0, 0], sizes = [64, 8], strides = [1, 1]} : vector<128x9xf32> to vector<64x8xf32>
    %130 = vector.extract_strided_slice %128 {offsets = [64, 8], sizes = [64, 1], strides = [1, 1]} : vector<128x9xf32> to vector<64x1xf32>
    %131 = vector.broadcast %4 : f32 to vector<64x8xf32>
    %132 = arith.mulf %131, %129 : vector<64x8xf32>
    %133 = arith.addf %84, %132 : vector<64x8xf32>
    %cst_34 = arith.constant dense<0.000000e+00> : vector<64x128xf32>
    %134 = tpu.matmul %133, %6, %cst_34 {dimension_numbers = #tpu.dot_dimension_numbers<[1], [0], [0], [1], [0, 0, 1, 1], [], []>} : vector<64x8xf32>, vector<8x128xf32>, vector<64x128xf32> -> vector<64x128xf32>
    %135 = vector.broadcast %102 : vector<1x128xf32> to vector<64x128xf32>
    %136 = arith.addf %134, %135 : vector<64x128xf32>
    %137 = math.tanh %136 : vector<64x128xf32>
    %138 = arith.mulf %137, %137 : vector<64x128xf32>
    %cst_35 = arith.constant 1.000000e+00 : f32
    %139 = vector.broadcast %cst_35 : f32 to vector<64x128xf32>
    %140 = arith.subf %139, %138 : vector<64x128xf32>
    %141 = tpu.concatenate %137, %140 in 0 : vector<64x128xf32>, vector<64x128xf32> -> vector<128x128xf32>
    %cst_36 = arith.constant dense<0.000000e+00> : vector<128x9xf32>
    %142 = tpu.matmul %141, %8, %cst_36 {dimension_numbers = #tpu.dot_dimension_numbers<[1], [0], [0], [1], [0, 0, 1, 1], [], []>} : vector<128x128xf32>, vector<128x9xf32>, vector<128x9xf32> -> vector<128x9xf32>
    %143 = vector.extract_strided_slice %142 {offsets = [0, 0], sizes = [64, 8], strides = [1, 1]} : vector<128x9xf32> to vector<64x8xf32>
    %144 = vector.extract_strided_slice %142 {offsets = [64, 8], sizes = [64, 1], strides = [1, 1]} : vector<128x9xf32> to vector<64x1xf32>
    %145 = vector.broadcast %3 : f32 to vector<64x8xf32>
    %146 = arith.mulf %145, %143 : vector<64x8xf32>
    %147 = arith.addf %84, %146 : vector<64x8xf32>
    %cst_37 = arith.constant dense<0.000000e+00> : vector<64x128xf32>
    %148 = tpu.matmul %147, %6, %cst_37 {dimension_numbers = #tpu.dot_dimension_numbers<[1], [0], [0], [1], [0, 0, 1, 1], [], []>} : vector<64x8xf32>, vector<8x128xf32>, vector<64x128xf32> -> vector<64x128xf32>
    %149 = vector.broadcast %105 : vector<1x128xf32> to vector<64x128xf32>
    %150 = arith.addf %148, %149 : vector<64x128xf32>
    %151 = math.tanh %150 : vector<64x128xf32>
    %152 = arith.mulf %151, %151 : vector<64x128xf32>
    %cst_38 = arith.constant 1.000000e+00 : f32
    %153 = vector.broadcast %cst_38 : f32 to vector<64x128xf32>
    %154 = arith.subf %153, %152 : vector<64x128xf32>
    %155 = tpu.concatenate %151, %154 in 0 : vector<64x128xf32>, vector<64x128xf32> -> vector<128x128xf32>
    %cst_39 = arith.constant dense<0.000000e+00> : vector<128x9xf32>
    %156 = tpu.matmul %155, %8, %cst_39 {dimension_numbers = #tpu.dot_dimension_numbers<[1], [0], [0], [1], [0, 0, 1, 1], [], []>} : vector<128x128xf32>, vector<128x9xf32>, vector<128x9xf32> -> vector<128x9xf32>
    %157 = vector.extract_strided_slice %156 {offsets = [0, 0], sizes = [64, 8], strides = [1, 1]} : vector<128x9xf32> to vector<64x8xf32>
    %158 = vector.extract_strided_slice %156 {offsets = [64, 8], sizes = [64, 1], strides = [1, 1]} : vector<128x9xf32> to vector<64x1xf32>
    %cst_40 = arith.constant 2.000000e+00 : f32
    %159 = vector.broadcast %cst_40 : f32 to vector<64x8xf32>
    %160 = arith.mulf %159, %129 : vector<64x8xf32>
    %161 = arith.addf %115, %160 : vector<64x8xf32>
    %cst_41 = arith.constant 2.000000e+00 : f32
    %162 = vector.broadcast %cst_41 : f32 to vector<64x8xf32>
    %163 = arith.mulf %162, %143 : vector<64x8xf32>
    %164 = arith.addf %161, %163 : vector<64x8xf32>
    %165 = arith.addf %164, %157 : vector<64x8xf32>
    %166 = vector.broadcast %5 : f32 to vector<64x8xf32>
    %167 = arith.mulf %166, %165 : vector<64x8xf32>
    %168 = arith.addf %84, %167 : vector<64x8xf32>
    %cst_42 = arith.constant 2.000000e+00 : f32
    %169 = vector.broadcast %cst_42 : f32 to vector<64x1xf32>
    %170 = arith.mulf %169, %130 : vector<64x1xf32>
    %171 = arith.addf %116, %170 : vector<64x1xf32>
    %cst_43 = arith.constant 2.000000e+00 : f32
    %172 = vector.broadcast %cst_43 : f32 to vector<64x1xf32>
    %173 = arith.mulf %172, %144 : vector<64x1xf32>
    %174 = arith.addf %171, %173 : vector<64x1xf32>
    %175 = arith.addf %174, %158 : vector<64x1xf32>
    %176 = vector.broadcast %5 : f32 to vector<64x1xf32>
    %177 = arith.mulf %176, %175 : vector<64x1xf32>
    %178 = arith.addf %94, %177 : vector<64x1xf32>
    %c2_i32 = arith.constant 2 : i32
    %179 = arith.sitofp %c2_i32 : i32 to f32
    %180 = arith.mulf %3, %179 : f32
    %181 = arith.addf %0, %180 : f32
    %182 = vector.broadcast %181 : f32 to vector<1x128xf32>
    %183 = arith.addf %7, %182 : vector<1x128xf32>
    %184 = arith.addf %181, %4 : f32
    %185 = vector.broadcast %184 : f32 to vector<1x128xf32>
    %186 = arith.addf %7, %185 : vector<1x128xf32>
    %187 = arith.addf %181, %3 : f32
    %188 = vector.broadcast %187 : f32 to vector<1x128xf32>
    %189 = arith.addf %7, %188 : vector<1x128xf32>
    %cst_44 = arith.constant dense<0.000000e+00> : vector<64x128xf32>
    %190 = tpu.matmul %168, %6, %cst_44 {dimension_numbers = #tpu.dot_dimension_numbers<[1], [0], [0], [1], [0, 0, 1, 1], [], []>} : vector<64x8xf32>, vector<8x128xf32>, vector<64x128xf32> -> vector<64x128xf32>
    %191 = vector.broadcast %183 : vector<1x128xf32> to vector<64x128xf32>
    %192 = arith.addf %190, %191 : vector<64x128xf32>
    %193 = math.tanh %192 : vector<64x128xf32>
    %194 = arith.mulf %193, %193 : vector<64x128xf32>
    %cst_45 = arith.constant 1.000000e+00 : f32
    %195 = vector.broadcast %cst_45 : f32 to vector<64x128xf32>
    %196 = arith.subf %195, %194 : vector<64x128xf32>
    %197 = tpu.concatenate %193, %196 in 0 : vector<64x128xf32>, vector<64x128xf32> -> vector<128x128xf32>
    %cst_46 = arith.constant dense<0.000000e+00> : vector<128x9xf32>
    %198 = tpu.matmul %197, %8, %cst_46 {dimension_numbers = #tpu.dot_dimension_numbers<[1], [0], [0], [1], [0, 0, 1, 1], [], []>} : vector<128x128xf32>, vector<128x9xf32>, vector<128x9xf32> -> vector<128x9xf32>
    %199 = vector.extract_strided_slice %198 {offsets = [0, 0], sizes = [64, 8], strides = [1, 1]} : vector<128x9xf32> to vector<64x8xf32>
    %200 = vector.extract_strided_slice %198 {offsets = [64, 8], sizes = [64, 1], strides = [1, 1]} : vector<128x9xf32> to vector<64x1xf32>
    %201 = vector.broadcast %4 : f32 to vector<64x8xf32>
    %202 = arith.mulf %201, %199 : vector<64x8xf32>
    %203 = arith.addf %168, %202 : vector<64x8xf32>
    %cst_47 = arith.constant dense<0.000000e+00> : vector<64x128xf32>
    %204 = tpu.matmul %203, %6, %cst_47 {dimension_numbers = #tpu.dot_dimension_numbers<[1], [0], [0], [1], [0, 0, 1, 1], [], []>} : vector<64x8xf32>, vector<8x128xf32>, vector<64x128xf32> -> vector<64x128xf32>
    %205 = vector.broadcast %186 : vector<1x128xf32> to vector<64x128xf32>
    %206 = arith.addf %204, %205 : vector<64x128xf32>
    %207 = math.tanh %206 : vector<64x128xf32>
    %208 = arith.mulf %207, %207 : vector<64x128xf32>
    %cst_48 = arith.constant 1.000000e+00 : f32
    %209 = vector.broadcast %cst_48 : f32 to vector<64x128xf32>
    %210 = arith.subf %209, %208 : vector<64x128xf32>
    %211 = tpu.concatenate %207, %210 in 0 : vector<64x128xf32>, vector<64x128xf32> -> vector<128x128xf32>
    %cst_49 = arith.constant dense<0.000000e+00> : vector<128x9xf32>
    %212 = tpu.matmul %211, %8, %cst_49 {dimension_numbers = #tpu.dot_dimension_numbers<[1], [0], [0], [1], [0, 0, 1, 1], [], []>} : vector<128x128xf32>, vector<128x9xf32>, vector<128x9xf32> -> vector<128x9xf32>
    %213 = vector.extract_strided_slice %212 {offsets = [0, 0], sizes = [64, 8], strides = [1, 1]} : vector<128x9xf32> to vector<64x8xf32>
    %214 = vector.extract_strided_slice %212 {offsets = [64, 8], sizes = [64, 1], strides = [1, 1]} : vector<128x9xf32> to vector<64x1xf32>
    %215 = vector.broadcast %4 : f32 to vector<64x8xf32>
    %216 = arith.mulf %215, %213 : vector<64x8xf32>
    %217 = arith.addf %168, %216 : vector<64x8xf32>
    %cst_50 = arith.constant dense<0.000000e+00> : vector<64x128xf32>
    %218 = tpu.matmul %217, %6, %cst_50 {dimension_numbers = #tpu.dot_dimension_numbers<[1], [0], [0], [1], [0, 0, 1, 1], [], []>} : vector<64x8xf32>, vector<8x128xf32>, vector<64x128xf32> -> vector<64x128xf32>
    %219 = vector.broadcast %186 : vector<1x128xf32> to vector<64x128xf32>
    %220 = arith.addf %218, %219 : vector<64x128xf32>
    %221 = math.tanh %220 : vector<64x128xf32>
    %222 = arith.mulf %221, %221 : vector<64x128xf32>
    %cst_51 = arith.constant 1.000000e+00 : f32
    %223 = vector.broadcast %cst_51 : f32 to vector<64x128xf32>
    %224 = arith.subf %223, %222 : vector<64x128xf32>
    %225 = tpu.concatenate %221, %224 in 0 : vector<64x128xf32>, vector<64x128xf32> -> vector<128x128xf32>
    %cst_52 = arith.constant dense<0.000000e+00> : vector<128x9xf32>
    %226 = tpu.matmul %225, %8, %cst_52 {dimension_numbers = #tpu.dot_dimension_numbers<[1], [0], [0], [1], [0, 0, 1, 1], [], []>} : vector<128x128xf32>, vector<128x9xf32>, vector<128x9xf32> -> vector<128x9xf32>
    %227 = vector.extract_strided_slice %226 {offsets = [0, 0], sizes = [64, 8], strides = [1, 1]} : vector<128x9xf32> to vector<64x8xf32>
    %228 = vector.extract_strided_slice %226 {offsets = [64, 8], sizes = [64, 1], strides = [1, 1]} : vector<128x9xf32> to vector<64x1xf32>
    %229 = vector.broadcast %3 : f32 to vector<64x8xf32>
    %230 = arith.mulf %229, %227 : vector<64x8xf32>
    %231 = arith.addf %168, %230 : vector<64x8xf32>
    %cst_53 = arith.constant dense<0.000000e+00> : vector<64x128xf32>
    %232 = tpu.matmul %231, %6, %cst_53 {dimension_numbers = #tpu.dot_dimension_numbers<[1], [0], [0], [1], [0, 0, 1, 1], [], []>} : vector<64x8xf32>, vector<8x128xf32>, vector<64x128xf32> -> vector<64x128xf32>
    %233 = vector.broadcast %189 : vector<1x128xf32> to vector<64x128xf32>
    %234 = arith.addf %232, %233 : vector<64x128xf32>
    %235 = math.tanh %234 : vector<64x128xf32>
    %236 = arith.mulf %235, %235 : vector<64x128xf32>
    %cst_54 = arith.constant 1.000000e+00 : f32
    %237 = vector.broadcast %cst_54 : f32 to vector<64x128xf32>
    %238 = arith.subf %237, %236 : vector<64x128xf32>
    %239 = tpu.concatenate %235, %238 in 0 : vector<64x128xf32>, vector<64x128xf32> -> vector<128x128xf32>
    %cst_55 = arith.constant dense<0.000000e+00> : vector<128x9xf32>
    %240 = tpu.matmul %239, %8, %cst_55 {dimension_numbers = #tpu.dot_dimension_numbers<[1], [0], [0], [1], [0, 0, 1, 1], [], []>} : vector<128x128xf32>, vector<128x9xf32>, vector<128x9xf32> -> vector<128x9xf32>
    %241 = vector.extract_strided_slice %240 {offsets = [0, 0], sizes = [64, 8], strides = [1, 1]} : vector<128x9xf32> to vector<64x8xf32>
    %242 = vector.extract_strided_slice %240 {offsets = [64, 8], sizes = [64, 1], strides = [1, 1]} : vector<128x9xf32> to vector<64x1xf32>
    %cst_56 = arith.constant 2.000000e+00 : f32
    %243 = vector.broadcast %cst_56 : f32 to vector<64x8xf32>
    %244 = arith.mulf %243, %213 : vector<64x8xf32>
    %245 = arith.addf %199, %244 : vector<64x8xf32>
    %cst_57 = arith.constant 2.000000e+00 : f32
    %246 = vector.broadcast %cst_57 : f32 to vector<64x8xf32>
    %247 = arith.mulf %246, %227 : vector<64x8xf32>
    %248 = arith.addf %245, %247 : vector<64x8xf32>
    %249 = arith.addf %248, %241 : vector<64x8xf32>
    %250 = vector.broadcast %5 : f32 to vector<64x8xf32>
    %251 = arith.mulf %250, %249 : vector<64x8xf32>
    %252 = arith.addf %168, %251 : vector<64x8xf32>
    %cst_58 = arith.constant 2.000000e+00 : f32
    %253 = vector.broadcast %cst_58 : f32 to vector<64x1xf32>
    %254 = arith.mulf %253, %214 : vector<64x1xf32>
    %255 = arith.addf %200, %254 : vector<64x1xf32>
    %cst_59 = arith.constant 2.000000e+00 : f32
    %256 = vector.broadcast %cst_59 : f32 to vector<64x1xf32>
    %257 = arith.mulf %256, %228 : vector<64x1xf32>
    %258 = arith.addf %255, %257 : vector<64x1xf32>
    %259 = arith.addf %258, %242 : vector<64x1xf32>
    %260 = vector.broadcast %5 : f32 to vector<64x1xf32>
    %261 = arith.mulf %260, %259 : vector<64x1xf32>
    %262 = arith.addf %178, %261 : vector<64x1xf32>
    %c3_i32 = arith.constant 3 : i32
    %263 = arith.sitofp %c3_i32 : i32 to f32
    %264 = arith.mulf %3, %263 : f32
    %265 = arith.addf %0, %264 : f32
    %266 = vector.broadcast %265 : f32 to vector<1x128xf32>
    %267 = arith.addf %7, %266 : vector<1x128xf32>
    %268 = arith.addf %265, %4 : f32
    %269 = vector.broadcast %268 : f32 to vector<1x128xf32>
    %270 = arith.addf %7, %269 : vector<1x128xf32>
    %271 = arith.addf %265, %3 : f32
    %272 = vector.broadcast %271 : f32 to vector<1x128xf32>
    %273 = arith.addf %7, %272 : vector<1x128xf32>
    %cst_60 = arith.constant dense<0.000000e+00> : vector<64x128xf32>
    %274 = tpu.matmul %252, %6, %cst_60 {dimension_numbers = #tpu.dot_dimension_numbers<[1], [0], [0], [1], [0, 0, 1, 1], [], []>} : vector<64x8xf32>, vector<8x128xf32>, vector<64x128xf32> -> vector<64x128xf32>
    %275 = vector.broadcast %267 : vector<1x128xf32> to vector<64x128xf32>
    %276 = arith.addf %274, %275 : vector<64x128xf32>
    %277 = math.tanh %276 : vector<64x128xf32>
    %278 = arith.mulf %277, %277 : vector<64x128xf32>
    %cst_61 = arith.constant 1.000000e+00 : f32
    %279 = vector.broadcast %cst_61 : f32 to vector<64x128xf32>
    %280 = arith.subf %279, %278 : vector<64x128xf32>
    %281 = tpu.concatenate %277, %280 in 0 : vector<64x128xf32>, vector<64x128xf32> -> vector<128x128xf32>
    %cst_62 = arith.constant dense<0.000000e+00> : vector<128x9xf32>
    %282 = tpu.matmul %281, %8, %cst_62 {dimension_numbers = #tpu.dot_dimension_numbers<[1], [0], [0], [1], [0, 0, 1, 1], [], []>} : vector<128x128xf32>, vector<128x9xf32>, vector<128x9xf32> -> vector<128x9xf32>
    %283 = vector.extract_strided_slice %282 {offsets = [0, 0], sizes = [64, 8], strides = [1, 1]} : vector<128x9xf32> to vector<64x8xf32>
    %284 = vector.extract_strided_slice %282 {offsets = [64, 8], sizes = [64, 1], strides = [1, 1]} : vector<128x9xf32> to vector<64x1xf32>
    %285 = vector.broadcast %4 : f32 to vector<64x8xf32>
    %286 = arith.mulf %285, %283 : vector<64x8xf32>
    %287 = arith.addf %252, %286 : vector<64x8xf32>
    %cst_63 = arith.constant dense<0.000000e+00> : vector<64x128xf32>
    %288 = tpu.matmul %287, %6, %cst_63 {dimension_numbers = #tpu.dot_dimension_numbers<[1], [0], [0], [1], [0, 0, 1, 1], [], []>} : vector<64x8xf32>, vector<8x128xf32>, vector<64x128xf32> -> vector<64x128xf32>
    %289 = vector.broadcast %270 : vector<1x128xf32> to vector<64x128xf32>
    %290 = arith.addf %288, %289 : vector<64x128xf32>
    %291 = math.tanh %290 : vector<64x128xf32>
    %292 = arith.mulf %291, %291 : vector<64x128xf32>
    %cst_64 = arith.constant 1.000000e+00 : f32
    %293 = vector.broadcast %cst_64 : f32 to vector<64x128xf32>
    %294 = arith.subf %293, %292 : vector<64x128xf32>
    %295 = tpu.concatenate %291, %294 in 0 : vector<64x128xf32>, vector<64x128xf32> -> vector<128x128xf32>
    %cst_65 = arith.constant dense<0.000000e+00> : vector<128x9xf32>
    %296 = tpu.matmul %295, %8, %cst_65 {dimension_numbers = #tpu.dot_dimension_numbers<[1], [0], [0], [1], [0, 0, 1, 1], [], []>} : vector<128x128xf32>, vector<128x9xf32>, vector<128x9xf32> -> vector<128x9xf32>
    %297 = vector.extract_strided_slice %296 {offsets = [0, 0], sizes = [64, 8], strides = [1, 1]} : vector<128x9xf32> to vector<64x8xf32>
    %298 = vector.extract_strided_slice %296 {offsets = [64, 8], sizes = [64, 1], strides = [1, 1]} : vector<128x9xf32> to vector<64x1xf32>
    %299 = vector.broadcast %4 : f32 to vector<64x8xf32>
    %300 = arith.mulf %299, %297 : vector<64x8xf32>
    %301 = arith.addf %252, %300 : vector<64x8xf32>
    %cst_66 = arith.constant dense<0.000000e+00> : vector<64x128xf32>
    %302 = tpu.matmul %301, %6, %cst_66 {dimension_numbers = #tpu.dot_dimension_numbers<[1], [0], [0], [1], [0, 0, 1, 1], [], []>} : vector<64x8xf32>, vector<8x128xf32>, vector<64x128xf32> -> vector<64x128xf32>
    %303 = vector.broadcast %270 : vector<1x128xf32> to vector<64x128xf32>
    %304 = arith.addf %302, %303 : vector<64x128xf32>
    %305 = math.tanh %304 : vector<64x128xf32>
    %306 = arith.mulf %305, %305 : vector<64x128xf32>
    %cst_67 = arith.constant 1.000000e+00 : f32
    %307 = vector.broadcast %cst_67 : f32 to vector<64x128xf32>
    %308 = arith.subf %307, %306 : vector<64x128xf32>
    %309 = tpu.concatenate %305, %308 in 0 : vector<64x128xf32>, vector<64x128xf32> -> vector<128x128xf32>
    %cst_68 = arith.constant dense<0.000000e+00> : vector<128x9xf32>
    %310 = tpu.matmul %309, %8, %cst_68 {dimension_numbers = #tpu.dot_dimension_numbers<[1], [0], [0], [1], [0, 0, 1, 1], [], []>} : vector<128x128xf32>, vector<128x9xf32>, vector<128x9xf32> -> vector<128x9xf32>
    %311 = vector.extract_strided_slice %310 {offsets = [0, 0], sizes = [64, 8], strides = [1, 1]} : vector<128x9xf32> to vector<64x8xf32>
    %312 = vector.extract_strided_slice %310 {offsets = [64, 8], sizes = [64, 1], strides = [1, 1]} : vector<128x9xf32> to vector<64x1xf32>
    %313 = vector.broadcast %3 : f32 to vector<64x8xf32>
    %314 = arith.mulf %313, %311 : vector<64x8xf32>
    %315 = arith.addf %252, %314 : vector<64x8xf32>
    %cst_69 = arith.constant dense<0.000000e+00> : vector<64x128xf32>
    %316 = tpu.matmul %315, %6, %cst_69 {dimension_numbers = #tpu.dot_dimension_numbers<[1], [0], [0], [1], [0, 0, 1, 1], [], []>} : vector<64x8xf32>, vector<8x128xf32>, vector<64x128xf32> -> vector<64x128xf32>
    %317 = vector.broadcast %273 : vector<1x128xf32> to vector<64x128xf32>
    %318 = arith.addf %316, %317 : vector<64x128xf32>
    %319 = math.tanh %318 : vector<64x128xf32>
    %320 = arith.mulf %319, %319 : vector<64x128xf32>
    %cst_70 = arith.constant 1.000000e+00 : f32
    %321 = vector.broadcast %cst_70 : f32 to vector<64x128xf32>
    %322 = arith.subf %321, %320 : vector<64x128xf32>
    %323 = tpu.concatenate %319, %322 in 0 : vector<64x128xf32>, vector<64x128xf32> -> vector<128x128xf32>
    %cst_71 = arith.constant dense<0.000000e+00> : vector<128x9xf32>
    %324 = tpu.matmul %323, %8, %cst_71 {dimension_numbers = #tpu.dot_dimension_numbers<[1], [0], [0], [1], [0, 0, 1, 1], [], []>} : vector<128x128xf32>, vector<128x9xf32>, vector<128x9xf32> -> vector<128x9xf32>
    %325 = vector.extract_strided_slice %324 {offsets = [0, 0], sizes = [64, 8], strides = [1, 1]} : vector<128x9xf32> to vector<64x8xf32>
    %326 = vector.extract_strided_slice %324 {offsets = [64, 8], sizes = [64, 1], strides = [1, 1]} : vector<128x9xf32> to vector<64x1xf32>
    %cst_72 = arith.constant 2.000000e+00 : f32
    %327 = vector.broadcast %cst_72 : f32 to vector<64x8xf32>
    %328 = arith.mulf %327, %297 : vector<64x8xf32>
    %329 = arith.addf %283, %328 : vector<64x8xf32>
    %cst_73 = arith.constant 2.000000e+00 : f32
    %330 = vector.broadcast %cst_73 : f32 to vector<64x8xf32>
    %331 = arith.mulf %330, %311 : vector<64x8xf32>
    %332 = arith.addf %329, %331 : vector<64x8xf32>
    %333 = arith.addf %332, %325 : vector<64x8xf32>
    %334 = vector.broadcast %5 : f32 to vector<64x8xf32>
    %335 = arith.mulf %334, %333 : vector<64x8xf32>
    %336 = arith.addf %252, %335 : vector<64x8xf32>
    %cst_74 = arith.constant 2.000000e+00 : f32
    %337 = vector.broadcast %cst_74 : f32 to vector<64x1xf32>
    %338 = arith.mulf %337, %298 : vector<64x1xf32>
    %339 = arith.addf %284, %338 : vector<64x1xf32>
    %cst_75 = arith.constant 2.000000e+00 : f32
    %340 = vector.broadcast %cst_75 : f32 to vector<64x1xf32>
    %341 = arith.mulf %340, %312 : vector<64x1xf32>
    %342 = arith.addf %339, %341 : vector<64x1xf32>
    %343 = arith.addf %342, %326 : vector<64x1xf32>
    %344 = vector.broadcast %5 : f32 to vector<64x1xf32>
    %345 = arith.mulf %344, %343 : vector<64x1xf32>
    %346 = arith.addf %262, %345 : vector<64x1xf32>
    %c4_i32 = arith.constant 4 : i32
    %347 = arith.sitofp %c4_i32 : i32 to f32
    %348 = arith.mulf %3, %347 : f32
    %349 = arith.addf %0, %348 : f32
    %350 = vector.broadcast %349 : f32 to vector<1x128xf32>
    %351 = arith.addf %7, %350 : vector<1x128xf32>
    %352 = arith.addf %349, %4 : f32
    %353 = vector.broadcast %352 : f32 to vector<1x128xf32>
    %354 = arith.addf %7, %353 : vector<1x128xf32>
    %355 = arith.addf %349, %3 : f32
    %356 = vector.broadcast %355 : f32 to vector<1x128xf32>
    %357 = arith.addf %7, %356 : vector<1x128xf32>
    %cst_76 = arith.constant dense<0.000000e+00> : vector<64x128xf32>
    %358 = tpu.matmul %336, %6, %cst_76 {dimension_numbers = #tpu.dot_dimension_numbers<[1], [0], [0], [1], [0, 0, 1, 1], [], []>} : vector<64x8xf32>, vector<8x128xf32>, vector<64x128xf32> -> vector<64x128xf32>
    %359 = vector.broadcast %351 : vector<1x128xf32> to vector<64x128xf32>
    %360 = arith.addf %358, %359 : vector<64x128xf32>
    %361 = math.tanh %360 : vector<64x128xf32>
    %362 = arith.mulf %361, %361 : vector<64x128xf32>
    %cst_77 = arith.constant 1.000000e+00 : f32
    %363 = vector.broadcast %cst_77 : f32 to vector<64x128xf32>
    %364 = arith.subf %363, %362 : vector<64x128xf32>
    %365 = tpu.concatenate %361, %364 in 0 : vector<64x128xf32>, vector<64x128xf32> -> vector<128x128xf32>
    %cst_78 = arith.constant dense<0.000000e+00> : vector<128x9xf32>
    %366 = tpu.matmul %365, %8, %cst_78 {dimension_numbers = #tpu.dot_dimension_numbers<[1], [0], [0], [1], [0, 0, 1, 1], [], []>} : vector<128x128xf32>, vector<128x9xf32>, vector<128x9xf32> -> vector<128x9xf32>
    %367 = vector.extract_strided_slice %366 {offsets = [0, 0], sizes = [64, 8], strides = [1, 1]} : vector<128x9xf32> to vector<64x8xf32>
    %368 = vector.extract_strided_slice %366 {offsets = [64, 8], sizes = [64, 1], strides = [1, 1]} : vector<128x9xf32> to vector<64x1xf32>
    %369 = vector.broadcast %4 : f32 to vector<64x8xf32>
    %370 = arith.mulf %369, %367 : vector<64x8xf32>
    %371 = arith.addf %336, %370 : vector<64x8xf32>
    %cst_79 = arith.constant dense<0.000000e+00> : vector<64x128xf32>
    %372 = tpu.matmul %371, %6, %cst_79 {dimension_numbers = #tpu.dot_dimension_numbers<[1], [0], [0], [1], [0, 0, 1, 1], [], []>} : vector<64x8xf32>, vector<8x128xf32>, vector<64x128xf32> -> vector<64x128xf32>
    %373 = vector.broadcast %354 : vector<1x128xf32> to vector<64x128xf32>
    %374 = arith.addf %372, %373 : vector<64x128xf32>
    %375 = math.tanh %374 : vector<64x128xf32>
    %376 = arith.mulf %375, %375 : vector<64x128xf32>
    %cst_80 = arith.constant 1.000000e+00 : f32
    %377 = vector.broadcast %cst_80 : f32 to vector<64x128xf32>
    %378 = arith.subf %377, %376 : vector<64x128xf32>
    %379 = tpu.concatenate %375, %378 in 0 : vector<64x128xf32>, vector<64x128xf32> -> vector<128x128xf32>
    %cst_81 = arith.constant dense<0.000000e+00> : vector<128x9xf32>
    %380 = tpu.matmul %379, %8, %cst_81 {dimension_numbers = #tpu.dot_dimension_numbers<[1], [0], [0], [1], [0, 0, 1, 1], [], []>} : vector<128x128xf32>, vector<128x9xf32>, vector<128x9xf32> -> vector<128x9xf32>
    %381 = vector.extract_strided_slice %380 {offsets = [0, 0], sizes = [64, 8], strides = [1, 1]} : vector<128x9xf32> to vector<64x8xf32>
    %382 = vector.extract_strided_slice %380 {offsets = [64, 8], sizes = [64, 1], strides = [1, 1]} : vector<128x9xf32> to vector<64x1xf32>
    %383 = vector.broadcast %4 : f32 to vector<64x8xf32>
    %384 = arith.mulf %383, %381 : vector<64x8xf32>
    %385 = arith.addf %336, %384 : vector<64x8xf32>
    %cst_82 = arith.constant dense<0.000000e+00> : vector<64x128xf32>
    %386 = tpu.matmul %385, %6, %cst_82 {dimension_numbers = #tpu.dot_dimension_numbers<[1], [0], [0], [1], [0, 0, 1, 1], [], []>} : vector<64x8xf32>, vector<8x128xf32>, vector<64x128xf32> -> vector<64x128xf32>
    %387 = vector.broadcast %354 : vector<1x128xf32> to vector<64x128xf32>
    %388 = arith.addf %386, %387 : vector<64x128xf32>
    %389 = math.tanh %388 : vector<64x128xf32>
    %390 = arith.mulf %389, %389 : vector<64x128xf32>
    %cst_83 = arith.constant 1.000000e+00 : f32
    %391 = vector.broadcast %cst_83 : f32 to vector<64x128xf32>
    %392 = arith.subf %391, %390 : vector<64x128xf32>
    %393 = tpu.concatenate %389, %392 in 0 : vector<64x128xf32>, vector<64x128xf32> -> vector<128x128xf32>
    %cst_84 = arith.constant dense<0.000000e+00> : vector<128x9xf32>
    %394 = tpu.matmul %393, %8, %cst_84 {dimension_numbers = #tpu.dot_dimension_numbers<[1], [0], [0], [1], [0, 0, 1, 1], [], []>} : vector<128x128xf32>, vector<128x9xf32>, vector<128x9xf32> -> vector<128x9xf32>
    %395 = vector.extract_strided_slice %394 {offsets = [0, 0], sizes = [64, 8], strides = [1, 1]} : vector<128x9xf32> to vector<64x8xf32>
    %396 = vector.extract_strided_slice %394 {offsets = [64, 8], sizes = [64, 1], strides = [1, 1]} : vector<128x9xf32> to vector<64x1xf32>
    %397 = vector.broadcast %3 : f32 to vector<64x8xf32>
    %398 = arith.mulf %397, %395 : vector<64x8xf32>
    %399 = arith.addf %336, %398 : vector<64x8xf32>
    %cst_85 = arith.constant dense<0.000000e+00> : vector<64x128xf32>
    %400 = tpu.matmul %399, %6, %cst_85 {dimension_numbers = #tpu.dot_dimension_numbers<[1], [0], [0], [1], [0, 0, 1, 1], [], []>} : vector<64x8xf32>, vector<8x128xf32>, vector<64x128xf32> -> vector<64x128xf32>
    %401 = vector.broadcast %357 : vector<1x128xf32> to vector<64x128xf32>
    %402 = arith.addf %400, %401 : vector<64x128xf32>
    %403 = math.tanh %402 : vector<64x128xf32>
    %404 = arith.mulf %403, %403 : vector<64x128xf32>
    %cst_86 = arith.constant 1.000000e+00 : f32
    %405 = vector.broadcast %cst_86 : f32 to vector<64x128xf32>
    %406 = arith.subf %405, %404 : vector<64x128xf32>
    %407 = tpu.concatenate %403, %406 in 0 : vector<64x128xf32>, vector<64x128xf32> -> vector<128x128xf32>
    %cst_87 = arith.constant dense<0.000000e+00> : vector<128x9xf32>
    %408 = tpu.matmul %407, %8, %cst_87 {dimension_numbers = #tpu.dot_dimension_numbers<[1], [0], [0], [1], [0, 0, 1, 1], [], []>} : vector<128x128xf32>, vector<128x9xf32>, vector<128x9xf32> -> vector<128x9xf32>
    %409 = vector.extract_strided_slice %408 {offsets = [0, 0], sizes = [64, 8], strides = [1, 1]} : vector<128x9xf32> to vector<64x8xf32>
    %410 = vector.extract_strided_slice %408 {offsets = [64, 8], sizes = [64, 1], strides = [1, 1]} : vector<128x9xf32> to vector<64x1xf32>
    %cst_88 = arith.constant 2.000000e+00 : f32
    %411 = vector.broadcast %cst_88 : f32 to vector<64x8xf32>
    %412 = arith.mulf %411, %381 : vector<64x8xf32>
    %413 = arith.addf %367, %412 : vector<64x8xf32>
    %cst_89 = arith.constant 2.000000e+00 : f32
    %414 = vector.broadcast %cst_89 : f32 to vector<64x8xf32>
    %415 = arith.mulf %414, %395 : vector<64x8xf32>
    %416 = arith.addf %413, %415 : vector<64x8xf32>
    %417 = arith.addf %416, %409 : vector<64x8xf32>
    %418 = vector.broadcast %5 : f32 to vector<64x8xf32>
    %419 = arith.mulf %418, %417 : vector<64x8xf32>
    %420 = arith.addf %336, %419 : vector<64x8xf32>
    %cst_90 = arith.constant 2.000000e+00 : f32
    %421 = vector.broadcast %cst_90 : f32 to vector<64x1xf32>
    %422 = arith.mulf %421, %382 : vector<64x1xf32>
    %423 = arith.addf %368, %422 : vector<64x1xf32>
    %cst_91 = arith.constant 2.000000e+00 : f32
    %424 = vector.broadcast %cst_91 : f32 to vector<64x1xf32>
    %425 = arith.mulf %424, %396 : vector<64x1xf32>
    %426 = arith.addf %423, %425 : vector<64x1xf32>
    %427 = arith.addf %426, %410 : vector<64x1xf32>
    %428 = vector.broadcast %5 : f32 to vector<64x1xf32>
    %429 = arith.mulf %428, %427 : vector<64x1xf32>
    %430 = arith.addf %346, %429 : vector<64x1xf32>
    %c5_i32 = arith.constant 5 : i32
    %431 = arith.sitofp %c5_i32 : i32 to f32
    %432 = arith.mulf %3, %431 : f32
    %433 = arith.addf %0, %432 : f32
    %434 = vector.broadcast %433 : f32 to vector<1x128xf32>
    %435 = arith.addf %7, %434 : vector<1x128xf32>
    %436 = arith.addf %433, %4 : f32
    %437 = vector.broadcast %436 : f32 to vector<1x128xf32>
    %438 = arith.addf %7, %437 : vector<1x128xf32>
    %439 = arith.addf %433, %3 : f32
    %440 = vector.broadcast %439 : f32 to vector<1x128xf32>
    %441 = arith.addf %7, %440 : vector<1x128xf32>
    %cst_92 = arith.constant dense<0.000000e+00> : vector<64x128xf32>
    %442 = tpu.matmul %420, %6, %cst_92 {dimension_numbers = #tpu.dot_dimension_numbers<[1], [0], [0], [1], [0, 0, 1, 1], [], []>} : vector<64x8xf32>, vector<8x128xf32>, vector<64x128xf32> -> vector<64x128xf32>
    %443 = vector.broadcast %435 : vector<1x128xf32> to vector<64x128xf32>
    %444 = arith.addf %442, %443 : vector<64x128xf32>
    %445 = math.tanh %444 : vector<64x128xf32>
    %446 = arith.mulf %445, %445 : vector<64x128xf32>
    %cst_93 = arith.constant 1.000000e+00 : f32
    %447 = vector.broadcast %cst_93 : f32 to vector<64x128xf32>
    %448 = arith.subf %447, %446 : vector<64x128xf32>
    %449 = tpu.concatenate %445, %448 in 0 : vector<64x128xf32>, vector<64x128xf32> -> vector<128x128xf32>
    %cst_94 = arith.constant dense<0.000000e+00> : vector<128x9xf32>
    %450 = tpu.matmul %449, %8, %cst_94 {dimension_numbers = #tpu.dot_dimension_numbers<[1], [0], [0], [1], [0, 0, 1, 1], [], []>} : vector<128x128xf32>, vector<128x9xf32>, vector<128x9xf32> -> vector<128x9xf32>
    %451 = vector.extract_strided_slice %450 {offsets = [0, 0], sizes = [64, 8], strides = [1, 1]} : vector<128x9xf32> to vector<64x8xf32>
    %452 = vector.extract_strided_slice %450 {offsets = [64, 8], sizes = [64, 1], strides = [1, 1]} : vector<128x9xf32> to vector<64x1xf32>
    %453 = vector.broadcast %4 : f32 to vector<64x8xf32>
    %454 = arith.mulf %453, %451 : vector<64x8xf32>
    %455 = arith.addf %420, %454 : vector<64x8xf32>
    %cst_95 = arith.constant dense<0.000000e+00> : vector<64x128xf32>
    %456 = tpu.matmul %455, %6, %cst_95 {dimension_numbers = #tpu.dot_dimension_numbers<[1], [0], [0], [1], [0, 0, 1, 1], [], []>} : vector<64x8xf32>, vector<8x128xf32>, vector<64x128xf32> -> vector<64x128xf32>
    %457 = vector.broadcast %438 : vector<1x128xf32> to vector<64x128xf32>
    %458 = arith.addf %456, %457 : vector<64x128xf32>
    %459 = math.tanh %458 : vector<64x128xf32>
    %460 = arith.mulf %459, %459 : vector<64x128xf32>
    %cst_96 = arith.constant 1.000000e+00 : f32
    %461 = vector.broadcast %cst_96 : f32 to vector<64x128xf32>
    %462 = arith.subf %461, %460 : vector<64x128xf32>
    %463 = tpu.concatenate %459, %462 in 0 : vector<64x128xf32>, vector<64x128xf32> -> vector<128x128xf32>
    %cst_97 = arith.constant dense<0.000000e+00> : vector<128x9xf32>
    %464 = tpu.matmul %463, %8, %cst_97 {dimension_numbers = #tpu.dot_dimension_numbers<[1], [0], [0], [1], [0, 0, 1, 1], [], []>} : vector<128x128xf32>, vector<128x9xf32>, vector<128x9xf32> -> vector<128x9xf32>
    %465 = vector.extract_strided_slice %464 {offsets = [0, 0], sizes = [64, 8], strides = [1, 1]} : vector<128x9xf32> to vector<64x8xf32>
    %466 = vector.extract_strided_slice %464 {offsets = [64, 8], sizes = [64, 1], strides = [1, 1]} : vector<128x9xf32> to vector<64x1xf32>
    %467 = vector.broadcast %4 : f32 to vector<64x8xf32>
    %468 = arith.mulf %467, %465 : vector<64x8xf32>
    %469 = arith.addf %420, %468 : vector<64x8xf32>
    %cst_98 = arith.constant dense<0.000000e+00> : vector<64x128xf32>
    %470 = tpu.matmul %469, %6, %cst_98 {dimension_numbers = #tpu.dot_dimension_numbers<[1], [0], [0], [1], [0, 0, 1, 1], [], []>} : vector<64x8xf32>, vector<8x128xf32>, vector<64x128xf32> -> vector<64x128xf32>
    %471 = vector.broadcast %438 : vector<1x128xf32> to vector<64x128xf32>
    %472 = arith.addf %470, %471 : vector<64x128xf32>
    %473 = math.tanh %472 : vector<64x128xf32>
    %474 = arith.mulf %473, %473 : vector<64x128xf32>
    %cst_99 = arith.constant 1.000000e+00 : f32
    %475 = vector.broadcast %cst_99 : f32 to vector<64x128xf32>
    %476 = arith.subf %475, %474 : vector<64x128xf32>
    %477 = tpu.concatenate %473, %476 in 0 : vector<64x128xf32>, vector<64x128xf32> -> vector<128x128xf32>
    %cst_100 = arith.constant dense<0.000000e+00> : vector<128x9xf32>
    %478 = tpu.matmul %477, %8, %cst_100 {dimension_numbers = #tpu.dot_dimension_numbers<[1], [0], [0], [1], [0, 0, 1, 1], [], []>} : vector<128x128xf32>, vector<128x9xf32>, vector<128x9xf32> -> vector<128x9xf32>
    %479 = vector.extract_strided_slice %478 {offsets = [0, 0], sizes = [64, 8], strides = [1, 1]} : vector<128x9xf32> to vector<64x8xf32>
    %480 = vector.extract_strided_slice %478 {offsets = [64, 8], sizes = [64, 1], strides = [1, 1]} : vector<128x9xf32> to vector<64x1xf32>
    %481 = vector.broadcast %3 : f32 to vector<64x8xf32>
    %482 = arith.mulf %481, %479 : vector<64x8xf32>
    %483 = arith.addf %420, %482 : vector<64x8xf32>
    %cst_101 = arith.constant dense<0.000000e+00> : vector<64x128xf32>
    %484 = tpu.matmul %483, %6, %cst_101 {dimension_numbers = #tpu.dot_dimension_numbers<[1], [0], [0], [1], [0, 0, 1, 1], [], []>} : vector<64x8xf32>, vector<8x128xf32>, vector<64x128xf32> -> vector<64x128xf32>
    %485 = vector.broadcast %441 : vector<1x128xf32> to vector<64x128xf32>
    %486 = arith.addf %484, %485 : vector<64x128xf32>
    %487 = math.tanh %486 : vector<64x128xf32>
    %488 = arith.mulf %487, %487 : vector<64x128xf32>
    %cst_102 = arith.constant 1.000000e+00 : f32
    %489 = vector.broadcast %cst_102 : f32 to vector<64x128xf32>
    %490 = arith.subf %489, %488 : vector<64x128xf32>
    %491 = tpu.concatenate %487, %490 in 0 : vector<64x128xf32>, vector<64x128xf32> -> vector<128x128xf32>
    %cst_103 = arith.constant dense<0.000000e+00> : vector<128x9xf32>
    %492 = tpu.matmul %491, %8, %cst_103 {dimension_numbers = #tpu.dot_dimension_numbers<[1], [0], [0], [1], [0, 0, 1, 1], [], []>} : vector<128x128xf32>, vector<128x9xf32>, vector<128x9xf32> -> vector<128x9xf32>
    %493 = vector.extract_strided_slice %492 {offsets = [0, 0], sizes = [64, 8], strides = [1, 1]} : vector<128x9xf32> to vector<64x8xf32>
    %494 = vector.extract_strided_slice %492 {offsets = [64, 8], sizes = [64, 1], strides = [1, 1]} : vector<128x9xf32> to vector<64x1xf32>
    %cst_104 = arith.constant 2.000000e+00 : f32
    %495 = vector.broadcast %cst_104 : f32 to vector<64x8xf32>
    %496 = arith.mulf %495, %465 : vector<64x8xf32>
    %497 = arith.addf %451, %496 : vector<64x8xf32>
    %cst_105 = arith.constant 2.000000e+00 : f32
    %498 = vector.broadcast %cst_105 : f32 to vector<64x8xf32>
    %499 = arith.mulf %498, %479 : vector<64x8xf32>
    %500 = arith.addf %497, %499 : vector<64x8xf32>
    %501 = arith.addf %500, %493 : vector<64x8xf32>
    %502 = vector.broadcast %5 : f32 to vector<64x8xf32>
    %503 = arith.mulf %502, %501 : vector<64x8xf32>
    %504 = arith.addf %420, %503 : vector<64x8xf32>
    %cst_106 = arith.constant 2.000000e+00 : f32
    %505 = vector.broadcast %cst_106 : f32 to vector<64x1xf32>
    %506 = arith.mulf %505, %466 : vector<64x1xf32>
    %507 = arith.addf %452, %506 : vector<64x1xf32>
    %cst_107 = arith.constant 2.000000e+00 : f32
    %508 = vector.broadcast %cst_107 : f32 to vector<64x1xf32>
    %509 = arith.mulf %508, %480 : vector<64x1xf32>
    %510 = arith.addf %507, %509 : vector<64x1xf32>
    %511 = arith.addf %510, %494 : vector<64x1xf32>
    %512 = vector.broadcast %5 : f32 to vector<64x1xf32>
    %513 = arith.mulf %512, %511 : vector<64x1xf32>
    %514 = arith.addf %430, %513 : vector<64x1xf32>
    %c6_i32 = arith.constant 6 : i32
    %515 = arith.sitofp %c6_i32 : i32 to f32
    %516 = arith.mulf %3, %515 : f32
    %517 = arith.addf %0, %516 : f32
    %518 = vector.broadcast %517 : f32 to vector<1x128xf32>
    %519 = arith.addf %7, %518 : vector<1x128xf32>
    %520 = arith.addf %517, %4 : f32
    %521 = vector.broadcast %520 : f32 to vector<1x128xf32>
    %522 = arith.addf %7, %521 : vector<1x128xf32>
    %523 = arith.addf %517, %3 : f32
    %524 = vector.broadcast %523 : f32 to vector<1x128xf32>
    %525 = arith.addf %7, %524 : vector<1x128xf32>
    %cst_108 = arith.constant dense<0.000000e+00> : vector<64x128xf32>
    %526 = tpu.matmul %504, %6, %cst_108 {dimension_numbers = #tpu.dot_dimension_numbers<[1], [0], [0], [1], [0, 0, 1, 1], [], []>} : vector<64x8xf32>, vector<8x128xf32>, vector<64x128xf32> -> vector<64x128xf32>
    %527 = vector.broadcast %519 : vector<1x128xf32> to vector<64x128xf32>
    %528 = arith.addf %526, %527 : vector<64x128xf32>
    %529 = math.tanh %528 : vector<64x128xf32>
    %530 = arith.mulf %529, %529 : vector<64x128xf32>
    %cst_109 = arith.constant 1.000000e+00 : f32
    %531 = vector.broadcast %cst_109 : f32 to vector<64x128xf32>
    %532 = arith.subf %531, %530 : vector<64x128xf32>
    %533 = tpu.concatenate %529, %532 in 0 : vector<64x128xf32>, vector<64x128xf32> -> vector<128x128xf32>
    %cst_110 = arith.constant dense<0.000000e+00> : vector<128x9xf32>
    %534 = tpu.matmul %533, %8, %cst_110 {dimension_numbers = #tpu.dot_dimension_numbers<[1], [0], [0], [1], [0, 0, 1, 1], [], []>} : vector<128x128xf32>, vector<128x9xf32>, vector<128x9xf32> -> vector<128x9xf32>
    %535 = vector.extract_strided_slice %534 {offsets = [0, 0], sizes = [64, 8], strides = [1, 1]} : vector<128x9xf32> to vector<64x8xf32>
    %536 = vector.extract_strided_slice %534 {offsets = [64, 8], sizes = [64, 1], strides = [1, 1]} : vector<128x9xf32> to vector<64x1xf32>
    %537 = vector.broadcast %4 : f32 to vector<64x8xf32>
    %538 = arith.mulf %537, %535 : vector<64x8xf32>
    %539 = arith.addf %504, %538 : vector<64x8xf32>
    %cst_111 = arith.constant dense<0.000000e+00> : vector<64x128xf32>
    %540 = tpu.matmul %539, %6, %cst_111 {dimension_numbers = #tpu.dot_dimension_numbers<[1], [0], [0], [1], [0, 0, 1, 1], [], []>} : vector<64x8xf32>, vector<8x128xf32>, vector<64x128xf32> -> vector<64x128xf32>
    %541 = vector.broadcast %522 : vector<1x128xf32> to vector<64x128xf32>
    %542 = arith.addf %540, %541 : vector<64x128xf32>
    %543 = math.tanh %542 : vector<64x128xf32>
    %544 = arith.mulf %543, %543 : vector<64x128xf32>
    %cst_112 = arith.constant 1.000000e+00 : f32
    %545 = vector.broadcast %cst_112 : f32 to vector<64x128xf32>
    %546 = arith.subf %545, %544 : vector<64x128xf32>
    %547 = tpu.concatenate %543, %546 in 0 : vector<64x128xf32>, vector<64x128xf32> -> vector<128x128xf32>
    %cst_113 = arith.constant dense<0.000000e+00> : vector<128x9xf32>
    %548 = tpu.matmul %547, %8, %cst_113 {dimension_numbers = #tpu.dot_dimension_numbers<[1], [0], [0], [1], [0, 0, 1, 1], [], []>} : vector<128x128xf32>, vector<128x9xf32>, vector<128x9xf32> -> vector<128x9xf32>
    %549 = vector.extract_strided_slice %548 {offsets = [0, 0], sizes = [64, 8], strides = [1, 1]} : vector<128x9xf32> to vector<64x8xf32>
    %550 = vector.extract_strided_slice %548 {offsets = [64, 8], sizes = [64, 1], strides = [1, 1]} : vector<128x9xf32> to vector<64x1xf32>
    %551 = vector.broadcast %4 : f32 to vector<64x8xf32>
    %552 = arith.mulf %551, %549 : vector<64x8xf32>
    %553 = arith.addf %504, %552 : vector<64x8xf32>
    %cst_114 = arith.constant dense<0.000000e+00> : vector<64x128xf32>
    %554 = tpu.matmul %553, %6, %cst_114 {dimension_numbers = #tpu.dot_dimension_numbers<[1], [0], [0], [1], [0, 0, 1, 1], [], []>} : vector<64x8xf32>, vector<8x128xf32>, vector<64x128xf32> -> vector<64x128xf32>
    %555 = vector.broadcast %522 : vector<1x128xf32> to vector<64x128xf32>
    %556 = arith.addf %554, %555 : vector<64x128xf32>
    %557 = math.tanh %556 : vector<64x128xf32>
    %558 = arith.mulf %557, %557 : vector<64x128xf32>
    %cst_115 = arith.constant 1.000000e+00 : f32
    %559 = vector.broadcast %cst_115 : f32 to vector<64x128xf32>
    %560 = arith.subf %559, %558 : vector<64x128xf32>
    %561 = tpu.concatenate %557, %560 in 0 : vector<64x128xf32>, vector<64x128xf32> -> vector<128x128xf32>
    %cst_116 = arith.constant dense<0.000000e+00> : vector<128x9xf32>
    %562 = tpu.matmul %561, %8, %cst_116 {dimension_numbers = #tpu.dot_dimension_numbers<[1], [0], [0], [1], [0, 0, 1, 1], [], []>} : vector<128x128xf32>, vector<128x9xf32>, vector<128x9xf32> -> vector<128x9xf32>
    %563 = vector.extract_strided_slice %562 {offsets = [0, 0], sizes = [64, 8], strides = [1, 1]} : vector<128x9xf32> to vector<64x8xf32>
    %564 = vector.extract_strided_slice %562 {offsets = [64, 8], sizes = [64, 1], strides = [1, 1]} : vector<128x9xf32> to vector<64x1xf32>
    %565 = vector.broadcast %3 : f32 to vector<64x8xf32>
    %566 = arith.mulf %565, %563 : vector<64x8xf32>
    %567 = arith.addf %504, %566 : vector<64x8xf32>
    %cst_117 = arith.constant dense<0.000000e+00> : vector<64x128xf32>
    %568 = tpu.matmul %567, %6, %cst_117 {dimension_numbers = #tpu.dot_dimension_numbers<[1], [0], [0], [1], [0, 0, 1, 1], [], []>} : vector<64x8xf32>, vector<8x128xf32>, vector<64x128xf32> -> vector<64x128xf32>
    %569 = vector.broadcast %525 : vector<1x128xf32> to vector<64x128xf32>
    %570 = arith.addf %568, %569 : vector<64x128xf32>
    %571 = math.tanh %570 : vector<64x128xf32>
    %572 = arith.mulf %571, %571 : vector<64x128xf32>
    %cst_118 = arith.constant 1.000000e+00 : f32
    %573 = vector.broadcast %cst_118 : f32 to vector<64x128xf32>
    %574 = arith.subf %573, %572 : vector<64x128xf32>
    %575 = tpu.concatenate %571, %574 in 0 : vector<64x128xf32>, vector<64x128xf32> -> vector<128x128xf32>
    %cst_119 = arith.constant dense<0.000000e+00> : vector<128x9xf32>
    %576 = tpu.matmul %575, %8, %cst_119 {dimension_numbers = #tpu.dot_dimension_numbers<[1], [0], [0], [1], [0, 0, 1, 1], [], []>} : vector<128x128xf32>, vector<128x9xf32>, vector<128x9xf32> -> vector<128x9xf32>
    %577 = vector.extract_strided_slice %576 {offsets = [0, 0], sizes = [64, 8], strides = [1, 1]} : vector<128x9xf32> to vector<64x8xf32>
    %578 = vector.extract_strided_slice %576 {offsets = [64, 8], sizes = [64, 1], strides = [1, 1]} : vector<128x9xf32> to vector<64x1xf32>
    %cst_120 = arith.constant 2.000000e+00 : f32
    %579 = vector.broadcast %cst_120 : f32 to vector<64x8xf32>
    %580 = arith.mulf %579, %549 : vector<64x8xf32>
    %581 = arith.addf %535, %580 : vector<64x8xf32>
    %cst_121 = arith.constant 2.000000e+00 : f32
    %582 = vector.broadcast %cst_121 : f32 to vector<64x8xf32>
    %583 = arith.mulf %582, %563 : vector<64x8xf32>
    %584 = arith.addf %581, %583 : vector<64x8xf32>
    %585 = arith.addf %584, %577 : vector<64x8xf32>
    %586 = vector.broadcast %5 : f32 to vector<64x8xf32>
    %587 = arith.mulf %586, %585 : vector<64x8xf32>
    %588 = arith.addf %504, %587 : vector<64x8xf32>
    %cst_122 = arith.constant 2.000000e+00 : f32
    %589 = vector.broadcast %cst_122 : f32 to vector<64x1xf32>
    %590 = arith.mulf %589, %550 : vector<64x1xf32>
    %591 = arith.addf %536, %590 : vector<64x1xf32>
    %cst_123 = arith.constant 2.000000e+00 : f32
    %592 = vector.broadcast %cst_123 : f32 to vector<64x1xf32>
    %593 = arith.mulf %592, %564 : vector<64x1xf32>
    %594 = arith.addf %591, %593 : vector<64x1xf32>
    %595 = arith.addf %594, %578 : vector<64x1xf32>
    %596 = vector.broadcast %5 : f32 to vector<64x1xf32>
    %597 = arith.mulf %596, %595 : vector<64x1xf32>
    %598 = arith.addf %514, %597 : vector<64x1xf32>
    %c7_i32 = arith.constant 7 : i32
    %599 = arith.sitofp %c7_i32 : i32 to f32
    %600 = arith.mulf %3, %599 : f32
    %601 = arith.addf %0, %600 : f32
    %602 = vector.broadcast %601 : f32 to vector<1x128xf32>
    %603 = arith.addf %7, %602 : vector<1x128xf32>
    %604 = arith.addf %601, %4 : f32
    %605 = vector.broadcast %604 : f32 to vector<1x128xf32>
    %606 = arith.addf %7, %605 : vector<1x128xf32>
    %607 = arith.addf %601, %3 : f32
    %608 = vector.broadcast %607 : f32 to vector<1x128xf32>
    %609 = arith.addf %7, %608 : vector<1x128xf32>
    %cst_124 = arith.constant dense<0.000000e+00> : vector<64x128xf32>
    %610 = tpu.matmul %588, %6, %cst_124 {dimension_numbers = #tpu.dot_dimension_numbers<[1], [0], [0], [1], [0, 0, 1, 1], [], []>} : vector<64x8xf32>, vector<8x128xf32>, vector<64x128xf32> -> vector<64x128xf32>
    %611 = vector.broadcast %603 : vector<1x128xf32> to vector<64x128xf32>
    %612 = arith.addf %610, %611 : vector<64x128xf32>
    %613 = math.tanh %612 : vector<64x128xf32>
    %614 = arith.mulf %613, %613 : vector<64x128xf32>
    %cst_125 = arith.constant 1.000000e+00 : f32
    %615 = vector.broadcast %cst_125 : f32 to vector<64x128xf32>
    %616 = arith.subf %615, %614 : vector<64x128xf32>
    %617 = tpu.concatenate %613, %616 in 0 : vector<64x128xf32>, vector<64x128xf32> -> vector<128x128xf32>
    %cst_126 = arith.constant dense<0.000000e+00> : vector<128x9xf32>
    %618 = tpu.matmul %617, %8, %cst_126 {dimension_numbers = #tpu.dot_dimension_numbers<[1], [0], [0], [1], [0, 0, 1, 1], [], []>} : vector<128x128xf32>, vector<128x9xf32>, vector<128x9xf32> -> vector<128x9xf32>
    %619 = vector.extract_strided_slice %618 {offsets = [0, 0], sizes = [64, 8], strides = [1, 1]} : vector<128x9xf32> to vector<64x8xf32>
    %620 = vector.extract_strided_slice %618 {offsets = [64, 8], sizes = [64, 1], strides = [1, 1]} : vector<128x9xf32> to vector<64x1xf32>
    %621 = vector.broadcast %4 : f32 to vector<64x8xf32>
    %622 = arith.mulf %621, %619 : vector<64x8xf32>
    %623 = arith.addf %588, %622 : vector<64x8xf32>
    %cst_127 = arith.constant dense<0.000000e+00> : vector<64x128xf32>
    %624 = tpu.matmul %623, %6, %cst_127 {dimension_numbers = #tpu.dot_dimension_numbers<[1], [0], [0], [1], [0, 0, 1, 1], [], []>} : vector<64x8xf32>, vector<8x128xf32>, vector<64x128xf32> -> vector<64x128xf32>
    %625 = vector.broadcast %606 : vector<1x128xf32> to vector<64x128xf32>
    %626 = arith.addf %624, %625 : vector<64x128xf32>
    %627 = math.tanh %626 : vector<64x128xf32>
    %628 = arith.mulf %627, %627 : vector<64x128xf32>
    %cst_128 = arith.constant 1.000000e+00 : f32
    %629 = vector.broadcast %cst_128 : f32 to vector<64x128xf32>
    %630 = arith.subf %629, %628 : vector<64x128xf32>
    %631 = tpu.concatenate %627, %630 in 0 : vector<64x128xf32>, vector<64x128xf32> -> vector<128x128xf32>
    %cst_129 = arith.constant dense<0.000000e+00> : vector<128x9xf32>
    %632 = tpu.matmul %631, %8, %cst_129 {dimension_numbers = #tpu.dot_dimension_numbers<[1], [0], [0], [1], [0, 0, 1, 1], [], []>} : vector<128x128xf32>, vector<128x9xf32>, vector<128x9xf32> -> vector<128x9xf32>
    %633 = vector.extract_strided_slice %632 {offsets = [0, 0], sizes = [64, 8], strides = [1, 1]} : vector<128x9xf32> to vector<64x8xf32>
    %634 = vector.extract_strided_slice %632 {offsets = [64, 8], sizes = [64, 1], strides = [1, 1]} : vector<128x9xf32> to vector<64x1xf32>
    %635 = vector.broadcast %4 : f32 to vector<64x8xf32>
    %636 = arith.mulf %635, %633 : vector<64x8xf32>
    %637 = arith.addf %588, %636 : vector<64x8xf32>
    %cst_130 = arith.constant dense<0.000000e+00> : vector<64x128xf32>
    %638 = tpu.matmul %637, %6, %cst_130 {dimension_numbers = #tpu.dot_dimension_numbers<[1], [0], [0], [1], [0, 0, 1, 1], [], []>} : vector<64x8xf32>, vector<8x128xf32>, vector<64x128xf32> -> vector<64x128xf32>
    %639 = vector.broadcast %606 : vector<1x128xf32> to vector<64x128xf32>
    %640 = arith.addf %638, %639 : vector<64x128xf32>
    %641 = math.tanh %640 : vector<64x128xf32>
    %642 = arith.mulf %641, %641 : vector<64x128xf32>
    %cst_131 = arith.constant 1.000000e+00 : f32
    %643 = vector.broadcast %cst_131 : f32 to vector<64x128xf32>
    %644 = arith.subf %643, %642 : vector<64x128xf32>
    %645 = tpu.concatenate %641, %644 in 0 : vector<64x128xf32>, vector<64x128xf32> -> vector<128x128xf32>
    %cst_132 = arith.constant dense<0.000000e+00> : vector<128x9xf32>
    %646 = tpu.matmul %645, %8, %cst_132 {dimension_numbers = #tpu.dot_dimension_numbers<[1], [0], [0], [1], [0, 0, 1, 1], [], []>} : vector<128x128xf32>, vector<128x9xf32>, vector<128x9xf32> -> vector<128x9xf32>
    %647 = vector.extract_strided_slice %646 {offsets = [0, 0], sizes = [64, 8], strides = [1, 1]} : vector<128x9xf32> to vector<64x8xf32>
    %648 = vector.extract_strided_slice %646 {offsets = [64, 8], sizes = [64, 1], strides = [1, 1]} : vector<128x9xf32> to vector<64x1xf32>
    %649 = vector.broadcast %3 : f32 to vector<64x8xf32>
    %650 = arith.mulf %649, %647 : vector<64x8xf32>
    %651 = arith.addf %588, %650 : vector<64x8xf32>
    %cst_133 = arith.constant dense<0.000000e+00> : vector<64x128xf32>
    %652 = tpu.matmul %651, %6, %cst_133 {dimension_numbers = #tpu.dot_dimension_numbers<[1], [0], [0], [1], [0, 0, 1, 1], [], []>} : vector<64x8xf32>, vector<8x128xf32>, vector<64x128xf32> -> vector<64x128xf32>
    %653 = vector.broadcast %609 : vector<1x128xf32> to vector<64x128xf32>
    %654 = arith.addf %652, %653 : vector<64x128xf32>
    %655 = math.tanh %654 : vector<64x128xf32>
    %656 = arith.mulf %655, %655 : vector<64x128xf32>
    %cst_134 = arith.constant 1.000000e+00 : f32
    %657 = vector.broadcast %cst_134 : f32 to vector<64x128xf32>
    %658 = arith.subf %657, %656 : vector<64x128xf32>
    %659 = tpu.concatenate %655, %658 in 0 : vector<64x128xf32>, vector<64x128xf32> -> vector<128x128xf32>
    %cst_135 = arith.constant dense<0.000000e+00> : vector<128x9xf32>
    %660 = tpu.matmul %659, %8, %cst_135 {dimension_numbers = #tpu.dot_dimension_numbers<[1], [0], [0], [1], [0, 0, 1, 1], [], []>} : vector<128x128xf32>, vector<128x9xf32>, vector<128x9xf32> -> vector<128x9xf32>
    %661 = vector.extract_strided_slice %660 {offsets = [0, 0], sizes = [64, 8], strides = [1, 1]} : vector<128x9xf32> to vector<64x8xf32>
    %662 = vector.extract_strided_slice %660 {offsets = [64, 8], sizes = [64, 1], strides = [1, 1]} : vector<128x9xf32> to vector<64x1xf32>
    %cst_136 = arith.constant 2.000000e+00 : f32
    %663 = vector.broadcast %cst_136 : f32 to vector<64x8xf32>
    %664 = arith.mulf %663, %633 : vector<64x8xf32>
    %665 = arith.addf %619, %664 : vector<64x8xf32>
    %cst_137 = arith.constant 2.000000e+00 : f32
    %666 = vector.broadcast %cst_137 : f32 to vector<64x8xf32>
    %667 = arith.mulf %666, %647 : vector<64x8xf32>
    %668 = arith.addf %665, %667 : vector<64x8xf32>
    %669 = arith.addf %668, %661 : vector<64x8xf32>
    %670 = vector.broadcast %5 : f32 to vector<64x8xf32>
    %671 = arith.mulf %670, %669 : vector<64x8xf32>
    %672 = arith.addf %588, %671 : vector<64x8xf32>
    %cst_138 = arith.constant 2.000000e+00 : f32
    %673 = vector.broadcast %cst_138 : f32 to vector<64x1xf32>
    %674 = arith.mulf %673, %634 : vector<64x1xf32>
    %675 = arith.addf %620, %674 : vector<64x1xf32>
    %cst_139 = arith.constant 2.000000e+00 : f32
    %676 = vector.broadcast %cst_139 : f32 to vector<64x1xf32>
    %677 = arith.mulf %676, %648 : vector<64x1xf32>
    %678 = arith.addf %675, %677 : vector<64x1xf32>
    %679 = arith.addf %678, %662 : vector<64x1xf32>
    %680 = vector.broadcast %5 : f32 to vector<64x1xf32>
    %681 = arith.mulf %680, %679 : vector<64x1xf32>
    %682 = arith.addf %598, %681 : vector<64x1xf32>
    %c8_i32 = arith.constant 8 : i32
    %c0_140 = arith.constant 0 : index
    %c0_141 = arith.constant 0 : index
    %683 = vector.load %arg7[%c0_140, %c0_141] : memref<64x8xf32, #tpu.memory_space<vmem>>, vector<64x8xf32>
    tpu.vector_store %arg7[%c0_140, %c0_141], %672 {strides = array<i32>} : memref<64x8xf32, #tpu.memory_space<vmem>>, vector<64x8xf32>,
    %c0_142 = arith.constant 0 : index
    %c0_143 = arith.constant 0 : index
    %684 = vector.load %arg8[%c0_142, %c0_143] : memref<64x1xf32, #tpu.memory_space<vmem>>, vector<64x1xf32>
    tpu.vector_store %arg8[%c0_142, %c0_143], %682 {strides = array<i32>} : memref<64x1xf32, #tpu.memory_space<vmem>>, vector<64x1xf32>,
    return
  }
  func.func @transform_0(%arg0: i32) -> i32 {
    %c0_i32 = arith.constant 0 : i32
    %c0_i32_0 = arith.constant 0 : i32
    return %c0_i32 : i32
  }
  func.func @transform_1(%arg0: i32) -> (i32, i32) {
    %c0_i32 = arith.constant 0 : i32
    %c0_i32_0 = arith.constant 0 : i32
    return %arg0, %c0_i32 : i32, i32
  }
  func.func @transform_2(%arg0: i32) -> (i32, i32) {
    %c0_i32 = arith.constant 0 : i32
    %c0_i32_0 = arith.constant 0 : i32
    return %arg0, %c0_i32 : i32, i32
  }
  func.func @transform_3(%arg0: i32) -> (i32, i32) {
    %c0_i32 = arith.constant 0 : i32
    %c0_i32_0 = arith.constant 0 : i32
    %c0_i32_1 = arith.constant 0 : i32
    return %c0_i32, %c0_i32_0 : i32, i32
  }
  func.func @transform_4(%arg0: i32) -> (i32, i32) {
    %c0_i32 = arith.constant 0 : i32
    %c0_i32_0 = arith.constant 0 : i32
    %c0_i32_1 = arith.constant 0 : i32
    return %c0_i32, %c0_i32_0 : i32, i32
  }
  func.func @transform_5(%arg0: i32) -> (i32, i32) {
    %c0_i32 = arith.constant 0 : i32
    %c0_i32_0 = arith.constant 0 : i32
    %c0_i32_1 = arith.constant 0 : i32
    return %c0_i32, %c0_i32_0 : i32, i32
  }
  func.func @transform_6(%arg0: i32) -> (i32, i32) {
    %c0_i32 = arith.constant 0 : i32
    %c0_i32_0 = arith.constant 0 : i32
    return %arg0, %c0_i32 : i32, i32
  }
  func.func @transform_7(%arg0: i32) -> (i32, i32) {
    %c0_i32 = arith.constant 0 : i32
    %c0_i32_0 = arith.constant 0 : i32
    return %arg0, %c0_i32 : i32, i32
  }
}

</mosaic_0001>

<llo_original>
// kernel: tpu_custom_call.1
$region0: #{tpu_custom_call.1}
  #allocation0 [shape = 'u32[]', space=smem, size = 0x4, offset = 0x4, fixed_abs, tag = 'smem constant byte address 0x4 - core index']
  #allocation1 [shape = 'u32[72,128]{1,0:T(1,128)}', space=vmem, size = 0x9000, scoped, tag = 'internal scratch']
  %s0 = inlined_call_operand.vmem [shape: f32[2], index: 0, kind: input, shape index: {}]
  %s1 = inlined_call_operand.vmem [shape: f32[64,8], index: 1, kind: input, shape index: {}]
  %s2 = inlined_call_operand.vmem [shape: f32[64,1], index: 2, kind: input, shape index: {}]
  %s3 = inlined_call_operand.vmem [shape: f32[8,128], index: 3, kind: input, shape index: {}]
  %s4 = inlined_call_operand.vmem [shape: f32[1,128], index: 4, kind: input, shape index: {}]
  %s5 = inlined_call_operand.vmem [shape: f32[128,9], index: 5, kind: input, shape index: {}]
  %s6 = inlined_call_operand.vmem [shape: f32[64,8], index: 6, kind: output, shape index: {0}]
  %s7 = inlined_call_operand.vmem [shape: f32[64,1], index: 7, kind: output, shape index: {1}]
  %8 = xla_tuple %s6, %s7
  %s9 = sld [smem:[#allocation0]]
  $region46: #{tpu_custom_call.1} parent=0
    _
  %s11 = ssub.s32 1, %s9
  %s12 = scalar_select 0, %s11, %s9
  $region1: #{tpu_custom_call.1} parent=0
    #allocation2 [shape = 'u8[512]{0}', space=smem, size = 0x200, scoped, tag = 'input window, operand 0, single buffered']
    #allocation3 [shape = 's32[1]{0}', space=sflag, size = 0x4, scoped, tag = 'scoped memory for tpu_custom_call.1']
    %13 = vsyncpa [#allocation3], 0
    // Predicated region
    $region2: #{tpu_custom_call.1} parent=1 // pred_check
      _
    $region3: #{tpu_custom_call.1} parent=1 // pred_check_branch
      %15 = sbr.rel (0) target = $region5
    $region4: #{tpu_custom_call.1} parent=1 // pred_region
      %17 = vsyncadd [#allocation3], 0
      %s19 = sshll.u32 %s0, 4
      %s20 = int_to_ptr.vmem [resolvable:$true] %s19
      %22 = dma.vmem_to_smem %s20, 16, [#allocation2], [#allocation3]
    $region5: #{tpu_custom_call.1} parent=1 // pred_fallthru
      _
    // Predicated region
    $region6: #{tpu_custom_call.1} parent=1 // pred_check
      _
    $region7: #{tpu_custom_call.1} parent=1 // pred_check_branch
      %24 = sbr.rel (0) target = $region9
    $region8: #{tpu_custom_call.1} parent=1 // pred_region
      _
    $region9: #{tpu_custom_call.1} parent=1 // pred_fallthru
      _
    // Predicated region
    $region10: #{tpu_custom_call.1} parent=1 // pred_check
      _
    $region11: #{tpu_custom_call.1} parent=1 // pred_check_branch
      %26 = sbr.rel (0) target = $region13
    $region12: #{tpu_custom_call.1} parent=1 // pred_region
      _
    $region13: #{tpu_custom_call.1} parent=1 // pred_fallthru
      _
    // Predicated region
    $region14: #{tpu_custom_call.1} parent=1 // pred_check
      _
    $region15: #{tpu_custom_call.1} parent=1 // pred_check_branch
      %28 = sbr.rel (0) target = $region17
    $region16: #{tpu_custom_call.1} parent=1 // pred_region
      _
    $region17: #{tpu_custom_call.1} parent=1 // pred_fallthru
      _
    // Predicated region
    $region18: #{tpu_custom_call.1} parent=1 // pred_check
      _
    $region19: #{tpu_custom_call.1} parent=1 // pred_check_branch
      %30 = sbr.rel (0) target = $region21
    $region20: #{tpu_custom_call.1} parent=1 // pred_region
      _
    $region21: #{tpu_custom_call.1} parent=1 // pred_fallthru
      _
    // Predicated region
    $region22: #{tpu_custom_call.1} parent=1 // pred_check
      _
    $region23: #{tpu_custom_call.1} parent=1 // pred_check_branch
      %32 = sbr.rel (0) target = $region25
    $region24: #{tpu_custom_call.1} parent=1 // pred_region
      _
    $region25: #{tpu_custom_call.1} parent=1 // pred_fallthru
      _
    // Predicated region
    $region26: #{tpu_custom_call.1} parent=1 // pred_check
      _
    $region27: #{tpu_custom_call.1} parent=1 // pred_check_branch
      %34 = sbr.rel (0) target = $region29
    $region28: #{tpu_custom_call.1} parent=1 // pred_region
      %36 = dma.done [#allocation3], 16
    $region29: #{tpu_custom_call.1} parent=1 // pred_fallthru
      _
    %37 = sfence
    %s38 = sld [smem:[#allocation2]]
    %s39 = sld [smem:[#allocation2 + $0x1]]
    %s40 = ssub.f32 %s39, %s38
    %v41 = vrcp.pop 8.0
    %v42 = vmul.f32 8.0, %v41
    %v43 = vsub.f32 1.0, %v42
    %v44 = vmul.f32 %v41, %v43
    %v45 = vadd.f32 %v41, %v44
    %vm46 = vweird.f32 %v41
    %v47 = vsel %vm46, %v41, %v45
    %s48 = vtos %v47
    %s49 = smul.f32 %s40, %s48
    %s50 = smul.f32 %s49, 0.5
    %v51 = vrcp.pop 6.0
    %v52 = vmul.f32 6.0, %v51
    %v53 = vsub.f32 1.0, %v52
    %v54 = vmul.f32 %v51, %v53
    %v55 = vadd.f32 %v51, %v54
    %vm56 = vweird.f32 %v51
    %v57 = vsel %vm56, %v51, %v55
    %s58 = vtos %v57
    %s59 = smul.f32 %s49, %s58
    %v60 = vld [vmem:[%s3] sm:$0xff]
    %v61 = vld [vmem:[%s4] sm:$0x1]
    %v62 = vld [vmem:[%s5] sm:$0xff]
    %v63 = vld [vmem:[%s5 + $0x8] sm:$0xff]
    %v64 = vld [vmem:[%s5 + $0x10] sm:$0xff]
    %v65 = vld [vmem:[%s5 + $0x18] sm:$0xff]
    %v66 = vld [vmem:[%s5 + $0x20] sm:$0xff]
    %v67 = vld [vmem:[%s5 + $0x28] sm:$0xff]
    %v68 = vld [vmem:[%s5 + $0x30] sm:$0xff]
    %v69 = vld [vmem:[%s5 + $0x38] sm:$0xff]
    %v70 = vld [vmem:[%s5 + $0x40] sm:$0xff]
    %v71 = vld [vmem:[%s5 + $0x48] sm:$0xff]
    %v72 = vld [vmem:[%s5 + $0x50] sm:$0xff]
    %v73 = vld [vmem:[%s5 + $0x58] sm:$0xff]
    %v74 = vld [vmem:[%s5 + $0x60] sm:$0xff]
    %v75 = vld [vmem:[%s5 + $0x68] sm:$0xff]
    %v76 = vld [vmem:[%s5 + $0x70] sm:$0xff]
    %v77 = vld [vmem:[%s5 + $0x78] sm:$0xff]
    %v78 = vld [vmem:[%s1] sm:$0xff]
    %v79 = vld [vmem:[%s1 + $0x8] sm:$0xff]
    %v80 = vld [vmem:[%s1 + $0x10] sm:$0xff]
    %v81 = vld [vmem:[%s1 + $0x18] sm:$0xff]
    %v82 = vld [vmem:[%s1 + $0x20] sm:$0xff]
    %v83 = vld [vmem:[%s1 + $0x28] sm:$0xff]
    %v84 = vld [vmem:[%s1 + $0x30] sm:$0xff]
    %v85 = vld [vmem:[%s1 + $0x38] sm:$0xff]
    %v86 = vld [vmem:[%s2] sm:$0xff]
    %v87 = vld [vmem:[%s2 + $0x8] sm:$0xff]
    %v88 = vld [vmem:[%s2 + $0x10] sm:$0xff]
    %v89 = vld [vmem:[%s2 + $0x18] sm:$0xff]
    %v90 = vld [vmem:[%s2 + $0x20] sm:$0xff]
    %v91 = vld [vmem:[%s2 + $0x28] sm:$0xff]
    %v92 = vld [vmem:[%s2 + $0x30] sm:$0xff]
    %v93 = vld [vmem:[%s2 + $0x38] sm:$0xff]
    %s94 = smul.f32 %s49, 0.0
    %s95 = sadd.f32 %s38, %s94
    %v96 = vstv %s95
    %v97 = vadd.f32 %v61, %v96
    %s98 = sadd.f32 %s95, %s50
    %v99 = vstv %s98
    %v100 = vadd.f32 %v61, %v99
    %s101 = sadd.f32 %s95, %s49
    %v102 = vstv %s101
    %v103 = vadd.f32 %v61, %v102
    %v105 = vperm.slane %v97, 0
    %vm107 = vcmask 64512
    %v109 = vsel %vm107, %v78, 0
    %v112 = vsel %vm107, %v79, 0
    %v115 = vsel %vm107, %v80, 0
    %v118 = vsel %vm107, %v81, 0
    %v121 = vsel %vm107, %v82, 0
    %v124 = vsel %vm107, %v83, 0
    %v127 = vsel %vm107, %v84, 0
    %v130 = vsel %vm107, %v85, 0
    %132 = vmatpush.msra.mxu0 0.0
    %133 = vmatpush.msra.mxu0 0.0
    %134 = vmatpush.msra.mxu0 0.0
    %135 = vmatpush.msra.mxu0 0.0
    %136 = vmatpush.msra.mxu0 0.0
    %137 = vmatpush.msra.mxu0 0.0
    %138 = vmatpush.msra.mxu0 0.0
    %139 = vmatpush.msra.mxu0 0.0
    %140 = vmatpush.msra.mxu0 0.0
    %141 = vmatpush.msra.mxu0 0.0
    %142 = vmatpush.msra.mxu0 0.0
    %143 = vmatpush.msra.mxu0 0.0
    %144 = vmatpush.msra.mxu0 0.0
    %145 = vmatpush.msra.mxu0 0.0
    %146 = vmatpush.msra.mxu0 0.0
    %147 = vmatpush.msra.mxu0 %v60
    %148 = vmatmul.f32.gmra.mxu0 %v109
    %v149 = vpop.f32.mrf.mxu0
    %v150 = vadd.f32 %v105, %v149
    %151 = vmatmul.f32.gmra.mxu0 %v112
    %v152 = vpop.f32.mrf.mxu0
    %v153 = vadd.f32 %v105, %v152
    %154 = vmatmul.f32.gmra.mxu0 %v115
    %v155 = vpop.f32.mrf.mxu0
    %v156 = vadd.f32 %v105, %v155
    %157 = vmatmul.f32.gmra.mxu0 %v118
    %v158 = vpop.f32.mrf.mxu0
    %v159 = vadd.f32 %v105, %v158
    %160 = vmatmul.f32.gmra.mxu0 %v121
    %v161 = vpop.f32.mrf.mxu0
    %v162 = vadd.f32 %v105, %v161
    %163 = vmatmul.f32.gmra.mxu0 %v124
    %v164 = vpop.f32.mrf.mxu0
    %v165 = vadd.f32 %v105, %v164
    %166 = vmatmul.f32.gmra.mxu0 %v127
    %v167 = vpop.f32.mrf.mxu0
    %v168 = vadd.f32 %v105, %v167
    %169 = vmatmul.f32.gmra.mxu0 %v130
    %v170 = vpop.f32.mrf.mxu0
    %v171 = vadd.f32 %v105, %v170
    %172 = vdwg.mxu0
    %v173 = vtanh.pop %v150
    %v174 = vtanh.pop %v153
    %v175 = vtanh.pop %v156
    %v176 = vtanh.pop %v159
    %v177 = vtanh.pop %v162
    %v178 = vtanh.pop %v165
    %v179 = vtanh.pop %v168
    %v180 = vtanh.pop %v171
    %v181 = vmul.f32 %v173, %v173
    %v182 = vmul.f32 %v174, %v174
    %v183 = vmul.f32 %v175, %v175
    %v184 = vmul.f32 %v176, %v176
    %v185 = vmul.f32 %v177, %v177
    %v186 = vmul.f32 %v178, %v178
    %v187 = vmul.f32 %v179, %v179
    %v188 = vmul.f32 %v180, %v180
    %v189 = vsub.f32 1.0, %v181
    %v190 = vsub.f32 1.0, %v182
    %v191 = vsub.f32 1.0, %v183
    %v192 = vsub.f32 1.0, %v184
    %v193 = vsub.f32 1.0, %v185
    %v194 = vsub.f32 1.0, %v186
    %v195 = vsub.f32 1.0, %v187
    %v196 = vsub.f32 1.0, %v188
    %197 = vmatpush.msra.mxu0 %v77
    %198 = vmatpush.msra.mxu0 %v76
    %199 = vmatpush.msra.mxu0 %v75
    %200 = vmatpush.msra.mxu0 %v74
    %201 = vmatpush.msra.mxu0 %v73
    %202 = vmatpush.msra.mxu0 %v72
    %203 = vmatpush.msra.mxu0 %v71
    %204 = vmatpush.msra.mxu0 %v70
    %205 = vmatpush.msra.mxu0 %v69
    %206 = vmatpush.msra.mxu0 %v68
    %207 = vmatpush.msra.mxu0 %v67
    %208 = vmatpush.msra.mxu0 %v66
    %209 = vmatpush.msra.mxu0 %v65
    %210 = vmatpush.msra.mxu0 %v64
    %211 = vmatpush.msra.mxu0 %v63
    %212 = vmatpush.msra.mxu0 %v62
    %213 = vmatmul.f32.gmra.mxu0 %v173
    %v214 = vpop.f32.mrf.mxu0
    %v215 = vadd.f32 0.0, %v214
    %216 = vmatmul.f32.gmra.mxu0 %v174
    %v217 = vpop.f32.mrf.mxu0
    %v218 = vadd.f32 0.0, %v217
    %219 = vmatmul.f32.gmra.mxu0 %v175
    %v220 = vpop.f32.mrf.mxu0
    %v221 = vadd.f32 0.0, %v220
    %222 = vmatmul.f32.gmra.mxu0 %v176
    %v223 = vpop.f32.mrf.mxu0
    %v224 = vadd.f32 0.0, %v223
    %225 = vmatmul.f32.gmra.mxu0 %v177
    %v226 = vpop.f32.mrf.mxu0
    %v227 = vadd.f32 0.0, %v226
    %228 = vmatmul.f32.gmra.mxu0 %v178
    %v229 = vpop.f32.mrf.mxu0
    %v230 = vadd.f32 0.0, %v229
    %231 = vmatmul.f32.gmra.mxu0 %v179
    %v232 = vpop.f32.mrf.mxu0
    %v233 = vadd.f32 0.0, %v232
    %234 = vmatmul.f32.gmra.mxu0 %v180
    %v235 = vpop.f32.mrf.mxu0
    %v236 = vadd.f32 0.0, %v235
    %237 = vmatmul.f32.gmra.mxu0 %v189
    %v238 = vpop.f32.mrf.mxu0
    %v239 = vadd.f32 0.0, %v238
    %240 = vmatmul.f32.gmra.mxu0 %v190
    %v241 = vpop.f32.mrf.mxu0
    %v242 = vadd.f32 0.0, %v241
    %243 = vmatmul.f32.gmra.mxu0 %v191
    %v244 = vpop.f32.mrf.mxu0
    %v245 = vadd.f32 0.0, %v244
    %246 = vmatmul.f32.gmra.mxu0 %v192
    %v247 = vpop.f32.mrf.mxu0
    %v248 = vadd.f32 0.0, %v247
    %249 = vmatmul.f32.gmra.mxu0 %v193
    %v250 = vpop.f32.mrf.mxu0
    %v251 = vadd.f32 0.0, %v250
    %252 = vmatmul.f32.gmra.mxu0 %v194
    %v253 = vpop.f32.mrf.mxu0
    %v254 = vadd.f32 0.0, %v253
    %255 = vmatmul.f32.gmra.mxu0 %v195
    %v256 = vpop.f32.mrf.mxu0
    %v257 = vadd.f32 0.0, %v256
    %258 = vmatmul.f32.gmra.mxu0 %v196
    %v259 = vpop.f32.mrf.mxu0
    %v260 = vadd.f32 0.0, %v259
    %261 = vdwg.mxu0
    %v262 = vstv %s50
    %v263 = vmul.f32 %v262, %v215
    %v264 = vmul.f32 %v262, %v218
    %v265 = vmul.f32 %v262, %v221
    %v266 = vmul.f32 %v262, %v224
    %v267 = vmul.f32 %v262, %v227
    %v268 = vmul.f32 %v262, %v230
    %v269 = vmul.f32 %v262, %v233
    %v270 = vmul.f32 %v262, %v236
    %v271 = vadd.f32 %v78, %v263
    %v272 = vadd.f32 %v79, %v264
    %v273 = vadd.f32 %v80, %v265
    %v274 = vadd.f32 %v81, %v266
    %v275 = vadd.f32 %v82, %v267
    %v276 = vadd.f32 %v83, %v268
    %v277 = vadd.f32 %v84, %v269
    %v278 = vadd.f32 %v85, %v270
    %v280 = vperm.slane %v100, 0
    %v283 = vsel %vm107, %v271, 0
    %v286 = vsel %vm107, %v272, 0
    %v289 = vsel %vm107, %v273, 0
    %v292 = vsel %vm107, %v274, 0
    %v295 = vsel %vm107, %v275, 0
    %v298 = vsel %vm107, %v276, 0
    %v301 = vsel %vm107, %v277, 0
    %v304 = vsel %vm107, %v278, 0
    %306 = vmatpush.msra.mxu0 0.0
    %307 = vmatpush.msra.mxu0 0.0
    %308 = vmatpush.msra.mxu0 0.0
    %309 = vmatpush.msra.mxu0 0.0
    %310 = vmatpush.msra.mxu0 0.0
    %311 = vmatpush.msra.mxu0 0.0
    %312 = vmatpush.msra.mxu0 0.0
    %313 = vmatpush.msra.mxu0 0.0
    %314 = vmatpush.msra.mxu0 0.0
    %315 = vmatpush.msra.mxu0 0.0
    %316 = vmatpush.msra.mxu0 0.0
    %317 = vmatpush.msra.mxu0 0.0
    %318 = vmatpush.msra.mxu0 0.0
    %319 = vmatpush.msra.mxu0 0.0
    %320 = vmatpush.msra.mxu0 0.0
    %321 = vmatpush.msra.mxu0 %v60
    %322 = vmatmul.f32.gmra.mxu0 %v283
    %v323 = vpop.f32.mrf.mxu0
    %v324 = vadd.f32 %v280, %v323
    %325 = vmatmul.f32.gmra.mxu0 %v286
    %v326 = vpop.f32.mrf.mxu0
    %v327 = vadd.f32 %v280, %v326
    %328 = vmatmul.f32.gmra.mxu0 %v289
    %v329 = vpop.f32.mrf.mxu0
    %v330 = vadd.f32 %v280, %v329
    %331 = vmatmul.f32.gmra.mxu0 %v292
    %v332 = vpop.f32.mrf.mxu0
    %v333 = vadd.f32 %v280, %v332
    %334 = vmatmul.f32.gmra.mxu0 %v295
    %v335 = vpop.f32.mrf.mxu0
    %v336 = vadd.f32 %v280, %v335
    %337 = vmatmul.f32.gmra.mxu0 %v298
    %v338 = vpop.f32.mrf.mxu0
    %v339 = vadd.f32 %v280, %v338
    %340 = vmatmul.f32.gmra.mxu0 %v301
    %v341 = vpop.f32.mrf.mxu0
    %v342 = vadd.f32 %v280, %v341
    %343 = vmatmul.f32.gmra.mxu0 %v304
    %v344 = vpop.f32.mrf.mxu0
    %v345 = vadd.f32 %v280, %v344
    %346 = vdwg.mxu0
    %v347 = vtanh.pop %v324
    %v348 = vtanh.pop %v327
    %v349 = vtanh.pop %v330
    %v350 = vtanh.pop %v333
    %v351 = vtanh.pop %v336
    %v352 = vtanh.pop %v339
    %v353 = vtanh.pop %v342
    %v354 = vtanh.pop %v345
    %v355 = vmul.f32 %v347, %v347
    %v356 = vmul.f32 %v348, %v348
    %v357 = vmul.f32 %v349, %v349
    %v358 = vmul.f32 %v350, %v350
    %v359 = vmul.f32 %v351, %v351
    %v360 = vmul.f32 %v352, %v352
    %v361 = vmul.f32 %v353, %v353
    %v362 = vmul.f32 %v354, %v354
    %v363 = vsub.f32 1.0, %v355
    %v364 = vsub.f32 1.0, %v356
    %v365 = vsub.f32 1.0, %v357
    %v366 = vsub.f32 1.0, %v358
    %v367 = vsub.f32 1.0, %v359
    %v368 = vsub.f32 1.0, %v360
    %v369 = vsub.f32 1.0, %v361
    %v370 = vsub.f32 1.0, %v362
    %371 = vmatpush.msra.mxu0 %v77
    %372 = vmatpush.msra.mxu0 %v76
    %373 = vmatpush.msra.mxu0 %v75
    %374 = vmatpush.msra.mxu0 %v74
    %375 = vmatpush.msra.mxu0 %v73
    %376 = vmatpush.msra.mxu0 %v72
    %377 = vmatpush.msra.mxu0 %v71
    %378 = vmatpush.msra.mxu0 %v70
    %379 = vmatpush.msra.mxu0 %v69
    %380 = vmatpush.msra.mxu0 %v68
    %381 = vmatpush.msra.mxu0 %v67
    %382 = vmatpush.msra.mxu0 %v66
    %383 = vmatpush.msra.mxu0 %v65
    %384 = vmatpush.msra.mxu0 %v64
    %385 = vmatpush.msra.mxu0 %v63
    %386 = vmatpush.msra.mxu0 %v62
    %387 = vmatmul.f32.gmra.mxu0 %v347
    %v388 = vpop.f32.mrf.mxu0
    %v389 = vadd.f32 0.0, %v388
    %390 = vmatmul.f32.gmra.mxu0 %v348
    %v391 = vpop.f32.mrf.mxu0
    %v392 = vadd.f32 0.0, %v391
    %393 = vmatmul.f32.gmra.mxu0 %v349
    %v394 = vpop.f32.mrf.mxu0
    %v395 = vadd.f32 0.0, %v394
    %396 = vmatmul.f32.gmra.mxu0 %v350
    %v397 = vpop.f32.mrf.mxu0
    %v398 = vadd.f32 0.0, %v397
    %399 = vmatmul.f32.gmra.mxu0 %v351
    %v400 = vpop.f32.mrf.mxu0
    %v401 = vadd.f32 0.0, %v400
    %402 = vmatmul.f32.gmra.mxu0 %v352
    %v403 = vpop.f32.mrf.mxu0
    %v404 = vadd.f32 0.0, %v403
    %405 = vmatmul.f32.gmra.mxu0 %v353
    %v406 = vpop.f32.mrf.mxu0
    %v407 = vadd.f32 0.0, %v406
    %408 = vmatmul.f32.gmra.mxu0 %v354
    %v409 = vpop.f32.mrf.mxu0
    %v410 = vadd.f32 0.0, %v409
    %411 = vmatmul.f32.gmra.mxu0 %v363
    %v412 = vpop.f32.mrf.mxu0
    %v413 = vadd.f32 0.0, %v412
    %414 = vmatmul.f32.gmra.mxu0 %v364
    %v415 = vpop.f32.mrf.mxu0
    %v416 = vadd.f32 0.0, %v415
    %417 = vmatmul.f32.gmra.mxu0 %v365
    %v418 = vpop.f32.mrf.mxu0
    %v419 = vadd.f32 0.0, %v418
    %420 = vmatmul.f32.gmra.mxu0 %v366
    %v421 = vpop.f32.mrf.mxu0
    %v422 = vadd.f32 0.0, %v421
    %423 = vmatmul.f32.gmra.mxu0 %v367
    %v424 = vpop.f32.mrf.mxu0
    %v425 = vadd.f32 0.0, %v424
    %426 = vmatmul.f32.gmra.mxu0 %v368
    %v427 = vpop.f32.mrf.mxu0
    %v428 = vadd.f32 0.0, %v427
    %429 = vmatmul.f32.gmra.mxu0 %v369
    %v430 = vpop.f32.mrf.mxu0
    %v431 = vadd.f32 0.0, %v430
    %432 = vmatmul.f32.gmra.mxu0 %v370
    %v433 = vpop.f32.mrf.mxu0
    %v434 = vadd.f32 0.0, %v433
    %435 = vdwg.mxu0
    %v436 = vmul.f32 %v262, %v389
    %v437 = vmul.f32 %v262, %v392
    %v438 = vmul.f32 %v262, %v395
    %v439 = vmul.f32 %v262, %v398
    %v440 = vmul.f32 %v262, %v401
    %v441 = vmul.f32 %v262, %v404
    %v442 = vmul.f32 %v262, %v407
    %v443 = vmul.f32 %v262, %v410
    %v444 = vadd.f32 %v78, %v436
    %v445 = vadd.f32 %v79, %v437
    %v446 = vadd.f32 %v80, %v438
    %v447 = vadd.f32 %v81, %v439
    %v448 = vadd.f32 %v82, %v440
    %v449 = vadd.f32 %v83, %v441
    %v450 = vadd.f32 %v84, %v442
    %v451 = vadd.f32 %v85, %v443
    %v453 = vsel %vm107, %v444, 0
    %v456 = vsel %vm107, %v445, 0
    %v459 = vsel %vm107, %v446, 0
    %v462 = vsel %vm107, %v447, 0
    %v465 = vsel %vm107, %v448, 0
    %v468 = vsel %vm107, %v449, 0
    %v471 = vsel %vm107, %v450, 0
    %v474 = vsel %vm107, %v451, 0
    %476 = vmatpush.msra.mxu0 0.0
    %477 = vmatpush.msra.mxu0 0.0
    %478 = vmatpush.msra.mxu0 0.0
    %479 = vmatpush.msra.mxu0 0.0
    %480 = vmatpush.msra.mxu0 0.0
    %481 = vmatpush.msra.mxu0 0.0
    %482 = vmatpush.msra.mxu0 0.0
    %483 = vmatpush.msra.mxu0 0.0
    %484 = vmatpush.msra.mxu0 0.0
    %485 = vmatpush.msra.mxu0 0.0
    %486 = vmatpush.msra.mxu0 0.0
    %487 = vmatpush.msra.mxu0 0.0
    %488 = vmatpush.msra.mxu0 0.0
    %489 = vmatpush.msra.mxu0 0.0
    %490 = vmatpush.msra.mxu0 0.0
    %491 = vmatpush.msra.mxu0 %v60
    %492 = vmatmul.f32.gmra.mxu0 %v453
    %v493 = vpop.f32.mrf.mxu0
    %v494 = vadd.f32 %v280, %v493
    %495 = vmatmul.f32.gmra.mxu0 %v456
    %v496 = vpop.f32.mrf.mxu0
    %v497 = vadd.f32 %v280, %v496
    %498 = vmatmul.f32.gmra.mxu0 %v459
    %v499 = vpop.f32.mrf.mxu0
    %v500 = vadd.f32 %v280, %v499
    %501 = vmatmul.f32.gmra.mxu0 %v462
    %v502 = vpop.f32.mrf.mxu0
    %v503 = vadd.f32 %v280, %v502
    %504 = vmatmul.f32.gmra.mxu0 %v465
    %v505 = vpop.f32.mrf.mxu0
    %v506 = vadd.f32 %v280, %v505
    %507 = vmatmul.f32.gmra.mxu0 %v468
    %v508 = vpop.f32.mrf.mxu0
    %v509 = vadd.f32 %v280, %v508
    %510 = vmatmul.f32.gmra.mxu0 %v471
    %v511 = vpop.f32.mrf.mxu0
    %v512 = vadd.f32 %v280, %v511
    %513 = vmatmul.f32.gmra.mxu0 %v474
    %v514 = vpop.f32.mrf.mxu0
    %v515 = vadd.f32 %v280, %v514
    %516 = vdwg.mxu0
    %v517 = vtanh.pop %v494
    %v518 = vtanh.pop %v497
    %v519 = vtanh.pop %v500
    %v520 = vtanh.pop %v503
    %v521 = vtanh.pop %v506
    %v522 = vtanh.pop %v509
    %v523 = vtanh.pop %v512
    %v524 = vtanh.pop %v515
    %v525 = vmul.f32 %v517, %v517
    %v526 = vmul.f32 %v518, %v518
    %v527 = vmul.f32 %v519, %v519
    %v528 = vmul.f32 %v520, %v520
    %v529 = vmul.f32 %v521, %v521
    %v530 = vmul.f32 %v522, %v522
    %v531 = vmul.f32 %v523, %v523
    %v532 = vmul.f32 %v524, %v524
    %v533 = vsub.f32 1.0, %v525
    %v534 = vsub.f32 1.0, %v526
    %v535 = vsub.f32 1.0, %v527
    %v536 = vsub.f32 1.0, %v528
    %v537 = vsub.f32 1.0, %v529
    %v538 = vsub.f32 1.0, %v530
    %v539 = vsub.f32 1.0, %v531
    %v540 = vsub.f32 1.0, %v532
    %541 = vmatpush.msra.mxu0 %v77
    %542 = vmatpush.msra.mxu0 %v76
    %543 = vmatpush.msra.mxu0 %v75
    %544 = vmatpush.msra.mxu0 %v74
    %545 = vmatpush.msra.mxu0 %v73
    %546 = vmatpush.msra.mxu0 %v72
    %547 = vmatpush.msra.mxu0 %v71
    %548 = vmatpush.msra.mxu0 %v70
    %549 = vmatpush.msra.mxu0 %v69
    %550 = vmatpush.msra.mxu0 %v68
    %551 = vmatpush.msra.mxu0 %v67
    %552 = vmatpush.msra.mxu0 %v66
    %553 = vmatpush.msra.mxu0 %v65
    %554 = vmatpush.msra.mxu0 %v64
    %555 = vmatpush.msra.mxu0 %v63
    %556 = vmatpush.msra.mxu0 %v62
    %557 = vmatmul.f32.gmra.mxu0 %v517
    %v558 = vpop.f32.mrf.mxu0
    %v559 = vadd.f32 0.0, %v558
    %560 = vmatmul.f32.gmra.mxu0 %v518
    %v561 = vpop.f32.mrf.mxu0
    %v562 = vadd.f32 0.0, %v561
    %563 = vmatmul.f32.gmra.mxu0 %v519
    %v564 = vpop.f32.mrf.mxu0
    %v565 = vadd.f32 0.0, %v564
    %566 = vmatmul.f32.gmra.mxu0 %v520
    %v567 = vpop.f32.mrf.mxu0
    %v568 = vadd.f32 0.0, %v567
    %569 = vmatmul.f32.gmra.mxu0 %v521
    %v570 = vpop.f32.mrf.mxu0
    %v571 = vadd.f32 0.0, %v570
    %572 = vmatmul.f32.gmra.mxu0 %v522
    %v573 = vpop.f32.mrf.mxu0
    %v574 = vadd.f32 0.0, %v573
    %575 = vmatmul.f32.gmra.mxu0 %v523
    %v576 = vpop.f32.mrf.mxu0
    %v577 = vadd.f32 0.0, %v576
    %578 = vmatmul.f32.gmra.mxu0 %v524
    %v579 = vpop.f32.mrf.mxu0
    %v580 = vadd.f32 0.0, %v579
    %581 = vmatmul.f32.gmra.mxu0 %v533
    %v582 = vpop.f32.mrf.mxu0
    %v583 = vadd.f32 0.0, %v582
    %584 = vmatmul.f32.gmra.mxu0 %v534
    %v585 = vpop.f32.mrf.mxu0
    %v586 = vadd.f32 0.0, %v585
    %587 = vmatmul.f32.gmra.mxu0 %v535
    %v588 = vpop.f32.mrf.mxu0
    %v589 = vadd.f32 0.0, %v588
    %590 = vmatmul.f32.gmra.mxu0 %v536
    %v591 = vpop.f32.mrf.mxu0
    %v592 = vadd.f32 0.0, %v591
    %593 = vmatmul.f32.gmra.mxu0 %v537
    %v594 = vpop.f32.mrf.mxu0
    %v595 = vadd.f32 0.0, %v594
    %596 = vmatmul.f32.gmra.mxu0 %v538
    %v597 = vpop.f32.mrf.mxu0
    %v598 = vadd.f32 0.0, %v597
    %599 = vmatmul.f32.gmra.mxu0 %v539
    %v600 = vpop.f32.mrf.mxu0
    %v601 = vadd.f32 0.0, %v600
    %602 = vmatmul.f32.gmra.mxu0 %v540
    %v603 = vpop.f32.mrf.mxu0
    %v604 = vadd.f32 0.0, %v603
    %605 = vdwg.mxu0
    %v606 = vstv %s49
    %v607 = vmul.f32 %v606, %v559
    %v608 = vmul.f32 %v606, %v562
    %v609 = vmul.f32 %v606, %v565
    %v610 = vmul.f32 %v606, %v568
    %v611 = vmul.f32 %v606, %v571
    %v612 = vmul.f32 %v606, %v574
    %v613 = vmul.f32 %v606, %v577
    %v614 = vmul.f32 %v606, %v580
    %v615 = vadd.f32 %v78, %v607
    %v616 = vadd.f32 %v79, %v608
    %v617 = vadd.f32 %v80, %v609
    %v618 = vadd.f32 %v81, %v610
    %v619 = vadd.f32 %v82, %v611
    %v620 = vadd.f32 %v83, %v612
    %v621 = vadd.f32 %v84, %v613
    %v622 = vadd.f32 %v85, %v614
    %v624 = vperm.slane %v103, 0
    %v627 = vsel %vm107, %v615, 0
    %v630 = vsel %vm107, %v616, 0
    %v633 = vsel %vm107, %v617, 0
    %v636 = vsel %vm107, %v618, 0
    %v639 = vsel %vm107, %v619, 0
    %v642 = vsel %vm107, %v620, 0
    %v645 = vsel %vm107, %v621, 0
    %v648 = vsel %vm107, %v622, 0
    %650 = vmatpush.msra.mxu0 0.0
    %651 = vmatpush.msra.mxu0 0.0
    %652 = vmatpush.msra.mxu0 0.0
    %653 = vmatpush.msra.mxu0 0.0
    %654 = vmatpush.msra.mxu0 0.0
    %655 = vmatpush.msra.mxu0 0.0
    %656 = vmatpush.msra.mxu0 0.0
    %657 = vmatpush.msra.mxu0 0.0
    %658 = vmatpush.msra.mxu0 0.0
    %659 = vmatpush.msra.mxu0 0.0
    %660 = vmatpush.msra.mxu0 0.0
    %661 = vmatpush.msra.mxu0 0.0
    %662 = vmatpush.msra.mxu0 0.0
    %663 = vmatpush.msra.mxu0 0.0
    %664 = vmatpush.msra.mxu0 0.0
    %665 = vmatpush.msra.mxu0 %v60
    %666 = vmatmul.f32.gmra.mxu0 %v627
    %v667 = vpop.f32.mrf.mxu0
    %v668 = vadd.f32 %v624, %v667
    %669 = vmatmul.f32.gmra.mxu0 %v630
    %v670 = vpop.f32.mrf.mxu0
    %v671 = vadd.f32 %v624, %v670
    %672 = vmatmul.f32.gmra.mxu0 %v633
    %v673 = vpop.f32.mrf.mxu0
    %v674 = vadd.f32 %v624, %v673
    %675 = vmatmul.f32.gmra.mxu0 %v636
    %v676 = vpop.f32.mrf.mxu0
    %v677 = vadd.f32 %v624, %v676
    %678 = vmatmul.f32.gmra.mxu0 %v639
    %v679 = vpop.f32.mrf.mxu0
    %v680 = vadd.f32 %v624, %v679
    %681 = vmatmul.f32.gmra.mxu0 %v642
    %v682 = vpop.f32.mrf.mxu0
    %v683 = vadd.f32 %v624, %v682
    %684 = vmatmul.f32.gmra.mxu0 %v645
    %v685 = vpop.f32.mrf.mxu0
    %v686 = vadd.f32 %v624, %v685
    %687 = vmatmul.f32.gmra.mxu0 %v648
    %v688 = vpop.f32.mrf.mxu0
    %v689 = vadd.f32 %v624, %v688
    %690 = vdwg.mxu0
    %v691 = vtanh.pop %v668
    %v692 = vtanh.pop %v671
    %v693 = vtanh.pop %v674
    %v694 = vtanh.pop %v677
    %v695 = vtanh.pop %v680
    %v696 = vtanh.pop %v683
    %v697 = vtanh.pop %v686
    %v698 = vtanh.pop %v689
    %v699 = vmul.f32 %v691, %v691
    %v700 = vmul.f32 %v692, %v692
    %v701 = vmul.f32 %v693, %v693
    %v702 = vmul.f32 %v694, %v694
    %v703 = vmul.f32 %v695, %v695
    %v704 = vmul.f32 %v696, %v696
    %v705 = vmul.f32 %v697, %v697
    %v706 = vmul.f32 %v698, %v698
    %v707 = vsub.f32 1.0, %v699
    %v708 = vsub.f32 1.0, %v700
    %v709 = vsub.f32 1.0, %v701
    %v710 = vsub.f32 1.0, %v702
    %v711 = vsub.f32 1.0, %v703
    %v712 = vsub.f32 1.0, %v704
    %v713 = vsub.f32 1.0, %v705
    %v714 = vsub.f32 1.0, %v706
    %715 = vmatpush.msra.mxu0 %v77
    %716 = vmatpush.msra.mxu0 %v76
    %717 = vmatpush.msra.mxu0 %v75
    %718 = vmatpush.msra.mxu0 %v74
    %719 = vmatpush.msra.mxu0 %v73
    %720 = vmatpush.msra.mxu0 %v72
    %721 = vmatpush.msra.mxu0 %v71
    %722 = vmatpush.msra.mxu0 %v70
    %723 = vmatpush.msra.mxu0 %v69
    %724 = vmatpush.msra.mxu0 %v68
    %725 = vmatpush.msra.mxu0 %v67
    %726 = vmatpush.msra.mxu0 %v66
    %727 = vmatpush.msra.mxu0 %v65
    %728 = vmatpush.msra.mxu0 %v64
    %729 = vmatpush.msra.mxu0 %v63
    %730 = vmatpush.msra.mxu0 %v62
    %731 = vmatmul.f32.gmra.mxu0 %v691
    %v732 = vpop.f32.mrf.mxu0
    %v733 = vadd.f32 0.0, %v732
    %734 = vmatmul.f32.gmra.mxu0 %v692
    %v735 = vpop.f32.mrf.mxu0
    %v736 = vadd.f32 0.0, %v735
    %737 = vmatmul.f32.gmra.mxu0 %v693
    %v738 = vpop.f32.mrf.mxu0
    %v739 = vadd.f32 0.0, %v738
    %740 = vmatmul.f32.gmra.mxu0 %v694
    %v741 = vpop.f32.mrf.mxu0
    %v742 = vadd.f32 0.0, %v741
    %743 = vmatmul.f32.gmra.mxu0 %v695
    %v744 = vpop.f32.mrf.mxu0
    %v745 = vadd.f32 0.0, %v744
    %746 = vmatmul.f32.gmra.mxu0 %v696
    %v747 = vpop.f32.mrf.mxu0
    %v748 = vadd.f32 0.0, %v747
    %749 = vmatmul.f32.gmra.mxu0 %v697
    %v750 = vpop.f32.mrf.mxu0
    %v751 = vadd.f32 0.0, %v750
    %752 = vmatmul.f32.gmra.mxu0 %v698
    %v753 = vpop.f32.mrf.mxu0
    %v754 = vadd.f32 0.0, %v753
    %755 = vmatmul.f32.gmra.mxu0 %v707
    %v756 = vpop.f32.mrf.mxu0
    %v757 = vadd.f32 0.0, %v756
    %758 = vmatmul.f32.gmra.mxu0 %v708
    %v759 = vpop.f32.mrf.mxu0
    %v760 = vadd.f32 0.0, %v759
    %761 = vmatmul.f32.gmra.mxu0 %v709
    %v762 = vpop.f32.mrf.mxu0
    %v763 = vadd.f32 0.0, %v762
    %764 = vmatmul.f32.gmra.mxu0 %v710
    %v765 = vpop.f32.mrf.mxu0
    %v766 = vadd.f32 0.0, %v765
    %767 = vmatmul.f32.gmra.mxu0 %v711
    %v768 = vpop.f32.mrf.mxu0
    %v769 = vadd.f32 0.0, %v768
    %770 = vmatmul.f32.gmra.mxu0 %v712
    %v771 = vpop.f32.mrf.mxu0
    %v772 = vadd.f32 0.0, %v771
    %773 = vmatmul.f32.gmra.mxu0 %v713
    %v774 = vpop.f32.mrf.mxu0
    %v775 = vadd.f32 0.0, %v774
    %776 = vmatmul.f32.gmra.mxu0 %v714
    %v777 = vpop.f32.mrf.mxu0
    %v778 = vadd.f32 0.0, %v777
    %779 = vdwg.mxu0
    %v780 = vmul.f32 %v389, 2.0
    %v781 = vmul.f32 %v392, 2.0
    %v782 = vmul.f32 %v395, 2.0
    %v783 = vmul.f32 %v398, 2.0
    %v784 = vmul.f32 %v401, 2.0
    %v785 = vmul.f32 %v404, 2.0
    %v786 = vmul.f32 %v407, 2.0
    %v787 = vmul.f32 %v410, 2.0
    %v788 = vadd.f32 %v215, %v780
    %v789 = vadd.f32 %v218, %v781
    %v790 = vadd.f32 %v221, %v782
    %v791 = vadd.f32 %v224, %v783
    %v792 = vadd.f32 %v227, %v784
    %v793 = vadd.f32 %v230, %v785
    %v794 = vadd.f32 %v233, %v786
    %v795 = vadd.f32 %v236, %v787
    %v796 = vmul.f32 %v559, 2.0
    %v797 = vmul.f32 %v562, 2.0
    %v798 = vmul.f32 %v565, 2.0
    %v799 = vmul.f32 %v568, 2.0
    %v800 = vmul.f32 %v571, 2.0
    %v801 = vmul.f32 %v574, 2.0
    %v802 = vmul.f32 %v577, 2.0
    %v803 = vmul.f32 %v580, 2.0
    %v804 = vadd.f32 %v788, %v796
    %v805 = vadd.f32 %v789, %v797
    %v806 = vadd.f32 %v790, %v798
    %v807 = vadd.f32 %v791, %v799
    %v808 = vadd.f32 %v792, %v800
    %v809 = vadd.f32 %v793, %v801
    %v810 = vadd.f32 %v794, %v802
    %v811 = vadd.f32 %v795, %v803
    %v812 = vadd.f32 %v804, %v733
    %v813 = vadd.f32 %v805, %v736
    %v814 = vadd.f32 %v806, %v739
    %v815 = vadd.f32 %v807, %v742
    %v816 = vadd.f32 %v808, %v745
    %v817 = vadd.f32 %v809, %v748
    %v818 = vadd.f32 %v810, %v751
    %v819 = vadd.f32 %v811, %v754
    %v820 = vstv %s59
    %v821 = vmul.f32 %v820, %v812
    %v822 = vmul.f32 %v820, %v813
    %v823 = vmul.f32 %v820, %v814
    %v824 = vmul.f32 %v820, %v815
    %v825 = vmul.f32 %v820, %v816
    %v826 = vmul.f32 %v820, %v817
    %v827 = vmul.f32 %v820, %v818
    %v828 = vmul.f32 %v820, %v819
    %v829 = vadd.f32 %v78, %v821
    %v830 = vadd.f32 %v79, %v822
    %v831 = vadd.f32 %v80, %v823
    %v832 = vadd.f32 %v81, %v824
    %v833 = vadd.f32 %v82, %v825
    %v834 = vadd.f32 %v83, %v826
    %v835 = vadd.f32 %v84, %v827
    %v836 = vadd.f32 %v85, %v828
    %v837 = vmul.f32 %v413, 2.0
    %v838 = vmul.f32 %v416, 2.0
    %v839 = vmul.f32 %v419, 2.0
    %v840 = vmul.f32 %v422, 2.0
    %v841 = vmul.f32 %v425, 2.0
    %v842 = vmul.f32 %v428, 2.0
    %v843 = vmul.f32 %v431, 2.0
    %v844 = vmul.f32 %v434, 2.0
    %v845 = vadd.f32 %v239, %v837
    %v846 = vadd.f32 %v242, %v838
    %v847 = vadd.f32 %v245, %v839
    %v848 = vadd.f32 %v248, %v840
    %v849 = vadd.f32 %v251, %v841
    %v850 = vadd.f32 %v254, %v842
    %v851 = vadd.f32 %v257, %v843
    %v852 = vadd.f32 %v260, %v844
    %v853 = vmul.f32 %v583, 2.0
    %v854 = vmul.f32 %v586, 2.0
    %v855 = vmul.f32 %v589, 2.0
    %v856 = vmul.f32 %v592, 2.0
    %v857 = vmul.f32 %v595, 2.0
    %v858 = vmul.f32 %v598, 2.0
    %v859 = vmul.f32 %v601, 2.0
    %v860 = vmul.f32 %v604, 2.0
    %v861 = vadd.f32 %v845, %v853
    %v862 = vadd.f32 %v846, %v854
    %v863 = vadd.f32 %v847, %v855
    %v864 = vadd.f32 %v848, %v856
    %v865 = vadd.f32 %v849, %v857
    %v866 = vadd.f32 %v850, %v858
    %v867 = vadd.f32 %v851, %v859
    %v868 = vadd.f32 %v852, %v860
    %v869 = vadd.f32 %v861, %v757
    %v870 = vadd.f32 %v862, %v760
    %v871 = vadd.f32 %v863, %v763
    %v872 = vadd.f32 %v864, %v766
    %v873 = vadd.f32 %v865, %v769
    %v874 = vadd.f32 %v866, %v772
    %v875 = vadd.f32 %v867, %v775
    %v876 = vadd.f32 %v868, %v778
    %v877 = vmul.f32 %v820, %v869
    %v878 = vmul.f32 %v820, %v870
    %v879 = vmul.f32 %v820, %v871
    %v880 = vmul.f32 %v820, %v872
    %v881 = vmul.f32 %v820, %v873
    %v882 = vmul.f32 %v820, %v874
    %v883 = vmul.f32 %v820, %v875
    %v884 = vmul.f32 %v820, %v876
    %893 = vrot.lane.b32.xlu0 %v877, 120
    %v894 = vpop.permute.xlu0 %893
    %895 = vrot.lane.b32.xlu0 %v878, 120
    %v896 = vpop.permute.xlu0 %895
    %897 = vrot.lane.b32.xlu0 %v879, 120
    %v898 = vpop.permute.xlu0 %897
    %899 = vrot.lane.b32.xlu0 %v880, 120
    %v900 = vpop.permute.xlu0 %899
    %901 = vrot.lane.b32.xlu0 %v881, 120
    %v902 = vpop.permute.xlu0 %901
    %903 = vrot.lane.b32.xlu0 %v882, 120
    %v904 = vpop.permute.xlu0 %903
    %905 = vrot.lane.b32.xlu0 %v883, 120
    %v906 = vpop.permute.xlu0 %905
    %907 = vrot.lane.b32.xlu0 %v884, 120
    %v908 = vpop.permute.xlu0 %907
    %v917 = vadd.f32 %v86, %v894
    %v918 = vadd.f32 %v87, %v896
    %v919 = vadd.f32 %v88, %v898
    %v920 = vadd.f32 %v89, %v900
    %v921 = vadd.f32 %v90, %v902
    %v922 = vadd.f32 %v91, %v904
    %v923 = vadd.f32 %v92, %v906
    %v924 = vadd.f32 %v93, %v908
    %s925 = sadd.f32 %s38, %s49
    %v926 = vstv %s925
    %v927 = vadd.f32 %v61, %v926
    %s928 = sadd.f32 %s925, %s50
    %v929 = vstv %s928
    %v930 = vadd.f32 %v61, %v929
    %s931 = sadd.f32 %s925, %s49
    %v932 = vstv %s931
    %v933 = vadd.f32 %v61, %v932
    %v935 = vperm.slane %v927, 0
    %v938 = vsel %vm107, %v829, 0
    %v941 = vsel %vm107, %v830, 0
    %v944 = vsel %vm107, %v831, 0
    %v947 = vsel %vm107, %v832, 0
    %v950 = vsel %vm107, %v833, 0
    %v953 = vsel %vm107, %v834, 0
    %v956 = vsel %vm107, %v835, 0
    %v959 = vsel %vm107, %v836, 0
    %961 = vmatpush.msra.mxu0 0.0
    %962 = vmatpush.msra.mxu0 0.0
    %963 = vmatpush.msra.mxu0 0.0
    %964 = vmatpush.msra.mxu0 0.0
    %965 = vmatpush.msra.mxu0 0.0
    %966 = vmatpush.msra.mxu0 0.0
    %967 = vmatpush.msra.mxu0 0.0
    %968 = vmatpush.msra.mxu0 0.0
    %969 = vmatpush.msra.mxu0 0.0
    %970 = vmatpush.msra.mxu0 0.0
    %971 = vmatpush.msra.mxu0 0.0
    %972 = vmatpush.msra.mxu0 0.0
    %973 = vmatpush.msra.mxu0 0.0
    %974 = vmatpush.msra.mxu0 0.0
    %975 = vmatpush.msra.mxu0 0.0
    %976 = vmatpush.msra.mxu0 %v60
    %977 = vmatmul.f32.gmra.mxu0 %v938
    %v978 = vpop.f32.mrf.mxu0
    %v979 = vadd.f32 %v935, %v978
    %980 = vmatmul.f32.gmra.mxu0 %v941
    %v981 = vpop.f32.mrf.mxu0
    %v982 = vadd.f32 %v935, %v981
    %983 = vmatmul.f32.gmra.mxu0 %v944
    %v984 = vpop.f32.mrf.mxu0
    %v985 = vadd.f32 %v935, %v984
    %986 = vmatmul.f32.gmra.mxu0 %v947
    %v987 = vpop.f32.mrf.mxu0
    %v988 = vadd.f32 %v935, %v987
    %989 = vmatmul.f32.gmra.mxu0 %v950
    %v990 = vpop.f32.mrf.mxu0
    %v991 = vadd.f32 %v935, %v990
    %992 = vmatmul.f32.gmra.mxu0 %v953
    %v993 = vpop.f32.mrf.mxu0
    %v994 = vadd.f32 %v935, %v993
    %995 = vmatmul.f32.gmra.mxu0 %v956
    %v996 = vpop.f32.mrf.mxu0
    %v997 = vadd.f32 %v935, %v996
    %998 = vmatmul.f32.gmra.mxu0 %v959
    %v999 = vpop.f32.mrf.mxu0
    %v1000 = vadd.f32 %v935, %v999
    %1001 = vdwg.mxu0
    %v1002 = vtanh.pop %v979
    %v1003 = vtanh.pop %v982
    %v1004 = vtanh.pop %v985
    %v1005 = vtanh.pop %v988
    %v1006 = vtanh.pop %v991
    %v1007 = vtanh.pop %v994
    %v1008 = vtanh.pop %v997
    %v1009 = vtanh.pop %v1000
    %v1010 = vmul.f32 %v1002, %v1002
    %v1011 = vmul.f32 %v1003, %v1003
    %v1012 = vmul.f32 %v1004, %v1004
    %v1013 = vmul.f32 %v1005, %v1005
    %v1014 = vmul.f32 %v1006, %v1006
    %v1015 = vmul.f32 %v1007, %v1007
    %v1016 = vmul.f32 %v1008, %v1008
    %v1017 = vmul.f32 %v1009, %v1009
    %v1018 = vsub.f32 1.0, %v1010
    %v1019 = vsub.f32 1.0, %v1011
    %v1020 = vsub.f32 1.0, %v1012
    %v1021 = vsub.f32 1.0, %v1013
    %v1022 = vsub.f32 1.0, %v1014
    %v1023 = vsub.f32 1.0, %v1015
    %v1024 = vsub.f32 1.0, %v1016
    %v1025 = vsub.f32 1.0, %v1017
    %1026 = vmatpush.msra.mxu0 %v77
    %1027 = vmatpush.msra.mxu0 %v76
    %1028 = vmatpush.msra.mxu0 %v75
    %1029 = vmatpush.msra.mxu0 %v74
    %1030 = vmatpush.msra.mxu0 %v73
    %1031 = vmatpush.msra.mxu0 %v72
    %1032 = vmatpush.msra.mxu0 %v71
    %1033 = vmatpush.msra.mxu0 %v70
    %1034 = vmatpush.msra.mxu0 %v69
    %1035 = vmatpush.msra.mxu0 %v68
    %1036 = vmatpush.msra.mxu0 %v67
    %1037 = vmatpush.msra.mxu0 %v66
    %1038 = vmatpush.msra.mxu0 %v65
    %1039 = vmatpush.msra.mxu0 %v64
    %1040 = vmatpush.msra.mxu0 %v63
    %1041 = vmatpush.msra.mxu0 %v62
    %1042 = vmatmul.f32.gmra.mxu0 %v1002
    %v1043 = vpop.f32.mrf.mxu0
    %v1044 = vadd.f32 0.0, %v1043
    %1045 = vmatmul.f32.gmra.mxu0 %v1003
    %v1046 = vpop.f32.mrf.mxu0
    %v1047 = vadd.f32 0.0, %v1046
    %1048 = vmatmul.f32.gmra.mxu0 %v1004
    %v1049 = vpop.f32.mrf.mxu0
    %v1050 = vadd.f32 0.0, %v1049
    %1051 = vmatmul.f32.gmra.mxu0 %v1005
    %v1052 = vpop.f32.mrf.mxu0
    %v1053 = vadd.f32 0.0, %v1052
    %1054 = vmatmul.f32.gmra.mxu0 %v1006
    %v1055 = vpop.f32.mrf.mxu0
    %v1056 = vadd.f32 0.0, %v1055
    %1057 = vmatmul.f32.gmra.mxu0 %v1007
    %v1058 = vpop.f32.mrf.mxu0
    %v1059 = vadd.f32 0.0, %v1058
    %1060 = vmatmul.f32.gmra.mxu0 %v1008
    %v1061 = vpop.f32.mrf.mxu0
    %v1062 = vadd.f32 0.0, %v1061
    %1063 = vmatmul.f32.gmra.mxu0 %v1009
    %v1064 = vpop.f32.mrf.mxu0
    %v1065 = vadd.f32 0.0, %v1064
    %1066 = vmatmul.f32.gmra.mxu0 %v1018
    %v1067 = vpop.f32.mrf.mxu0
    %v1068 = vadd.f32 0.0, %v1067
    %1069 = vmatmul.f32.gmra.mxu0 %v1019
    %v1070 = vpop.f32.mrf.mxu0
    %v1071 = vadd.f32 0.0, %v1070
    %1072 = vmatmul.f32.gmra.mxu0 %v1020
    %v1073 = vpop.f32.mrf.mxu0
    %v1074 = vadd.f32 0.0, %v1073
    %1075 = vmatmul.f32.gmra.mxu0 %v1021
    %v1076 = vpop.f32.mrf.mxu0
    %v1077 = vadd.f32 0.0, %v1076
    %1078 = vmatmul.f32.gmra.mxu0 %v1022
    %v1079 = vpop.f32.mrf.mxu0
    %v1080 = vadd.f32 0.0, %v1079
    %1081 = vmatmul.f32.gmra.mxu0 %v1023
    %v1082 = vpop.f32.mrf.mxu0
    %v1083 = vadd.f32 0.0, %v1082
    %1084 = vmatmul.f32.gmra.mxu0 %v1024
    %v1085 = vpop.f32.mrf.mxu0
    %v1086 = vadd.f32 0.0, %v1085
    %1087 = vmatmul.f32.gmra.mxu0 %v1025
    %v1088 = vpop.f32.mrf.mxu0
    %v1089 = vadd.f32 0.0, %v1088
    %1090 = vdwg.mxu0
    %v1091 = vmul.f32 %v262, %v1044
    %v1092 = vmul.f32 %v262, %v1047
    %v1093 = vmul.f32 %v262, %v1050
    %v1094 = vmul.f32 %v262, %v1053
    %v1095 = vmul.f32 %v262, %v1056
    %v1096 = vmul.f32 %v262, %v1059
    %v1097 = vmul.f32 %v262, %v1062
    %v1098 = vmul.f32 %v262, %v1065
    %v1099 = vadd.f32 %v829, %v1091
    %v1100 = vadd.f32 %v830, %v1092
    %v1101 = vadd.f32 %v831, %v1093
    %v1102 = vadd.f32 %v832, %v1094
    %v1103 = vadd.f32 %v833, %v1095
    %v1104 = vadd.f32 %v834, %v1096
    %v1105 = vadd.f32 %v835, %v1097
    %v1106 = vadd.f32 %v836, %v1098
    %v1108 = vperm.slane %v930, 0
    %v1111 = vsel %vm107, %v1099, 0
    %v1114 = vsel %vm107, %v1100, 0
    %v1117 = vsel %vm107, %v1101, 0
    %v1120 = vsel %vm107, %v1102, 0
    %v1123 = vsel %vm107, %v1103, 0
    %v1126 = vsel %vm107, %v1104, 0
    %v1129 = vsel %vm107, %v1105, 0
    %v1132 = vsel %vm107, %v1106, 0
    %1134 = vmatpush.msra.mxu0 0.0
    %1135 = vmatpush.msra.mxu0 0.0
    %1136 = vmatpush.msra.mxu0 0.0
    %1137 = vmatpush.msra.mxu0 0.0
    %1138 = vmatpush.msra.mxu0 0.0
    %1139 = vmatpush.msra.mxu0 0.0
    %1140 = vmatpush.msra.mxu0 0.0
    %1141 = vmatpush.msra.mxu0 0.0
    %1142 = vmatpush.msra.mxu0 0.0
    %1143 = vmatpush.msra.mxu0 0.0
    %1144 = vmatpush.msra.mxu0 0.0
    %1145 = vmatpush.msra.mxu0 0.0
    %1146 = vmatpush.msra.mxu0 0.0
    %1147 = vmatpush.msra.mxu0 0.0
    %1148 = vmatpush.msra.mxu0 0.0
    %1149 = vmatpush.msra.mxu0 %v60
    %1150 = vmatmul.f32.gmra.mxu0 %v1111
    %v1151 = vpop.f32.mrf.mxu0
    %v1152 = vadd.f32 %v1108, %v1151
    %1153 = vmatmul.f32.gmra.mxu0 %v1114
    %v1154 = vpop.f32.mrf.mxu0
    %v1155 = vadd.f32 %v1108, %v1154
    %1156 = vmatmul.f32.gmra.mxu0 %v1117
    %v1157 = vpop.f32.mrf.mxu0
    %v1158 = vadd.f32 %v1108, %v1157
    %1159 = vmatmul.f32.gmra.mxu0 %v1120
    %v1160 = vpop.f32.mrf.mxu0
    %v1161 = vadd.f32 %v1108, %v1160
    %1162 = vmatmul.f32.gmra.mxu0 %v1123
    %v1163 = vpop.f32.mrf.mxu0
    %v1164 = vadd.f32 %v1108, %v1163
    %1165 = vmatmul.f32.gmra.mxu0 %v1126
    %v1166 = vpop.f32.mrf.mxu0
    %v1167 = vadd.f32 %v1108, %v1166
    %1168 = vmatmul.f32.gmra.mxu0 %v1129
    %v1169 = vpop.f32.mrf.mxu0
    %v1170 = vadd.f32 %v1108, %v1169
    %1171 = vmatmul.f32.gmra.mxu0 %v1132
    %v1172 = vpop.f32.mrf.mxu0
    %v1173 = vadd.f32 %v1108, %v1172
    %1174 = vdwg.mxu0
    %v1175 = vtanh.pop %v1152
    %v1176 = vtanh.pop %v1155
    %v1177 = vtanh.pop %v1158
    %v1178 = vtanh.pop %v1161
    %v1179 = vtanh.pop %v1164
    %v1180 = vtanh.pop %v1167
    %v1181 = vtanh.pop %v1170
    %v1182 = vtanh.pop %v1173
    %v1183 = vmul.f32 %v1175, %v1175
    %v1184 = vmul.f32 %v1176, %v1176
    %v1185 = vmul.f32 %v1177, %v1177
    %v1186 = vmul.f32 %v1178, %v1178
    %v1187 = vmul.f32 %v1179, %v1179
    %v1188 = vmul.f32 %v1180, %v1180
    %v1189 = vmul.f32 %v1181, %v1181
    %v1190 = vmul.f32 %v1182, %v1182
    %v1191 = vsub.f32 1.0, %v1183
    %v1192 = vsub.f32 1.0, %v1184
    %v1193 = vsub.f32 1.0, %v1185
    %v1194 = vsub.f32 1.0, %v1186
    %v1195 = vsub.f32 1.0, %v1187
    %v1196 = vsub.f32 1.0, %v1188
    %v1197 = vsub.f32 1.0, %v1189
    %v1198 = vsub.f32 1.0, %v1190
    %1199 = vmatpush.msra.mxu0 %v77
    %1200 = vmatpush.msra.mxu0 %v76
    %1201 = vmatpush.msra.mxu0 %v75
    %1202 = vmatpush.msra.mxu0 %v74
    %1203 = vmatpush.msra.mxu0 %v73
    %1204 = vmatpush.msra.mxu0 %v72
    %1205 = vmatpush.msra.mxu0 %v71
    %1206 = vmatpush.msra.mxu0 %v70
    %1207 = vmatpush.msra.mxu0 %v69
    %1208 = vmatpush.msra.mxu0 %v68
    %1209 = vmatpush.msra.mxu0 %v67
    %1210 = vmatpush.msra.mxu0 %v66
    %1211 = vmatpush.msra.mxu0 %v65
    %1212 = vmatpush.msra.mxu0 %v64
    %1213 = vmatpush.msra.mxu0 %v63
    %1214 = vmatpush.msra.mxu0 %v62
    %1215 = vmatmul.f32.gmra.mxu0 %v1175
    %v1216 = vpop.f32.mrf.mxu0
    %v1217 = vadd.f32 0.0, %v1216
    %1218 = vmatmul.f32.gmra.mxu0 %v1176
    %v1219 = vpop.f32.mrf.mxu0
    %v1220 = vadd.f32 0.0, %v1219
    %1221 = vmatmul.f32.gmra.mxu0 %v1177
    %v1222 = vpop.f32.mrf.mxu0
    %v1223 = vadd.f32 0.0, %v1222
    %1224 = vmatmul.f32.gmra.mxu0 %v1178
    %v1225 = vpop.f32.mrf.mxu0
    %v1226 = vadd.f32 0.0, %v1225
    %1227 = vmatmul.f32.gmra.mxu0 %v1179
    %v1228 = vpop.f32.mrf.mxu0
    %v1229 = vadd.f32 0.0, %v1228
    %1230 = vmatmul.f32.gmra.mxu0 %v1180
    %v1231 = vpop.f32.mrf.mxu0
    %v1232 = vadd.f32 0.0, %v1231
    %1233 = vmatmul.f32.gmra.mxu0 %v1181
    %v1234 = vpop.f32.mrf.mxu0
    %v1235 = vadd.f32 0.0, %v1234
    %1236 = vmatmul.f32.gmra.mxu0 %v1182
    %v1237 = vpop.f32.mrf.mxu0
    %v1238 = vadd.f32 0.0, %v1237
    %1239 = vmatmul.f32.gmra.mxu0 %v1191
    %v1240 = vpop.f32.mrf.mxu0
    %v1241 = vadd.f32 0.0, %v1240
    %1242 = vmatmul.f32.gmra.mxu0 %v1192
    %v1243 = vpop.f32.mrf.mxu0
    %v1244 = vadd.f32 0.0, %v1243
    %1245 = vmatmul.f32.gmra.mxu0 %v1193
    %v1246 = vpop.f32.mrf.mxu0
    %v1247 = vadd.f32 0.0, %v1246
    %1248 = vmatmul.f32.gmra.mxu0 %v1194
    %v1249 = vpop.f32.mrf.mxu0
    %v1250 = vadd.f32 0.0, %v1249
    %1251 = vmatmul.f32.gmra.mxu0 %v1195
    %v1252 = vpop.f32.mrf.mxu0
    %v1253 = vadd.f32 0.0, %v1252
    %1254 = vmatmul.f32.gmra.mxu0 %v1196
    %v1255 = vpop.f32.mrf.mxu0
    %v1256 = vadd.f32 0.0, %v1255
    %1257 = vmatmul.f32.gmra.mxu0 %v1197
    %v1258 = vpop.f32.mrf.mxu0
    %v1259 = vadd.f32 0.0, %v1258
    %1260 = vmatmul.f32.gmra.mxu0 %v1198
    %v1261 = vpop.f32.mrf.mxu0
    %v1262 = vadd.f32 0.0, %v1261
    %1263 = vdwg.mxu0
    %v1264 = vmul.f32 %v262, %v1217
    %v1265 = vmul.f32 %v262, %v1220
    %v1266 = vmul.f32 %v262, %v1223
    %v1267 = vmul.f32 %v262, %v1226
    %v1268 = vmul.f32 %v262, %v1229
    %v1269 = vmul.f32 %v262, %v1232
    %v1270 = vmul.f32 %v262, %v1235
    %v1271 = vmul.f32 %v262, %v1238
    %v1272 = vadd.f32 %v829, %v1264
    %v1273 = vadd.f32 %v830, %v1265
    %v1274 = vadd.f32 %v831, %v1266
    %v1275 = vadd.f32 %v832, %v1267
    %v1276 = vadd.f32 %v833, %v1268
    %v1277 = vadd.f32 %v834, %v1269
    %v1278 = vadd.f32 %v835, %v1270
    %v1279 = vadd.f32 %v836, %v1271
    %v1281 = vsel %vm107, %v1272, 0
    %v1284 = vsel %vm107, %v1273, 0
    %v1287 = vsel %vm107, %v1274, 0
    %v1290 = vsel %vm107, %v1275, 0
    %v1293 = vsel %vm107, %v1276, 0
    %v1296 = vsel %vm107, %v1277, 0
    %v1299 = vsel %vm107, %v1278, 0
    %v1302 = vsel %vm107, %v1279, 0
    %1304 = vmatpush.msra.mxu0 0.0
    %1305 = vmatpush.msra.mxu0 0.0
    %1306 = vmatpush.msra.mxu0 0.0
    %1307 = vmatpush.msra.mxu0 0.0
    %1308 = vmatpush.msra.mxu0 0.0
    %1309 = vmatpush.msra.mxu0 0.0
    %1310 = vmatpush.msra.mxu0 0.0
    %1311 = vmatpush.msra.mxu0 0.0
    %1312 = vmatpush.msra.mxu0 0.0
    %1313 = vmatpush.msra.mxu0 0.0
    %1314 = vmatpush.msra.mxu0 0.0
    %1315 = vmatpush.msra.mxu0 0.0
    %1316 = vmatpush.msra.mxu0 0.0
    %1317 = vmatpush.msra.mxu0 0.0
    %1318 = vmatpush.msra.mxu0 0.0
    %1319 = vmatpush.msra.mxu0 %v60
    %1320 = vmatmul.f32.gmra.mxu0 %v1281
    %v1321 = vpop.f32.mrf.mxu0
    %v1322 = vadd.f32 %v1108, %v1321
    %1323 = vmatmul.f32.gmra.mxu0 %v1284
    %v1324 = vpop.f32.mrf.mxu0
    %v1325 = vadd.f32 %v1108, %v1324
    %1326 = vmatmul.f32.gmra.mxu0 %v1287
    %v1327 = vpop.f32.mrf.mxu0
    %v1328 = vadd.f32 %v1108, %v1327
    %1329 = vmatmul.f32.gmra.mxu0 %v1290
    %v1330 = vpop.f32.mrf.mxu0
    %v1331 = vadd.f32 %v1108, %v1330
    %1332 = vmatmul.f32.gmra.mxu0 %v1293
    %v1333 = vpop.f32.mrf.mxu0
    %v1334 = vadd.f32 %v1108, %v1333
    %1335 = vmatmul.f32.gmra.mxu0 %v1296
    %v1336 = vpop.f32.mrf.mxu0
    %v1337 = vadd.f32 %v1108, %v1336
    %1338 = vmatmul.f32.gmra.mxu0 %v1299
    %v1339 = vpop.f32.mrf.mxu0
    %v1340 = vadd.f32 %v1108, %v1339
    %1341 = vmatmul.f32.gmra.mxu0 %v1302
    %v1342 = vpop.f32.mrf.mxu0
    %v1343 = vadd.f32 %v1108, %v1342
    %1344 = vdwg.mxu0
    %v1345 = vtanh.pop %v1322
    %v1346 = vtanh.pop %v1325
    %v1347 = vtanh.pop %v1328
    %v1348 = vtanh.pop %v1331
    %v1349 = vtanh.pop %v1334
    %v1350 = vtanh.pop %v1337
    %v1351 = vtanh.pop %v1340
    %v1352 = vtanh.pop %v1343
    %v1353 = vmul.f32 %v1345, %v1345
    %v1354 = vmul.f32 %v1346, %v1346
    %v1355 = vmul.f32 %v1347, %v1347
    %v1356 = vmul.f32 %v1348, %v1348
    %v1357 = vmul.f32 %v1349, %v1349
    %v1358 = vmul.f32 %v1350, %v1350
    %v1359 = vmul.f32 %v1351, %v1351
    %v1360 = vmul.f32 %v1352, %v1352
    %v1361 = vsub.f32 1.0, %v1353
    %v1362 = vsub.f32 1.0, %v1354
    %v1363 = vsub.f32 1.0, %v1355
    %v1364 = vsub.f32 1.0, %v1356
    %v1365 = vsub.f32 1.0, %v1357
    %v1366 = vsub.f32 1.0, %v1358
    %v1367 = vsub.f32 1.0, %v1359
    %v1368 = vsub.f32 1.0, %v1360
    %1369 = vmatpush.msra.mxu0 %v77
    %1370 = vmatpush.msra.mxu0 %v76
    %1371 = vmatpush.msra.mxu0 %v75
    %1372 = vmatpush.msra.mxu0 %v74
    %1373 = vmatpush.msra.mxu0 %v73
    %1374 = vmatpush.msra.mxu0 %v72
    %1375 = vmatpush.msra.mxu0 %v71
    %1376 = vmatpush.msra.mxu0 %v70
    %1377 = vmatpush.msra.mxu0 %v69
    %1378 = vmatpush.msra.mxu0 %v68
    %1379 = vmatpush.msra.mxu0 %v67
    %1380 = vmatpush.msra.mxu0 %v66
    %1381 = vmatpush.msra.mxu0 %v65
    %1382 = vmatpush.msra.mxu0 %v64
    %1383 = vmatpush.msra.mxu0 %v63
    %1384 = vmatpush.msra.mxu0 %v62
    %1385 = vmatmul.f32.gmra.mxu0 %v1345
    %v1386 = vpop.f32.mrf.mxu0
    %v1387 = vadd.f32 0.0, %v1386
    %1388 = vmatmul.f32.gmra.mxu0 %v1346
    %v1389 = vpop.f32.mrf.mxu0
    %v1390 = vadd.f32 0.0, %v1389
    %1391 = vmatmul.f32.gmra.mxu0 %v1347
    %v1392 = vpop.f32.mrf.mxu0
    %v1393 = vadd.f32 0.0, %v1392
    %1394 = vmatmul.f32.gmra.mxu0 %v1348
    %v1395 = vpop.f32.mrf.mxu0
    %v1396 = vadd.f32 0.0, %v1395
    %1397 = vmatmul.f32.gmra.mxu0 %v1349
    %v1398 = vpop.f32.mrf.mxu0
    %v1399 = vadd.f32 0.0, %v1398
    %1400 = vmatmul.f32.gmra.mxu0 %v1350
    %v1401 = vpop.f32.mrf.mxu0
    %v1402 = vadd.f32 0.0, %v1401
    %1403 = vmatmul.f32.gmra.mxu0 %v1351
    %v1404 = vpop.f32.mrf.mxu0
    %v1405 = vadd.f32 0.0, %v1404
    %1406 = vmatmul.f32.gmra.mxu0 %v1352
    %v1407 = vpop.f32.mrf.mxu0
    %v1408 = vadd.f32 0.0, %v1407
    %1409 = vmatmul.f32.gmra.mxu0 %v1361
    %v1410 = vpop.f32.mrf.mxu0
    %v1411 = vadd.f32 0.0, %v1410
    %1412 = vmatmul.f32.gmra.mxu0 %v1362
    %v1413 = vpop.f32.mrf.mxu0
    %v1414 = vadd.f32 0.0, %v1413
    %1415 = vmatmul.f32.gmra.mxu0 %v1363
    %v1416 = vpop.f32.mrf.mxu0
    %v1417 = vadd.f32 0.0, %v1416
    %1418 = vmatmul.f32.gmra.mxu0 %v1364
    %v1419 = vpop.f32.mrf.mxu0
    %v1420 = vadd.f32 0.0, %v1419
    %1421 = vmatmul.f32.gmra.mxu0 %v1365
    %v1422 = vpop.f32.mrf.mxu0
    %v1423 = vadd.f32 0.0, %v1422
    %1424 = vmatmul.f32.gmra.mxu0 %v1366
    %v1425 = vpop.f32.mrf.mxu0
    %v1426 = vadd.f32 0.0, %v1425
    %1427 = vmatmul.f32.gmra.mxu0 %v1367
    %v1428 = vpop.f32.mrf.mxu0
    %v1429 = vadd.f32 0.0, %v1428
    %1430 = vmatmul.f32.gmra.mxu0 %v1368
    %v1431 = vpop.f32.mrf.mxu0
    %v1432 = vadd.f32 0.0, %v1431
    %1433 = vdwg.mxu0
    %v1434 = vmul.f32 %v606, %v1387
    %v1435 = vmul.f32 %v606, %v1390
    %v1436 = vmul.f32 %v606, %v1393
    %v1437 = vmul.f32 %v606, %v1396
    %v1438 = vmul.f32 %v606, %v1399
    %v1439 = vmul.f32 %v606, %v1402
    %v1440 = vmul.f32 %v606, %v1405
    %v1441 = vmul.f32 %v606, %v1408
    %v1442 = vadd.f32 %v829, %v1434
    %v1443 = vadd.f32 %v830, %v1435
    %v1444 = vadd.f32 %v831, %v1436
    %v1445 = vadd.f32 %v832, %v1437
    %v1446 = vadd.f32 %v833, %v1438
    %v1447 = vadd.f32 %v834, %v1439
    %v1448 = vadd.f32 %v835, %v1440
    %v1449 = vadd.f32 %v836, %v1441
    %v1451 = vperm.slane %v933, 0
    %v1454 = vsel %vm107, %v1442, 0
    %v1457 = vsel %vm107, %v1443, 0
    %v1460 = vsel %vm107, %v1444, 0
    %v1463 = vsel %vm107, %v1445, 0
    %v1466 = vsel %vm107, %v1446, 0
    %v1469 = vsel %vm107, %v1447, 0
    %v1472 = vsel %vm107, %v1448, 0
    %v1475 = vsel %vm107, %v1449, 0
    %1477 = vmatpush.msra.mxu0 0.0
    %1478 = vmatpush.msra.mxu0 0.0
    %1479 = vmatpush.msra.mxu0 0.0
    %1480 = vmatpush.msra.mxu0 0.0
    %1481 = vmatpush.msra.mxu0 0.0
    %1482 = vmatpush.msra.mxu0 0.0
    %1483 = vmatpush.msra.mxu0 0.0
    %1484 = vmatpush.msra.mxu0 0.0
    %1485 = vmatpush.msra.mxu0 0.0
    %1486 = vmatpush.msra.mxu0 0.0
    %1487 = vmatpush.msra.mxu0 0.0
    %1488 = vmatpush.msra.mxu0 0.0
    %1489 = vmatpush.msra.mxu0 0.0
    %1490 = vmatpush.msra.mxu0 0.0
    %1491 = vmatpush.msra.mxu0 0.0
    %1492 = vmatpush.msra.mxu0 %v60
    %1493 = vmatmul.f32.gmra.mxu0 %v1454
    %v1494 = vpop.f32.mrf.mxu0
    %v1495 = vadd.f32 %v1451, %v1494
    %1496 = vmatmul.f32.gmra.mxu0 %v1457
    %v1497 = vpop.f32.mrf.mxu0
    %v1498 = vadd.f32 %v1451, %v1497
    %1499 = vmatmul.f32.gmra.mxu0 %v1460
    %v1500 = vpop.f32.mrf.mxu0
    %v1501 = vadd.f32 %v1451, %v1500
    %1502 = vmatmul.f32.gmra.mxu0 %v1463
    %v1503 = vpop.f32.mrf.mxu0
    %v1504 = vadd.f32 %v1451, %v1503
    %1505 = vmatmul.f32.gmra.mxu0 %v1466
    %v1506 = vpop.f32.mrf.mxu0
    %v1507 = vadd.f32 %v1451, %v1506
    %1508 = vmatmul.f32.gmra.mxu0 %v1469
    %v1509 = vpop.f32.mrf.mxu0
    %v1510 = vadd.f32 %v1451, %v1509
    %1511 = vmatmul.f32.gmra.mxu0 %v1472
    %v1512 = vpop.f32.mrf.mxu0
    %v1513 = vadd.f32 %v1451, %v1512
    %1514 = vmatmul.f32.gmra.mxu0 %v1475
    %v1515 = vpop.f32.mrf.mxu0
    %v1516 = vadd.f32 %v1451, %v1515
    %1517 = vdwg.mxu0
    %v1518 = vtanh.pop %v1495
    %v1519 = vtanh.pop %v1498
    %v1520 = vtanh.pop %v1501
    %v1521 = vtanh.pop %v1504
    %v1522 = vtanh.pop %v1507
    %v1523 = vtanh.pop %v1510
    %v1524 = vtanh.pop %v1513
    %v1525 = vtanh.pop %v1516
    %v1526 = vmul.f32 %v1518, %v1518
    %v1527 = vmul.f32 %v1519, %v1519
    %v1528 = vmul.f32 %v1520, %v1520
    %v1529 = vmul.f32 %v1521, %v1521
    %v1530 = vmul.f32 %v1522, %v1522
    %v1531 = vmul.f32 %v1523, %v1523
    %v1532 = vmul.f32 %v1524, %v1524
    %v1533 = vmul.f32 %v1525, %v1525
    %v1534 = vsub.f32 1.0, %v1526
    %v1535 = vsub.f32 1.0, %v1527
    %v1536 = vsub.f32 1.0, %v1528
    %v1537 = vsub.f32 1.0, %v1529
    %v1538 = vsub.f32 1.0, %v1530
    %v1539 = vsub.f32 1.0, %v1531
    %v1540 = vsub.f32 1.0, %v1532
    %v1541 = vsub.f32 1.0, %v1533
    %1542 = vmatpush.msra.mxu0 %v77
    %1543 = vmatpush.msra.mxu0 %v76
    %1544 = vmatpush.msra.mxu0 %v75
    %1545 = vmatpush.msra.mxu0 %v74
    %1546 = vmatpush.msra.mxu0 %v73
    %1547 = vmatpush.msra.mxu0 %v72
    %1548 = vmatpush.msra.mxu0 %v71
    %1549 = vmatpush.msra.mxu0 %v70
    %1550 = vmatpush.msra.mxu0 %v69
    %1551 = vmatpush.msra.mxu0 %v68
    %1552 = vmatpush.msra.mxu0 %v67
    %1553 = vmatpush.msra.mxu0 %v66
    %1554 = vmatpush.msra.mxu0 %v65
    %1555 = vmatpush.msra.mxu0 %v64
    %1556 = vmatpush.msra.mxu0 %v63
    %1557 = vmatpush.msra.mxu0 %v62
    %1558 = vmatmul.f32.gmra.mxu0 %v1518
    %v1559 = vpop.f32.mrf.mxu0
    %v1560 = vadd.f32 0.0, %v1559
    %1561 = vmatmul.f32.gmra.mxu0 %v1519
    %v1562 = vpop.f32.mrf.mxu0
    %v1563 = vadd.f32 0.0, %v1562
    %1564 = vmatmul.f32.gmra.mxu0 %v1520
    %v1565 = vpop.f32.mrf.mxu0
    %v1566 = vadd.f32 0.0, %v1565
    %1567 = vmatmul.f32.gmra.mxu0 %v1521
    %v1568 = vpop.f32.mrf.mxu0
    %v1569 = vadd.f32 0.0, %v1568
    %1570 = vmatmul.f32.gmra.mxu0 %v1522
    %v1571 = vpop.f32.mrf.mxu0
    %v1572 = vadd.f32 0.0, %v1571
    %1573 = vmatmul.f32.gmra.mxu0 %v1523
    %v1574 = vpop.f32.mrf.mxu0
    %v1575 = vadd.f32 0.0, %v1574
    %1576 = vmatmul.f32.gmra.mxu0 %v1524
    %v1577 = vpop.f32.mrf.mxu0
    %v1578 = vadd.f32 0.0, %v1577
    %1579 = vmatmul.f32.gmra.mxu0 %v1525
    %v1580 = vpop.f32.mrf.mxu0
    %v1581 = vadd.f32 0.0, %v1580
    %1582 = vmatmul.f32.gmra.mxu0 %v1534
    %v1583 = vpop.f32.mrf.mxu0
    %v1584 = vadd.f32 0.0, %v1583
    %1585 = vmatmul.f32.gmra.mxu0 %v1535
    %v1586 = vpop.f32.mrf.mxu0
    %v1587 = vadd.f32 0.0, %v1586
    %1588 = vmatmul.f32.gmra.mxu0 %v1536
    %v1589 = vpop.f32.mrf.mxu0
    %v1590 = vadd.f32 0.0, %v1589
    %1591 = vmatmul.f32.gmra.mxu0 %v1537
    %v1592 = vpop.f32.mrf.mxu0
    %v1593 = vadd.f32 0.0, %v1592
    %1594 = vmatmul.f32.gmra.mxu0 %v1538
    %v1595 = vpop.f32.mrf.mxu0
    %v1596 = vadd.f32 0.0, %v1595
    %1597 = vmatmul.f32.gmra.mxu0 %v1539
    %v1598 = vpop.f32.mrf.mxu0
    %v1599 = vadd.f32 0.0, %v1598
    %1600 = vmatmul.f32.gmra.mxu0 %v1540
    %v1601 = vpop.f32.mrf.mxu0
    %v1602 = vadd.f32 0.0, %v1601
    %1603 = vmatmul.f32.gmra.mxu0 %v1541
    %v1604 = vpop.f32.mrf.mxu0
    %v1605 = vadd.f32 0.0, %v1604
    %1606 = vdwg.mxu0
    %v1607 = vmul.f32 %v1217, 2.0
    %v1608 = vmul.f32 %v1220, 2.0
    %v1609 = vmul.f32 %v1223, 2.0
    %v1610 = vmul.f32 %v1226, 2.0
    %v1611 = vmul.f32 %v1229, 2.0
    %v1612 = vmul.f32 %v1232, 2.0
    %v1613 = vmul.f32 %v1235, 2.0
    %v1614 = vmul.f32 %v1238, 2.0
    %v1615 = vadd.f32 %v1044, %v1607
    %v1616 = vadd.f32 %v1047, %v1608
    %v1617 = vadd.f32 %v1050, %v1609
    %v1618 = vadd.f32 %v1053, %v1610
    %v1619 = vadd.f32 %v1056, %v1611
    %v1620 = vadd.f32 %v1059, %v1612
    %v1621 = vadd.f32 %v1062, %v1613
    %v1622 = vadd.f32 %v1065, %v1614
    %v1623 = vmul.f32 %v1387, 2.0
    %v1624 = vmul.f32 %v1390, 2.0
    %v1625 = vmul.f32 %v1393, 2.0
    %v1626 = vmul.f32 %v1396, 2.0
    %v1627 = vmul.f32 %v1399, 2.0
    %v1628 = vmul.f32 %v1402, 2.0
    %v1629 = vmul.f32 %v1405, 2.0
    %v1630 = vmul.f32 %v1408, 2.0
    %v1631 = vadd.f32 %v1615, %v1623
    %v1632 = vadd.f32 %v1616, %v1624
    %v1633 = vadd.f32 %v1617, %v1625
    %v1634 = vadd.f32 %v1618, %v1626
    %v1635 = vadd.f32 %v1619, %v1627
    %v1636 = vadd.f32 %v1620, %v1628
    %v1637 = vadd.f32 %v1621, %v1629
    %v1638 = vadd.f32 %v1622, %v1630
    %v1639 = vadd.f32 %v1631, %v1560
    %v1640 = vadd.f32 %v1632, %v1563
    %v1641 = vadd.f32 %v1633, %v1566
    %v1642 = vadd.f32 %v1634, %v1569
    %v1643 = vadd.f32 %v1635, %v1572
    %v1644 = vadd.f32 %v1636, %v1575
    %v1645 = vadd.f32 %v1637, %v1578
    %v1646 = vadd.f32 %v1638, %v1581
    %v1647 = vmul.f32 %v820, %v1639
    %v1648 = vmul.f32 %v820, %v1640
    %v1649 = vmul.f32 %v820, %v1641
    %v1650 = vmul.f32 %v820, %v1642
    %v1651 = vmul.f32 %v820, %v1643
    %v1652 = vmul.f32 %v820, %v1644
    %v1653 = vmul.f32 %v820, %v1645
    %v1654 = vmul.f32 %v820, %v1646
    %v1655 = vadd.f32 %v829, %v1647
    %v1656 = vadd.f32 %v830, %v1648
    %v1657 = vadd.f32 %v831, %v1649
    %v1658 = vadd.f32 %v832, %v1650
    %v1659 = vadd.f32 %v833, %v1651
    %v1660 = vadd.f32 %v834, %v1652
    %v1661 = vadd.f32 %v835, %v1653
    %v1662 = vadd.f32 %v836, %v1654
    %v1663 = vmul.f32 %v1241, 2.0
    %v1664 = vmul.f32 %v1244, 2.0
    %v1665 = vmul.f32 %v1247, 2.0
    %v1666 = vmul.f32 %v1250, 2.0
    %v1667 = vmul.f32 %v1253, 2.0
    %v1668 = vmul.f32 %v1256, 2.0
    %v1669 = vmul.f32 %v1259, 2.0
    %v1670 = vmul.f32 %v1262, 2.0
    %v1671 = vadd.f32 %v1068, %v1663
    %v1672 = vadd.f32 %v1071, %v1664
    %v1673 = vadd.f32 %v1074, %v1665
    %v1674 = vadd.f32 %v1077, %v1666
    %v1675 = vadd.f32 %v1080, %v1667
    %v1676 = vadd.f32 %v1083, %v1668
    %v1677 = vadd.f32 %v1086, %v1669
    %v1678 = vadd.f32 %v1089, %v1670
    %v1679 = vmul.f32 %v1411, 2.0
    %v1680 = vmul.f32 %v1414, 2.0
    %v1681 = vmul.f32 %v1417, 2.0
    %v1682 = vmul.f32 %v1420, 2.0
    %v1683 = vmul.f32 %v1423, 2.0
    %v1684 = vmul.f32 %v1426, 2.0
    %v1685 = vmul.f32 %v1429, 2.0
    %v1686 = vmul.f32 %v1432, 2.0
    %v1687 = vadd.f32 %v1671, %v1679
    %v1688 = vadd.f32 %v1672, %v1680
    %v1689 = vadd.f32 %v1673, %v1681
    %v1690 = vadd.f32 %v1674, %v1682
    %v1691 = vadd.f32 %v1675, %v1683
    %v1692 = vadd.f32 %v1676, %v1684
    %v1693 = vadd.f32 %v1677, %v1685
    %v1694 = vadd.f32 %v1678, %v1686
    %v1695 = vadd.f32 %v1687, %v1584
    %v1696 = vadd.f32 %v1688, %v1587
    %v1697 = vadd.f32 %v1689, %v1590
    %v1698 = vadd.f32 %v1690, %v1593
    %v1699 = vadd.f32 %v1691, %v1596
    %v1700 = vadd.f32 %v1692, %v1599
    %v1701 = vadd.f32 %v1693, %v1602
    %v1702 = vadd.f32 %v1694, %v1605
    %v1703 = vmul.f32 %v820, %v1695
    %v1704 = vmul.f32 %v820, %v1696
    %v1705 = vmul.f32 %v820, %v1697
    %v1706 = vmul.f32 %v820, %v1698
    %v1707 = vmul.f32 %v820, %v1699
    %v1708 = vmul.f32 %v820, %v1700
    %v1709 = vmul.f32 %v820, %v1701
    %v1710 = vmul.f32 %v820, %v1702
    %1719 = vrot.lane.b32.xlu0 %v1703, 120
    %v1720 = vpop.permute.xlu0 %1719
    %1721 = vrot.lane.b32.xlu0 %v1704, 120
    %v1722 = vpop.permute.xlu0 %1721
    %1723 = vrot.lane.b32.xlu0 %v1705, 120
    %v1724 = vpop.permute.xlu0 %1723
    %1725 = vrot.lane.b32.xlu0 %v1706, 120
    %v1726 = vpop.permute.xlu0 %1725
    %1727 = vrot.lane.b32.xlu0 %v1707, 120
    %v1728 = vpop.permute.xlu0 %1727
    %1729 = vrot.lane.b32.xlu0 %v1708, 120
    %v1730 = vpop.permute.xlu0 %1729
    %1731 = vrot.lane.b32.xlu0 %v1709, 120
    %v1732 = vpop.permute.xlu0 %1731
    %1733 = vrot.lane.b32.xlu0 %v1710, 120
    %v1734 = vpop.permute.xlu0 %1733
    %v1743 = vadd.f32 %v917, %v1720
    %v1744 = vadd.f32 %v918, %v1722
    %v1745 = vadd.f32 %v919, %v1724
    %v1746 = vadd.f32 %v920, %v1726
    %v1747 = vadd.f32 %v921, %v1728
    %v1748 = vadd.f32 %v922, %v1730
    %v1749 = vadd.f32 %v923, %v1732
    %v1750 = vadd.f32 %v924, %v1734
    %s1751 = smul.f32 %s49, 2.0
    %s1752 = sadd.f32 %s38, %s1751
    %v1753 = vstv %s1752
    %v1754 = vadd.f32 %v61, %v1753
    %s1755 = sadd.f32 %s1752, %s50
    %v1756 = vstv %s1755
    %v1757 = vadd.f32 %v61, %v1756
    %s1758 = sadd.f32 %s1752, %s49
    %v1759 = vstv %s1758
    %v1760 = vadd.f32 %v61, %v1759
    %v1762 = vperm.slane %v1754, 0
    %v1765 = vsel %vm107, %v1655, 0
    %v1768 = vsel %vm107, %v1656, 0
    %v1771 = vsel %vm107, %v1657, 0
    %v1774 = vsel %vm107, %v1658, 0
    %v1777 = vsel %vm107, %v1659, 0
    %v1780 = vsel %vm107, %v1660, 0
    %v1783 = vsel %vm107, %v1661, 0
    %v1786 = vsel %vm107, %v1662, 0
    %1788 = vmatpush.msra.mxu0 0.0
    %1789 = vmatpush.msra.mxu0 0.0
    %1790 = vmatpush.msra.mxu0 0.0
    %1791 = vmatpush.msra.mxu0 0.0
    %1792 = vmatpush.msra.mxu0 0.0
    %1793 = vmatpush.msra.mxu0 0.0
    %1794 = vmatpush.msra.mxu0 0.0
    %1795 = vmatpush.msra.mxu0 0.0
    %1796 = vmatpush.msra.mxu0 0.0
    %1797 = vmatpush.msra.mxu0 0.0
    %1798 = vmatpush.msra.mxu0 0.0
    %1799 = vmatpush.msra.mxu0 0.0
    %1800 = vmatpush.msra.mxu0 0.0
    %1801 = vmatpush.msra.mxu0 0.0
    %1802 = vmatpush.msra.mxu0 0.0
    %1803 = vmatpush.msra.mxu0 %v60
    %1804 = vmatmul.f32.gmra.mxu0 %v1765
    %v1805 = vpop.f32.mrf.mxu0
    %v1806 = vadd.f32 %v1762, %v1805
    %1807 = vmatmul.f32.gmra.mxu0 %v1768
    %v1808 = vpop.f32.mrf.mxu0
    %v1809 = vadd.f32 %v1762, %v1808
    %1810 = vmatmul.f32.gmra.mxu0 %v1771
    %v1811 = vpop.f32.mrf.mxu0
    %v1812 = vadd.f32 %v1762, %v1811
    %1813 = vmatmul.f32.gmra.mxu0 %v1774
    %v1814 = vpop.f32.mrf.mxu0
    %v1815 = vadd.f32 %v1762, %v1814
    %1816 = vmatmul.f32.gmra.mxu0 %v1777
    %v1817 = vpop.f32.mrf.mxu0
    %v1818 = vadd.f32 %v1762, %v1817
    %1819 = vmatmul.f32.gmra.mxu0 %v1780
    %v1820 = vpop.f32.mrf.mxu0
    %v1821 = vadd.f32 %v1762, %v1820
    %1822 = vmatmul.f32.gmra.mxu0 %v1783
    %v1823 = vpop.f32.mrf.mxu0
    %v1824 = vadd.f32 %v1762, %v1823
    %1825 = vmatmul.f32.gmra.mxu0 %v1786
    %v1826 = vpop.f32.mrf.mxu0
    %v1827 = vadd.f32 %v1762, %v1826
    %1828 = vdwg.mxu0
    %v1829 = vtanh.pop %v1806
    %v1830 = vtanh.pop %v1809
    %v1831 = vtanh.pop %v1812
    %v1832 = vtanh.pop %v1815
    %v1833 = vtanh.pop %v1818
    %v1834 = vtanh.pop %v1821
    %v1835 = vtanh.pop %v1824
    %v1836 = vtanh.pop %v1827
    %v1837 = vmul.f32 %v1829, %v1829
    %v1838 = vmul.f32 %v1830, %v1830
    %v1839 = vmul.f32 %v1831, %v1831
    %v1840 = vmul.f32 %v1832, %v1832
    %v1841 = vmul.f32 %v1833, %v1833
    %v1842 = vmul.f32 %v1834, %v1834
    %v1843 = vmul.f32 %v1835, %v1835
    %v1844 = vmul.f32 %v1836, %v1836
    %v1845 = vsub.f32 1.0, %v1837
    %v1846 = vsub.f32 1.0, %v1838
    %v1847 = vsub.f32 1.0, %v1839
    %v1848 = vsub.f32 1.0, %v1840
    %v1849 = vsub.f32 1.0, %v1841
    %v1850 = vsub.f32 1.0, %v1842
    %v1851 = vsub.f32 1.0, %v1843
    %v1852 = vsub.f32 1.0, %v1844
    %1853 = vmatpush.msra.mxu0 %v77
    %1854 = vmatpush.msra.mxu0 %v76
    %1855 = vmatpush.msra.mxu0 %v75
    %1856 = vmatpush.msra.mxu0 %v74
    %1857 = vmatpush.msra.mxu0 %v73
    %1858 = vmatpush.msra.mxu0 %v72
    %1859 = vmatpush.msra.mxu0 %v71
    %1860 = vmatpush.msra.mxu0 %v70
    %1861 = vmatpush.msra.mxu0 %v69
    %1862 = vmatpush.msra.mxu0 %v68
    %1863 = vmatpush.msra.mxu0 %v67
    %1864 = vmatpush.msra.mxu0 %v66
    %1865 = vmatpush.msra.mxu0 %v65
    %1866 = vmatpush.msra.mxu0 %v64
    %1867 = vmatpush.msra.mxu0 %v63
    %1868 = vmatpush.msra.mxu0 %v62
    %1869 = vmatmul.f32.gmra.mxu0 %v1829
    %v1870 = vpop.f32.mrf.mxu0
    %v1871 = vadd.f32 0.0, %v1870
    %1872 = vmatmul.f32.gmra.mxu0 %v1830
    %v1873 = vpop.f32.mrf.mxu0
    %v1874 = vadd.f32 0.0, %v1873
    %1875 = vmatmul.f32.gmra.mxu0 %v1831
    %v1876 = vpop.f32.mrf.mxu0
    %v1877 = vadd.f32 0.0, %v1876
    %1878 = vmatmul.f32.gmra.mxu0 %v1832
    %v1879 = vpop.f32.mrf.mxu0
    %v1880 = vadd.f32 0.0, %v1879
    %1881 = vmatmul.f32.gmra.mxu0 %v1833
    %v1882 = vpop.f32.mrf.mxu0
    %v1883 = vadd.f32 0.0, %v1882
    %1884 = vmatmul.f32.gmra.mxu0 %v1834
    %v1885 = vpop.f32.mrf.mxu0
    %v1886 = vadd.f32 0.0, %v1885
    %1887 = vmatmul.f32.gmra.mxu0 %v1835
    %v1888 = vpop.f32.mrf.mxu0
    %v1889 = vadd.f32 0.0, %v1888
    %1890 = vmatmul.f32.gmra.mxu0 %v1836
    %v1891 = vpop.f32.mrf.mxu0
    %v1892 = vadd.f32 0.0, %v1891
    %1893 = vmatmul.f32.gmra.mxu0 %v1845
    %v1894 = vpop.f32.mrf.mxu0
    %v1895 = vadd.f32 0.0, %v1894
    %1896 = vmatmul.f32.gmra.mxu0 %v1846
    %v1897 = vpop.f32.mrf.mxu0
    %v1898 = vadd.f32 0.0, %v1897
    %1899 = vmatmul.f32.gmra.mxu0 %v1847
    %v1900 = vpop.f32.mrf.mxu0
    %v1901 = vadd.f32 0.0, %v1900
    %1902 = vmatmul.f32.gmra.mxu0 %v1848
    %v1903 = vpop.f32.mrf.mxu0
    %v1904 = vadd.f32 0.0, %v1903
    %1905 = vmatmul.f32.gmra.mxu0 %v1849
    %v1906 = vpop.f32.mrf.mxu0
    %v1907 = vadd.f32 0.0, %v1906
    %1908 = vmatmul.f32.gmra.mxu0 %v1850
    %v1909 = vpop.f32.mrf.mxu0
    %v1910 = vadd.f32 0.0, %v1909
    %1911 = vmatmul.f32.gmra.mxu0 %v1851
    %v1912 = vpop.f32.mrf.mxu0
    %v1913 = vadd.f32 0.0, %v1912
    %1914 = vmatmul.f32.gmra.mxu0 %v1852
    %v1915 = vpop.f32.mrf.mxu0
    %v1916 = vadd.f32 0.0, %v1915
    %1917 = vdwg.mxu0
    %v1918 = vmul.f32 %v262, %v1871
    %v1919 = vmul.f32 %v262, %v1874
    %v1920 = vmul.f32 %v262, %v1877
    %v1921 = vmul.f32 %v262, %v1880
    %v1922 = vmul.f32 %v262, %v1883
    %v1923 = vmul.f32 %v262, %v1886
    %v1924 = vmul.f32 %v262, %v1889
    %v1925 = vmul.f32 %v262, %v1892
    %v1926 = vadd.f32 %v1655, %v1918
    %v1927 = vadd.f32 %v1656, %v1919
    %v1928 = vadd.f32 %v1657, %v1920
    %v1929 = vadd.f32 %v1658, %v1921
    %v1930 = vadd.f32 %v1659, %v1922
    %v1931 = vadd.f32 %v1660, %v1923
    %v1932 = vadd.f32 %v1661, %v1924
    %v1933 = vadd.f32 %v1662, %v1925
    %v1935 = vperm.slane %v1757, 0
    %v1938 = vsel %vm107, %v1926, 0
    %v1941 = vsel %vm107, %v1927, 0
    %v1944 = vsel %vm107, %v1928, 0
    %v1947 = vsel %vm107, %v1929, 0
    %v1950 = vsel %vm107, %v1930, 0
    %v1953 = vsel %vm107, %v1931, 0
    %v1956 = vsel %vm107, %v1932, 0
    %v1959 = vsel %vm107, %v1933, 0
    %1961 = vmatpush.msra.mxu0 0.0
    %1962 = vmatpush.msra.mxu0 0.0
    %1963 = vmatpush.msra.mxu0 0.0
    %1964 = vmatpush.msra.mxu0 0.0
    %1965 = vmatpush.msra.mxu0 0.0
    %1966 = vmatpush.msra.mxu0 0.0
    %1967 = vmatpush.msra.mxu0 0.0
    %1968 = vmatpush.msra.mxu0 0.0
    %1969 = vmatpush.msra.mxu0 0.0
    %1970 = vmatpush.msra.mxu0 0.0
    %1971 = vmatpush.msra.mxu0 0.0
    %1972 = vmatpush.msra.mxu0 0.0
    %1973 = vmatpush.msra.mxu0 0.0
    %1974 = vmatpush.msra.mxu0 0.0
    %1975 = vmatpush.msra.mxu0 0.0
    %1976 = vmatpush.msra.mxu0 %v60
    %1977 = vmatmul.f32.gmra.mxu0 %v1938
    %v1978 = vpop.f32.mrf.mxu0
    %v1979 = vadd.f32 %v1935, %v1978
    %1980 = vmatmul.f32.gmra.mxu0 %v1941
    %v1981 = vpop.f32.mrf.mxu0
    %v1982 = vadd.f32 %v1935, %v1981
    %1983 = vmatmul.f32.gmra.mxu0 %v1944
    %v1984 = vpop.f32.mrf.mxu0
    %v1985 = vadd.f32 %v1935, %v1984
    %1986 = vmatmul.f32.gmra.mxu0 %v1947
    %v1987 = vpop.f32.mrf.mxu0
    %v1988 = vadd.f32 %v1935, %v1987
    %1989 = vmatmul.f32.gmra.mxu0 %v1950
    %v1990 = vpop.f32.mrf.mxu0
    %v1991 = vadd.f32 %v1935, %v1990
    %1992 = vmatmul.f32.gmra.mxu0 %v1953
    %v1993 = vpop.f32.mrf.mxu0
    %v1994 = vadd.f32 %v1935, %v1993
    %1995 = vmatmul.f32.gmra.mxu0 %v1956
    %v1996 = vpop.f32.mrf.mxu0
    %v1997 = vadd.f32 %v1935, %v1996
    %1998 = vmatmul.f32.gmra.mxu0 %v1959
    %v1999 = vpop.f32.mrf.mxu0
    %v2000 = vadd.f32 %v1935, %v1999
    %2001 = vdwg.mxu0
    %v2002 = vtanh.pop %v1979
    %v2003 = vtanh.pop %v1982
    %v2004 = vtanh.pop %v1985
    %v2005 = vtanh.pop %v1988
    %v2006 = vtanh.pop %v1991
    %v2007 = vtanh.pop %v1994
    %v2008 = vtanh.pop %v1997
    %v2009 = vtanh.pop %v2000
    %v2010 = vmul.f32 %v2002, %v2002
    %v2011 = vmul.f32 %v2003, %v2003
    %v2012 = vmul.f32 %v2004, %v2004
    %v2013 = vmul.f32 %v2005, %v2005
    %v2014 = vmul.f32 %v2006, %v2006
    %v2015 = vmul.f32 %v2007, %v2007
    %v2016 = vmul.f32 %v2008, %v2008
    %v2017 = vmul.f32 %v2009, %v2009
    %v2018 = vsub.f32 1.0, %v2010
    %v2019 = vsub.f32 1.0, %v2011
    %v2020 = vsub.f32 1.0, %v2012
    %v2021 = vsub.f32 1.0, %v2013
    %v2022 = vsub.f32 1.0, %v2014
    %v2023 = vsub.f32 1.0, %v2015
    %v2024 = vsub.f32 1.0, %v2016
    %v2025 = vsub.f32 1.0, %v2017
    %2026 = vmatpush.msra.mxu0 %v77
    %2027 = vmatpush.msra.mxu0 %v76
    %2028 = vmatpush.msra.mxu0 %v75
    %2029 = vmatpush.msra.mxu0 %v74
    %2030 = vmatpush.msra.mxu0 %v73
    %2031 = vmatpush.msra.mxu0 %v72
    %2032 = vmatpush.msra.mxu0 %v71
    %2033 = vmatpush.msra.mxu0 %v70
    %2034 = vmatpush.msra.mxu0 %v69
    %2035 = vmatpush.msra.mxu0 %v68
    %2036 = vmatpush.msra.mxu0 %v67
    %2037 = vmatpush.msra.mxu0 %v66
    %2038 = vmatpush.msra.mxu0 %v65
    %2039 = vmatpush.msra.mxu0 %v64
    %2040 = vmatpush.msra.mxu0 %v63
    %2041 = vmatpush.msra.mxu0 %v62
    %2042 = vmatmul.f32.gmra.mxu0 %v2002
    %v2043 = vpop.f32.mrf.mxu0
    %v2044 = vadd.f32 0.0, %v2043
    %2045 = vmatmul.f32.gmra.mxu0 %v2003
    %v2046 = vpop.f32.mrf.mxu0
    %v2047 = vadd.f32 0.0, %v2046
    %2048 = vmatmul.f32.gmra.mxu0 %v2004
    %v2049 = vpop.f32.mrf.mxu0
    %v2050 = vadd.f32 0.0, %v2049
    %2051 = vmatmul.f32.gmra.mxu0 %v2005
    %v2052 = vpop.f32.mrf.mxu0
    %v2053 = vadd.f32 0.0, %v2052
    %2054 = vmatmul.f32.gmra.mxu0 %v2006
    %v2055 = vpop.f32.mrf.mxu0
    %v2056 = vadd.f32 0.0, %v2055
    %2057 = vmatmul.f32.gmra.mxu0 %v2007
    %v2058 = vpop.f32.mrf.mxu0
    %v2059 = vadd.f32 0.0, %v2058
    %2060 = vmatmul.f32.gmra.mxu0 %v2008
    %v2061 = vpop.f32.mrf.mxu0
    %v2062 = vadd.f32 0.0, %v2061
    %2063 = vmatmul.f32.gmra.mxu0 %v2009
    %v2064 = vpop.f32.mrf.mxu0
    %v2065 = vadd.f32 0.0, %v2064
    %2066 = vmatmul.f32.gmra.mxu0 %v2018
    %v2067 = vpop.f32.mrf.mxu0
    %v2068 = vadd.f32 0.0, %v2067
    %2069 = vmatmul.f32.gmra.mxu0 %v2019
    %v2070 = vpop.f32.mrf.mxu0
    %v2071 = vadd.f32 0.0, %v2070
    %2072 = vmatmul.f32.gmra.mxu0 %v2020
    %v2073 = vpop.f32.mrf.mxu0
    %v2074 = vadd.f32 0.0, %v2073
    %2075 = vmatmul.f32.gmra.mxu0 %v2021
    %v2076 = vpop.f32.mrf.mxu0
    %v2077 = vadd.f32 0.0, %v2076
    %2078 = vmatmul.f32.gmra.mxu0 %v2022
    %v2079 = vpop.f32.mrf.mxu0
    %v2080 = vadd.f32 0.0, %v2079
    %2081 = vmatmul.f32.gmra.mxu0 %v2023
    %v2082 = vpop.f32.mrf.mxu0
    %v2083 = vadd.f32 0.0, %v2082
    %2084 = vmatmul.f32.gmra.mxu0 %v2024
    %v2085 = vpop.f32.mrf.mxu0
    %v2086 = vadd.f32 0.0, %v2085
    %2087 = vmatmul.f32.gmra.mxu0 %v2025
    %v2088 = vpop.f32.mrf.mxu0
    %v2089 = vadd.f32 0.0, %v2088
    %2090 = vdwg.mxu0
    %v2091 = vmul.f32 %v262, %v2044
    %v2092 = vmul.f32 %v262, %v2047
    %v2093 = vmul.f32 %v262, %v2050
    %v2094 = vmul.f32 %v262, %v2053
    %v2095 = vmul.f32 %v262, %v2056
    %v2096 = vmul.f32 %v262, %v2059
    %v2097 = vmul.f32 %v262, %v2062
    %v2098 = vmul.f32 %v262, %v2065
    %v2099 = vadd.f32 %v1655, %v2091
    %v2100 = vadd.f32 %v1656, %v2092
    %v2101 = vadd.f32 %v1657, %v2093
    %v2102 = vadd.f32 %v1658, %v2094
    %v2103 = vadd.f32 %v1659, %v2095
    %v2104 = vadd.f32 %v1660, %v2096
    %v2105 = vadd.f32 %v1661, %v2097
    %v2106 = vadd.f32 %v1662, %v2098
    %v2108 = vsel %vm107, %v2099, 0
    %v2111 = vsel %vm107, %v2100, 0
    %v2114 = vsel %vm107, %v2101, 0
    %v2117 = vsel %vm107, %v2102, 0
    %v2120 = vsel %vm107, %v2103, 0
    %v2123 = vsel %vm107, %v2104, 0
    %v2126 = vsel %vm107, %v2105, 0
    %v2129 = vsel %vm107, %v2106, 0
    %2131 = vmatpush.msra.mxu0 0.0
    %2132 = vmatpush.msra.mxu0 0.0
    %2133 = vmatpush.msra.mxu0 0.0
    %2134 = vmatpush.msra.mxu0 0.0
    %2135 = vmatpush.msra.mxu0 0.0
    %2136 = vmatpush.msra.mxu0 0.0
    %2137 = vmatpush.msra.mxu0 0.0
    %2138 = vmatpush.msra.mxu0 0.0
    %2139 = vmatpush.msra.mxu0 0.0
    %2140 = vmatpush.msra.mxu0 0.0
    %2141 = vmatpush.msra.mxu0 0.0
    %2142 = vmatpush.msra.mxu0 0.0
    %2143 = vmatpush.msra.mxu0 0.0
    %2144 = vmatpush.msra.mxu0 0.0
    %2145 = vmatpush.msra.mxu0 0.0
    %2146 = vmatpush.msra.mxu0 %v60
    %2147 = vmatmul.f32.gmra.mxu0 %v2108
    %v2148 = vpop.f32.mrf.mxu0
    %v2149 = vadd.f32 %v1935, %v2148
    %2150 = vmatmul.f32.gmra.mxu0 %v2111
    %v2151 = vpop.f32.mrf.mxu0
    %v2152 = vadd.f32 %v1935, %v2151
    %2153 = vmatmul.f32.gmra.mxu0 %v2114
    %v2154 = vpop.f32.mrf.mxu0
    %v2155 = vadd.f32 %v1935, %v2154
    %2156 = vmatmul.f32.gmra.mxu0 %v2117
    %v2157 = vpop.f32.mrf.mxu0
    %v2158 = vadd.f32 %v1935, %v2157
    %2159 = vmatmul.f32.gmra.mxu0 %v2120
    %v2160 = vpop.f32.mrf.mxu0
    %v2161 = vadd.f32 %v1935, %v2160
    %2162 = vmatmul.f32.gmra.mxu0 %v2123
    %v2163 = vpop.f32.mrf.mxu0
    %v2164 = vadd.f32 %v1935, %v2163
    %2165 = vmatmul.f32.gmra.mxu0 %v2126
    %v2166 = vpop.f32.mrf.mxu0
    %v2167 = vadd.f32 %v1935, %v2166
    %2168 = vmatmul.f32.gmra.mxu0 %v2129
    %v2169 = vpop.f32.mrf.mxu0
    %v2170 = vadd.f32 %v1935, %v2169
    %2171 = vdwg.mxu0
    %v2172 = vtanh.pop %v2149
    %v2173 = vtanh.pop %v2152
    %v2174 = vtanh.pop %v2155
    %v2175 = vtanh.pop %v2158
    %v2176 = vtanh.pop %v2161
    %v2177 = vtanh.pop %v2164
    %v2178 = vtanh.pop %v2167
    %v2179 = vtanh.pop %v2170
    %v2180 = vmul.f32 %v2172, %v2172
    %v2181 = vmul.f32 %v2173, %v2173
    %v2182 = vmul.f32 %v2174, %v2174
    %v2183 = vmul.f32 %v2175, %v2175
    %v2184 = vmul.f32 %v2176, %v2176
    %v2185 = vmul.f32 %v2177, %v2177
    %v2186 = vmul.f32 %v2178, %v2178
    %v2187 = vmul.f32 %v2179, %v2179
    %v2188 = vsub.f32 1.0, %v2180
    %v2189 = vsub.f32 1.0, %v2181
    %v2190 = vsub.f32 1.0, %v2182
    %v2191 = vsub.f32 1.0, %v2183
    %v2192 = vsub.f32 1.0, %v2184
    %v2193 = vsub.f32 1.0, %v2185
    %v2194 = vsub.f32 1.0, %v2186
    %v2195 = vsub.f32 1.0, %v2187
    %2196 = vmatpush.msra.mxu0 %v77
    %2197 = vmatpush.msra.mxu0 %v76
    %2198 = vmatpush.msra.mxu0 %v75
    %2199 = vmatpush.msra.mxu0 %v74
    %2200 = vmatpush.msra.mxu0 %v73
    %2201 = vmatpush.msra.mxu0 %v72
    %2202 = vmatpush.msra.mxu0 %v71
    %2203 = vmatpush.msra.mxu0 %v70
    %2204 = vmatpush.msra.mxu0 %v69
    %2205 = vmatpush.msra.mxu0 %v68
    %2206 = vmatpush.msra.mxu0 %v67
    %2207 = vmatpush.msra.mxu0 %v66
    %2208 = vmatpush.msra.mxu0 %v65
    %2209 = vmatpush.msra.mxu0 %v64
    %2210 = vmatpush.msra.mxu0 %v63
    %2211 = vmatpush.msra.mxu0 %v62
    %2212 = vmatmul.f32.gmra.mxu0 %v2172
    %v2213 = vpop.f32.mrf.mxu0
    %v2214 = vadd.f32 0.0, %v2213
    %2215 = vmatmul.f32.gmra.mxu0 %v2173
    %v2216 = vpop.f32.mrf.mxu0
    %v2217 = vadd.f32 0.0, %v2216
    %2218 = vmatmul.f32.gmra.mxu0 %v2174
    %v2219 = vpop.f32.mrf.mxu0
    %v2220 = vadd.f32 0.0, %v2219
    %2221 = vmatmul.f32.gmra.mxu0 %v2175
    %v2222 = vpop.f32.mrf.mxu0
    %v2223 = vadd.f32 0.0, %v2222
    %2224 = vmatmul.f32.gmra.mxu0 %v2176
    %v2225 = vpop.f32.mrf.mxu0
    %v2226 = vadd.f32 0.0, %v2225
    %2227 = vmatmul.f32.gmra.mxu0 %v2177
    %v2228 = vpop.f32.mrf.mxu0
    %v2229 = vadd.f32 0.0, %v2228
    %2230 = vmatmul.f32.gmra.mxu0 %v2178
    %v2231 = vpop.f32.mrf.mxu0
    %v2232 = vadd.f32 0.0, %v2231
    %2233 = vmatmul.f32.gmra.mxu0 %v2179
    %v2234 = vpop.f32.mrf.mxu0
    %v2235 = vadd.f32 0.0, %v2234
    %2236 = vmatmul.f32.gmra.mxu0 %v2188
    %v2237 = vpop.f32.mrf.mxu0
    %v2238 = vadd.f32 0.0, %v2237
    %2239 = vmatmul.f32.gmra.mxu0 %v2189
    %v2240 = vpop.f32.mrf.mxu0
    %v2241 = vadd.f32 0.0, %v2240
    %2242 = vmatmul.f32.gmra.mxu0 %v2190
    %v2243 = vpop.f32.mrf.mxu0
    %v2244 = vadd.f32 0.0, %v2243
    %2245 = vmatmul.f32.gmra.mxu0 %v2191
    %v2246 = vpop.f32.mrf.mxu0
    %v2247 = vadd.f32 0.0, %v2246
    %2248 = vmatmul.f32.gmra.mxu0 %v2192
    %v2249 = vpop.f32.mrf.mxu0
    %v2250 = vadd.f32 0.0, %v2249
    %2251 = vmatmul.f32.gmra.mxu0 %v2193
    %v2252 = vpop.f32.mrf.mxu0
    %v2253 = vadd.f32 0.0, %v2252
    %2254 = vmatmul.f32.gmra.mxu0 %v2194
    %v2255 = vpop.f32.mrf.mxu0
    %v2256 = vadd.f32 0.0, %v2255
    %2257 = vmatmul.f32.gmra.mxu0 %v2195
    %v2258 = vpop.f32.mrf.mxu0
    %v2259 = vadd.f32 0.0, %v2258
    %2260 = vdwg.mxu0
    %v2261 = vmul.f32 %v606, %v2214
    %v2262 = vmul.f32 %v606, %v2217
    %v2263 = vmul.f32 %v606, %v2220
    %v2264 = vmul.f32 %v606, %v2223
    %v2265 = vmul.f32 %v606, %v2226
    %v2266 = vmul.f32 %v606, %v2229
    %v2267 = vmul.f32 %v606, %v2232
    %v2268 = vmul.f32 %v606, %v2235
    %v2269 = vadd.f32 %v1655, %v2261
    %v2270 = vadd.f32 %v1656, %v2262
    %v2271 = vadd.f32 %v1657, %v2263
    %v2272 = vadd.f32 %v1658, %v2264
    %v2273 = vadd.f32 %v1659, %v2265
    %v2274 = vadd.f32 %v1660, %v2266
    %v2275 = vadd.f32 %v1661, %v2267
    %v2276 = vadd.f32 %v1662, %v2268
    %v2278 = vperm.slane %v1760, 0
    %v2281 = vsel %vm107, %v2269, 0
    %v2284 = vsel %vm107, %v2270, 0
    %v2287 = vsel %vm107, %v2271, 0
    %v2290 = vsel %vm107, %v2272, 0
    %v2293 = vsel %vm107, %v2273, 0
    %v2296 = vsel %vm107, %v2274, 0
    %v2299 = vsel %vm107, %v2275, 0
    %v2302 = vsel %vm107, %v2276, 0
    %2304 = vmatpush.msra.mxu0 0.0
    %2305 = vmatpush.msra.mxu0 0.0
    %2306 = vmatpush.msra.mxu0 0.0
    %2307 = vmatpush.msra.mxu0 0.0
    %2308 = vmatpush.msra.mxu0 0.0
    %2309 = vmatpush.msra.mxu0 0.0
    %2310 = vmatpush.msra.mxu0 0.0
    %2311 = vmatpush.msra.mxu0 0.0
    %2312 = vmatpush.msra.mxu0 0.0
    %2313 = vmatpush.msra.mxu0 0.0
    %2314 = vmatpush.msra.mxu0 0.0
    %2315 = vmatpush.msra.mxu0 0.0
    %2316 = vmatpush.msra.mxu0 0.0
    %2317 = vmatpush.msra.mxu0 0.0
    %2318 = vmatpush.msra.mxu0 0.0
    %2319 = vmatpush.msra.mxu0 %v60
    %2320 = vmatmul.f32.gmra.mxu0 %v2281
    %v2321 = vpop.f32.mrf.mxu0
    %v2322 = vadd.f32 %v2278, %v2321
    %2323 = vmatmul.f32.gmra.mxu0 %v2284
    %v2324 = vpop.f32.mrf.mxu0
    %v2325 = vadd.f32 %v2278, %v2324
    %2326 = vmatmul.f32.gmra.mxu0 %v2287
    %v2327 = vpop.f32.mrf.mxu0
    %v2328 = vadd.f32 %v2278, %v2327
    %2329 = vmatmul.f32.gmra.mxu0 %v2290
    %v2330 = vpop.f32.mrf.mxu0
    %v2331 = vadd.f32 %v2278, %v2330
    %2332 = vmatmul.f32.gmra.mxu0 %v2293
    %v2333 = vpop.f32.mrf.mxu0
    %v2334 = vadd.f32 %v2278, %v2333
    %2335 = vmatmul.f32.gmra.mxu0 %v2296
    %v2336 = vpop.f32.mrf.mxu0
    %v2337 = vadd.f32 %v2278, %v2336
    %2338 = vmatmul.f32.gmra.mxu0 %v2299
    %v2339 = vpop.f32.mrf.mxu0
    %v2340 = vadd.f32 %v2278, %v2339
    %2341 = vmatmul.f32.gmra.mxu0 %v2302
    %v2342 = vpop.f32.mrf.mxu0
    %v2343 = vadd.f32 %v2278, %v2342
    %2344 = vdwg.mxu0
    %v2345 = vtanh.pop %v2322
    %v2346 = vtanh.pop %v2325
    %v2347 = vtanh.pop %v2328
    %v2348 = vtanh.pop %v2331
    %v2349 = vtanh.pop %v2334
    %v2350 = vtanh.pop %v2337
    %v2351 = vtanh.pop %v2340
    %v2352 = vtanh.pop %v2343
    %v2353 = vmul.f32 %v2345, %v2345
    %v2354 = vmul.f32 %v2346, %v2346
    %v2355 = vmul.f32 %v2347, %v2347
    %v2356 = vmul.f32 %v2348, %v2348
    %v2357 = vmul.f32 %v2349, %v2349
    %v2358 = vmul.f32 %v2350, %v2350
    %v2359 = vmul.f32 %v2351, %v2351
    %v2360 = vmul.f32 %v2352, %v2352
    %v2361 = vsub.f32 1.0, %v2353
    %v2362 = vsub.f32 1.0, %v2354
    %v2363 = vsub.f32 1.0, %v2355
    %v2364 = vsub.f32 1.0, %v2356
    %v2365 = vsub.f32 1.0, %v2357
    %v2366 = vsub.f32 1.0, %v2358
    %v2367 = vsub.f32 1.0, %v2359
    %v2368 = vsub.f32 1.0, %v2360
    %2369 = vmatpush.msra.mxu0 %v77
    %2370 = vmatpush.msra.mxu0 %v76
    %2371 = vmatpush.msra.mxu0 %v75
    %2372 = vmatpush.msra.mxu0 %v74
    %2373 = vmatpush.msra.mxu0 %v73
    %2374 = vmatpush.msra.mxu0 %v72
    %2375 = vmatpush.msra.mxu0 %v71
    %2376 = vmatpush.msra.mxu0 %v70
    %2377 = vmatpush.msra.mxu0 %v69
    %2378 = vmatpush.msra.mxu0 %v68
    %2379 = vmatpush.msra.mxu0 %v67
    %2380 = vmatpush.msra.mxu0 %v66
    %2381 = vmatpush.msra.mxu0 %v65
    %2382 = vmatpush.msra.mxu0 %v64
    %2383 = vmatpush.msra.mxu0 %v63
    %2384 = vmatpush.msra.mxu0 %v62
    %2385 = vmatmul.f32.gmra.mxu0 %v2345
    %v2386 = vpop.f32.mrf.mxu0
    %v2387 = vadd.f32 0.0, %v2386
    %2388 = vmatmul.f32.gmra.mxu0 %v2346
    %v2389 = vpop.f32.mrf.mxu0
    %v2390 = vadd.f32 0.0, %v2389
    %2391 = vmatmul.f32.gmra.mxu0 %v2347
    %v2392 = vpop.f32.mrf.mxu0
    %v2393 = vadd.f32 0.0, %v2392
    %2394 = vmatmul.f32.gmra.mxu0 %v2348
    %v2395 = vpop.f32.mrf.mxu0
    %v2396 = vadd.f32 0.0, %v2395
    %2397 = vmatmul.f32.gmra.mxu0 %v2349
    %v2398 = vpop.f32.mrf.mxu0
    %v2399 = vadd.f32 0.0, %v2398
    %2400 = vmatmul.f32.gmra.mxu0 %v2350
    %v2401 = vpop.f32.mrf.mxu0
    %v2402 = vadd.f32 0.0, %v2401
    %2403 = vmatmul.f32.gmra.mxu0 %v2351
    %v2404 = vpop.f32.mrf.mxu0
    %v2405 = vadd.f32 0.0, %v2404
    %2406 = vmatmul.f32.gmra.mxu0 %v2352
    %v2407 = vpop.f32.mrf.mxu0
    %v2408 = vadd.f32 0.0, %v2407
    %2409 = vmatmul.f32.gmra.mxu0 %v2361
    %v2410 = vpop.f32.mrf.mxu0
    %v2411 = vadd.f32 0.0, %v2410
    %2412 = vmatmul.f32.gmra.mxu0 %v2362
    %v2413 = vpop.f32.mrf.mxu0
    %v2414 = vadd.f32 0.0, %v2413
    %2415 = vmatmul.f32.gmra.mxu0 %v2363
    %v2416 = vpop.f32.mrf.mxu0
    %v2417 = vadd.f32 0.0, %v2416
    %2418 = vmatmul.f32.gmra.mxu0 %v2364
    %v2419 = vpop.f32.mrf.mxu0
    %v2420 = vadd.f32 0.0, %v2419
    %2421 = vmatmul.f32.gmra.mxu0 %v2365
    %v2422 = vpop.f32.mrf.mxu0
    %v2423 = vadd.f32 0.0, %v2422
    %2424 = vmatmul.f32.gmra.mxu0 %v2366
    %v2425 = vpop.f32.mrf.mxu0
    %v2426 = vadd.f32 0.0, %v2425
    %2427 = vmatmul.f32.gmra.mxu0 %v2367
    %v2428 = vpop.f32.mrf.mxu0
    %v2429 = vadd.f32 0.0, %v2428
    %2430 = vmatmul.f32.gmra.mxu0 %v2368
    %v2431 = vpop.f32.mrf.mxu0
    %v2432 = vadd.f32 0.0, %v2431
    %2433 = vdwg.mxu0
    %v2434 = vmul.f32 %v2044, 2.0
    %v2435 = vmul.f32 %v2047, 2.0
    %v2436 = vmul.f32 %v2050, 2.0
    %v2437 = vmul.f32 %v2053, 2.0
    %v2438 = vmul.f32 %v2056, 2.0
    %v2439 = vmul.f32 %v2059, 2.0
    %v2440 = vmul.f32 %v2062, 2.0
    %v2441 = vmul.f32 %v2065, 2.0
    %v2442 = vadd.f32 %v1871, %v2434
    %v2443 = vadd.f32 %v1874, %v2435
    %v2444 = vadd.f32 %v1877, %v2436
    %v2445 = vadd.f32 %v1880, %v2437
    %v2446 = vadd.f32 %v1883, %v2438
    %v2447 = vadd.f32 %v1886, %v2439
    %v2448 = vadd.f32 %v1889, %v2440
    %v2449 = vadd.f32 %v1892, %v2441
    %v2450 = vmul.f32 %v2214, 2.0
    %v2451 = vmul.f32 %v2217, 2.0
    %v2452 = vmul.f32 %v2220, 2.0
    %v2453 = vmul.f32 %v2223, 2.0
    %v2454 = vmul.f32 %v2226, 2.0
    %v2455 = vmul.f32 %v2229, 2.0
    %v2456 = vmul.f32 %v2232, 2.0
    %v2457 = vmul.f32 %v2235, 2.0
    %v2458 = vadd.f32 %v2442, %v2450
    %v2459 = vadd.f32 %v2443, %v2451
    %v2460 = vadd.f32 %v2444, %v2452
    %v2461 = vadd.f32 %v2445, %v2453
    %v2462 = vadd.f32 %v2446, %v2454
    %v2463 = vadd.f32 %v2447, %v2455
    %v2464 = vadd.f32 %v2448, %v2456
    %v2465 = vadd.f32 %v2449, %v2457
    %v2466 = vadd.f32 %v2458, %v2387
    %v2467 = vadd.f32 %v2459, %v2390
    %v2468 = vadd.f32 %v2460, %v2393
    %v2469 = vadd.f32 %v2461, %v2396
    %v2470 = vadd.f32 %v2462, %v2399
    %v2471 = vadd.f32 %v2463, %v2402
    %v2472 = vadd.f32 %v2464, %v2405
    %v2473 = vadd.f32 %v2465, %v2408
    %v2474 = vmul.f32 %v820, %v2466
    %v2475 = vmul.f32 %v820, %v2467
    %v2476 = vmul.f32 %v820, %v2468
    %v2477 = vmul.f32 %v820, %v2469
    %v2478 = vmul.f32 %v820, %v2470
    %v2479 = vmul.f32 %v820, %v2471
    %v2480 = vmul.f32 %v820, %v2472
    %v2481 = vmul.f32 %v820, %v2473
    %v2482 = vadd.f32 %v1655, %v2474
    %v2483 = vadd.f32 %v1656, %v2475
    %v2484 = vadd.f32 %v1657, %v2476
    %v2485 = vadd.f32 %v1658, %v2477
    %v2486 = vadd.f32 %v1659, %v2478
    %v2487 = vadd.f32 %v1660, %v2479
    %v2488 = vadd.f32 %v1661, %v2480
    %v2489 = vadd.f32 %v1662, %v2481
    %v2490 = vmul.f32 %v2068, 2.0
    %v2491 = vmul.f32 %v2071, 2.0
    %v2492 = vmul.f32 %v2074, 2.0
    %v2493 = vmul.f32 %v2077, 2.0
    %v2494 = vmul.f32 %v2080, 2.0
    %v2495 = vmul.f32 %v2083, 2.0
    %v2496 = vmul.f32 %v2086, 2.0
    %v2497 = vmul.f32 %v2089, 2.0
    %v2498 = vadd.f32 %v1895, %v2490
    %v2499 = vadd.f32 %v1898, %v2491
    %v2500 = vadd.f32 %v1901, %v2492
    %v2501 = vadd.f32 %v1904, %v2493
    %v2502 = vadd.f32 %v1907, %v2494
    %v2503 = vadd.f32 %v1910, %v2495
    %v2504 = vadd.f32 %v1913, %v2496
    %v2505 = vadd.f32 %v1916, %v2497
    %v2506 = vmul.f32 %v2238, 2.0
    %v2507 = vmul.f32 %v2241, 2.0
    %v2508 = vmul.f32 %v2244, 2.0
    %v2509 = vmul.f32 %v2247, 2.0
    %v2510 = vmul.f32 %v2250, 2.0
    %v2511 = vmul.f32 %v2253, 2.0
    %v2512 = vmul.f32 %v2256, 2.0
    %v2513 = vmul.f32 %v2259, 2.0
    %v2514 = vadd.f32 %v2498, %v2506
    %v2515 = vadd.f32 %v2499, %v2507
    %v2516 = vadd.f32 %v2500, %v2508
    %v2517 = vadd.f32 %v2501, %v2509
    %v2518 = vadd.f32 %v2502, %v2510
    %v2519 = vadd.f32 %v2503, %v2511
    %v2520 = vadd.f32 %v2504, %v2512
    %v2521 = vadd.f32 %v2505, %v2513
    %v2522 = vadd.f32 %v2514, %v2411
    %v2523 = vadd.f32 %v2515, %v2414
    %v2524 = vadd.f32 %v2516, %v2417
    %v2525 = vadd.f32 %v2517, %v2420
    %v2526 = vadd.f32 %v2518, %v2423
    %v2527 = vadd.f32 %v2519, %v2426
    %v2528 = vadd.f32 %v2520, %v2429
    %v2529 = vadd.f32 %v2521, %v2432
    %v2530 = vmul.f32 %v820, %v2522
    %v2531 = vmul.f32 %v820, %v2523
    %v2532 = vmul.f32 %v820, %v2524
    %v2533 = vmul.f32 %v820, %v2525
    %v2534 = vmul.f32 %v820, %v2526
    %v2535 = vmul.f32 %v820, %v2527
    %v2536 = vmul.f32 %v820, %v2528
    %v2537 = vmul.f32 %v820, %v2529
    %2546 = vrot.lane.b32.xlu0 %v2530, 120
    %v2547 = vpop.permute.xlu0 %2546
    %2548 = vrot.lane.b32.xlu0 %v2531, 120
    %v2549 = vpop.permute.xlu0 %2548
    %2550 = vrot.lane.b32.xlu0 %v2532, 120
    %v2551 = vpop.permute.xlu0 %2550
    %2552 = vrot.lane.b32.xlu0 %v2533, 120
    %v2553 = vpop.permute.xlu0 %2552
    %2554 = vrot.lane.b32.xlu0 %v2534, 120
    %v2555 = vpop.permute.xlu0 %2554
    %2556 = vrot.lane.b32.xlu0 %v2535, 120
    %v2557 = vpop.permute.xlu0 %2556
    %2558 = vrot.lane.b32.xlu0 %v2536, 120
    %v2559 = vpop.permute.xlu0 %2558
    %2560 = vrot.lane.b32.xlu0 %v2537, 120
    %v2561 = vpop.permute.xlu0 %2560
    %v2570 = vadd.f32 %v1743, %v2547
    %v2571 = vadd.f32 %v1744, %v2549
    %v2572 = vadd.f32 %v1745, %v2551
    %v2573 = vadd.f32 %v1746, %v2553
    %v2574 = vadd.f32 %v1747, %v2555
    %v2575 = vadd.f32 %v1748, %v2557
    %v2576 = vadd.f32 %v1749, %v2559
    %v2577 = vadd.f32 %v1750, %v2561
    %s2578 = smul.f32 %s49, 3.0
    %s2579 = sadd.f32 %s38, %s2578
    %v2580 = vstv %s2579
    %v2581 = vadd.f32 %v61, %v2580
    %s2582 = sadd.f32 %s2579, %s50
    %v2583 = vstv %s2582
    %v2584 = vadd.f32 %v61, %v2583
    %s2585 = sadd.f32 %s2579, %s49
    %v2586 = vstv %s2585
    %v2587 = vadd.f32 %v61, %v2586
    %v2589 = vperm.slane %v2581, 0
    %v2592 = vsel %vm107, %v2482, 0
    %v2595 = vsel %vm107, %v2483, 0
    %v2598 = vsel %vm107, %v2484, 0
    %v2601 = vsel %vm107, %v2485, 0
    %v2604 = vsel %vm107, %v2486, 0
    %v2607 = vsel %vm107, %v2487, 0
    %v2610 = vsel %vm107, %v2488, 0
    %v2613 = vsel %vm107, %v2489, 0
    %2615 = vmatpush.msra.mxu0 0.0
    %2616 = vmatpush.msra.mxu0 0.0
    %2617 = vmatpush.msra.mxu0 0.0
    %2618 = vmatpush.msra.mxu0 0.0
    %2619 = vmatpush.msra.mxu0 0.0
    %2620 = vmatpush.msra.mxu0 0.0
    %2621 = vmatpush.msra.mxu0 0.0
    %2622 = vmatpush.msra.mxu0 0.0
    %2623 = vmatpush.msra.mxu0 0.0
    %2624 = vmatpush.msra.mxu0 0.0
    %2625 = vmatpush.msra.mxu0 0.0
    %2626 = vmatpush.msra.mxu0 0.0
    %2627 = vmatpush.msra.mxu0 0.0
    %2628 = vmatpush.msra.mxu0 0.0
    %2629 = vmatpush.msra.mxu0 0.0
    %2630 = vmatpush.msra.mxu0 %v60
    %2631 = vmatmul.f32.gmra.mxu0 %v2592
    %v2632 = vpop.f32.mrf.mxu0
    %v2633 = vadd.f32 %v2589, %v2632
    %2634 = vmatmul.f32.gmra.mxu0 %v2595
    %v2635 = vpop.f32.mrf.mxu0
    %v2636 = vadd.f32 %v2589, %v2635
    %2637 = vmatmul.f32.gmra.mxu0 %v2598
    %v2638 = vpop.f32.mrf.mxu0
    %v2639 = vadd.f32 %v2589, %v2638
    %2640 = vmatmul.f32.gmra.mxu0 %v2601
    %v2641 = vpop.f32.mrf.mxu0
    %v2642 = vadd.f32 %v2589, %v2641
    %2643 = vmatmul.f32.gmra.mxu0 %v2604
    %v2644 = vpop.f32.mrf.mxu0
    %v2645 = vadd.f32 %v2589, %v2644
    %2646 = vmatmul.f32.gmra.mxu0 %v2607
    %v2647 = vpop.f32.mrf.mxu0
    %v2648 = vadd.f32 %v2589, %v2647
    %2649 = vmatmul.f32.gmra.mxu0 %v2610
    %v2650 = vpop.f32.mrf.mxu0
    %v2651 = vadd.f32 %v2589, %v2650
    %2652 = vmatmul.f32.gmra.mxu0 %v2613
    %v2653 = vpop.f32.mrf.mxu0
    %v2654 = vadd.f32 %v2589, %v2653
    %2655 = vdwg.mxu0
    %v2656 = vtanh.pop %v2633
    %v2657 = vtanh.pop %v2636
    %v2658 = vtanh.pop %v2639
    %v2659 = vtanh.pop %v2642
    %v2660 = vtanh.pop %v2645
    %v2661 = vtanh.pop %v2648
    %v2662 = vtanh.pop %v2651
    %v2663 = vtanh.pop %v2654
    %v2664 = vmul.f32 %v2656, %v2656
    %v2665 = vmul.f32 %v2657, %v2657
    %v2666 = vmul.f32 %v2658, %v2658
    %v2667 = vmul.f32 %v2659, %v2659
    %v2668 = vmul.f32 %v2660, %v2660
    %v2669 = vmul.f32 %v2661, %v2661
    %v2670 = vmul.f32 %v2662, %v2662
    %v2671 = vmul.f32 %v2663, %v2663
    %v2672 = vsub.f32 1.0, %v2664
    %v2673 = vsub.f32 1.0, %v2665
    %v2674 = vsub.f32 1.0, %v2666
    %v2675 = vsub.f32 1.0, %v2667
    %v2676 = vsub.f32 1.0, %v2668
    %v2677 = vsub.f32 1.0, %v2669
    %v2678 = vsub.f32 1.0, %v2670
    %v2679 = vsub.f32 1.0, %v2671
    %2680 = vmatpush.msra.mxu0 %v77
    %2681 = vmatpush.msra.mxu0 %v76
    %2682 = vmatpush.msra.mxu0 %v75
    %2683 = vmatpush.msra.mxu0 %v74
    %2684 = vmatpush.msra.mxu0 %v73
    %2685 = vmatpush.msra.mxu0 %v72
    %2686 = vmatpush.msra.mxu0 %v71
    %2687 = vmatpush.msra.mxu0 %v70
    %2688 = vmatpush.msra.mxu0 %v69
    %2689 = vmatpush.msra.mxu0 %v68
    %2690 = vmatpush.msra.mxu0 %v67
    %2691 = vmatpush.msra.mxu0 %v66
    %2692 = vmatpush.msra.mxu0 %v65
    %2693 = vmatpush.msra.mxu0 %v64
    %2694 = vmatpush.msra.mxu0 %v63
    %2695 = vmatpush.msra.mxu0 %v62
    %2696 = vmatmul.f32.gmra.mxu0 %v2656
    %v2697 = vpop.f32.mrf.mxu0
    %v2698 = vadd.f32 0.0, %v2697
    %2699 = vmatmul.f32.gmra.mxu0 %v2657
    %v2700 = vpop.f32.mrf.mxu0
    %v2701 = vadd.f32 0.0, %v2700
    %2702 = vmatmul.f32.gmra.mxu0 %v2658
    %v2703 = vpop.f32.mrf.mxu0
    %v2704 = vadd.f32 0.0, %v2703
    %2705 = vmatmul.f32.gmra.mxu0 %v2659
    %v2706 = vpop.f32.mrf.mxu0
    %v2707 = vadd.f32 0.0, %v2706
    %2708 = vmatmul.f32.gmra.mxu0 %v2660
    %v2709 = vpop.f32.mrf.mxu0
    %v2710 = vadd.f32 0.0, %v2709
    %2711 = vmatmul.f32.gmra.mxu0 %v2661
    %v2712 = vpop.f32.mrf.mxu0
    %v2713 = vadd.f32 0.0, %v2712
    %2714 = vmatmul.f32.gmra.mxu0 %v2662
    %v2715 = vpop.f32.mrf.mxu0
    %v2716 = vadd.f32 0.0, %v2715
    %2717 = vmatmul.f32.gmra.mxu0 %v2663
    %v2718 = vpop.f32.mrf.mxu0
    %v2719 = vadd.f32 0.0, %v2718
    %2720 = vmatmul.f32.gmra.mxu0 %v2672
    %v2721 = vpop.f32.mrf.mxu0
    %v2722 = vadd.f32 0.0, %v2721
    %2723 = vmatmul.f32.gmra.mxu0 %v2673
    %v2724 = vpop.f32.mrf.mxu0
    %v2725 = vadd.f32 0.0, %v2724
    %2726 = vmatmul.f32.gmra.mxu0 %v2674
    %v2727 = vpop.f32.mrf.mxu0
    %v2728 = vadd.f32 0.0, %v2727
    %2729 = vmatmul.f32.gmra.mxu0 %v2675
    %v2730 = vpop.f32.mrf.mxu0
    %v2731 = vadd.f32 0.0, %v2730
    %2732 = vmatmul.f32.gmra.mxu0 %v2676
    %v2733 = vpop.f32.mrf.mxu0
    %v2734 = vadd.f32 0.0, %v2733
    %2735 = vmatmul.f32.gmra.mxu0 %v2677
    %v2736 = vpop.f32.mrf.mxu0
    %v2737 = vadd.f32 0.0, %v2736
    %2738 = vmatmul.f32.gmra.mxu0 %v2678
    %v2739 = vpop.f32.mrf.mxu0
    %v2740 = vadd.f32 0.0, %v2739
    %2741 = vmatmul.f32.gmra.mxu0 %v2679
    %v2742 = vpop.f32.mrf.mxu0
    %v2743 = vadd.f32 0.0, %v2742
    %2744 = vdwg.mxu0
    %v2745 = vmul.f32 %v262, %v2698
    %v2746 = vmul.f32 %v262, %v2701
    %v2747 = vmul.f32 %v262, %v2704
    %v2748 = vmul.f32 %v262, %v2707
    %v2749 = vmul.f32 %v262, %v2710
    %v2750 = vmul.f32 %v262, %v2713
    %v2751 = vmul.f32 %v262, %v2716
    %v2752 = vmul.f32 %v262, %v2719
    %v2753 = vadd.f32 %v2482, %v2745
    %v2754 = vadd.f32 %v2483, %v2746
    %v2755 = vadd.f32 %v2484, %v2747
    %v2756 = vadd.f32 %v2485, %v2748
    %v2757 = vadd.f32 %v2486, %v2749
    %v2758 = vadd.f32 %v2487, %v2750
    %v2759 = vadd.f32 %v2488, %v2751
    %v2760 = vadd.f32 %v2489, %v2752
    %v2762 = vperm.slane %v2584, 0
    %v2765 = vsel %vm107, %v2753, 0
    %v2768 = vsel %vm107, %v2754, 0
    %v2771 = vsel %vm107, %v2755, 0
    %v2774 = vsel %vm107, %v2756, 0
    %v2777 = vsel %vm107, %v2757, 0
    %v2780 = vsel %vm107, %v2758, 0
    %v2783 = vsel %vm107, %v2759, 0
    %v2786 = vsel %vm107, %v2760, 0
    %2788 = vmatpush.msra.mxu0 0.0
    %2789 = vmatpush.msra.mxu0 0.0
    %2790 = vmatpush.msra.mxu0 0.0
    %2791 = vmatpush.msra.mxu0 0.0
    %2792 = vmatpush.msra.mxu0 0.0
    %2793 = vmatpush.msra.mxu0 0.0
    %2794 = vmatpush.msra.mxu0 0.0
    %2795 = vmatpush.msra.mxu0 0.0
    %2796 = vmatpush.msra.mxu0 0.0
    %2797 = vmatpush.msra.mxu0 0.0
    %2798 = vmatpush.msra.mxu0 0.0
    %2799 = vmatpush.msra.mxu0 0.0
    %2800 = vmatpush.msra.mxu0 0.0
    %2801 = vmatpush.msra.mxu0 0.0
    %2802 = vmatpush.msra.mxu0 0.0
    %2803 = vmatpush.msra.mxu0 %v60
    %2804 = vmatmul.f32.gmra.mxu0 %v2765
    %v2805 = vpop.f32.mrf.mxu0
    %v2806 = vadd.f32 %v2762, %v2805
    %2807 = vmatmul.f32.gmra.mxu0 %v2768
    %v2808 = vpop.f32.mrf.mxu0
    %v2809 = vadd.f32 %v2762, %v2808
    %2810 = vmatmul.f32.gmra.mxu0 %v2771
    %v2811 = vpop.f32.mrf.mxu0
    %v2812 = vadd.f32 %v2762, %v2811
    %2813 = vmatmul.f32.gmra.mxu0 %v2774
    %v2814 = vpop.f32.mrf.mxu0
    %v2815 = vadd.f32 %v2762, %v2814
    %2816 = vmatmul.f32.gmra.mxu0 %v2777
    %v2817 = vpop.f32.mrf.mxu0
    %v2818 = vadd.f32 %v2762, %v2817
    %2819 = vmatmul.f32.gmra.mxu0 %v2780
    %v2820 = vpop.f32.mrf.mxu0
    %v2821 = vadd.f32 %v2762, %v2820
    %2822 = vmatmul.f32.gmra.mxu0 %v2783
    %v2823 = vpop.f32.mrf.mxu0
    %v2824 = vadd.f32 %v2762, %v2823
    %2825 = vmatmul.f32.gmra.mxu0 %v2786
    %v2826 = vpop.f32.mrf.mxu0
    %v2827 = vadd.f32 %v2762, %v2826
    %2828 = vdwg.mxu0
    %v2829 = vtanh.pop %v2806
    %v2830 = vtanh.pop %v2809
    %v2831 = vtanh.pop %v2812
    %v2832 = vtanh.pop %v2815
    %v2833 = vtanh.pop %v2818
    %v2834 = vtanh.pop %v2821
    %v2835 = vtanh.pop %v2824
    %v2836 = vtanh.pop %v2827
    %v2837 = vmul.f32 %v2829, %v2829
    %v2838 = vmul.f32 %v2830, %v2830
    %v2839 = vmul.f32 %v2831, %v2831
    %v2840 = vmul.f32 %v2832, %v2832
    %v2841 = vmul.f32 %v2833, %v2833
    %v2842 = vmul.f32 %v2834, %v2834
    %v2843 = vmul.f32 %v2835, %v2835
    %v2844 = vmul.f32 %v2836, %v2836
    %v2845 = vsub.f32 1.0, %v2837
    %v2846 = vsub.f32 1.0, %v2838
    %v2847 = vsub.f32 1.0, %v2839
    %v2848 = vsub.f32 1.0, %v2840
    %v2849 = vsub.f32 1.0, %v2841
    %v2850 = vsub.f32 1.0, %v2842
    %v2851 = vsub.f32 1.0, %v2843
    %v2852 = vsub.f32 1.0, %v2844
    %2853 = vmatpush.msra.mxu0 %v77
    %2854 = vmatpush.msra.mxu0 %v76
    %2855 = vmatpush.msra.mxu0 %v75
    %2856 = vmatpush.msra.mxu0 %v74
    %2857 = vmatpush.msra.mxu0 %v73
    %2858 = vmatpush.msra.mxu0 %v72
    %2859 = vmatpush.msra.mxu0 %v71
    %2860 = vmatpush.msra.mxu0 %v70
    %2861 = vmatpush.msra.mxu0 %v69
    %2862 = vmatpush.msra.mxu0 %v68
    %2863 = vmatpush.msra.mxu0 %v67
    %2864 = vmatpush.msra.mxu0 %v66
    %2865 = vmatpush.msra.mxu0 %v65
    %2866 = vmatpush.msra.mxu0 %v64
    %2867 = vmatpush.msra.mxu0 %v63
    %2868 = vmatpush.msra.mxu0 %v62
    %2869 = vmatmul.f32.gmra.mxu0 %v2829
    %v2870 = vpop.f32.mrf.mxu0
    %v2871 = vadd.f32 0.0, %v2870
    %2872 = vmatmul.f32.gmra.mxu0 %v2830
    %v2873 = vpop.f32.mrf.mxu0
    %v2874 = vadd.f32 0.0, %v2873
    %2875 = vmatmul.f32.gmra.mxu0 %v2831
    %v2876 = vpop.f32.mrf.mxu0
    %v2877 = vadd.f32 0.0, %v2876
    %2878 = vmatmul.f32.gmra.mxu0 %v2832
    %v2879 = vpop.f32.mrf.mxu0
    %v2880 = vadd.f32 0.0, %v2879
    %2881 = vmatmul.f32.gmra.mxu0 %v2833
    %v2882 = vpop.f32.mrf.mxu0
    %v2883 = vadd.f32 0.0, %v2882
    %2884 = vmatmul.f32.gmra.mxu0 %v2834
    %v2885 = vpop.f32.mrf.mxu0
    %v2886 = vadd.f32 0.0, %v2885
    %2887 = vmatmul.f32.gmra.mxu0 %v2835
    %v2888 = vpop.f32.mrf.mxu0
    %v2889 = vadd.f32 0.0, %v2888
    %2890 = vmatmul.f32.gmra.mxu0 %v2836
    %v2891 = vpop.f32.mrf.mxu0
    %v2892 = vadd.f32 0.0, %v2891
    %2893 = vmatmul.f32.gmra.mxu0 %v2845
    %v2894 = vpop.f32.mrf.mxu0
    %v2895 = vadd.f32 0.0, %v2894
    %2896 = vmatmul.f32.gmra.mxu0 %v2846
    %v2897 = vpop.f32.mrf.mxu0
    %v2898 = vadd.f32 0.0, %v2897
    %2899 = vmatmul.f32.gmra.mxu0 %v2847
    %v2900 = vpop.f32.mrf.mxu0
    %v2901 = vadd.f32 0.0, %v2900
    %2902 = vmatmul.f32.gmra.mxu0 %v2848
    %v2903 = vpop.f32.mrf.mxu0
    %v2904 = vadd.f32 0.0, %v2903
    %2905 = vmatmul.f32.gmra.mxu0 %v2849
    %v2906 = vpop.f32.mrf.mxu0
    %v2907 = vadd.f32 0.0, %v2906
    %2908 = vmatmul.f32.gmra.mxu0 %v2850
    %v2909 = vpop.f32.mrf.mxu0
    %v2910 = vadd.f32 0.0, %v2909
    %2911 = vmatmul.f32.gmra.mxu0 %v2851
    %v2912 = vpop.f32.mrf.mxu0
    %v2913 = vadd.f32 0.0, %v2912
    %2914 = vmatmul.f32.gmra.mxu0 %v2852
    %v2915 = vpop.f32.mrf.mxu0
    %v2916 = vadd.f32 0.0, %v2915
    %2917 = vdwg.mxu0
    %v2918 = vmul.f32 %v262, %v2871
    %v2919 = vmul.f32 %v262, %v2874
    %v2920 = vmul.f32 %v262, %v2877
    %v2921 = vmul.f32 %v262, %v2880
    %v2922 = vmul.f32 %v262, %v2883
    %v2923 = vmul.f32 %v262, %v2886
    %v2924 = vmul.f32 %v262, %v2889
    %v2925 = vmul.f32 %v262, %v2892
    %v2926 = vadd.f32 %v2482, %v2918
    %v2927 = vadd.f32 %v2483, %v2919
    %v2928 = vadd.f32 %v2484, %v2920
    %v2929 = vadd.f32 %v2485, %v2921
    %v2930 = vadd.f32 %v2486, %v2922
    %v2931 = vadd.f32 %v2487, %v2923
    %v2932 = vadd.f32 %v2488, %v2924
    %v2933 = vadd.f32 %v2489, %v2925
    %v2935 = vsel %vm107, %v2926, 0
    %v2938 = vsel %vm107, %v2927, 0
    %v2941 = vsel %vm107, %v2928, 0
    %v2944 = vsel %vm107, %v2929, 0
    %v2947 = vsel %vm107, %v2930, 0
    %v2950 = vsel %vm107, %v2931, 0
    %v2953 = vsel %vm107, %v2932, 0
    %v2956 = vsel %vm107, %v2933, 0
    %2958 = vmatpush.msra.mxu0 0.0
    %2959 = vmatpush.msra.mxu0 0.0
    %2960 = vmatpush.msra.mxu0 0.0
    %2961 = vmatpush.msra.mxu0 0.0
    %2962 = vmatpush.msra.mxu0 0.0
    %2963 = vmatpush.msra.mxu0 0.0
    %2964 = vmatpush.msra.mxu0 0.0
    %2965 = vmatpush.msra.mxu0 0.0
    %2966 = vmatpush.msra.mxu0 0.0
    %2967 = vmatpush.msra.mxu0 0.0
    %2968 = vmatpush.msra.mxu0 0.0
    %2969 = vmatpush.msra.mxu0 0.0
    %2970 = vmatpush.msra.mxu0 0.0
    %2971 = vmatpush.msra.mxu0 0.0
    %2972 = vmatpush.msra.mxu0 0.0
    %2973 = vmatpush.msra.mxu0 %v60
    %2974 = vmatmul.f32.gmra.mxu0 %v2935
    %v2975 = vpop.f32.mrf.mxu0
    %v2976 = vadd.f32 %v2762, %v2975
    %2977 = vmatmul.f32.gmra.mxu0 %v2938
    %v2978 = vpop.f32.mrf.mxu0
    %v2979 = vadd.f32 %v2762, %v2978
    %2980 = vmatmul.f32.gmra.mxu0 %v2941
    %v2981 = vpop.f32.mrf.mxu0
    %v2982 = vadd.f32 %v2762, %v2981
    %2983 = vmatmul.f32.gmra.mxu0 %v2944
    %v2984 = vpop.f32.mrf.mxu0
    %v2985 = vadd.f32 %v2762, %v2984
    %2986 = vmatmul.f32.gmra.mxu0 %v2947
    %v2987 = vpop.f32.mrf.mxu0
    %v2988 = vadd.f32 %v2762, %v2987
    %2989 = vmatmul.f32.gmra.mxu0 %v2950
    %v2990 = vpop.f32.mrf.mxu0
    %v2991 = vadd.f32 %v2762, %v2990
    %2992 = vmatmul.f32.gmra.mxu0 %v2953
    %v2993 = vpop.f32.mrf.mxu0
    %v2994 = vadd.f32 %v2762, %v2993
    %2995 = vmatmul.f32.gmra.mxu0 %v2956
    %v2996 = vpop.f32.mrf.mxu0
    %v2997 = vadd.f32 %v2762, %v2996
    %2998 = vdwg.mxu0
    %v2999 = vtanh.pop %v2976
    %v3000 = vtanh.pop %v2979
    %v3001 = vtanh.pop %v2982
    %v3002 = vtanh.pop %v2985
    %v3003 = vtanh.pop %v2988
    %v3004 = vtanh.pop %v2991
    %v3005 = vtanh.pop %v2994
    %v3006 = vtanh.pop %v2997
    %v3007 = vmul.f32 %v2999, %v2999
    %v3008 = vmul.f32 %v3000, %v3000
    %v3009 = vmul.f32 %v3001, %v3001
    %v3010 = vmul.f32 %v3002, %v3002
    %v3011 = vmul.f32 %v3003, %v3003
    %v3012 = vmul.f32 %v3004, %v3004
    %v3013 = vmul.f32 %v3005, %v3005
    %v3014 = vmul.f32 %v3006, %v3006
    %v3015 = vsub.f32 1.0, %v3007
    %v3016 = vsub.f32 1.0, %v3008
    %v3017 = vsub.f32 1.0, %v3009
    %v3018 = vsub.f32 1.0, %v3010
    %v3019 = vsub.f32 1.0, %v3011
    %v3020 = vsub.f32 1.0, %v3012
    %v3021 = vsub.f32 1.0, %v3013
    %v3022 = vsub.f32 1.0, %v3014
    %3023 = vmatpush.msra.mxu0 %v77
    %3024 = vmatpush.msra.mxu0 %v76
    %3025 = vmatpush.msra.mxu0 %v75
    %3026 = vmatpush.msra.mxu0 %v74
    %3027 = vmatpush.msra.mxu0 %v73
    %3028 = vmatpush.msra.mxu0 %v72
    %3029 = vmatpush.msra.mxu0 %v71
    %3030 = vmatpush.msra.mxu0 %v70
    %3031 = vmatpush.msra.mxu0 %v69
    %3032 = vmatpush.msra.mxu0 %v68
    %3033 = vmatpush.msra.mxu0 %v67
    %3034 = vmatpush.msra.mxu0 %v66
    %3035 = vmatpush.msra.mxu0 %v65
    %3036 = vmatpush.msra.mxu0 %v64
    %3037 = vmatpush.msra.mxu0 %v63
    %3038 = vmatpush.msra.mxu0 %v62
    %3039 = vmatmul.f32.gmra.mxu0 %v2999
    %v3040 = vpop.f32.mrf.mxu0
    %v3041 = vadd.f32 0.0, %v3040
    %3042 = vmatmul.f32.gmra.mxu0 %v3000
    %v3043 = vpop.f32.mrf.mxu0
    %v3044 = vadd.f32 0.0, %v3043
    %3045 = vmatmul.f32.gmra.mxu0 %v3001
    %v3046 = vpop.f32.mrf.mxu0
    %v3047 = vadd.f32 0.0, %v3046
    %3048 = vmatmul.f32.gmra.mxu0 %v3002
    %v3049 = vpop.f32.mrf.mxu0
    %v3050 = vadd.f32 0.0, %v3049
    %3051 = vmatmul.f32.gmra.mxu0 %v3003
    %v3052 = vpop.f32.mrf.mxu0
    %v3053 = vadd.f32 0.0, %v3052
    %3054 = vmatmul.f32.gmra.mxu0 %v3004
    %v3055 = vpop.f32.mrf.mxu0
    %v3056 = vadd.f32 0.0, %v3055
    %3057 = vmatmul.f32.gmra.mxu0 %v3005
    %v3058 = vpop.f32.mrf.mxu0
    %v3059 = vadd.f32 0.0, %v3058
    %3060 = vmatmul.f32.gmra.mxu0 %v3006
    %v3061 = vpop.f32.mrf.mxu0
    %v3062 = vadd.f32 0.0, %v3061
    %3063 = vmatmul.f32.gmra.mxu0 %v3015
    %v3064 = vpop.f32.mrf.mxu0
    %v3065 = vadd.f32 0.0, %v3064
    %3066 = vmatmul.f32.gmra.mxu0 %v3016
    %v3067 = vpop.f32.mrf.mxu0
    %v3068 = vadd.f32 0.0, %v3067
    %3069 = vmatmul.f32.gmra.mxu0 %v3017
    %v3070 = vpop.f32.mrf.mxu0
    %v3071 = vadd.f32 0.0, %v3070
    %3072 = vmatmul.f32.gmra.mxu0 %v3018
    %v3073 = vpop.f32.mrf.mxu0
    %v3074 = vadd.f32 0.0, %v3073
    %3075 = vmatmul.f32.gmra.mxu0 %v3019
    %v3076 = vpop.f32.mrf.mxu0
    %v3077 = vadd.f32 0.0, %v3076
    %3078 = vmatmul.f32.gmra.mxu0 %v3020
    %v3079 = vpop.f32.mrf.mxu0
    %v3080 = vadd.f32 0.0, %v3079
    %3081 = vmatmul.f32.gmra.mxu0 %v3021
    %v3082 = vpop.f32.mrf.mxu0
    %v3083 = vadd.f32 0.0, %v3082
    %3084 = vmatmul.f32.gmra.mxu0 %v3022
    %v3085 = vpop.f32.mrf.mxu0
    %v3086 = vadd.f32 0.0, %v3085
    %3087 = vdwg.mxu0
    %v3088 = vmul.f32 %v606, %v3041
    %v3089 = vmul.f32 %v606, %v3044
    %v3090 = vmul.f32 %v606, %v3047
    %v3091 = vmul.f32 %v606, %v3050
    %v3092 = vmul.f32 %v606, %v3053
    %v3093 = vmul.f32 %v606, %v3056
    %v3094 = vmul.f32 %v606, %v3059
    %v3095 = vmul.f32 %v606, %v3062
    %v3096 = vadd.f32 %v2482, %v3088
    %v3097 = vadd.f32 %v2483, %v3089
    %v3098 = vadd.f32 %v2484, %v3090
    %v3099 = vadd.f32 %v2485, %v3091
    %v3100 = vadd.f32 %v2486, %v3092
    %v3101 = vadd.f32 %v2487, %v3093
    %v3102 = vadd.f32 %v2488, %v3094
    %v3103 = vadd.f32 %v2489, %v3095
    %v3105 = vperm.slane %v2587, 0
    %v3108 = vsel %vm107, %v3096, 0
    %v3111 = vsel %vm107, %v3097, 0
    %v3114 = vsel %vm107, %v3098, 0
    %v3117 = vsel %vm107, %v3099, 0
    %v3120 = vsel %vm107, %v3100, 0
    %v3123 = vsel %vm107, %v3101, 0
    %v3126 = vsel %vm107, %v3102, 0
    %v3129 = vsel %vm107, %v3103, 0
    %3131 = vmatpush.msra.mxu0 0.0
    %3132 = vmatpush.msra.mxu0 0.0
    %3133 = vmatpush.msra.mxu0 0.0
    %3134 = vmatpush.msra.mxu0 0.0
    %3135 = vmatpush.msra.mxu0 0.0
    %3136 = vmatpush.msra.mxu0 0.0
    %3137 = vmatpush.msra.mxu0 0.0
    %3138 = vmatpush.msra.mxu0 0.0
    %3139 = vmatpush.msra.mxu0 0.0
    %3140 = vmatpush.msra.mxu0 0.0
    %3141 = vmatpush.msra.mxu0 0.0
    %3142 = vmatpush.msra.mxu0 0.0
    %3143 = vmatpush.msra.mxu0 0.0
    %3144 = vmatpush.msra.mxu0 0.0
    %3145 = vmatpush.msra.mxu0 0.0
    %3146 = vmatpush.msra.mxu0 %v60
    %3147 = vmatmul.f32.gmra.mxu0 %v3108
    %v3148 = vpop.f32.mrf.mxu0
    %v3149 = vadd.f32 %v3105, %v3148
    %3150 = vmatmul.f32.gmra.mxu0 %v3111
    %v3151 = vpop.f32.mrf.mxu0
    %v3152 = vadd.f32 %v3105, %v3151
    %3153 = vmatmul.f32.gmra.mxu0 %v3114
    %v3154 = vpop.f32.mrf.mxu0
    %v3155 = vadd.f32 %v3105, %v3154
    %3156 = vmatmul.f32.gmra.mxu0 %v3117
    %v3157 = vpop.f32.mrf.mxu0
    %v3158 = vadd.f32 %v3105, %v3157
    %3159 = vmatmul.f32.gmra.mxu0 %v3120
    %v3160 = vpop.f32.mrf.mxu0
    %v3161 = vadd.f32 %v3105, %v3160
    %3162 = vmatmul.f32.gmra.mxu0 %v3123
    %v3163 = vpop.f32.mrf.mxu0
    %v3164 = vadd.f32 %v3105, %v3163
    %3165 = vmatmul.f32.gmra.mxu0 %v3126
    %v3166 = vpop.f32.mrf.mxu0
    %v3167 = vadd.f32 %v3105, %v3166
    %3168 = vmatmul.f32.gmra.mxu0 %v3129
    %v3169 = vpop.f32.mrf.mxu0
    %v3170 = vadd.f32 %v3105, %v3169
    %3171 = vdwg.mxu0
    %v3172 = vtanh.pop %v3149
    %v3173 = vtanh.pop %v3152
    %v3174 = vtanh.pop %v3155
    %v3175 = vtanh.pop %v3158
    %v3176 = vtanh.pop %v3161
    %v3177 = vtanh.pop %v3164
    %v3178 = vtanh.pop %v3167
    %v3179 = vtanh.pop %v3170
    %v3180 = vmul.f32 %v3172, %v3172
    %v3181 = vmul.f32 %v3173, %v3173
    %v3182 = vmul.f32 %v3174, %v3174
    %v3183 = vmul.f32 %v3175, %v3175
    %v3184 = vmul.f32 %v3176, %v3176
    %v3185 = vmul.f32 %v3177, %v3177
    %v3186 = vmul.f32 %v3178, %v3178
    %v3187 = vmul.f32 %v3179, %v3179
    %v3188 = vsub.f32 1.0, %v3180
    %v3189 = vsub.f32 1.0, %v3181
    %v3190 = vsub.f32 1.0, %v3182
    %v3191 = vsub.f32 1.0, %v3183
    %v3192 = vsub.f32 1.0, %v3184
    %v3193 = vsub.f32 1.0, %v3185
    %v3194 = vsub.f32 1.0, %v3186
    %v3195 = vsub.f32 1.0, %v3187
    %3196 = vmatpush.msra.mxu0 %v77
    %3197 = vmatpush.msra.mxu0 %v76
    %3198 = vmatpush.msra.mxu0 %v75
    %3199 = vmatpush.msra.mxu0 %v74
    %3200 = vmatpush.msra.mxu0 %v73
    %3201 = vmatpush.msra.mxu0 %v72
    %3202 = vmatpush.msra.mxu0 %v71
    %3203 = vmatpush.msra.mxu0 %v70
    %3204 = vmatpush.msra.mxu0 %v69
    %3205 = vmatpush.msra.mxu0 %v68
    %3206 = vmatpush.msra.mxu0 %v67
    %3207 = vmatpush.msra.mxu0 %v66
    %3208 = vmatpush.msra.mxu0 %v65
    %3209 = vmatpush.msra.mxu0 %v64
    %3210 = vmatpush.msra.mxu0 %v63
    %3211 = vmatpush.msra.mxu0 %v62
    %3212 = vmatmul.f32.gmra.mxu0 %v3172
    %v3213 = vpop.f32.mrf.mxu0
    %v3214 = vadd.f32 0.0, %v3213
    %3215 = vmatmul.f32.gmra.mxu0 %v3173
    %v3216 = vpop.f32.mrf.mxu0
    %v3217 = vadd.f32 0.0, %v3216
    %3218 = vmatmul.f32.gmra.mxu0 %v3174
    %v3219 = vpop.f32.mrf.mxu0
    %v3220 = vadd.f32 0.0, %v3219
    %3221 = vmatmul.f32.gmra.mxu0 %v3175
    %v3222 = vpop.f32.mrf.mxu0
    %v3223 = vadd.f32 0.0, %v3222
    %3224 = vmatmul.f32.gmra.mxu0 %v3176
    %v3225 = vpop.f32.mrf.mxu0
    %v3226 = vadd.f32 0.0, %v3225
    %3227 = vmatmul.f32.gmra.mxu0 %v3177
    %v3228 = vpop.f32.mrf.mxu0
    %v3229 = vadd.f32 0.0, %v3228
    %3230 = vmatmul.f32.gmra.mxu0 %v3178
    %v3231 = vpop.f32.mrf.mxu0
    %v3232 = vadd.f32 0.0, %v3231
    %3233 = vmatmul.f32.gmra.mxu0 %v3179
    %v3234 = vpop.f32.mrf.mxu0
    %v3235 = vadd.f32 0.0, %v3234
    %3236 = vmatmul.f32.gmra.mxu0 %v3188
    %v3237 = vpop.f32.mrf.mxu0
    %v3238 = vadd.f32 0.0, %v3237
    %3239 = vmatmul.f32.gmra.mxu0 %v3189
    %v3240 = vpop.f32.mrf.mxu0
    %v3241 = vadd.f32 0.0, %v3240
    %3242 = vmatmul.f32.gmra.mxu0 %v3190
    %v3243 = vpop.f32.mrf.mxu0
    %v3244 = vadd.f32 0.0, %v3243
    %3245 = vmatmul.f32.gmra.mxu0 %v3191
    %v3246 = vpop.f32.mrf.mxu0
    %v3247 = vadd.f32 0.0, %v3246
    %3248 = vmatmul.f32.gmra.mxu0 %v3192
    %v3249 = vpop.f32.mrf.mxu0
    %v3250 = vadd.f32 0.0, %v3249
    %3251 = vmatmul.f32.gmra.mxu0 %v3193
    %v3252 = vpop.f32.mrf.mxu0
    %v3253 = vadd.f32 0.0, %v3252
    %3254 = vmatmul.f32.gmra.mxu0 %v3194
    %v3255 = vpop.f32.mrf.mxu0
    %v3256 = vadd.f32 0.0, %v3255
    %3257 = vmatmul.f32.gmra.mxu0 %v3195
    %v3258 = vpop.f32.mrf.mxu0
    %v3259 = vadd.f32 0.0, %v3258
    %3260 = vdwg.mxu0
    %v3261 = vmul.f32 %v2871, 2.0
    %v3262 = vmul.f32 %v2874, 2.0
    %v3263 = vmul.f32 %v2877, 2.0
    %v3264 = vmul.f32 %v2880, 2.0
    %v3265 = vmul.f32 %v2883, 2.0
    %v3266 = vmul.f32 %v2886, 2.0
    %v3267 = vmul.f32 %v2889, 2.0
    %v3268 = vmul.f32 %v2892, 2.0
    %v3269 = vadd.f32 %v2698, %v3261
    %v3270 = vadd.f32 %v2701, %v3262
    %v3271 = vadd.f32 %v2704, %v3263
    %v3272 = vadd.f32 %v2707, %v3264
    %v3273 = vadd.f32 %v2710, %v3265
    %v3274 = vadd.f32 %v2713, %v3266
    %v3275 = vadd.f32 %v2716, %v3267
    %v3276 = vadd.f32 %v2719, %v3268
    %v3277 = vmul.f32 %v3041, 2.0
    %v3278 = vmul.f32 %v3044, 2.0
    %v3279 = vmul.f32 %v3047, 2.0
    %v3280 = vmul.f32 %v3050, 2.0
    %v3281 = vmul.f32 %v3053, 2.0
    %v3282 = vmul.f32 %v3056, 2.0
    %v3283 = vmul.f32 %v3059, 2.0
    %v3284 = vmul.f32 %v3062, 2.0
    %v3285 = vadd.f32 %v3269, %v3277
    %v3286 = vadd.f32 %v3270, %v3278
    %v3287 = vadd.f32 %v3271, %v3279
    %v3288 = vadd.f32 %v3272, %v3280
    %v3289 = vadd.f32 %v3273, %v3281
    %v3290 = vadd.f32 %v3274, %v3282
    %v3291 = vadd.f32 %v3275, %v3283
    %v3292 = vadd.f32 %v3276, %v3284
    %v3293 = vadd.f32 %v3285, %v3214
    %v3294 = vadd.f32 %v3286, %v3217
    %v3295 = vadd.f32 %v3287, %v3220
    %v3296 = vadd.f32 %v3288, %v3223
    %v3297 = vadd.f32 %v3289, %v3226
    %v3298 = vadd.f32 %v3290, %v3229
    %v3299 = vadd.f32 %v3291, %v3232
    %v3300 = vadd.f32 %v3292, %v3235
    %v3301 = vmul.f32 %v820, %v3293
    %v3302 = vmul.f32 %v820, %v3294
    %v3303 = vmul.f32 %v820, %v3295
    %v3304 = vmul.f32 %v820, %v3296
    %v3305 = vmul.f32 %v820, %v3297
    %v3306 = vmul.f32 %v820, %v3298
    %v3307 = vmul.f32 %v820, %v3299
    %v3308 = vmul.f32 %v820, %v3300
    %v3309 = vadd.f32 %v2482, %v3301
    %v3310 = vadd.f32 %v2483, %v3302
    %v3311 = vadd.f32 %v2484, %v3303
    %v3312 = vadd.f32 %v2485, %v3304
    %v3313 = vadd.f32 %v2486, %v3305
    %v3314 = vadd.f32 %v2487, %v3306
    %v3315 = vadd.f32 %v2488, %v3307
    %v3316 = vadd.f32 %v2489, %v3308
    %v3317 = vmul.f32 %v2895, 2.0
    %v3318 = vmul.f32 %v2898, 2.0
    %v3319 = vmul.f32 %v2901, 2.0
    %v3320 = vmul.f32 %v2904, 2.0
    %v3321 = vmul.f32 %v2907, 2.0
    %v3322 = vmul.f32 %v2910, 2.0
    %v3323 = vmul.f32 %v2913, 2.0
    %v3324 = vmul.f32 %v2916, 2.0
    %v3325 = vadd.f32 %v2722, %v3317
    %v3326 = vadd.f32 %v2725, %v3318
    %v3327 = vadd.f32 %v2728, %v3319
    %v3328 = vadd.f32 %v2731, %v3320
    %v3329 = vadd.f32 %v2734, %v3321
    %v3330 = vadd.f32 %v2737, %v3322
    %v3331 = vadd.f32 %v2740, %v3323
    %v3332 = vadd.f32 %v2743, %v3324
    %v3333 = vmul.f32 %v3065, 2.0
    %v3334 = vmul.f32 %v3068, 2.0
    %v3335 = vmul.f32 %v3071, 2.0
    %v3336 = vmul.f32 %v3074, 2.0
    %v3337 = vmul.f32 %v3077, 2.0
    %v3338 = vmul.f32 %v3080, 2.0
    %v3339 = vmul.f32 %v3083, 2.0
    %v3340 = vmul.f32 %v3086, 2.0
    %v3341 = vadd.f32 %v3325, %v3333
    %v3342 = vadd.f32 %v3326, %v3334
    %v3343 = vadd.f32 %v3327, %v3335
    %v3344 = vadd.f32 %v3328, %v3336
    %v3345 = vadd.f32 %v3329, %v3337
    %v3346 = vadd.f32 %v3330, %v3338
    %v3347 = vadd.f32 %v3331, %v3339
    %v3348 = vadd.f32 %v3332, %v3340
    %v3349 = vadd.f32 %v3341, %v3238
    %v3350 = vadd.f32 %v3342, %v3241
    %v3351 = vadd.f32 %v3343, %v3244
    %v3352 = vadd.f32 %v3344, %v3247
    %v3353 = vadd.f32 %v3345, %v3250
    %v3354 = vadd.f32 %v3346, %v3253
    %v3355 = vadd.f32 %v3347, %v3256
    %v3356 = vadd.f32 %v3348, %v3259
    %v3357 = vmul.f32 %v820, %v3349
    %v3358 = vmul.f32 %v820, %v3350
    %v3359 = vmul.f32 %v820, %v3351
    %v3360 = vmul.f32 %v820, %v3352
    %v3361 = vmul.f32 %v820, %v3353
    %v3362 = vmul.f32 %v820, %v3354
    %v3363 = vmul.f32 %v820, %v3355
    %v3364 = vmul.f32 %v820, %v3356
    %3373 = vrot.lane.b32.xlu0 %v3357, 120
    %v3374 = vpop.permute.xlu0 %3373
    %3375 = vrot.lane.b32.xlu0 %v3358, 120
    %v3376 = vpop.permute.xlu0 %3375
    %3377 = vrot.lane.b32.xlu0 %v3359, 120
    %v3378 = vpop.permute.xlu0 %3377
    %3379 = vrot.lane.b32.xlu0 %v3360, 120
    %v3380 = vpop.permute.xlu0 %3379
    %3381 = vrot.lane.b32.xlu0 %v3361, 120
    %v3382 = vpop.permute.xlu0 %3381
    %3383 = vrot.lane.b32.xlu0 %v3362, 120
    %v3384 = vpop.permute.xlu0 %3383
    %3385 = vrot.lane.b32.xlu0 %v3363, 120
    %v3386 = vpop.permute.xlu0 %3385
    %3387 = vrot.lane.b32.xlu0 %v3364, 120
    %v3388 = vpop.permute.xlu0 %3387
    %v3397 = vadd.f32 %v2570, %v3374
    %v3398 = vadd.f32 %v2571, %v3376
    %v3399 = vadd.f32 %v2572, %v3378
    %v3400 = vadd.f32 %v2573, %v3380
    %v3401 = vadd.f32 %v2574, %v3382
    %v3402 = vadd.f32 %v2575, %v3384
    %v3403 = vadd.f32 %v2576, %v3386
    %v3404 = vadd.f32 %v2577, %v3388
    %s3405 = smul.f32 %s49, 4.0
    %s3406 = sadd.f32 %s38, %s3405
    %v3407 = vstv %s3406
    %v3408 = vadd.f32 %v61, %v3407
    %s3409 = sadd.f32 %s3406, %s50
    %v3410 = vstv %s3409
    %v3411 = vadd.f32 %v61, %v3410
    %s3412 = sadd.f32 %s3406, %s49
    %v3413 = vstv %s3412
    %v3414 = vadd.f32 %v61, %v3413
    %v3416 = vperm.slane %v3408, 0
    %v3419 = vsel %vm107, %v3309, 0
    %v3422 = vsel %vm107, %v3310, 0
    %v3425 = vsel %vm107, %v3311, 0
    %v3428 = vsel %vm107, %v3312, 0
    %v3431 = vsel %vm107, %v3313, 0
    %v3434 = vsel %vm107, %v3314, 0
    %v3437 = vsel %vm107, %v3315, 0
    %v3440 = vsel %vm107, %v3316, 0
    %3442 = vmatpush.msra.mxu0 0.0
    %3443 = vmatpush.msra.mxu0 0.0
    %3444 = vmatpush.msra.mxu0 0.0
    %3445 = vmatpush.msra.mxu0 0.0
    %3446 = vmatpush.msra.mxu0 0.0
    %3447 = vmatpush.msra.mxu0 0.0
    %3448 = vmatpush.msra.mxu0 0.0
    %3449 = vmatpush.msra.mxu0 0.0
    %3450 = vmatpush.msra.mxu0 0.0
    %3451 = vmatpush.msra.mxu0 0.0
    %3452 = vmatpush.msra.mxu0 0.0
    %3453 = vmatpush.msra.mxu0 0.0
    %3454 = vmatpush.msra.mxu0 0.0
    %3455 = vmatpush.msra.mxu0 0.0
    %3456 = vmatpush.msra.mxu0 0.0
    %3457 = vmatpush.msra.mxu0 %v60
    %3458 = vmatmul.f32.gmra.mxu0 %v3419
    %v3459 = vpop.f32.mrf.mxu0
    %v3460 = vadd.f32 %v3416, %v3459
    %3461 = vmatmul.f32.gmra.mxu0 %v3422
    %v3462 = vpop.f32.mrf.mxu0
    %v3463 = vadd.f32 %v3416, %v3462
    %3464 = vmatmul.f32.gmra.mxu0 %v3425
    %v3465 = vpop.f32.mrf.mxu0
    %v3466 = vadd.f32 %v3416, %v3465
    %3467 = vmatmul.f32.gmra.mxu0 %v3428
    %v3468 = vpop.f32.mrf.mxu0
    %v3469 = vadd.f32 %v3416, %v3468
    %3470 = vmatmul.f32.gmra.mxu0 %v3431
    %v3471 = vpop.f32.mrf.mxu0
    %v3472 = vadd.f32 %v3416, %v3471
    %3473 = vmatmul.f32.gmra.mxu0 %v3434
    %v3474 = vpop.f32.mrf.mxu0
    %v3475 = vadd.f32 %v3416, %v3474
    %3476 = vmatmul.f32.gmra.mxu0 %v3437
    %v3477 = vpop.f32.mrf.mxu0
    %v3478 = vadd.f32 %v3416, %v3477
    %3479 = vmatmul.f32.gmra.mxu0 %v3440
    %v3480 = vpop.f32.mrf.mxu0
    %v3481 = vadd.f32 %v3416, %v3480
    %3482 = vdwg.mxu0
    %v3483 = vtanh.pop %v3460
    %v3484 = vtanh.pop %v3463
    %v3485 = vtanh.pop %v3466
    %v3486 = vtanh.pop %v3469
    %v3487 = vtanh.pop %v3472
    %v3488 = vtanh.pop %v3475
    %v3489 = vtanh.pop %v3478
    %v3490 = vtanh.pop %v3481
    %v3491 = vmul.f32 %v3483, %v3483
    %v3492 = vmul.f32 %v3484, %v3484
    %v3493 = vmul.f32 %v3485, %v3485
    %v3494 = vmul.f32 %v3486, %v3486
    %v3495 = vmul.f32 %v3487, %v3487
    %v3496 = vmul.f32 %v3488, %v3488
    %v3497 = vmul.f32 %v3489, %v3489
    %v3498 = vmul.f32 %v3490, %v3490
    %v3499 = vsub.f32 1.0, %v3491
    %v3500 = vsub.f32 1.0, %v3492
    %v3501 = vsub.f32 1.0, %v3493
    %v3502 = vsub.f32 1.0, %v3494
    %v3503 = vsub.f32 1.0, %v3495
    %v3504 = vsub.f32 1.0, %v3496
    %v3505 = vsub.f32 1.0, %v3497
    %v3506 = vsub.f32 1.0, %v3498
    %3507 = vmatpush.msra.mxu0 %v77
    %3508 = vmatpush.msra.mxu0 %v76
    %3509 = vmatpush.msra.mxu0 %v75
    %3510 = vmatpush.msra.mxu0 %v74
    %3511 = vmatpush.msra.mxu0 %v73
    %3512 = vmatpush.msra.mxu0 %v72
    %3513 = vmatpush.msra.mxu0 %v71
    %3514 = vmatpush.msra.mxu0 %v70
    %3515 = vmatpush.msra.mxu0 %v69
    %3516 = vmatpush.msra.mxu0 %v68
    %3517 = vmatpush.msra.mxu0 %v67
    %3518 = vmatpush.msra.mxu0 %v66
    %3519 = vmatpush.msra.mxu0 %v65
    %3520 = vmatpush.msra.mxu0 %v64
    %3521 = vmatpush.msra.mxu0 %v63
    %3522 = vmatpush.msra.mxu0 %v62
    %3523 = vmatmul.f32.gmra.mxu0 %v3483
    %v3524 = vpop.f32.mrf.mxu0
    %v3525 = vadd.f32 0.0, %v3524
    %3526 = vmatmul.f32.gmra.mxu0 %v3484
    %v3527 = vpop.f32.mrf.mxu0
    %v3528 = vadd.f32 0.0, %v3527
    %3529 = vmatmul.f32.gmra.mxu0 %v3485
    %v3530 = vpop.f32.mrf.mxu0
    %v3531 = vadd.f32 0.0, %v3530
    %3532 = vmatmul.f32.gmra.mxu0 %v3486
    %v3533 = vpop.f32.mrf.mxu0
    %v3534 = vadd.f32 0.0, %v3533
    %3535 = vmatmul.f32.gmra.mxu0 %v3487
    %v3536 = vpop.f32.mrf.mxu0
    %v3537 = vadd.f32 0.0, %v3536
    %3538 = vmatmul.f32.gmra.mxu0 %v3488
    %v3539 = vpop.f32.mrf.mxu0
    %v3540 = vadd.f32 0.0, %v3539
    %3541 = vmatmul.f32.gmra.mxu0 %v3489
    %v3542 = vpop.f32.mrf.mxu0
    %v3543 = vadd.f32 0.0, %v3542
    %3544 = vmatmul.f32.gmra.mxu0 %v3490
    %v3545 = vpop.f32.mrf.mxu0
    %v3546 = vadd.f32 0.0, %v3545
    %3547 = vmatmul.f32.gmra.mxu0 %v3499
    %v3548 = vpop.f32.mrf.mxu0
    %v3549 = vadd.f32 0.0, %v3548
    %3550 = vmatmul.f32.gmra.mxu0 %v3500
    %v3551 = vpop.f32.mrf.mxu0
    %v3552 = vadd.f32 0.0, %v3551
    %3553 = vmatmul.f32.gmra.mxu0 %v3501
    %v3554 = vpop.f32.mrf.mxu0
    %v3555 = vadd.f32 0.0, %v3554
    %3556 = vmatmul.f32.gmra.mxu0 %v3502
    %v3557 = vpop.f32.mrf.mxu0
    %v3558 = vadd.f32 0.0, %v3557
    %3559 = vmatmul.f32.gmra.mxu0 %v3503
    %v3560 = vpop.f32.mrf.mxu0
    %v3561 = vadd.f32 0.0, %v3560
    %3562 = vmatmul.f32.gmra.mxu0 %v3504
    %v3563 = vpop.f32.mrf.mxu0
    %v3564 = vadd.f32 0.0, %v3563
    %3565 = vmatmul.f32.gmra.mxu0 %v3505
    %v3566 = vpop.f32.mrf.mxu0
    %v3567 = vadd.f32 0.0, %v3566
    %3568 = vmatmul.f32.gmra.mxu0 %v3506
    %v3569 = vpop.f32.mrf.mxu0
    %v3570 = vadd.f32 0.0, %v3569
    %3571 = vdwg.mxu0
    %v3572 = vmul.f32 %v262, %v3525
    %v3573 = vmul.f32 %v262, %v3528
    %v3574 = vmul.f32 %v262, %v3531
    %v3575 = vmul.f32 %v262, %v3534
    %v3576 = vmul.f32 %v262, %v3537
    %v3577 = vmul.f32 %v262, %v3540
    %v3578 = vmul.f32 %v262, %v3543
    %v3579 = vmul.f32 %v262, %v3546
    %v3580 = vadd.f32 %v3309, %v3572
    %v3581 = vadd.f32 %v3310, %v3573
    %v3582 = vadd.f32 %v3311, %v3574
    %v3583 = vadd.f32 %v3312, %v3575
    %v3584 = vadd.f32 %v3313, %v3576
    %v3585 = vadd.f32 %v3314, %v3577
    %v3586 = vadd.f32 %v3315, %v3578
    %v3587 = vadd.f32 %v3316, %v3579
    %v3589 = vperm.slane %v3411, 0
    %v3592 = vsel %vm107, %v3580, 0
    %v3595 = vsel %vm107, %v3581, 0
    %v3598 = vsel %vm107, %v3582, 0
    %v3601 = vsel %vm107, %v3583, 0
    %v3604 = vsel %vm107, %v3584, 0
    %v3607 = vsel %vm107, %v3585, 0
    %v3610 = vsel %vm107, %v3586, 0
    %v3613 = vsel %vm107, %v3587, 0
    %3615 = vmatpush.msra.mxu0 0.0
    %3616 = vmatpush.msra.mxu0 0.0
    %3617 = vmatpush.msra.mxu0 0.0
    %3618 = vmatpush.msra.mxu0 0.0
    %3619 = vmatpush.msra.mxu0 0.0
    %3620 = vmatpush.msra.mxu0 0.0
    %3621 = vmatpush.msra.mxu0 0.0
    %3622 = vmatpush.msra.mxu0 0.0
    %3623 = vmatpush.msra.mxu0 0.0
    %3624 = vmatpush.msra.mxu0 0.0
    %3625 = vmatpush.msra.mxu0 0.0
    %3626 = vmatpush.msra.mxu0 0.0
    %3627 = vmatpush.msra.mxu0 0.0
    %3628 = vmatpush.msra.mxu0 0.0
    %3629 = vmatpush.msra.mxu0 0.0
    %3630 = vmatpush.msra.mxu0 %v60
    %3631 = vmatmul.f32.gmra.mxu0 %v3592
    %v3632 = vpop.f32.mrf.mxu0
    %v3633 = vadd.f32 %v3589, %v3632
    %3634 = vmatmul.f32.gmra.mxu0 %v3595
    %v3635 = vpop.f32.mrf.mxu0
    %v3636 = vadd.f32 %v3589, %v3635
    %3637 = vmatmul.f32.gmra.mxu0 %v3598
    %v3638 = vpop.f32.mrf.mxu0
    %v3639 = vadd.f32 %v3589, %v3638
    %3640 = vmatmul.f32.gmra.mxu0 %v3601
    %v3641 = vpop.f32.mrf.mxu0
    %v3642 = vadd.f32 %v3589, %v3641
    %3643 = vmatmul.f32.gmra.mxu0 %v3604
    %v3644 = vpop.f32.mrf.mxu0
    %v3645 = vadd.f32 %v3589, %v3644
    %3646 = vmatmul.f32.gmra.mxu0 %v3607
    %v3647 = vpop.f32.mrf.mxu0
    %v3648 = vadd.f32 %v3589, %v3647
    %3649 = vmatmul.f32.gmra.mxu0 %v3610
    %v3650 = vpop.f32.mrf.mxu0
    %v3651 = vadd.f32 %v3589, %v3650
    %3652 = vmatmul.f32.gmra.mxu0 %v3613
    %v3653 = vpop.f32.mrf.mxu0
    %v3654 = vadd.f32 %v3589, %v3653
    %3655 = vdwg.mxu0
    %v3656 = vtanh.pop %v3633
    %v3657 = vtanh.pop %v3636
    %v3658 = vtanh.pop %v3639
    %v3659 = vtanh.pop %v3642
    %v3660 = vtanh.pop %v3645
    %v3661 = vtanh.pop %v3648
    %v3662 = vtanh.pop %v3651
    %v3663 = vtanh.pop %v3654
    %v3664 = vmul.f32 %v3656, %v3656
    %v3665 = vmul.f32 %v3657, %v3657
    %v3666 = vmul.f32 %v3658, %v3658
    %v3667 = vmul.f32 %v3659, %v3659
    %v3668 = vmul.f32 %v3660, %v3660
    %v3669 = vmul.f32 %v3661, %v3661
    %v3670 = vmul.f32 %v3662, %v3662
    %v3671 = vmul.f32 %v3663, %v3663
    %v3672 = vsub.f32 1.0, %v3664
    %v3673 = vsub.f32 1.0, %v3665
    %v3674 = vsub.f32 1.0, %v3666
    %v3675 = vsub.f32 1.0, %v3667
    %v3676 = vsub.f32 1.0, %v3668
    %v3677 = vsub.f32 1.0, %v3669
    %v3678 = vsub.f32 1.0, %v3670
    %v3679 = vsub.f32 1.0, %v3671
    %3680 = vmatpush.msra.mxu0 %v77
    %3681 = vmatpush.msra.mxu0 %v76
    %3682 = vmatpush.msra.mxu0 %v75
    %3683 = vmatpush.msra.mxu0 %v74
    %3684 = vmatpush.msra.mxu0 %v73
    %3685 = vmatpush.msra.mxu0 %v72
    %3686 = vmatpush.msra.mxu0 %v71
    %3687 = vmatpush.msra.mxu0 %v70
    %3688 = vmatpush.msra.mxu0 %v69
    %3689 = vmatpush.msra.mxu0 %v68
    %3690 = vmatpush.msra.mxu0 %v67
    %3691 = vmatpush.msra.mxu0 %v66
    %3692 = vmatpush.msra.mxu0 %v65
    %3693 = vmatpush.msra.mxu0 %v64
    %3694 = vmatpush.msra.mxu0 %v63
    %3695 = vmatpush.msra.mxu0 %v62
    %3696 = vmatmul.f32.gmra.mxu0 %v3656
    %v3697 = vpop.f32.mrf.mxu0
    %v3698 = vadd.f32 0.0, %v3697
    %3699 = vmatmul.f32.gmra.mxu0 %v3657
    %v3700 = vpop.f32.mrf.mxu0
    %v3701 = vadd.f32 0.0, %v3700
    %3702 = vmatmul.f32.gmra.mxu0 %v3658
    %v3703 = vpop.f32.mrf.mxu0
    %v3704 = vadd.f32 0.0, %v3703
    %3705 = vmatmul.f32.gmra.mxu0 %v3659
    %v3706 = vpop.f32.mrf.mxu0
    %v3707 = vadd.f32 0.0, %v3706
    %3708 = vmatmul.f32.gmra.mxu0 %v3660
    %v3709 = vpop.f32.mrf.mxu0
    %v3710 = vadd.f32 0.0, %v3709
    %3711 = vmatmul.f32.gmra.mxu0 %v3661
    %v3712 = vpop.f32.mrf.mxu0
    %v3713 = vadd.f32 0.0, %v3712
    %3714 = vmatmul.f32.gmra.mxu0 %v3662
    %v3715 = vpop.f32.mrf.mxu0
    %v3716 = vadd.f32 0.0, %v3715
    %3717 = vmatmul.f32.gmra.mxu0 %v3663
    %v3718 = vpop.f32.mrf.mxu0
    %v3719 = vadd.f32 0.0, %v3718
    %3720 = vmatmul.f32.gmra.mxu0 %v3672
    %v3721 = vpop.f32.mrf.mxu0
    %v3722 = vadd.f32 0.0, %v3721
    %3723 = vmatmul.f32.gmra.mxu0 %v3673
    %v3724 = vpop.f32.mrf.mxu0
    %v3725 = vadd.f32 0.0, %v3724
    %3726 = vmatmul.f32.gmra.mxu0 %v3674
    %v3727 = vpop.f32.mrf.mxu0
    %v3728 = vadd.f32 0.0, %v3727
    %3729 = vmatmul.f32.gmra.mxu0 %v3675
    %v3730 = vpop.f32.mrf.mxu0
    %v3731 = vadd.f32 0.0, %v3730
    %3732 = vmatmul.f32.gmra.mxu0 %v3676
    %v3733 = vpop.f32.mrf.mxu0
    %v3734 = vadd.f32 0.0, %v3733
    %3735 = vmatmul.f32.gmra.mxu0 %v3677
    %v3736 = vpop.f32.mrf.mxu0
    %v3737 = vadd.f32 0.0, %v3736
    %3738 = vmatmul.f32.gmra.mxu0 %v3678
    %v3739 = vpop.f32.mrf.mxu0
    %v3740 = vadd.f32 0.0, %v3739
    %3741 = vmatmul.f32.gmra.mxu0 %v3679
    %v3742 = vpop.f32.mrf.mxu0
    %v3743 = vadd.f32 0.0, %v3742
    %3744 = vdwg.mxu0
    %v3745 = vmul.f32 %v262, %v3698
    %v3746 = vmul.f32 %v262, %v3701
    %v3747 = vmul.f32 %v262, %v3704
    %v3748 = vmul.f32 %v262, %v3707
    %v3749 = vmul.f32 %v262, %v3710
    %v3750 = vmul.f32 %v262, %v3713
    %v3751 = vmul.f32 %v262, %v3716
    %v3752 = vmul.f32 %v262, %v3719
    %v3753 = vadd.f32 %v3309, %v3745
    %v3754 = vadd.f32 %v3310, %v3746
    %v3755 = vadd.f32 %v3311, %v3747
    %v3756 = vadd.f32 %v3312, %v3748
    %v3757 = vadd.f32 %v3313, %v3749
    %v3758 = vadd.f32 %v3314, %v3750
    %v3759 = vadd.f32 %v3315, %v3751
    %v3760 = vadd.f32 %v3316, %v3752
    %v3762 = vsel %vm107, %v3753, 0
    %v3765 = vsel %vm107, %v3754, 0
    %v3768 = vsel %vm107, %v3755, 0
    %v3771 = vsel %vm107, %v3756, 0
    %v3774 = vsel %vm107, %v3757, 0
    %v3777 = vsel %vm107, %v3758, 0
    %v3780 = vsel %vm107, %v3759, 0
    %v3783 = vsel %vm107, %v3760, 0
    %3785 = vmatpush.msra.mxu0 0.0
    %3786 = vmatpush.msra.mxu0 0.0
    %3787 = vmatpush.msra.mxu0 0.0
    %3788 = vmatpush.msra.mxu0 0.0
    %3789 = vmatpush.msra.mxu0 0.0
    %3790 = vmatpush.msra.mxu0 0.0
    %3791 = vmatpush.msra.mxu0 0.0
    %3792 = vmatpush.msra.mxu0 0.0
    %3793 = vmatpush.msra.mxu0 0.0
    %3794 = vmatpush.msra.mxu0 0.0
    %3795 = vmatpush.msra.mxu0 0.0
    %3796 = vmatpush.msra.mxu0 0.0
    %3797 = vmatpush.msra.mxu0 0.0
    %3798 = vmatpush.msra.mxu0 0.0
    %3799 = vmatpush.msra.mxu0 0.0
    %3800 = vmatpush.msra.mxu0 %v60
    %3801 = vmatmul.f32.gmra.mxu0 %v3762
    %v3802 = vpop.f32.mrf.mxu0
    %v3803 = vadd.f32 %v3589, %v3802
    %3804 = vmatmul.f32.gmra.mxu0 %v3765
    %v3805 = vpop.f32.mrf.mxu0
    %v3806 = vadd.f32 %v3589, %v3805
    %3807 = vmatmul.f32.gmra.mxu0 %v3768
    %v3808 = vpop.f32.mrf.mxu0
    %v3809 = vadd.f32 %v3589, %v3808
    %3810 = vmatmul.f32.gmra.mxu0 %v3771
    %v3811 = vpop.f32.mrf.mxu0
    %v3812 = vadd.f32 %v3589, %v3811
    %3813 = vmatmul.f32.gmra.mxu0 %v3774
    %v3814 = vpop.f32.mrf.mxu0
    %v3815 = vadd.f32 %v3589, %v3814
    %3816 = vmatmul.f32.gmra.mxu0 %v3777
    %v3817 = vpop.f32.mrf.mxu0
    %v3818 = vadd.f32 %v3589, %v3817
    %3819 = vmatmul.f32.gmra.mxu0 %v3780
    %v3820 = vpop.f32.mrf.mxu0
    %v3821 = vadd.f32 %v3589, %v3820
    %3822 = vmatmul.f32.gmra.mxu0 %v3783
    %v3823 = vpop.f32.mrf.mxu0
    %v3824 = vadd.f32 %v3589, %v3823
    %3825 = vdwg.mxu0
    %v3826 = vtanh.pop %v3803
    %v3827 = vtanh.pop %v3806
    %v3828 = vtanh.pop %v3809
    %v3829 = vtanh.pop %v3812
    %v3830 = vtanh.pop %v3815
    %v3831 = vtanh.pop %v3818
    %v3832 = vtanh.pop %v3821
    %v3833 = vtanh.pop %v3824
    %v3834 = vmul.f32 %v3826, %v3826
    %v3835 = vmul.f32 %v3827, %v3827
    %v3836 = vmul.f32 %v3828, %v3828
    %v3837 = vmul.f32 %v3829, %v3829
    %v3838 = vmul.f32 %v3830, %v3830
    %v3839 = vmul.f32 %v3831, %v3831
    %v3840 = vmul.f32 %v3832, %v3832
    %v3841 = vmul.f32 %v3833, %v3833
    %v3842 = vsub.f32 1.0, %v3834
    %v3843 = vsub.f32 1.0, %v3835
    %v3844 = vsub.f32 1.0, %v3836
    %v3845 = vsub.f32 1.0, %v3837
    %v3846 = vsub.f32 1.0, %v3838
    %v3847 = vsub.f32 1.0, %v3839
    %v3848 = vsub.f32 1.0, %v3840
    %v3849 = vsub.f32 1.0, %v3841
    %3850 = vmatpush.msra.mxu0 %v77
    %3851 = vmatpush.msra.mxu0 %v76
    %3852 = vmatpush.msra.mxu0 %v75
    %3853 = vmatpush.msra.mxu0 %v74
    %3854 = vmatpush.msra.mxu0 %v73
    %3855 = vmatpush.msra.mxu0 %v72
    %3856 = vmatpush.msra.mxu0 %v71
    %3857 = vmatpush.msra.mxu0 %v70
    %3858 = vmatpush.msra.mxu0 %v69
    %3859 = vmatpush.msra.mxu0 %v68
    %3860 = vmatpush.msra.mxu0 %v67
    %3861 = vmatpush.msra.mxu0 %v66
    %3862 = vmatpush.msra.mxu0 %v65
    %3863 = vmatpush.msra.mxu0 %v64
    %3864 = vmatpush.msra.mxu0 %v63
    %3865 = vmatpush.msra.mxu0 %v62
    %3866 = vmatmul.f32.gmra.mxu0 %v3826
    %v3867 = vpop.f32.mrf.mxu0
    %v3868 = vadd.f32 0.0, %v3867
    %3869 = vmatmul.f32.gmra.mxu0 %v3827
    %v3870 = vpop.f32.mrf.mxu0
    %v3871 = vadd.f32 0.0, %v3870
    %3872 = vmatmul.f32.gmra.mxu0 %v3828
    %v3873 = vpop.f32.mrf.mxu0
    %v3874 = vadd.f32 0.0, %v3873
    %3875 = vmatmul.f32.gmra.mxu0 %v3829
    %v3876 = vpop.f32.mrf.mxu0
    %v3877 = vadd.f32 0.0, %v3876
    %3878 = vmatmul.f32.gmra.mxu0 %v3830
    %v3879 = vpop.f32.mrf.mxu0
    %v3880 = vadd.f32 0.0, %v3879
    %3881 = vmatmul.f32.gmra.mxu0 %v3831
    %v3882 = vpop.f32.mrf.mxu0
    %v3883 = vadd.f32 0.0, %v3882
    %3884 = vmatmul.f32.gmra.mxu0 %v3832
    %v3885 = vpop.f32.mrf.mxu0
    %v3886 = vadd.f32 0.0, %v3885
    %3887 = vmatmul.f32.gmra.mxu0 %v3833
    %v3888 = vpop.f32.mrf.mxu0
    %v3889 = vadd.f32 0.0, %v3888
    %3890 = vmatmul.f32.gmra.mxu0 %v3842
    %v3891 = vpop.f32.mrf.mxu0
    %v3892 = vadd.f32 0.0, %v3891
    %3893 = vmatmul.f32.gmra.mxu0 %v3843
    %v3894 = vpop.f32.mrf.mxu0
    %v3895 = vadd.f32 0.0, %v3894
    %3896 = vmatmul.f32.gmra.mxu0 %v3844
    %v3897 = vpop.f32.mrf.mxu0
    %v3898 = vadd.f32 0.0, %v3897
    %3899 = vmatmul.f32.gmra.mxu0 %v3845
    %v3900 = vpop.f32.mrf.mxu0
    %v3901 = vadd.f32 0.0, %v3900
    %3902 = vmatmul.f32.gmra.mxu0 %v3846
    %v3903 = vpop.f32.mrf.mxu0
    %v3904 = vadd.f32 0.0, %v3903
    %3905 = vmatmul.f32.gmra.mxu0 %v3847
    %v3906 = vpop.f32.mrf.mxu0
    %v3907 = vadd.f32 0.0, %v3906
    %3908 = vmatmul.f32.gmra.mxu0 %v3848
    %v3909 = vpop.f32.mrf.mxu0
    %v3910 = vadd.f32 0.0, %v3909
    %3911 = vmatmul.f32.gmra.mxu0 %v3849
    %v3912 = vpop.f32.mrf.mxu0
    %v3913 = vadd.f32 0.0, %v3912
    %3914 = vdwg.mxu0
    %v3915 = vmul.f32 %v606, %v3868
    %v3916 = vmul.f32 %v606, %v3871
    %v3917 = vmul.f32 %v606, %v3874
    %v3918 = vmul.f32 %v606, %v3877
    %v3919 = vmul.f32 %v606, %v3880
    %v3920 = vmul.f32 %v606, %v3883
    %v3921 = vmul.f32 %v606, %v3886
    %v3922 = vmul.f32 %v606, %v3889
    %v3923 = vadd.f32 %v3309, %v3915
    %v3924 = vadd.f32 %v3310, %v3916
    %v3925 = vadd.f32 %v3311, %v3917
    %v3926 = vadd.f32 %v3312, %v3918
    %v3927 = vadd.f32 %v3313, %v3919
    %v3928 = vadd.f32 %v3314, %v3920
    %v3929 = vadd.f32 %v3315, %v3921
    %v3930 = vadd.f32 %v3316, %v3922
    %v3932 = vperm.slane %v3414, 0
    %v3935 = vsel %vm107, %v3923, 0
    %v3938 = vsel %vm107, %v3924, 0
    %v3941 = vsel %vm107, %v3925, 0
    %v3944 = vsel %vm107, %v3926, 0
    %v3947 = vsel %vm107, %v3927, 0
    %v3950 = vsel %vm107, %v3928, 0
    %v3953 = vsel %vm107, %v3929, 0
    %v3956 = vsel %vm107, %v3930, 0
    %3958 = vmatpush.msra.mxu0 0.0
    %3959 = vmatpush.msra.mxu0 0.0
    %3960 = vmatpush.msra.mxu0 0.0
    %3961 = vmatpush.msra.mxu0 0.0
    %3962 = vmatpush.msra.mxu0 0.0
    %3963 = vmatpush.msra.mxu0 0.0
    %3964 = vmatpush.msra.mxu0 0.0
    %3965 = vmatpush.msra.mxu0 0.0
    %3966 = vmatpush.msra.mxu0 0.0
    %3967 = vmatpush.msra.mxu0 0.0
    %3968 = vmatpush.msra.mxu0 0.0
    %3969 = vmatpush.msra.mxu0 0.0
    %3970 = vmatpush.msra.mxu0 0.0
    %3971 = vmatpush.msra.mxu0 0.0
    %3972 = vmatpush.msra.mxu0 0.0
    %3973 = vmatpush.msra.mxu0 %v60
    %3974 = vmatmul.f32.gmra.mxu0 %v3935
    %v3975 = vpop.f32.mrf.mxu0
    %v3976 = vadd.f32 %v3932, %v3975
    %3977 = vmatmul.f32.gmra.mxu0 %v3938
    %v3978 = vpop.f32.mrf.mxu0
    %v3979 = vadd.f32 %v3932, %v3978
    %3980 = vmatmul.f32.gmra.mxu0 %v3941
    %v3981 = vpop.f32.mrf.mxu0
    %v3982 = vadd.f32 %v3932, %v3981
    %3983 = vmatmul.f32.gmra.mxu0 %v3944
    %v3984 = vpop.f32.mrf.mxu0
    %v3985 = vadd.f32 %v3932, %v3984
    %3986 = vmatmul.f32.gmra.mxu0 %v3947
    %v3987 = vpop.f32.mrf.mxu0
    %v3988 = vadd.f32 %v3932, %v3987
    %3989 = vmatmul.f32.gmra.mxu0 %v3950
    %v3990 = vpop.f32.mrf.mxu0
    %v3991 = vadd.f32 %v3932, %v3990
    %3992 = vmatmul.f32.gmra.mxu0 %v3953
    %v3993 = vpop.f32.mrf.mxu0
    %v3994 = vadd.f32 %v3932, %v3993
    %3995 = vmatmul.f32.gmra.mxu0 %v3956
    %v3996 = vpop.f32.mrf.mxu0
    %v3997 = vadd.f32 %v3932, %v3996
    %3998 = vdwg.mxu0
    %v3999 = vtanh.pop %v3976
    %v4000 = vtanh.pop %v3979
    %v4001 = vtanh.pop %v3982
    %v4002 = vtanh.pop %v3985
    %v4003 = vtanh.pop %v3988
    %v4004 = vtanh.pop %v3991
    %v4005 = vtanh.pop %v3994
    %v4006 = vtanh.pop %v3997
    %v4007 = vmul.f32 %v3999, %v3999
    %v4008 = vmul.f32 %v4000, %v4000
    %v4009 = vmul.f32 %v4001, %v4001
    %v4010 = vmul.f32 %v4002, %v4002
    %v4011 = vmul.f32 %v4003, %v4003
    %v4012 = vmul.f32 %v4004, %v4004
    %v4013 = vmul.f32 %v4005, %v4005
    %v4014 = vmul.f32 %v4006, %v4006
    %v4015 = vsub.f32 1.0, %v4007
    %v4016 = vsub.f32 1.0, %v4008
    %v4017 = vsub.f32 1.0, %v4009
    %v4018 = vsub.f32 1.0, %v4010
    %v4019 = vsub.f32 1.0, %v4011
    %v4020 = vsub.f32 1.0, %v4012
    %v4021 = vsub.f32 1.0, %v4013
    %v4022 = vsub.f32 1.0, %v4014
    %4023 = vmatpush.msra.mxu0 %v77
    %4024 = vmatpush.msra.mxu0 %v76
    %4025 = vmatpush.msra.mxu0 %v75
    %4026 = vmatpush.msra.mxu0 %v74
    %4027 = vmatpush.msra.mxu0 %v73
    %4028 = vmatpush.msra.mxu0 %v72
    %4029 = vmatpush.msra.mxu0 %v71
    %4030 = vmatpush.msra.mxu0 %v70
    %4031 = vmatpush.msra.mxu0 %v69
    %4032 = vmatpush.msra.mxu0 %v68
    %4033 = vmatpush.msra.mxu0 %v67
    %4034 = vmatpush.msra.mxu0 %v66
    %4035 = vmatpush.msra.mxu0 %v65
    %4036 = vmatpush.msra.mxu0 %v64
    %4037 = vmatpush.msra.mxu0 %v63
    %4038 = vmatpush.msra.mxu0 %v62
    %4039 = vmatmul.f32.gmra.mxu0 %v3999
    %v4040 = vpop.f32.mrf.mxu0
    %v4041 = vadd.f32 0.0, %v4040
    %4042 = vmatmul.f32.gmra.mxu0 %v4000
    %v4043 = vpop.f32.mrf.mxu0
    %v4044 = vadd.f32 0.0, %v4043
    %4045 = vmatmul.f32.gmra.mxu0 %v4001
    %v4046 = vpop.f32.mrf.mxu0
    %v4047 = vadd.f32 0.0, %v4046
    %4048 = vmatmul.f32.gmra.mxu0 %v4002
    %v4049 = vpop.f32.mrf.mxu0
    %v4050 = vadd.f32 0.0, %v4049
    %4051 = vmatmul.f32.gmra.mxu0 %v4003
    %v4052 = vpop.f32.mrf.mxu0
    %v4053 = vadd.f32 0.0, %v4052
    %4054 = vmatmul.f32.gmra.mxu0 %v4004
    %v4055 = vpop.f32.mrf.mxu0
    %v4056 = vadd.f32 0.0, %v4055
    %4057 = vmatmul.f32.gmra.mxu0 %v4005
    %v4058 = vpop.f32.mrf.mxu0
    %v4059 = vadd.f32 0.0, %v4058
    %4060 = vmatmul.f32.gmra.mxu0 %v4006
    %v4061 = vpop.f32.mrf.mxu0
    %v4062 = vadd.f32 0.0, %v4061
    %4063 = vmatmul.f32.gmra.mxu0 %v4015
    %v4064 = vpop.f32.mrf.mxu0
    %v4065 = vadd.f32 0.0, %v4064
    %4066 = vmatmul.f32.gmra.mxu0 %v4016
    %v4067 = vpop.f32.mrf.mxu0
    %v4068 = vadd.f32 0.0, %v4067
    %4069 = vmatmul.f32.gmra.mxu0 %v4017
    %v4070 = vpop.f32.mrf.mxu0
    %v4071 = vadd.f32 0.0, %v4070
    %4072 = vmatmul.f32.gmra.mxu0 %v4018
    %v4073 = vpop.f32.mrf.mxu0
    %v4074 = vadd.f32 0.0, %v4073
    %4075 = vmatmul.f32.gmra.mxu0 %v4019
    %v4076 = vpop.f32.mrf.mxu0
    %v4077 = vadd.f32 0.0, %v4076
    %4078 = vmatmul.f32.gmra.mxu0 %v4020
    %v4079 = vpop.f32.mrf.mxu0
    %v4080 = vadd.f32 0.0, %v4079
    %4081 = vmatmul.f32.gmra.mxu0 %v4021
    %v4082 = vpop.f32.mrf.mxu0
    %v4083 = vadd.f32 0.0, %v4082
    %4084 = vmatmul.f32.gmra.mxu0 %v4022
    %v4085 = vpop.f32.mrf.mxu0
    %v4086 = vadd.f32 0.0, %v4085
    %4087 = vdwg.mxu0
    %v4088 = vmul.f32 %v3698, 2.0
    %v4089 = vmul.f32 %v3701, 2.0
    %v4090 = vmul.f32 %v3704, 2.0
    %v4091 = vmul.f32 %v3707, 2.0
    %v4092 = vmul.f32 %v3710, 2.0
    %v4093 = vmul.f32 %v3713, 2.0
    %v4094 = vmul.f32 %v3716, 2.0
    %v4095 = vmul.f32 %v3719, 2.0
    %v4096 = vadd.f32 %v3525, %v4088
    %v4097 = vadd.f32 %v3528, %v4089
    %v4098 = vadd.f32 %v3531, %v4090
    %v4099 = vadd.f32 %v3534, %v4091
    %v4100 = vadd.f32 %v3537, %v4092
    %v4101 = vadd.f32 %v3540, %v4093
    %v4102 = vadd.f32 %v3543, %v4094
    %v4103 = vadd.f32 %v3546, %v4095
    %v4104 = vmul.f32 %v3868, 2.0
    %v4105 = vmul.f32 %v3871, 2.0
    %v4106 = vmul.f32 %v3874, 2.0
    %v4107 = vmul.f32 %v3877, 2.0
    %v4108 = vmul.f32 %v3880, 2.0
    %v4109 = vmul.f32 %v3883, 2.0
    %v4110 = vmul.f32 %v3886, 2.0
    %v4111 = vmul.f32 %v3889, 2.0
    %v4112 = vadd.f32 %v4096, %v4104
    %v4113 = vadd.f32 %v4097, %v4105
    %v4114 = vadd.f32 %v4098, %v4106
    %v4115 = vadd.f32 %v4099, %v4107
    %v4116 = vadd.f32 %v4100, %v4108
    %v4117 = vadd.f32 %v4101, %v4109
    %v4118 = vadd.f32 %v4102, %v4110
    %v4119 = vadd.f32 %v4103, %v4111
    %v4120 = vadd.f32 %v4112, %v4041
    %v4121 = vadd.f32 %v4113, %v4044
    %v4122 = vadd.f32 %v4114, %v4047
    %v4123 = vadd.f32 %v4115, %v4050
    %v4124 = vadd.f32 %v4116, %v4053
    %v4125 = vadd.f32 %v4117, %v4056
    %v4126 = vadd.f32 %v4118, %v4059
    %v4127 = vadd.f32 %v4119, %v4062
    %v4128 = vmul.f32 %v820, %v4120
    %v4129 = vmul.f32 %v820, %v4121
    %v4130 = vmul.f32 %v820, %v4122
    %v4131 = vmul.f32 %v820, %v4123
    %v4132 = vmul.f32 %v820, %v4124
    %v4133 = vmul.f32 %v820, %v4125
    %v4134 = vmul.f32 %v820, %v4126
    %v4135 = vmul.f32 %v820, %v4127
    %v4136 = vadd.f32 %v3309, %v4128
    %v4137 = vadd.f32 %v3310, %v4129
    %v4138 = vadd.f32 %v3311, %v4130
    %v4139 = vadd.f32 %v3312, %v4131
    %v4140 = vadd.f32 %v3313, %v4132
    %v4141 = vadd.f32 %v3314, %v4133
    %v4142 = vadd.f32 %v3315, %v4134
    %v4143 = vadd.f32 %v3316, %v4135
    %v4144 = vmul.f32 %v3722, 2.0
    %v4145 = vmul.f32 %v3725, 2.0
    %v4146 = vmul.f32 %v3728, 2.0
    %v4147 = vmul.f32 %v3731, 2.0
    %v4148 = vmul.f32 %v3734, 2.0
    %v4149 = vmul.f32 %v3737, 2.0
    %v4150 = vmul.f32 %v3740, 2.0
    %v4151 = vmul.f32 %v3743, 2.0
    %v4152 = vadd.f32 %v3549, %v4144
    %v4153 = vadd.f32 %v3552, %v4145
    %v4154 = vadd.f32 %v3555, %v4146
    %v4155 = vadd.f32 %v3558, %v4147
    %v4156 = vadd.f32 %v3561, %v4148
    %v4157 = vadd.f32 %v3564, %v4149
    %v4158 = vadd.f32 %v3567, %v4150
    %v4159 = vadd.f32 %v3570, %v4151
    %v4160 = vmul.f32 %v3892, 2.0
    %v4161 = vmul.f32 %v3895, 2.0
    %v4162 = vmul.f32 %v3898, 2.0
    %v4163 = vmul.f32 %v3901, 2.0
    %v4164 = vmul.f32 %v3904, 2.0
    %v4165 = vmul.f32 %v3907, 2.0
    %v4166 = vmul.f32 %v3910, 2.0
    %v4167 = vmul.f32 %v3913, 2.0
    %v4168 = vadd.f32 %v4152, %v4160
    %v4169 = vadd.f32 %v4153, %v4161
    %v4170 = vadd.f32 %v4154, %v4162
    %v4171 = vadd.f32 %v4155, %v4163
    %v4172 = vadd.f32 %v4156, %v4164
    %v4173 = vadd.f32 %v4157, %v4165
    %v4174 = vadd.f32 %v4158, %v4166
    %v4175 = vadd.f32 %v4159, %v4167
    %v4176 = vadd.f32 %v4168, %v4065
    %v4177 = vadd.f32 %v4169, %v4068
    %v4178 = vadd.f32 %v4170, %v4071
    %v4179 = vadd.f32 %v4171, %v4074
    %v4180 = vadd.f32 %v4172, %v4077
    %v4181 = vadd.f32 %v4173, %v4080
    %v4182 = vadd.f32 %v4174, %v4083
    %v4183 = vadd.f32 %v4175, %v4086
    %v4184 = vmul.f32 %v820, %v4176
    %v4185 = vmul.f32 %v820, %v4177
    %v4186 = vmul.f32 %v820, %v4178
    %v4187 = vmul.f32 %v820, %v4179
    %v4188 = vmul.f32 %v820, %v4180
    %v4189 = vmul.f32 %v820, %v4181
    %v4190 = vmul.f32 %v820, %v4182
    %v4191 = vmul.f32 %v820, %v4183
    %4200 = vrot.lane.b32.xlu0 %v4184, 120
    %v4201 = vpop.permute.xlu0 %4200
    %4202 = vrot.lane.b32.xlu0 %v4185, 120
    %v4203 = vpop.permute.xlu0 %4202
    %4204 = vrot.lane.b32.xlu0 %v4186, 120
    %v4205 = vpop.permute.xlu0 %4204
    %4206 = vrot.lane.b32.xlu0 %v4187, 120
    %v4207 = vpop.permute.xlu0 %4206
    %4208 = vrot.lane.b32.xlu0 %v4188, 120
    %v4209 = vpop.permute.xlu0 %4208
    %4210 = vrot.lane.b32.xlu0 %v4189, 120
    %v4211 = vpop.permute.xlu0 %4210
    %4212 = vrot.lane.b32.xlu0 %v4190, 120
    %v4213 = vpop.permute.xlu0 %4212
    %4214 = vrot.lane.b32.xlu0 %v4191, 120
    %v4215 = vpop.permute.xlu0 %4214
    %v4224 = vadd.f32 %v3397, %v4201
    %v4225 = vadd.f32 %v3398, %v4203
    %v4226 = vadd.f32 %v3399, %v4205
    %v4227 = vadd.f32 %v3400, %v4207
    %v4228 = vadd.f32 %v3401, %v4209
    %v4229 = vadd.f32 %v3402, %v4211
    %v4230 = vadd.f32 %v3403, %v4213
    %v4231 = vadd.f32 %v3404, %v4215
    %s4232 = smul.f32 %s49, 5.0
    %s4233 = sadd.f32 %s38, %s4232
    %v4234 = vstv %s4233
    %v4235 = vadd.f32 %v61, %v4234
    %s4236 = sadd.f32 %s4233, %s50
    %v4237 = vstv %s4236
    %v4238 = vadd.f32 %v61, %v4237
    %s4239 = sadd.f32 %s4233, %s49
    %v4240 = vstv %s4239
    %v4241 = vadd.f32 %v61, %v4240
    %v4243 = vperm.slane %v4235, 0
    %v4246 = vsel %vm107, %v4136, 0
    %v4249 = vsel %vm107, %v4137, 0
    %v4252 = vsel %vm107, %v4138, 0
    %v4255 = vsel %vm107, %v4139, 0
    %v4258 = vsel %vm107, %v4140, 0
    %v4261 = vsel %vm107, %v4141, 0
    %v4264 = vsel %vm107, %v4142, 0
    %v4267 = vsel %vm107, %v4143, 0
    %4269 = vmatpush.msra.mxu0 0.0
    %4270 = vmatpush.msra.mxu0 0.0
    %4271 = vmatpush.msra.mxu0 0.0
    %4272 = vmatpush.msra.mxu0 0.0
    %4273 = vmatpush.msra.mxu0 0.0
    %4274 = vmatpush.msra.mxu0 0.0
    %4275 = vmatpush.msra.mxu0 0.0
    %4276 = vmatpush.msra.mxu0 0.0
    %4277 = vmatpush.msra.mxu0 0.0
    %4278 = vmatpush.msra.mxu0 0.0
    %4279 = vmatpush.msra.mxu0 0.0
    %4280 = vmatpush.msra.mxu0 0.0
    %4281 = vmatpush.msra.mxu0 0.0
    %4282 = vmatpush.msra.mxu0 0.0
    %4283 = vmatpush.msra.mxu0 0.0
    %4284 = vmatpush.msra.mxu0 %v60
    %4285 = vmatmul.f32.gmra.mxu0 %v4246
    %v4286 = vpop.f32.mrf.mxu0
    %v4287 = vadd.f32 %v4243, %v4286
    %4288 = vmatmul.f32.gmra.mxu0 %v4249
    %v4289 = vpop.f32.mrf.mxu0
    %v4290 = vadd.f32 %v4243, %v4289
    %4291 = vmatmul.f32.gmra.mxu0 %v4252
    %v4292 = vpop.f32.mrf.mxu0
    %v4293 = vadd.f32 %v4243, %v4292
    %4294 = vmatmul.f32.gmra.mxu0 %v4255
    %v4295 = vpop.f32.mrf.mxu0
    %v4296 = vadd.f32 %v4243, %v4295
    %4297 = vmatmul.f32.gmra.mxu0 %v4258
    %v4298 = vpop.f32.mrf.mxu0
    %v4299 = vadd.f32 %v4243, %v4298
    %4300 = vmatmul.f32.gmra.mxu0 %v4261
    %v4301 = vpop.f32.mrf.mxu0
    %v4302 = vadd.f32 %v4243, %v4301
    %4303 = vmatmul.f32.gmra.mxu0 %v4264
    %v4304 = vpop.f32.mrf.mxu0
    %v4305 = vadd.f32 %v4243, %v4304
    %4306 = vmatmul.f32.gmra.mxu0 %v4267
    %v4307 = vpop.f32.mrf.mxu0
    %v4308 = vadd.f32 %v4243, %v4307
    %4309 = vdwg.mxu0
    %v4310 = vtanh.pop %v4287
    %v4311 = vtanh.pop %v4290
    %v4312 = vtanh.pop %v4293
    %v4313 = vtanh.pop %v4296
    %v4314 = vtanh.pop %v4299
    %v4315 = vtanh.pop %v4302
    %v4316 = vtanh.pop %v4305
    %v4317 = vtanh.pop %v4308
    %v4318 = vmul.f32 %v4310, %v4310
    %v4319 = vmul.f32 %v4311, %v4311
    %v4320 = vmul.f32 %v4312, %v4312
    %v4321 = vmul.f32 %v4313, %v4313
    %v4322 = vmul.f32 %v4314, %v4314
    %v4323 = vmul.f32 %v4315, %v4315
    %v4324 = vmul.f32 %v4316, %v4316
    %v4325 = vmul.f32 %v4317, %v4317
    %v4326 = vsub.f32 1.0, %v4318
    %v4327 = vsub.f32 1.0, %v4319
    %v4328 = vsub.f32 1.0, %v4320
    %v4329 = vsub.f32 1.0, %v4321
    %v4330 = vsub.f32 1.0, %v4322
    %v4331 = vsub.f32 1.0, %v4323
    %v4332 = vsub.f32 1.0, %v4324
    %v4333 = vsub.f32 1.0, %v4325
    %4334 = vmatpush.msra.mxu0 %v77
    %4335 = vmatpush.msra.mxu0 %v76
    %4336 = vmatpush.msra.mxu0 %v75
    %4337 = vmatpush.msra.mxu0 %v74
    %4338 = vmatpush.msra.mxu0 %v73
    %4339 = vmatpush.msra.mxu0 %v72
    %4340 = vmatpush.msra.mxu0 %v71
    %4341 = vmatpush.msra.mxu0 %v70
    %4342 = vmatpush.msra.mxu0 %v69
    %4343 = vmatpush.msra.mxu0 %v68
    %4344 = vmatpush.msra.mxu0 %v67
    %4345 = vmatpush.msra.mxu0 %v66
    %4346 = vmatpush.msra.mxu0 %v65
    %4347 = vmatpush.msra.mxu0 %v64
    %4348 = vmatpush.msra.mxu0 %v63
    %4349 = vmatpush.msra.mxu0 %v62
    %4350 = vmatmul.f32.gmra.mxu0 %v4310
    %v4351 = vpop.f32.mrf.mxu0
    %v4352 = vadd.f32 0.0, %v4351
    %4353 = vmatmul.f32.gmra.mxu0 %v4311
    %v4354 = vpop.f32.mrf.mxu0
    %v4355 = vadd.f32 0.0, %v4354
    %4356 = vmatmul.f32.gmra.mxu0 %v4312
    %v4357 = vpop.f32.mrf.mxu0
    %v4358 = vadd.f32 0.0, %v4357
    %4359 = vmatmul.f32.gmra.mxu0 %v4313
    %v4360 = vpop.f32.mrf.mxu0
    %v4361 = vadd.f32 0.0, %v4360
    %4362 = vmatmul.f32.gmra.mxu0 %v4314
    %v4363 = vpop.f32.mrf.mxu0
    %v4364 = vadd.f32 0.0, %v4363
    %4365 = vmatmul.f32.gmra.mxu0 %v4315
    %v4366 = vpop.f32.mrf.mxu0
    %v4367 = vadd.f32 0.0, %v4366
    %4368 = vmatmul.f32.gmra.mxu0 %v4316
    %v4369 = vpop.f32.mrf.mxu0
    %v4370 = vadd.f32 0.0, %v4369
    %4371 = vmatmul.f32.gmra.mxu0 %v4317
    %v4372 = vpop.f32.mrf.mxu0
    %v4373 = vadd.f32 0.0, %v4372
    %4374 = vmatmul.f32.gmra.mxu0 %v4326
    %v4375 = vpop.f32.mrf.mxu0
    %v4376 = vadd.f32 0.0, %v4375
    %4377 = vmatmul.f32.gmra.mxu0 %v4327
    %v4378 = vpop.f32.mrf.mxu0
    %v4379 = vadd.f32 0.0, %v4378
    %4380 = vmatmul.f32.gmra.mxu0 %v4328
    %v4381 = vpop.f32.mrf.mxu0
    %v4382 = vadd.f32 0.0, %v4381
    %4383 = vmatmul.f32.gmra.mxu0 %v4329
    %v4384 = vpop.f32.mrf.mxu0
    %v4385 = vadd.f32 0.0, %v4384
    %4386 = vmatmul.f32.gmra.mxu0 %v4330
    %v4387 = vpop.f32.mrf.mxu0
    %v4388 = vadd.f32 0.0, %v4387
    %4389 = vmatmul.f32.gmra.mxu0 %v4331
    %v4390 = vpop.f32.mrf.mxu0
    %v4391 = vadd.f32 0.0, %v4390
    %4392 = vmatmul.f32.gmra.mxu0 %v4332
    %v4393 = vpop.f32.mrf.mxu0
    %v4394 = vadd.f32 0.0, %v4393
    %4395 = vmatmul.f32.gmra.mxu0 %v4333
    %v4396 = vpop.f32.mrf.mxu0
    %v4397 = vadd.f32 0.0, %v4396
    %4398 = vdwg.mxu0
    %v4399 = vmul.f32 %v262, %v4352
    %v4400 = vmul.f32 %v262, %v4355
    %v4401 = vmul.f32 %v262, %v4358
    %v4402 = vmul.f32 %v262, %v4361
    %v4403 = vmul.f32 %v262, %v4364
    %v4404 = vmul.f32 %v262, %v4367
    %v4405 = vmul.f32 %v262, %v4370
    %v4406 = vmul.f32 %v262, %v4373
    %v4407 = vadd.f32 %v4136, %v4399
    %v4408 = vadd.f32 %v4137, %v4400
    %v4409 = vadd.f32 %v4138, %v4401
    %v4410 = vadd.f32 %v4139, %v4402
    %v4411 = vadd.f32 %v4140, %v4403
    %v4412 = vadd.f32 %v4141, %v4404
    %v4413 = vadd.f32 %v4142, %v4405
    %v4414 = vadd.f32 %v4143, %v4406
    %v4416 = vperm.slane %v4238, 0
    %v4419 = vsel %vm107, %v4407, 0
    %v4422 = vsel %vm107, %v4408, 0
    %v4425 = vsel %vm107, %v4409, 0
    %v4428 = vsel %vm107, %v4410, 0
    %v4431 = vsel %vm107, %v4411, 0
    %v4434 = vsel %vm107, %v4412, 0
    %v4437 = vsel %vm107, %v4413, 0
    %v4440 = vsel %vm107, %v4414, 0
    %4442 = vmatpush.msra.mxu0 0.0
    %4443 = vmatpush.msra.mxu0 0.0
    %4444 = vmatpush.msra.mxu0 0.0
    %4445 = vmatpush.msra.mxu0 0.0
    %4446 = vmatpush.msra.mxu0 0.0
    %4447 = vmatpush.msra.mxu0 0.0
    %4448 = vmatpush.msra.mxu0 0.0
    %4449 = vmatpush.msra.mxu0 0.0
    %4450 = vmatpush.msra.mxu0 0.0
    %4451 = vmatpush.msra.mxu0 0.0
    %4452 = vmatpush.msra.mxu0 0.0
    %4453 = vmatpush.msra.mxu0 0.0
    %4454 = vmatpush.msra.mxu0 0.0
    %4455 = vmatpush.msra.mxu0 0.0
    %4456 = vmatpush.msra.mxu0 0.0
    %4457 = vmatpush.msra.mxu0 %v60
    %4458 = vmatmul.f32.gmra.mxu0 %v4419
    %v4459 = vpop.f32.mrf.mxu0
    %v4460 = vadd.f32 %v4416, %v4459
    %4461 = vmatmul.f32.gmra.mxu0 %v4422
    %v4462 = vpop.f32.mrf.mxu0
    %v4463 = vadd.f32 %v4416, %v4462
    %4464 = vmatmul.f32.gmra.mxu0 %v4425
    %v4465 = vpop.f32.mrf.mxu0
    %v4466 = vadd.f32 %v4416, %v4465
    %4467 = vmatmul.f32.gmra.mxu0 %v4428
    %v4468 = vpop.f32.mrf.mxu0
    %v4469 = vadd.f32 %v4416, %v4468
    %4470 = vmatmul.f32.gmra.mxu0 %v4431
    %v4471 = vpop.f32.mrf.mxu0
    %v4472 = vadd.f32 %v4416, %v4471
    %4473 = vmatmul.f32.gmra.mxu0 %v4434
    %v4474 = vpop.f32.mrf.mxu0
    %v4475 = vadd.f32 %v4416, %v4474
    %4476 = vmatmul.f32.gmra.mxu0 %v4437
    %v4477 = vpop.f32.mrf.mxu0
    %v4478 = vadd.f32 %v4416, %v4477
    %4479 = vmatmul.f32.gmra.mxu0 %v4440
    %v4480 = vpop.f32.mrf.mxu0
    %v4481 = vadd.f32 %v4416, %v4480
    %4482 = vdwg.mxu0
    %v4483 = vtanh.pop %v4460
    %v4484 = vtanh.pop %v4463
    %v4485 = vtanh.pop %v4466
    %v4486 = vtanh.pop %v4469
    %v4487 = vtanh.pop %v4472
    %v4488 = vtanh.pop %v4475
    %v4489 = vtanh.pop %v4478
    %v4490 = vtanh.pop %v4481
    %v4491 = vmul.f32 %v4483, %v4483
    %v4492 = vmul.f32 %v4484, %v4484
    %v4493 = vmul.f32 %v4485, %v4485
    %v4494 = vmul.f32 %v4486, %v4486
    %v4495 = vmul.f32 %v4487, %v4487
    %v4496 = vmul.f32 %v4488, %v4488
    %v4497 = vmul.f32 %v4489, %v4489
    %v4498 = vmul.f32 %v4490, %v4490
    %v4499 = vsub.f32 1.0, %v4491
    %v4500 = vsub.f32 1.0, %v4492
    %v4501 = vsub.f32 1.0, %v4493
    %v4502 = vsub.f32 1.0, %v4494
    %v4503 = vsub.f32 1.0, %v4495
    %v4504 = vsub.f32 1.0, %v4496
    %v4505 = vsub.f32 1.0, %v4497
    %v4506 = vsub.f32 1.0, %v4498
    %4507 = vmatpush.msra.mxu0 %v77
    %4508 = vmatpush.msra.mxu0 %v76
    %4509 = vmatpush.msra.mxu0 %v75
    %4510 = vmatpush.msra.mxu0 %v74
    %4511 = vmatpush.msra.mxu0 %v73
    %4512 = vmatpush.msra.mxu0 %v72
    %4513 = vmatpush.msra.mxu0 %v71
    %4514 = vmatpush.msra.mxu0 %v70
    %4515 = vmatpush.msra.mxu0 %v69
    %4516 = vmatpush.msra.mxu0 %v68
    %4517 = vmatpush.msra.mxu0 %v67
    %4518 = vmatpush.msra.mxu0 %v66
    %4519 = vmatpush.msra.mxu0 %v65
    %4520 = vmatpush.msra.mxu0 %v64
    %4521 = vmatpush.msra.mxu0 %v63
    %4522 = vmatpush.msra.mxu0 %v62
    %4523 = vmatmul.f32.gmra.mxu0 %v4483
    %v4524 = vpop.f32.mrf.mxu0
    %v4525 = vadd.f32 0.0, %v4524
    %4526 = vmatmul.f32.gmra.mxu0 %v4484
    %v4527 = vpop.f32.mrf.mxu0
    %v4528 = vadd.f32 0.0, %v4527
    %4529 = vmatmul.f32.gmra.mxu0 %v4485
    %v4530 = vpop.f32.mrf.mxu0
    %v4531 = vadd.f32 0.0, %v4530
    %4532 = vmatmul.f32.gmra.mxu0 %v4486
    %v4533 = vpop.f32.mrf.mxu0
    %v4534 = vadd.f32 0.0, %v4533
    %4535 = vmatmul.f32.gmra.mxu0 %v4487
    %v4536 = vpop.f32.mrf.mxu0
    %v4537 = vadd.f32 0.0, %v4536
    %4538 = vmatmul.f32.gmra.mxu0 %v4488
    %v4539 = vpop.f32.mrf.mxu0
    %v4540 = vadd.f32 0.0, %v4539
    %4541 = vmatmul.f32.gmra.mxu0 %v4489
    %v4542 = vpop.f32.mrf.mxu0
    %v4543 = vadd.f32 0.0, %v4542
    %4544 = vmatmul.f32.gmra.mxu0 %v4490
    %v4545 = vpop.f32.mrf.mxu0
    %v4546 = vadd.f32 0.0, %v4545
    %4547 = vmatmul.f32.gmra.mxu0 %v4499
    %v4548 = vpop.f32.mrf.mxu0
    %v4549 = vadd.f32 0.0, %v4548
    %4550 = vmatmul.f32.gmra.mxu0 %v4500
    %v4551 = vpop.f32.mrf.mxu0
    %v4552 = vadd.f32 0.0, %v4551
    %4553 = vmatmul.f32.gmra.mxu0 %v4501
    %v4554 = vpop.f32.mrf.mxu0
    %v4555 = vadd.f32 0.0, %v4554
    %4556 = vmatmul.f32.gmra.mxu0 %v4502
    %v4557 = vpop.f32.mrf.mxu0
    %v4558 = vadd.f32 0.0, %v4557
    %4559 = vmatmul.f32.gmra.mxu0 %v4503
    %v4560 = vpop.f32.mrf.mxu0
    %v4561 = vadd.f32 0.0, %v4560
    %4562 = vmatmul.f32.gmra.mxu0 %v4504
    %v4563 = vpop.f32.mrf.mxu0
    %v4564 = vadd.f32 0.0, %v4563
    %4565 = vmatmul.f32.gmra.mxu0 %v4505
    %v4566 = vpop.f32.mrf.mxu0
    %v4567 = vadd.f32 0.0, %v4566
    %4568 = vmatmul.f32.gmra.mxu0 %v4506
    %v4569 = vpop.f32.mrf.mxu0
    %v4570 = vadd.f32 0.0, %v4569
    %4571 = vdwg.mxu0
    %v4572 = vmul.f32 %v262, %v4525
    %v4573 = vmul.f32 %v262, %v4528
    %v4574 = vmul.f32 %v262, %v4531
    %v4575 = vmul.f32 %v262, %v4534
    %v4576 = vmul.f32 %v262, %v4537
    %v4577 = vmul.f32 %v262, %v4540
    %v4578 = vmul.f32 %v262, %v4543
    %v4579 = vmul.f32 %v262, %v4546
    %v4580 = vadd.f32 %v4136, %v4572
    %v4581 = vadd.f32 %v4137, %v4573
    %v4582 = vadd.f32 %v4138, %v4574
    %v4583 = vadd.f32 %v4139, %v4575
    %v4584 = vadd.f32 %v4140, %v4576
    %v4585 = vadd.f32 %v4141, %v4577
    %v4586 = vadd.f32 %v4142, %v4578
    %v4587 = vadd.f32 %v4143, %v4579
    %v4589 = vsel %vm107, %v4580, 0
    %v4592 = vsel %vm107, %v4581, 0
    %v4595 = vsel %vm107, %v4582, 0
    %v4598 = vsel %vm107, %v4583, 0
    %v4601 = vsel %vm107, %v4584, 0
    %v4604 = vsel %vm107, %v4585, 0
    %v4607 = vsel %vm107, %v4586, 0
    %v4610 = vsel %vm107, %v4587, 0
    %4612 = vmatpush.msra.mxu0 0.0
    %4613 = vmatpush.msra.mxu0 0.0
    %4614 = vmatpush.msra.mxu0 0.0
    %4615 = vmatpush.msra.mxu0 0.0
    %4616 = vmatpush.msra.mxu0 0.0
    %4617 = vmatpush.msra.mxu0 0.0
    %4618 = vmatpush.msra.mxu0 0.0
    %4619 = vmatpush.msra.mxu0 0.0
    %4620 = vmatpush.msra.mxu0 0.0
    %4621 = vmatpush.msra.mxu0 0.0
    %4622 = vmatpush.msra.mxu0 0.0
    %4623 = vmatpush.msra.mxu0 0.0
    %4624 = vmatpush.msra.mxu0 0.0
    %4625 = vmatpush.msra.mxu0 0.0
    %4626 = vmatpush.msra.mxu0 0.0
    %4627 = vmatpush.msra.mxu0 %v60
    %4628 = vmatmul.f32.gmra.mxu0 %v4589
    %v4629 = vpop.f32.mrf.mxu0
    %v4630 = vadd.f32 %v4416, %v4629
    %4631 = vmatmul.f32.gmra.mxu0 %v4592
    %v4632 = vpop.f32.mrf.mxu0
    %v4633 = vadd.f32 %v4416, %v4632
    %4634 = vmatmul.f32.gmra.mxu0 %v4595
    %v4635 = vpop.f32.mrf.mxu0
    %v4636 = vadd.f32 %v4416, %v4635
    %4637 = vmatmul.f32.gmra.mxu0 %v4598
    %v4638 = vpop.f32.mrf.mxu0
    %v4639 = vadd.f32 %v4416, %v4638
    %4640 = vmatmul.f32.gmra.mxu0 %v4601
    %v4641 = vpop.f32.mrf.mxu0
    %v4642 = vadd.f32 %v4416, %v4641
    %4643 = vmatmul.f32.gmra.mxu0 %v4604
    %v4644 = vpop.f32.mrf.mxu0
    %v4645 = vadd.f32 %v4416, %v4644
    %4646 = vmatmul.f32.gmra.mxu0 %v4607
    %v4647 = vpop.f32.mrf.mxu0
    %v4648 = vadd.f32 %v4416, %v4647
    %4649 = vmatmul.f32.gmra.mxu0 %v4610
    %v4650 = vpop.f32.mrf.mxu0
    %v4651 = vadd.f32 %v4416, %v4650
    %4652 = vdwg.mxu0
    %v4653 = vtanh.pop %v4630
    %v4654 = vtanh.pop %v4633
    %v4655 = vtanh.pop %v4636
    %v4656 = vtanh.pop %v4639
    %v4657 = vtanh.pop %v4642
    %v4658 = vtanh.pop %v4645
    %v4659 = vtanh.pop %v4648
    %v4660 = vtanh.pop %v4651
    %v4661 = vmul.f32 %v4653, %v4653
    %v4662 = vmul.f32 %v4654, %v4654
    %v4663 = vmul.f32 %v4655, %v4655
    %v4664 = vmul.f32 %v4656, %v4656
    %v4665 = vmul.f32 %v4657, %v4657
    %v4666 = vmul.f32 %v4658, %v4658
    %v4667 = vmul.f32 %v4659, %v4659
    %v4668 = vmul.f32 %v4660, %v4660
    %v4669 = vsub.f32 1.0, %v4661
    %v4670 = vsub.f32 1.0, %v4662
    %v4671 = vsub.f32 1.0, %v4663
    %v4672 = vsub.f32 1.0, %v4664
    %v4673 = vsub.f32 1.0, %v4665
    %v4674 = vsub.f32 1.0, %v4666
    %v4675 = vsub.f32 1.0, %v4667
    %v4676 = vsub.f32 1.0, %v4668
    %4677 = vmatpush.msra.mxu0 %v77
    %4678 = vmatpush.msra.mxu0 %v76
    %4679 = vmatpush.msra.mxu0 %v75
    %4680 = vmatpush.msra.mxu0 %v74
    %4681 = vmatpush.msra.mxu0 %v73
    %4682 = vmatpush.msra.mxu0 %v72
    %4683 = vmatpush.msra.mxu0 %v71
    %4684 = vmatpush.msra.mxu0 %v70
    %4685 = vmatpush.msra.mxu0 %v69
    %4686 = vmatpush.msra.mxu0 %v68
    %4687 = vmatpush.msra.mxu0 %v67
    %4688 = vmatpush.msra.mxu0 %v66
    %4689 = vmatpush.msra.mxu0 %v65
    %4690 = vmatpush.msra.mxu0 %v64
    %4691 = vmatpush.msra.mxu0 %v63
    %4692 = vmatpush.msra.mxu0 %v62
    %4693 = vmatmul.f32.gmra.mxu0 %v4653
    %v4694 = vpop.f32.mrf.mxu0
    %v4695 = vadd.f32 0.0, %v4694
    %4696 = vmatmul.f32.gmra.mxu0 %v4654
    %v4697 = vpop.f32.mrf.mxu0
    %v4698 = vadd.f32 0.0, %v4697
    %4699 = vmatmul.f32.gmra.mxu0 %v4655
    %v4700 = vpop.f32.mrf.mxu0
    %v4701 = vadd.f32 0.0, %v4700
    %4702 = vmatmul.f32.gmra.mxu0 %v4656
    %v4703 = vpop.f32.mrf.mxu0
    %v4704 = vadd.f32 0.0, %v4703
    %4705 = vmatmul.f32.gmra.mxu0 %v4657
    %v4706 = vpop.f32.mrf.mxu0
    %v4707 = vadd.f32 0.0, %v4706
    %4708 = vmatmul.f32.gmra.mxu0 %v4658
    %v4709 = vpop.f32.mrf.mxu0
    %v4710 = vadd.f32 0.0, %v4709
    %4711 = vmatmul.f32.gmra.mxu0 %v4659
    %v4712 = vpop.f32.mrf.mxu0
    %v4713 = vadd.f32 0.0, %v4712
    %4714 = vmatmul.f32.gmra.mxu0 %v4660
    %v4715 = vpop.f32.mrf.mxu0
    %v4716 = vadd.f32 0.0, %v4715
    %4717 = vmatmul.f32.gmra.mxu0 %v4669
    %v4718 = vpop.f32.mrf.mxu0
    %v4719 = vadd.f32 0.0, %v4718
    %4720 = vmatmul.f32.gmra.mxu0 %v4670
    %v4721 = vpop.f32.mrf.mxu0
    %v4722 = vadd.f32 0.0, %v4721
    %4723 = vmatmul.f32.gmra.mxu0 %v4671
    %v4724 = vpop.f32.mrf.mxu0
    %v4725 = vadd.f32 0.0, %v4724
    %4726 = vmatmul.f32.gmra.mxu0 %v4672
    %v4727 = vpop.f32.mrf.mxu0
    %v4728 = vadd.f32 0.0, %v4727
    %4729 = vmatmul.f32.gmra.mxu0 %v4673
    %v4730 = vpop.f32.mrf.mxu0
    %v4731 = vadd.f32 0.0, %v4730
    %4732 = vmatmul.f32.gmra.mxu0 %v4674
    %v4733 = vpop.f32.mrf.mxu0
    %v4734 = vadd.f32 0.0, %v4733
    %4735 = vmatmul.f32.gmra.mxu0 %v4675
    %v4736 = vpop.f32.mrf.mxu0
    %v4737 = vadd.f32 0.0, %v4736
    %4738 = vmatmul.f32.gmra.mxu0 %v4676
    %v4739 = vpop.f32.mrf.mxu0
    %v4740 = vadd.f32 0.0, %v4739
    %4741 = vdwg.mxu0
    %v4742 = vmul.f32 %v606, %v4695
    %v4743 = vmul.f32 %v606, %v4698
    %v4744 = vmul.f32 %v606, %v4701
    %v4745 = vmul.f32 %v606, %v4704
    %v4746 = vmul.f32 %v606, %v4707
    %v4747 = vmul.f32 %v606, %v4710
    %v4748 = vmul.f32 %v606, %v4713
    %v4749 = vmul.f32 %v606, %v4716
    %v4750 = vadd.f32 %v4136, %v4742
    %v4751 = vadd.f32 %v4137, %v4743
    %v4752 = vadd.f32 %v4138, %v4744
    %v4753 = vadd.f32 %v4139, %v4745
    %v4754 = vadd.f32 %v4140, %v4746
    %v4755 = vadd.f32 %v4141, %v4747
    %v4756 = vadd.f32 %v4142, %v4748
    %v4757 = vadd.f32 %v4143, %v4749
    %v4759 = vperm.slane %v4241, 0
    %v4762 = vsel %vm107, %v4750, 0
    %v4765 = vsel %vm107, %v4751, 0
    %v4768 = vsel %vm107, %v4752, 0
    %v4771 = vsel %vm107, %v4753, 0
    %v4774 = vsel %vm107, %v4754, 0
    %v4777 = vsel %vm107, %v4755, 0
    %v4780 = vsel %vm107, %v4756, 0
    %v4783 = vsel %vm107, %v4757, 0
    %4785 = vmatpush.msra.mxu0 0.0
    %4786 = vmatpush.msra.mxu0 0.0
    %4787 = vmatpush.msra.mxu0 0.0
    %4788 = vmatpush.msra.mxu0 0.0
    %4789 = vmatpush.msra.mxu0 0.0
    %4790 = vmatpush.msra.mxu0 0.0
    %4791 = vmatpush.msra.mxu0 0.0
    %4792 = vmatpush.msra.mxu0 0.0
    %4793 = vmatpush.msra.mxu0 0.0
    %4794 = vmatpush.msra.mxu0 0.0
    %4795 = vmatpush.msra.mxu0 0.0
    %4796 = vmatpush.msra.mxu0 0.0
    %4797 = vmatpush.msra.mxu0 0.0
    %4798 = vmatpush.msra.mxu0 0.0
    %4799 = vmatpush.msra.mxu0 0.0
    %4800 = vmatpush.msra.mxu0 %v60
    %4801 = vmatmul.f32.gmra.mxu0 %v4762
    %v4802 = vpop.f32.mrf.mxu0
    %v4803 = vadd.f32 %v4759, %v4802
    %4804 = vmatmul.f32.gmra.mxu0 %v4765
    %v4805 = vpop.f32.mrf.mxu0
    %v4806 = vadd.f32 %v4759, %v4805
    %4807 = vmatmul.f32.gmra.mxu0 %v4768
    %v4808 = vpop.f32.mrf.mxu0
    %v4809 = vadd.f32 %v4759, %v4808
    %4810 = vmatmul.f32.gmra.mxu0 %v4771
    %v4811 = vpop.f32.mrf.mxu0
    %v4812 = vadd.f32 %v4759, %v4811
    %4813 = vmatmul.f32.gmra.mxu0 %v4774
    %v4814 = vpop.f32.mrf.mxu0
    %v4815 = vadd.f32 %v4759, %v4814
    %4816 = vmatmul.f32.gmra.mxu0 %v4777
    %v4817 = vpop.f32.mrf.mxu0
    %v4818 = vadd.f32 %v4759, %v4817
    %4819 = vmatmul.f32.gmra.mxu0 %v4780
    %v4820 = vpop.f32.mrf.mxu0
    %v4821 = vadd.f32 %v4759, %v4820
    %4822 = vmatmul.f32.gmra.mxu0 %v4783
    %v4823 = vpop.f32.mrf.mxu0
    %v4824 = vadd.f32 %v4759, %v4823
    %4825 = vdwg.mxu0
    %v4826 = vtanh.pop %v4803
    %v4827 = vtanh.pop %v4806
    %v4828 = vtanh.pop %v4809
    %v4829 = vtanh.pop %v4812
    %v4830 = vtanh.pop %v4815
    %v4831 = vtanh.pop %v4818
    %v4832 = vtanh.pop %v4821
    %v4833 = vtanh.pop %v4824
    %v4834 = vmul.f32 %v4826, %v4826
    %v4835 = vmul.f32 %v4827, %v4827
    %v4836 = vmul.f32 %v4828, %v4828
    %v4837 = vmul.f32 %v4829, %v4829
    %v4838 = vmul.f32 %v4830, %v4830
    %v4839 = vmul.f32 %v4831, %v4831
    %v4840 = vmul.f32 %v4832, %v4832
    %v4841 = vmul.f32 %v4833, %v4833
    %v4842 = vsub.f32 1.0, %v4834
    %v4843 = vsub.f32 1.0, %v4835
    %v4844 = vsub.f32 1.0, %v4836
    %v4845 = vsub.f32 1.0, %v4837
    %v4846 = vsub.f32 1.0, %v4838
    %v4847 = vsub.f32 1.0, %v4839
    %v4848 = vsub.f32 1.0, %v4840
    %v4849 = vsub.f32 1.0, %v4841
    %4850 = vmatpush.msra.mxu0 %v77
    %4851 = vmatpush.msra.mxu0 %v76
    %4852 = vmatpush.msra.mxu0 %v75
    %4853 = vmatpush.msra.mxu0 %v74
    %4854 = vmatpush.msra.mxu0 %v73
    %4855 = vmatpush.msra.mxu0 %v72
    %4856 = vmatpush.msra.mxu0 %v71
    %4857 = vmatpush.msra.mxu0 %v70
    %4858 = vmatpush.msra.mxu0 %v69
    %4859 = vmatpush.msra.mxu0 %v68
    %4860 = vmatpush.msra.mxu0 %v67
    %4861 = vmatpush.msra.mxu0 %v66
    %4862 = vmatpush.msra.mxu0 %v65
    %4863 = vmatpush.msra.mxu0 %v64
    %4864 = vmatpush.msra.mxu0 %v63
    %4865 = vmatpush.msra.mxu0 %v62
    %4866 = vmatmul.f32.gmra.mxu0 %v4826
    %v4867 = vpop.f32.mrf.mxu0
    %v4868 = vadd.f32 0.0, %v4867
    %4869 = vmatmul.f32.gmra.mxu0 %v4827
    %v4870 = vpop.f32.mrf.mxu0
    %v4871 = vadd.f32 0.0, %v4870
    %4872 = vmatmul.f32.gmra.mxu0 %v4828
    %v4873 = vpop.f32.mrf.mxu0
    %v4874 = vadd.f32 0.0, %v4873
    %4875 = vmatmul.f32.gmra.mxu0 %v4829
    %v4876 = vpop.f32.mrf.mxu0
    %v4877 = vadd.f32 0.0, %v4876
    %4878 = vmatmul.f32.gmra.mxu0 %v4830
    %v4879 = vpop.f32.mrf.mxu0
    %v4880 = vadd.f32 0.0, %v4879
    %4881 = vmatmul.f32.gmra.mxu0 %v4831
    %v4882 = vpop.f32.mrf.mxu0
    %v4883 = vadd.f32 0.0, %v4882
    %4884 = vmatmul.f32.gmra.mxu0 %v4832
    %v4885 = vpop.f32.mrf.mxu0
    %v4886 = vadd.f32 0.0, %v4885
    %4887 = vmatmul.f32.gmra.mxu0 %v4833
    %v4888 = vpop.f32.mrf.mxu0
    %v4889 = vadd.f32 0.0, %v4888
    %4890 = vmatmul.f32.gmra.mxu0 %v4842
    %v4891 = vpop.f32.mrf.mxu0
    %v4892 = vadd.f32 0.0, %v4891
    %4893 = vmatmul.f32.gmra.mxu0 %v4843
    %v4894 = vpop.f32.mrf.mxu0
    %v4895 = vadd.f32 0.0, %v4894
    %4896 = vmatmul.f32.gmra.mxu0 %v4844
    %v4897 = vpop.f32.mrf.mxu0
    %v4898 = vadd.f32 0.0, %v4897
    %4899 = vmatmul.f32.gmra.mxu0 %v4845
    %v4900 = vpop.f32.mrf.mxu0
    %v4901 = vadd.f32 0.0, %v4900
    %4902 = vmatmul.f32.gmra.mxu0 %v4846
    %v4903 = vpop.f32.mrf.mxu0
    %v4904 = vadd.f32 0.0, %v4903
    %4905 = vmatmul.f32.gmra.mxu0 %v4847
    %v4906 = vpop.f32.mrf.mxu0
    %v4907 = vadd.f32 0.0, %v4906
    %4908 = vmatmul.f32.gmra.mxu0 %v4848
    %v4909 = vpop.f32.mrf.mxu0
    %v4910 = vadd.f32 0.0, %v4909
    %4911 = vmatmul.f32.gmra.mxu0 %v4849
    %v4912 = vpop.f32.mrf.mxu0
    %v4913 = vadd.f32 0.0, %v4912
    %4914 = vdwg.mxu0
    %v4915 = vmul.f32 %v4525, 2.0
    %v4916 = vmul.f32 %v4528, 2.0
    %v4917 = vmul.f32 %v4531, 2.0
    %v4918 = vmul.f32 %v4534, 2.0
    %v4919 = vmul.f32 %v4537, 2.0
    %v4920 = vmul.f32 %v4540, 2.0
    %v4921 = vmul.f32 %v4543, 2.0
    %v4922 = vmul.f32 %v4546, 2.0
    %v4923 = vadd.f32 %v4352, %v4915
    %v4924 = vadd.f32 %v4355, %v4916
    %v4925 = vadd.f32 %v4358, %v4917
    %v4926 = vadd.f32 %v4361, %v4918
    %v4927 = vadd.f32 %v4364, %v4919
    %v4928 = vadd.f32 %v4367, %v4920
    %v4929 = vadd.f32 %v4370, %v4921
    %v4930 = vadd.f32 %v4373, %v4922
    %v4931 = vmul.f32 %v4695, 2.0
    %v4932 = vmul.f32 %v4698, 2.0
    %v4933 = vmul.f32 %v4701, 2.0
    %v4934 = vmul.f32 %v4704, 2.0
    %v4935 = vmul.f32 %v4707, 2.0
    %v4936 = vmul.f32 %v4710, 2.0
    %v4937 = vmul.f32 %v4713, 2.0
    %v4938 = vmul.f32 %v4716, 2.0
    %v4939 = vadd.f32 %v4923, %v4931
    %v4940 = vadd.f32 %v4924, %v4932
    %v4941 = vadd.f32 %v4925, %v4933
    %v4942 = vadd.f32 %v4926, %v4934
    %v4943 = vadd.f32 %v4927, %v4935
    %v4944 = vadd.f32 %v4928, %v4936
    %v4945 = vadd.f32 %v4929, %v4937
    %v4946 = vadd.f32 %v4930, %v4938
    %v4947 = vadd.f32 %v4939, %v4868
    %v4948 = vadd.f32 %v4940, %v4871
    %v4949 = vadd.f32 %v4941, %v4874
    %v4950 = vadd.f32 %v4942, %v4877
    %v4951 = vadd.f32 %v4943, %v4880
    %v4952 = vadd.f32 %v4944, %v4883
    %v4953 = vadd.f32 %v4945, %v4886
    %v4954 = vadd.f32 %v4946, %v4889
    %v4955 = vmul.f32 %v820, %v4947
    %v4956 = vmul.f32 %v820, %v4948
    %v4957 = vmul.f32 %v820, %v4949
    %v4958 = vmul.f32 %v820, %v4950
    %v4959 = vmul.f32 %v820, %v4951
    %v4960 = vmul.f32 %v820, %v4952
    %v4961 = vmul.f32 %v820, %v4953
    %v4962 = vmul.f32 %v820, %v4954
    %v4963 = vadd.f32 %v4136, %v4955
    %v4964 = vadd.f32 %v4137, %v4956
    %v4965 = vadd.f32 %v4138, %v4957
    %v4966 = vadd.f32 %v4139, %v4958
    %v4967 = vadd.f32 %v4140, %v4959
    %v4968 = vadd.f32 %v4141, %v4960
    %v4969 = vadd.f32 %v4142, %v4961
    %v4970 = vadd.f32 %v4143, %v4962
    %v4971 = vmul.f32 %v4549, 2.0
    %v4972 = vmul.f32 %v4552, 2.0
    %v4973 = vmul.f32 %v4555, 2.0
    %v4974 = vmul.f32 %v4558, 2.0
    %v4975 = vmul.f32 %v4561, 2.0
    %v4976 = vmul.f32 %v4564, 2.0
    %v4977 = vmul.f32 %v4567, 2.0
    %v4978 = vmul.f32 %v4570, 2.0
    %v4979 = vadd.f32 %v4376, %v4971
    %v4980 = vadd.f32 %v4379, %v4972
    %v4981 = vadd.f32 %v4382, %v4973
    %v4982 = vadd.f32 %v4385, %v4974
    %v4983 = vadd.f32 %v4388, %v4975
    %v4984 = vadd.f32 %v4391, %v4976
    %v4985 = vadd.f32 %v4394, %v4977
    %v4986 = vadd.f32 %v4397, %v4978
    %v4987 = vmul.f32 %v4719, 2.0
    %v4988 = vmul.f32 %v4722, 2.0
    %v4989 = vmul.f32 %v4725, 2.0
    %v4990 = vmul.f32 %v4728, 2.0
    %v4991 = vmul.f32 %v4731, 2.0
    %v4992 = vmul.f32 %v4734, 2.0
    %v4993 = vmul.f32 %v4737, 2.0
    %v4994 = vmul.f32 %v4740, 2.0
    %v4995 = vadd.f32 %v4979, %v4987
    %v4996 = vadd.f32 %v4980, %v4988
    %v4997 = vadd.f32 %v4981, %v4989
    %v4998 = vadd.f32 %v4982, %v4990
    %v4999 = vadd.f32 %v4983, %v4991
    %v5000 = vadd.f32 %v4984, %v4992
    %v5001 = vadd.f32 %v4985, %v4993
    %v5002 = vadd.f32 %v4986, %v4994
    %v5003 = vadd.f32 %v4995, %v4892
    %v5004 = vadd.f32 %v4996, %v4895
    %v5005 = vadd.f32 %v4997, %v4898
    %v5006 = vadd.f32 %v4998, %v4901
    %v5007 = vadd.f32 %v4999, %v4904
    %v5008 = vadd.f32 %v5000, %v4907
    %v5009 = vadd.f32 %v5001, %v4910
    %v5010 = vadd.f32 %v5002, %v4913
    %v5011 = vmul.f32 %v820, %v5003
    %v5012 = vmul.f32 %v820, %v5004
    %v5013 = vmul.f32 %v820, %v5005
    %v5014 = vmul.f32 %v820, %v5006
    %v5015 = vmul.f32 %v820, %v5007
    %v5016 = vmul.f32 %v820, %v5008
    %v5017 = vmul.f32 %v820, %v5009
    %v5018 = vmul.f32 %v820, %v5010
    %5027 = vrot.lane.b32.xlu0 %v5011, 120
    %v5028 = vpop.permute.xlu0 %5027
    %5029 = vrot.lane.b32.xlu0 %v5012, 120
    %v5030 = vpop.permute.xlu0 %5029
    %5031 = vrot.lane.b32.xlu0 %v5013, 120
    %v5032 = vpop.permute.xlu0 %5031
    %5033 = vrot.lane.b32.xlu0 %v5014, 120
    %v5034 = vpop.permute.xlu0 %5033
    %5035 = vrot.lane.b32.xlu0 %v5015, 120
    %v5036 = vpop.permute.xlu0 %5035
    %5037 = vrot.lane.b32.xlu0 %v5016, 120
    %v5038 = vpop.permute.xlu0 %5037
    %5039 = vrot.lane.b32.xlu0 %v5017, 120
    %v5040 = vpop.permute.xlu0 %5039
    %5041 = vrot.lane.b32.xlu0 %v5018, 120
    %v5042 = vpop.permute.xlu0 %5041
    %v5051 = vadd.f32 %v4224, %v5028
    %v5052 = vadd.f32 %v4225, %v5030
    %v5053 = vadd.f32 %v4226, %v5032
    %v5054 = vadd.f32 %v4227, %v5034
    %v5055 = vadd.f32 %v4228, %v5036
    %v5056 = vadd.f32 %v4229, %v5038
    %v5057 = vadd.f32 %v4230, %v5040
    %v5058 = vadd.f32 %v4231, %v5042
    %s5059 = smul.f32 %s49, 6.0
    %s5060 = sadd.f32 %s38, %s5059
    %v5061 = vstv %s5060
    %v5062 = vadd.f32 %v61, %v5061
    %s5063 = sadd.f32 %s5060, %s50
    %v5064 = vstv %s5063
    %v5065 = vadd.f32 %v61, %v5064
    %s5066 = sadd.f32 %s5060, %s49
    %v5067 = vstv %s5066
    %v5068 = vadd.f32 %v61, %v5067
    %v5070 = vperm.slane %v5062, 0
    %v5073 = vsel %vm107, %v4963, 0
    %v5076 = vsel %vm107, %v4964, 0
    %v5079 = vsel %vm107, %v4965, 0
    %v5082 = vsel %vm107, %v4966, 0
    %v5085 = vsel %vm107, %v4967, 0
    %v5088 = vsel %vm107, %v4968, 0
    %v5091 = vsel %vm107, %v4969, 0
    %v5094 = vsel %vm107, %v4970, 0
    %5096 = vmatpush.msra.mxu0 0.0
    %5097 = vmatpush.msra.mxu0 0.0
    %5098 = vmatpush.msra.mxu0 0.0
    %5099 = vmatpush.msra.mxu0 0.0
    %5100 = vmatpush.msra.mxu0 0.0
    %5101 = vmatpush.msra.mxu0 0.0
    %5102 = vmatpush.msra.mxu0 0.0
    %5103 = vmatpush.msra.mxu0 0.0
    %5104 = vmatpush.msra.mxu0 0.0
    %5105 = vmatpush.msra.mxu0 0.0
    %5106 = vmatpush.msra.mxu0 0.0
    %5107 = vmatpush.msra.mxu0 0.0
    %5108 = vmatpush.msra.mxu0 0.0
    %5109 = vmatpush.msra.mxu0 0.0
    %5110 = vmatpush.msra.mxu0 0.0
    %5111 = vmatpush.msra.mxu0 %v60
    %5112 = vmatmul.f32.gmra.mxu0 %v5073
    %v5113 = vpop.f32.mrf.mxu0
    %v5114 = vadd.f32 %v5070, %v5113
    %5115 = vmatmul.f32.gmra.mxu0 %v5076
    %v5116 = vpop.f32.mrf.mxu0
    %v5117 = vadd.f32 %v5070, %v5116
    %5118 = vmatmul.f32.gmra.mxu0 %v5079
    %v5119 = vpop.f32.mrf.mxu0
    %v5120 = vadd.f32 %v5070, %v5119
    %5121 = vmatmul.f32.gmra.mxu0 %v5082
    %v5122 = vpop.f32.mrf.mxu0
    %v5123 = vadd.f32 %v5070, %v5122
    %5124 = vmatmul.f32.gmra.mxu0 %v5085
    %v5125 = vpop.f32.mrf.mxu0
    %v5126 = vadd.f32 %v5070, %v5125
    %5127 = vmatmul.f32.gmra.mxu0 %v5088
    %v5128 = vpop.f32.mrf.mxu0
    %v5129 = vadd.f32 %v5070, %v5128
    %5130 = vmatmul.f32.gmra.mxu0 %v5091
    %v5131 = vpop.f32.mrf.mxu0
    %v5132 = vadd.f32 %v5070, %v5131
    %5133 = vmatmul.f32.gmra.mxu0 %v5094
    %v5134 = vpop.f32.mrf.mxu0
    %v5135 = vadd.f32 %v5070, %v5134
    %5136 = vdwg.mxu0
    %v5137 = vtanh.pop %v5114
    %v5138 = vtanh.pop %v5117
    %v5139 = vtanh.pop %v5120
    %v5140 = vtanh.pop %v5123
    %v5141 = vtanh.pop %v5126
    %v5142 = vtanh.pop %v5129
    %v5143 = vtanh.pop %v5132
    %v5144 = vtanh.pop %v5135
    %v5145 = vmul.f32 %v5137, %v5137
    %v5146 = vmul.f32 %v5138, %v5138
    %v5147 = vmul.f32 %v5139, %v5139
    %v5148 = vmul.f32 %v5140, %v5140
    %v5149 = vmul.f32 %v5141, %v5141
    %v5150 = vmul.f32 %v5142, %v5142
    %v5151 = vmul.f32 %v5143, %v5143
    %v5152 = vmul.f32 %v5144, %v5144
    %v5153 = vsub.f32 1.0, %v5145
    %v5154 = vsub.f32 1.0, %v5146
    %v5155 = vsub.f32 1.0, %v5147
    %v5156 = vsub.f32 1.0, %v5148
    %v5157 = vsub.f32 1.0, %v5149
    %v5158 = vsub.f32 1.0, %v5150
    %v5159 = vsub.f32 1.0, %v5151
    %v5160 = vsub.f32 1.0, %v5152
    %5161 = vmatpush.msra.mxu0 %v77
    %5162 = vmatpush.msra.mxu0 %v76
    %5163 = vmatpush.msra.mxu0 %v75
    %5164 = vmatpush.msra.mxu0 %v74
    %5165 = vmatpush.msra.mxu0 %v73
    %5166 = vmatpush.msra.mxu0 %v72
    %5167 = vmatpush.msra.mxu0 %v71
    %5168 = vmatpush.msra.mxu0 %v70
    %5169 = vmatpush.msra.mxu0 %v69
    %5170 = vmatpush.msra.mxu0 %v68
    %5171 = vmatpush.msra.mxu0 %v67
    %5172 = vmatpush.msra.mxu0 %v66
    %5173 = vmatpush.msra.mxu0 %v65
    %5174 = vmatpush.msra.mxu0 %v64
    %5175 = vmatpush.msra.mxu0 %v63
    %5176 = vmatpush.msra.mxu0 %v62
    %5177 = vmatmul.f32.gmra.mxu0 %v5137
    %v5178 = vpop.f32.mrf.mxu0
    %v5179 = vadd.f32 0.0, %v5178
    %5180 = vmatmul.f32.gmra.mxu0 %v5138
    %v5181 = vpop.f32.mrf.mxu0
    %v5182 = vadd.f32 0.0, %v5181
    %5183 = vmatmul.f32.gmra.mxu0 %v5139
    %v5184 = vpop.f32.mrf.mxu0
    %v5185 = vadd.f32 0.0, %v5184
    %5186 = vmatmul.f32.gmra.mxu0 %v5140
    %v5187 = vpop.f32.mrf.mxu0
    %v5188 = vadd.f32 0.0, %v5187
    %5189 = vmatmul.f32.gmra.mxu0 %v5141
    %v5190 = vpop.f32.mrf.mxu0
    %v5191 = vadd.f32 0.0, %v5190
    %5192 = vmatmul.f32.gmra.mxu0 %v5142
    %v5193 = vpop.f32.mrf.mxu0
    %v5194 = vadd.f32 0.0, %v5193
    %5195 = vmatmul.f32.gmra.mxu0 %v5143
    %v5196 = vpop.f32.mrf.mxu0
    %v5197 = vadd.f32 0.0, %v5196
    %5198 = vmatmul.f32.gmra.mxu0 %v5144
    %v5199 = vpop.f32.mrf.mxu0
    %v5200 = vadd.f32 0.0, %v5199
    %5201 = vmatmul.f32.gmra.mxu0 %v5153
    %v5202 = vpop.f32.mrf.mxu0
    %v5203 = vadd.f32 0.0, %v5202
    %5204 = vmatmul.f32.gmra.mxu0 %v5154
    %v5205 = vpop.f32.mrf.mxu0
    %v5206 = vadd.f32 0.0, %v5205
    %5207 = vmatmul.f32.gmra.mxu0 %v5155
    %v5208 = vpop.f32.mrf.mxu0
    %v5209 = vadd.f32 0.0, %v5208
    %5210 = vmatmul.f32.gmra.mxu0 %v5156
    %v5211 = vpop.f32.mrf.mxu0
    %v5212 = vadd.f32 0.0, %v5211
    %5213 = vmatmul.f32.gmra.mxu0 %v5157
    %v5214 = vpop.f32.mrf.mxu0
    %v5215 = vadd.f32 0.0, %v5214
    %5216 = vmatmul.f32.gmra.mxu0 %v5158
    %v5217 = vpop.f32.mrf.mxu0
    %v5218 = vadd.f32 0.0, %v5217
    %5219 = vmatmul.f32.gmra.mxu0 %v5159
    %v5220 = vpop.f32.mrf.mxu0
    %v5221 = vadd.f32 0.0, %v5220
    %5222 = vmatmul.f32.gmra.mxu0 %v5160
    %v5223 = vpop.f32.mrf.mxu0
    %v5224 = vadd.f32 0.0, %v5223
    %5225 = vdwg.mxu0
    %v5226 = vmul.f32 %v262, %v5179
    %v5227 = vmul.f32 %v262, %v5182
    %v5228 = vmul.f32 %v262, %v5185
    %v5229 = vmul.f32 %v262, %v5188
    %v5230 = vmul.f32 %v262, %v5191
    %v5231 = vmul.f32 %v262, %v5194
    %v5232 = vmul.f32 %v262, %v5197
    %v5233 = vmul.f32 %v262, %v5200
    %v5234 = vadd.f32 %v4963, %v5226
    %v5235 = vadd.f32 %v4964, %v5227
    %v5236 = vadd.f32 %v4965, %v5228
    %v5237 = vadd.f32 %v4966, %v5229
    %v5238 = vadd.f32 %v4967, %v5230
    %v5239 = vadd.f32 %v4968, %v5231
    %v5240 = vadd.f32 %v4969, %v5232
    %v5241 = vadd.f32 %v4970, %v5233
    %v5243 = vperm.slane %v5065, 0
    %v5246 = vsel %vm107, %v5234, 0
    %v5249 = vsel %vm107, %v5235, 0
    %v5252 = vsel %vm107, %v5236, 0
    %v5255 = vsel %vm107, %v5237, 0
    %v5258 = vsel %vm107, %v5238, 0
    %v5261 = vsel %vm107, %v5239, 0
    %v5264 = vsel %vm107, %v5240, 0
    %v5267 = vsel %vm107, %v5241, 0
    %5269 = vmatpush.msra.mxu0 0.0
    %5270 = vmatpush.msra.mxu0 0.0
    %5271 = vmatpush.msra.mxu0 0.0
    %5272 = vmatpush.msra.mxu0 0.0
    %5273 = vmatpush.msra.mxu0 0.0
    %5274 = vmatpush.msra.mxu0 0.0
    %5275 = vmatpush.msra.mxu0 0.0
    %5276 = vmatpush.msra.mxu0 0.0
    %5277 = vmatpush.msra.mxu0 0.0
    %5278 = vmatpush.msra.mxu0 0.0
    %5279 = vmatpush.msra.mxu0 0.0
    %5280 = vmatpush.msra.mxu0 0.0
    %5281 = vmatpush.msra.mxu0 0.0
    %5282 = vmatpush.msra.mxu0 0.0
    %5283 = vmatpush.msra.mxu0 0.0
    %5284 = vmatpush.msra.mxu0 %v60
    %5285 = vmatmul.f32.gmra.mxu0 %v5246
    %v5286 = vpop.f32.mrf.mxu0
    %v5287 = vadd.f32 %v5243, %v5286
    %5288 = vmatmul.f32.gmra.mxu0 %v5249
    %v5289 = vpop.f32.mrf.mxu0
    %v5290 = vadd.f32 %v5243, %v5289
    %5291 = vmatmul.f32.gmra.mxu0 %v5252
    %v5292 = vpop.f32.mrf.mxu0
    %v5293 = vadd.f32 %v5243, %v5292
    %5294 = vmatmul.f32.gmra.mxu0 %v5255
    %v5295 = vpop.f32.mrf.mxu0
    %v5296 = vadd.f32 %v5243, %v5295
    %5297 = vmatmul.f32.gmra.mxu0 %v5258
    %v5298 = vpop.f32.mrf.mxu0
    %v5299 = vadd.f32 %v5243, %v5298
    %5300 = vmatmul.f32.gmra.mxu0 %v5261
    %v5301 = vpop.f32.mrf.mxu0
    %v5302 = vadd.f32 %v5243, %v5301
    %5303 = vmatmul.f32.gmra.mxu0 %v5264
    %v5304 = vpop.f32.mrf.mxu0
    %v5305 = vadd.f32 %v5243, %v5304
    %5306 = vmatmul.f32.gmra.mxu0 %v5267
    %v5307 = vpop.f32.mrf.mxu0
    %v5308 = vadd.f32 %v5243, %v5307
    %5309 = vdwg.mxu0
    %v5310 = vtanh.pop %v5287
    %v5311 = vtanh.pop %v5290
    %v5312 = vtanh.pop %v5293
    %v5313 = vtanh.pop %v5296
    %v5314 = vtanh.pop %v5299
    %v5315 = vtanh.pop %v5302
    %v5316 = vtanh.pop %v5305
    %v5317 = vtanh.pop %v5308
    %v5318 = vmul.f32 %v5310, %v5310
    %v5319 = vmul.f32 %v5311, %v5311
    %v5320 = vmul.f32 %v5312, %v5312
    %v5321 = vmul.f32 %v5313, %v5313
    %v5322 = vmul.f32 %v5314, %v5314
    %v5323 = vmul.f32 %v5315, %v5315
    %v5324 = vmul.f32 %v5316, %v5316
    %v5325 = vmul.f32 %v5317, %v5317
    %v5326 = vsub.f32 1.0, %v5318
    %v5327 = vsub.f32 1.0, %v5319
    %v5328 = vsub.f32 1.0, %v5320
    %v5329 = vsub.f32 1.0, %v5321
    %v5330 = vsub.f32 1.0, %v5322
    %v5331 = vsub.f32 1.0, %v5323
    %v5332 = vsub.f32 1.0, %v5324
    %v5333 = vsub.f32 1.0, %v5325
    %5334 = vmatpush.msra.mxu0 %v77
    %5335 = vmatpush.msra.mxu0 %v76
    %5336 = vmatpush.msra.mxu0 %v75
    %5337 = vmatpush.msra.mxu0 %v74
    %5338 = vmatpush.msra.mxu0 %v73
    %5339 = vmatpush.msra.mxu0 %v72
    %5340 = vmatpush.msra.mxu0 %v71
    %5341 = vmatpush.msra.mxu0 %v70
    %5342 = vmatpush.msra.mxu0 %v69
    %5343 = vmatpush.msra.mxu0 %v68
    %5344 = vmatpush.msra.mxu0 %v67
    %5345 = vmatpush.msra.mxu0 %v66
    %5346 = vmatpush.msra.mxu0 %v65
    %5347 = vmatpush.msra.mxu0 %v64
    %5348 = vmatpush.msra.mxu0 %v63
    %5349 = vmatpush.msra.mxu0 %v62
    %5350 = vmatmul.f32.gmra.mxu0 %v5310
    %v5351 = vpop.f32.mrf.mxu0
    %v5352 = vadd.f32 0.0, %v5351
    %5353 = vmatmul.f32.gmra.mxu0 %v5311
    %v5354 = vpop.f32.mrf.mxu0
    %v5355 = vadd.f32 0.0, %v5354
    %5356 = vmatmul.f32.gmra.mxu0 %v5312
    %v5357 = vpop.f32.mrf.mxu0
    %v5358 = vadd.f32 0.0, %v5357
    %5359 = vmatmul.f32.gmra.mxu0 %v5313
    %v5360 = vpop.f32.mrf.mxu0
    %v5361 = vadd.f32 0.0, %v5360
    %5362 = vmatmul.f32.gmra.mxu0 %v5314
    %v5363 = vpop.f32.mrf.mxu0
    %v5364 = vadd.f32 0.0, %v5363
    %5365 = vmatmul.f32.gmra.mxu0 %v5315
    %v5366 = vpop.f32.mrf.mxu0
    %v5367 = vadd.f32 0.0, %v5366
    %5368 = vmatmul.f32.gmra.mxu0 %v5316
    %v5369 = vpop.f32.mrf.mxu0
    %v5370 = vadd.f32 0.0, %v5369
    %5371 = vmatmul.f32.gmra.mxu0 %v5317
    %v5372 = vpop.f32.mrf.mxu0
    %v5373 = vadd.f32 0.0, %v5372
    %5374 = vmatmul.f32.gmra.mxu0 %v5326
    %v5375 = vpop.f32.mrf.mxu0
    %v5376 = vadd.f32 0.0, %v5375
    %5377 = vmatmul.f32.gmra.mxu0 %v5327
    %v5378 = vpop.f32.mrf.mxu0
    %v5379 = vadd.f32 0.0, %v5378
    %5380 = vmatmul.f32.gmra.mxu0 %v5328
    %v5381 = vpop.f32.mrf.mxu0
    %v5382 = vadd.f32 0.0, %v5381
    %5383 = vmatmul.f32.gmra.mxu0 %v5329
    %v5384 = vpop.f32.mrf.mxu0
    %v5385 = vadd.f32 0.0, %v5384
    %5386 = vmatmul.f32.gmra.mxu0 %v5330
    %v5387 = vpop.f32.mrf.mxu0
    %v5388 = vadd.f32 0.0, %v5387
    %5389 = vmatmul.f32.gmra.mxu0 %v5331
    %v5390 = vpop.f32.mrf.mxu0
    %v5391 = vadd.f32 0.0, %v5390
    %5392 = vmatmul.f32.gmra.mxu0 %v5332
    %v5393 = vpop.f32.mrf.mxu0
    %v5394 = vadd.f32 0.0, %v5393
    %5395 = vmatmul.f32.gmra.mxu0 %v5333
    %v5396 = vpop.f32.mrf.mxu0
    %v5397 = vadd.f32 0.0, %v5396
    %5398 = vdwg.mxu0
    %v5399 = vmul.f32 %v262, %v5352
    %v5400 = vmul.f32 %v262, %v5355
    %v5401 = vmul.f32 %v262, %v5358
    %v5402 = vmul.f32 %v262, %v5361
    %v5403 = vmul.f32 %v262, %v5364
    %v5404 = vmul.f32 %v262, %v5367
    %v5405 = vmul.f32 %v262, %v5370
    %v5406 = vmul.f32 %v262, %v5373
    %v5407 = vadd.f32 %v4963, %v5399
    %v5408 = vadd.f32 %v4964, %v5400
    %v5409 = vadd.f32 %v4965, %v5401
    %v5410 = vadd.f32 %v4966, %v5402
    %v5411 = vadd.f32 %v4967, %v5403
    %v5412 = vadd.f32 %v4968, %v5404
    %v5413 = vadd.f32 %v4969, %v5405
    %v5414 = vadd.f32 %v4970, %v5406
    %v5416 = vsel %vm107, %v5407, 0
    %v5419 = vsel %vm107, %v5408, 0
    %v5422 = vsel %vm107, %v5409, 0
    %v5425 = vsel %vm107, %v5410, 0
    %v5428 = vsel %vm107, %v5411, 0
    %v5431 = vsel %vm107, %v5412, 0
    %v5434 = vsel %vm107, %v5413, 0
    %v5437 = vsel %vm107, %v5414, 0
    %5439 = vmatpush.msra.mxu0 0.0
    %5440 = vmatpush.msra.mxu0 0.0
    %5441 = vmatpush.msra.mxu0 0.0
    %5442 = vmatpush.msra.mxu0 0.0
    %5443 = vmatpush.msra.mxu0 0.0
    %5444 = vmatpush.msra.mxu0 0.0
    %5445 = vmatpush.msra.mxu0 0.0
    %5446 = vmatpush.msra.mxu0 0.0
    %5447 = vmatpush.msra.mxu0 0.0
    %5448 = vmatpush.msra.mxu0 0.0
    %5449 = vmatpush.msra.mxu0 0.0
    %5450 = vmatpush.msra.mxu0 0.0
    %5451 = vmatpush.msra.mxu0 0.0
    %5452 = vmatpush.msra.mxu0 0.0
    %5453 = vmatpush.msra.mxu0 0.0
    %5454 = vmatpush.msra.mxu0 %v60
    %5455 = vmatmul.f32.gmra.mxu0 %v5416
    %v5456 = vpop.f32.mrf.mxu0
    %v5457 = vadd.f32 %v5243, %v5456
    %5458 = vmatmul.f32.gmra.mxu0 %v5419
    %v5459 = vpop.f32.mrf.mxu0
    %v5460 = vadd.f32 %v5243, %v5459
    %5461 = vmatmul.f32.gmra.mxu0 %v5422
    %v5462 = vpop.f32.mrf.mxu0
    %v5463 = vadd.f32 %v5243, %v5462
    %5464 = vmatmul.f32.gmra.mxu0 %v5425
    %v5465 = vpop.f32.mrf.mxu0
    %v5466 = vadd.f32 %v5243, %v5465
    %5467 = vmatmul.f32.gmra.mxu0 %v5428
    %v5468 = vpop.f32.mrf.mxu0
    %v5469 = vadd.f32 %v5243, %v5468
    %5470 = vmatmul.f32.gmra.mxu0 %v5431
    %v5471 = vpop.f32.mrf.mxu0
    %v5472 = vadd.f32 %v5243, %v5471
    %5473 = vmatmul.f32.gmra.mxu0 %v5434
    %v5474 = vpop.f32.mrf.mxu0
    %v5475 = vadd.f32 %v5243, %v5474
    %5476 = vmatmul.f32.gmra.mxu0 %v5437
    %v5477 = vpop.f32.mrf.mxu0
    %v5478 = vadd.f32 %v5243, %v5477
    %5479 = vdwg.mxu0
    %v5480 = vtanh.pop %v5457
    %v5481 = vtanh.pop %v5460
    %v5482 = vtanh.pop %v5463
    %v5483 = vtanh.pop %v5466
    %v5484 = vtanh.pop %v5469
    %v5485 = vtanh.pop %v5472
    %v5486 = vtanh.pop %v5475
    %v5487 = vtanh.pop %v5478
    %v5488 = vmul.f32 %v5480, %v5480
    %v5489 = vmul.f32 %v5481, %v5481
    %v5490 = vmul.f32 %v5482, %v5482
    %v5491 = vmul.f32 %v5483, %v5483
    %v5492 = vmul.f32 %v5484, %v5484
    %v5493 = vmul.f32 %v5485, %v5485
    %v5494 = vmul.f32 %v5486, %v5486
    %v5495 = vmul.f32 %v5487, %v5487
    %v5496 = vsub.f32 1.0, %v5488
    %v5497 = vsub.f32 1.0, %v5489
    %v5498 = vsub.f32 1.0, %v5490
    %v5499 = vsub.f32 1.0, %v5491
    %v5500 = vsub.f32 1.0, %v5492
    %v5501 = vsub.f32 1.0, %v5493
    %v5502 = vsub.f32 1.0, %v5494
    %v5503 = vsub.f32 1.0, %v5495
    %5504 = vmatpush.msra.mxu0 %v77
    %5505 = vmatpush.msra.mxu0 %v76
    %5506 = vmatpush.msra.mxu0 %v75
    %5507 = vmatpush.msra.mxu0 %v74
    %5508 = vmatpush.msra.mxu0 %v73
    %5509 = vmatpush.msra.mxu0 %v72
    %5510 = vmatpush.msra.mxu0 %v71
    %5511 = vmatpush.msra.mxu0 %v70
    %5512 = vmatpush.msra.mxu0 %v69
    %5513 = vmatpush.msra.mxu0 %v68
    %5514 = vmatpush.msra.mxu0 %v67
    %5515 = vmatpush.msra.mxu0 %v66
    %5516 = vmatpush.msra.mxu0 %v65
    %5517 = vmatpush.msra.mxu0 %v64
    %5518 = vmatpush.msra.mxu0 %v63
    %5519 = vmatpush.msra.mxu0 %v62
    %5520 = vmatmul.f32.gmra.mxu0 %v5480
    %v5521 = vpop.f32.mrf.mxu0
    %v5522 = vadd.f32 0.0, %v5521
    %5523 = vmatmul.f32.gmra.mxu0 %v5481
    %v5524 = vpop.f32.mrf.mxu0
    %v5525 = vadd.f32 0.0, %v5524
    %5526 = vmatmul.f32.gmra.mxu0 %v5482
    %v5527 = vpop.f32.mrf.mxu0
    %v5528 = vadd.f32 0.0, %v5527
    %5529 = vmatmul.f32.gmra.mxu0 %v5483
    %v5530 = vpop.f32.mrf.mxu0
    %v5531 = vadd.f32 0.0, %v5530
    %5532 = vmatmul.f32.gmra.mxu0 %v5484
    %v5533 = vpop.f32.mrf.mxu0
    %v5534 = vadd.f32 0.0, %v5533
    %5535 = vmatmul.f32.gmra.mxu0 %v5485
    %v5536 = vpop.f32.mrf.mxu0
    %v5537 = vadd.f32 0.0, %v5536
    %5538 = vmatmul.f32.gmra.mxu0 %v5486
    %v5539 = vpop.f32.mrf.mxu0
    %v5540 = vadd.f32 0.0, %v5539
    %5541 = vmatmul.f32.gmra.mxu0 %v5487
    %v5542 = vpop.f32.mrf.mxu0
    %v5543 = vadd.f32 0.0, %v5542
    %5544 = vmatmul.f32.gmra.mxu0 %v5496
    %v5545 = vpop.f32.mrf.mxu0
    %v5546 = vadd.f32 0.0, %v5545
    %5547 = vmatmul.f32.gmra.mxu0 %v5497
    %v5548 = vpop.f32.mrf.mxu0
    %v5549 = vadd.f32 0.0, %v5548
    %5550 = vmatmul.f32.gmra.mxu0 %v5498
    %v5551 = vpop.f32.mrf.mxu0
    %v5552 = vadd.f32 0.0, %v5551
    %5553 = vmatmul.f32.gmra.mxu0 %v5499
    %v5554 = vpop.f32.mrf.mxu0
    %v5555 = vadd.f32 0.0, %v5554
    %5556 = vmatmul.f32.gmra.mxu0 %v5500
    %v5557 = vpop.f32.mrf.mxu0
    %v5558 = vadd.f32 0.0, %v5557
    %5559 = vmatmul.f32.gmra.mxu0 %v5501
    %v5560 = vpop.f32.mrf.mxu0
    %v5561 = vadd.f32 0.0, %v5560
    %5562 = vmatmul.f32.gmra.mxu0 %v5502
    %v5563 = vpop.f32.mrf.mxu0
    %v5564 = vadd.f32 0.0, %v5563
    %5565 = vmatmul.f32.gmra.mxu0 %v5503
    %v5566 = vpop.f32.mrf.mxu0
    %v5567 = vadd.f32 0.0, %v5566
    %5568 = vdwg.mxu0
    %v5569 = vmul.f32 %v606, %v5522
    %v5570 = vmul.f32 %v606, %v5525
    %v5571 = vmul.f32 %v606, %v5528
    %v5572 = vmul.f32 %v606, %v5531
    %v5573 = vmul.f32 %v606, %v5534
    %v5574 = vmul.f32 %v606, %v5537
    %v5575 = vmul.f32 %v606, %v5540
    %v5576 = vmul.f32 %v606, %v5543
    %v5577 = vadd.f32 %v4963, %v5569
    %v5578 = vadd.f32 %v4964, %v5570
    %v5579 = vadd.f32 %v4965, %v5571
    %v5580 = vadd.f32 %v4966, %v5572
    %v5581 = vadd.f32 %v4967, %v5573
    %v5582 = vadd.f32 %v4968, %v5574
    %v5583 = vadd.f32 %v4969, %v5575
    %v5584 = vadd.f32 %v4970, %v5576
    %v5586 = vperm.slane %v5068, 0
    %v5589 = vsel %vm107, %v5577, 0
    %v5592 = vsel %vm107, %v5578, 0
    %v5595 = vsel %vm107, %v5579, 0
    %v5598 = vsel %vm107, %v5580, 0
    %v5601 = vsel %vm107, %v5581, 0
    %v5604 = vsel %vm107, %v5582, 0
    %v5607 = vsel %vm107, %v5583, 0
    %v5610 = vsel %vm107, %v5584, 0
    %5612 = vmatpush.msra.mxu0 0.0
    %5613 = vmatpush.msra.mxu0 0.0
    %5614 = vmatpush.msra.mxu0 0.0
    %5615 = vmatpush.msra.mxu0 0.0
    %5616 = vmatpush.msra.mxu0 0.0
    %5617 = vmatpush.msra.mxu0 0.0
    %5618 = vmatpush.msra.mxu0 0.0
    %5619 = vmatpush.msra.mxu0 0.0
    %5620 = vmatpush.msra.mxu0 0.0
    %5621 = vmatpush.msra.mxu0 0.0
    %5622 = vmatpush.msra.mxu0 0.0
    %5623 = vmatpush.msra.mxu0 0.0
    %5624 = vmatpush.msra.mxu0 0.0
    %5625 = vmatpush.msra.mxu0 0.0
    %5626 = vmatpush.msra.mxu0 0.0
    %5627 = vmatpush.msra.mxu0 %v60
    %5628 = vmatmul.f32.gmra.mxu0 %v5589
    %v5629 = vpop.f32.mrf.mxu0
    %v5630 = vadd.f32 %v5586, %v5629
    %5631 = vmatmul.f32.gmra.mxu0 %v5592
    %v5632 = vpop.f32.mrf.mxu0
    %v5633 = vadd.f32 %v5586, %v5632
    %5634 = vmatmul.f32.gmra.mxu0 %v5595
    %v5635 = vpop.f32.mrf.mxu0
    %v5636 = vadd.f32 %v5586, %v5635
    %5637 = vmatmul.f32.gmra.mxu0 %v5598
    %v5638 = vpop.f32.mrf.mxu0
    %v5639 = vadd.f32 %v5586, %v5638
    %5640 = vmatmul.f32.gmra.mxu0 %v5601
    %v5641 = vpop.f32.mrf.mxu0
    %v5642 = vadd.f32 %v5586, %v5641
    %5643 = vmatmul.f32.gmra.mxu0 %v5604
    %v5644 = vpop.f32.mrf.mxu0
    %v5645 = vadd.f32 %v5586, %v5644
    %5646 = vmatmul.f32.gmra.mxu0 %v5607
    %v5647 = vpop.f32.mrf.mxu0
    %v5648 = vadd.f32 %v5586, %v5647
    %5649 = vmatmul.f32.gmra.mxu0 %v5610
    %v5650 = vpop.f32.mrf.mxu0
    %v5651 = vadd.f32 %v5586, %v5650
    %5652 = vdwg.mxu0
    %v5653 = vtanh.pop %v5630
    %v5654 = vtanh.pop %v5633
    %v5655 = vtanh.pop %v5636
    %v5656 = vtanh.pop %v5639
    %v5657 = vtanh.pop %v5642
    %v5658 = vtanh.pop %v5645
    %v5659 = vtanh.pop %v5648
    %v5660 = vtanh.pop %v5651
    %v5661 = vmul.f32 %v5653, %v5653
    %v5662 = vmul.f32 %v5654, %v5654
    %v5663 = vmul.f32 %v5655, %v5655
    %v5664 = vmul.f32 %v5656, %v5656
    %v5665 = vmul.f32 %v5657, %v5657
    %v5666 = vmul.f32 %v5658, %v5658
    %v5667 = vmul.f32 %v5659, %v5659
    %v5668 = vmul.f32 %v5660, %v5660
    %v5669 = vsub.f32 1.0, %v5661
    %v5670 = vsub.f32 1.0, %v5662
    %v5671 = vsub.f32 1.0, %v5663
    %v5672 = vsub.f32 1.0, %v5664
    %v5673 = vsub.f32 1.0, %v5665
    %v5674 = vsub.f32 1.0, %v5666
    %v5675 = vsub.f32 1.0, %v5667
    %v5676 = vsub.f32 1.0, %v5668
    %5677 = vmatpush.msra.mxu0 %v77
    %5678 = vmatpush.msra.mxu0 %v76
    %5679 = vmatpush.msra.mxu0 %v75
    %5680 = vmatpush.msra.mxu0 %v74
    %5681 = vmatpush.msra.mxu0 %v73
    %5682 = vmatpush.msra.mxu0 %v72
    %5683 = vmatpush.msra.mxu0 %v71
    %5684 = vmatpush.msra.mxu0 %v70
    %5685 = vmatpush.msra.mxu0 %v69
    %5686 = vmatpush.msra.mxu0 %v68
    %5687 = vmatpush.msra.mxu0 %v67
    %5688 = vmatpush.msra.mxu0 %v66
    %5689 = vmatpush.msra.mxu0 %v65
    %5690 = vmatpush.msra.mxu0 %v64
    %5691 = vmatpush.msra.mxu0 %v63
    %5692 = vmatpush.msra.mxu0 %v62
    %5693 = vmatmul.f32.gmra.mxu0 %v5653
    %v5694 = vpop.f32.mrf.mxu0
    %v5695 = vadd.f32 0.0, %v5694
    %5696 = vmatmul.f32.gmra.mxu0 %v5654
    %v5697 = vpop.f32.mrf.mxu0
    %v5698 = vadd.f32 0.0, %v5697
    %5699 = vmatmul.f32.gmra.mxu0 %v5655
    %v5700 = vpop.f32.mrf.mxu0
    %v5701 = vadd.f32 0.0, %v5700
    %5702 = vmatmul.f32.gmra.mxu0 %v5656
    %v5703 = vpop.f32.mrf.mxu0
    %v5704 = vadd.f32 0.0, %v5703
    %5705 = vmatmul.f32.gmra.mxu0 %v5657
    %v5706 = vpop.f32.mrf.mxu0
    %v5707 = vadd.f32 0.0, %v5706
    %5708 = vmatmul.f32.gmra.mxu0 %v5658
    %v5709 = vpop.f32.mrf.mxu0
    %v5710 = vadd.f32 0.0, %v5709
    %5711 = vmatmul.f32.gmra.mxu0 %v5659
    %v5712 = vpop.f32.mrf.mxu0
    %v5713 = vadd.f32 0.0, %v5712
    %5714 = vmatmul.f32.gmra.mxu0 %v5660
    %v5715 = vpop.f32.mrf.mxu0
    %v5716 = vadd.f32 0.0, %v5715
    %5717 = vmatmul.f32.gmra.mxu0 %v5669
    %v5718 = vpop.f32.mrf.mxu0
    %v5719 = vadd.f32 0.0, %v5718
    %5720 = vmatmul.f32.gmra.mxu0 %v5670
    %v5721 = vpop.f32.mrf.mxu0
    %v5722 = vadd.f32 0.0, %v5721
    %5723 = vmatmul.f32.gmra.mxu0 %v5671
    %v5724 = vpop.f32.mrf.mxu0
    %v5725 = vadd.f32 0.0, %v5724
    %5726 = vmatmul.f32.gmra.mxu0 %v5672
    %v5727 = vpop.f32.mrf.mxu0
    %v5728 = vadd.f32 0.0, %v5727
    %5729 = vmatmul.f32.gmra.mxu0 %v5673
    %v5730 = vpop.f32.mrf.mxu0
    %v5731 = vadd.f32 0.0, %v5730
    %5732 = vmatmul.f32.gmra.mxu0 %v5674
    %v5733 = vpop.f32.mrf.mxu0
    %v5734 = vadd.f32 0.0, %v5733
    %5735 = vmatmul.f32.gmra.mxu0 %v5675
    %v5736 = vpop.f32.mrf.mxu0
    %v5737 = vadd.f32 0.0, %v5736
    %5738 = vmatmul.f32.gmra.mxu0 %v5676
    %v5739 = vpop.f32.mrf.mxu0
    %v5740 = vadd.f32 0.0, %v5739
    %5741 = vdwg.mxu0
    %v5742 = vmul.f32 %v5352, 2.0
    %v5743 = vmul.f32 %v5355, 2.0
    %v5744 = vmul.f32 %v5358, 2.0
    %v5745 = vmul.f32 %v5361, 2.0
    %v5746 = vmul.f32 %v5364, 2.0
    %v5747 = vmul.f32 %v5367, 2.0
    %v5748 = vmul.f32 %v5370, 2.0
    %v5749 = vmul.f32 %v5373, 2.0
    %v5750 = vadd.f32 %v5179, %v5742
    %v5751 = vadd.f32 %v5182, %v5743
    %v5752 = vadd.f32 %v5185, %v5744
    %v5753 = vadd.f32 %v5188, %v5745
    %v5754 = vadd.f32 %v5191, %v5746
    %v5755 = vadd.f32 %v5194, %v5747
    %v5756 = vadd.f32 %v5197, %v5748
    %v5757 = vadd.f32 %v5200, %v5749
    %v5758 = vmul.f32 %v5522, 2.0
    %v5759 = vmul.f32 %v5525, 2.0
    %v5760 = vmul.f32 %v5528, 2.0
    %v5761 = vmul.f32 %v5531, 2.0
    %v5762 = vmul.f32 %v5534, 2.0
    %v5763 = vmul.f32 %v5537, 2.0
    %v5764 = vmul.f32 %v5540, 2.0
    %v5765 = vmul.f32 %v5543, 2.0
    %v5766 = vadd.f32 %v5750, %v5758
    %v5767 = vadd.f32 %v5751, %v5759
    %v5768 = vadd.f32 %v5752, %v5760
    %v5769 = vadd.f32 %v5753, %v5761
    %v5770 = vadd.f32 %v5754, %v5762
    %v5771 = vadd.f32 %v5755, %v5763
    %v5772 = vadd.f32 %v5756, %v5764
    %v5773 = vadd.f32 %v5757, %v5765
    %v5774 = vadd.f32 %v5766, %v5695
    %v5775 = vadd.f32 %v5767, %v5698
    %v5776 = vadd.f32 %v5768, %v5701
    %v5777 = vadd.f32 %v5769, %v5704
    %v5778 = vadd.f32 %v5770, %v5707
    %v5779 = vadd.f32 %v5771, %v5710
    %v5780 = vadd.f32 %v5772, %v5713
    %v5781 = vadd.f32 %v5773, %v5716
    %v5782 = vmul.f32 %v820, %v5774
    %v5783 = vmul.f32 %v820, %v5775
    %v5784 = vmul.f32 %v820, %v5776
    %v5785 = vmul.f32 %v820, %v5777
    %v5786 = vmul.f32 %v820, %v5778
    %v5787 = vmul.f32 %v820, %v5779
    %v5788 = vmul.f32 %v820, %v5780
    %v5789 = vmul.f32 %v820, %v5781
    %v5790 = vadd.f32 %v4963, %v5782
    %v5791 = vadd.f32 %v4964, %v5783
    %v5792 = vadd.f32 %v4965, %v5784
    %v5793 = vadd.f32 %v4966, %v5785
    %v5794 = vadd.f32 %v4967, %v5786
    %v5795 = vadd.f32 %v4968, %v5787
    %v5796 = vadd.f32 %v4969, %v5788
    %v5797 = vadd.f32 %v4970, %v5789
    %v5798 = vmul.f32 %v5376, 2.0
    %v5799 = vmul.f32 %v5379, 2.0
    %v5800 = vmul.f32 %v5382, 2.0
    %v5801 = vmul.f32 %v5385, 2.0
    %v5802 = vmul.f32 %v5388, 2.0
    %v5803 = vmul.f32 %v5391, 2.0
    %v5804 = vmul.f32 %v5394, 2.0
    %v5805 = vmul.f32 %v5397, 2.0
    %v5806 = vadd.f32 %v5203, %v5798
    %v5807 = vadd.f32 %v5206, %v5799
    %v5808 = vadd.f32 %v5209, %v5800
    %v5809 = vadd.f32 %v5212, %v5801
    %v5810 = vadd.f32 %v5215, %v5802
    %v5811 = vadd.f32 %v5218, %v5803
    %v5812 = vadd.f32 %v5221, %v5804
    %v5813 = vadd.f32 %v5224, %v5805
    %v5814 = vmul.f32 %v5546, 2.0
    %v5815 = vmul.f32 %v5549, 2.0
    %v5816 = vmul.f32 %v5552, 2.0
    %v5817 = vmul.f32 %v5555, 2.0
    %v5818 = vmul.f32 %v5558, 2.0
    %v5819 = vmul.f32 %v5561, 2.0
    %v5820 = vmul.f32 %v5564, 2.0
    %v5821 = vmul.f32 %v5567, 2.0
    %v5822 = vadd.f32 %v5806, %v5814
    %v5823 = vadd.f32 %v5807, %v5815
    %v5824 = vadd.f32 %v5808, %v5816
    %v5825 = vadd.f32 %v5809, %v5817
    %v5826 = vadd.f32 %v5810, %v5818
    %v5827 = vadd.f32 %v5811, %v5819
    %v5828 = vadd.f32 %v5812, %v5820
    %v5829 = vadd.f32 %v5813, %v5821
    %v5830 = vadd.f32 %v5822, %v5719
    %v5831 = vadd.f32 %v5823, %v5722
    %v5832 = vadd.f32 %v5824, %v5725
    %v5833 = vadd.f32 %v5825, %v5728
    %v5834 = vadd.f32 %v5826, %v5731
    %v5835 = vadd.f32 %v5827, %v5734
    %v5836 = vadd.f32 %v5828, %v5737
    %v5837 = vadd.f32 %v5829, %v5740
    %v5838 = vmul.f32 %v820, %v5830
    %v5839 = vmul.f32 %v820, %v5831
    %v5840 = vmul.f32 %v820, %v5832
    %v5841 = vmul.f32 %v820, %v5833
    %v5842 = vmul.f32 %v820, %v5834
    %v5843 = vmul.f32 %v820, %v5835
    %v5844 = vmul.f32 %v820, %v5836
    %v5845 = vmul.f32 %v820, %v5837
    %5854 = vrot.lane.b32.xlu0 %v5838, 120
    %v5855 = vpop.permute.xlu0 %5854
    %5856 = vrot.lane.b32.xlu0 %v5839, 120
    %v5857 = vpop.permute.xlu0 %5856
    %5858 = vrot.lane.b32.xlu0 %v5840, 120
    %v5859 = vpop.permute.xlu0 %5858
    %5860 = vrot.lane.b32.xlu0 %v5841, 120
    %v5861 = vpop.permute.xlu0 %5860
    %5862 = vrot.lane.b32.xlu0 %v5842, 120
    %v5863 = vpop.permute.xlu0 %5862
    %5864 = vrot.lane.b32.xlu0 %v5843, 120
    %v5865 = vpop.permute.xlu0 %5864
    %5866 = vrot.lane.b32.xlu0 %v5844, 120
    %v5867 = vpop.permute.xlu0 %5866
    %5868 = vrot.lane.b32.xlu0 %v5845, 120
    %v5869 = vpop.permute.xlu0 %5868
    %v5878 = vadd.f32 %v5051, %v5855
    %v5879 = vadd.f32 %v5052, %v5857
    %v5880 = vadd.f32 %v5053, %v5859
    %v5881 = vadd.f32 %v5054, %v5861
    %v5882 = vadd.f32 %v5055, %v5863
    %v5883 = vadd.f32 %v5056, %v5865
    %v5884 = vadd.f32 %v5057, %v5867
    %v5885 = vadd.f32 %v5058, %v5869
    %s5886 = smul.f32 %s49, 7.0
    %s5887 = sadd.f32 %s38, %s5886
    %v5888 = vstv %s5887
    %v5889 = vadd.f32 %v61, %v5888
    %s5890 = sadd.f32 %s5887, %s50
    %v5891 = vstv %s5890
    %v5892 = vadd.f32 %v61, %v5891
    %s5893 = sadd.f32 %s5887, %s49
    %v5894 = vstv %s5893
    %v5895 = vadd.f32 %v61, %v5894
    %v5897 = vperm.slane %v5889, 0
    %v5900 = vsel %vm107, %v5790, 0
    %v5903 = vsel %vm107, %v5791, 0
    %v5906 = vsel %vm107, %v5792, 0
    %v5909 = vsel %vm107, %v5793, 0
    %v5912 = vsel %vm107, %v5794, 0
    %v5915 = vsel %vm107, %v5795, 0
    %v5918 = vsel %vm107, %v5796, 0
    %v5921 = vsel %vm107, %v5797, 0
    %5923 = vmatpush.msra.mxu0 0.0
    %5924 = vmatpush.msra.mxu0 0.0
    %5925 = vmatpush.msra.mxu0 0.0
    %5926 = vmatpush.msra.mxu0 0.0
    %5927 = vmatpush.msra.mxu0 0.0
    %5928 = vmatpush.msra.mxu0 0.0
    %5929 = vmatpush.msra.mxu0 0.0
    %5930 = vmatpush.msra.mxu0 0.0
    %5931 = vmatpush.msra.mxu0 0.0
    %5932 = vmatpush.msra.mxu0 0.0
    %5933 = vmatpush.msra.mxu0 0.0
    %5934 = vmatpush.msra.mxu0 0.0
    %5935 = vmatpush.msra.mxu0 0.0
    %5936 = vmatpush.msra.mxu0 0.0
    %5937 = vmatpush.msra.mxu0 0.0
    %5938 = vmatpush.msra.mxu0 %v60
    %5939 = vmatmul.f32.gmra.mxu0 %v5900
    %v5940 = vpop.f32.mrf.mxu0
    %v5941 = vadd.f32 %v5897, %v5940
    %5942 = vmatmul.f32.gmra.mxu0 %v5903
    %v5943 = vpop.f32.mrf.mxu0
    %v5944 = vadd.f32 %v5897, %v5943
    %5945 = vmatmul.f32.gmra.mxu0 %v5906
    %v5946 = vpop.f32.mrf.mxu0
    %v5947 = vadd.f32 %v5897, %v5946
    %5948 = vmatmul.f32.gmra.mxu0 %v5909
    %v5949 = vpop.f32.mrf.mxu0
    %v5950 = vadd.f32 %v5897, %v5949
    %5951 = vmatmul.f32.gmra.mxu0 %v5912
    %v5952 = vpop.f32.mrf.mxu0
    %v5953 = vadd.f32 %v5897, %v5952
    %5954 = vmatmul.f32.gmra.mxu0 %v5915
    %v5955 = vpop.f32.mrf.mxu0
    %v5956 = vadd.f32 %v5897, %v5955
    %5957 = vmatmul.f32.gmra.mxu0 %v5918
    %v5958 = vpop.f32.mrf.mxu0
    %v5959 = vadd.f32 %v5897, %v5958
    %5960 = vmatmul.f32.gmra.mxu0 %v5921
    %v5961 = vpop.f32.mrf.mxu0
    %v5962 = vadd.f32 %v5897, %v5961
    %5963 = vdwg.mxu0
    %v5964 = vtanh.pop %v5941
    %v5965 = vtanh.pop %v5944
    %v5966 = vtanh.pop %v5947
    %v5967 = vtanh.pop %v5950
    %v5968 = vtanh.pop %v5953
    %v5969 = vtanh.pop %v5956
    %v5970 = vtanh.pop %v5959
    %v5971 = vtanh.pop %v5962
    %v5972 = vmul.f32 %v5964, %v5964
    %v5973 = vmul.f32 %v5965, %v5965
    %v5974 = vmul.f32 %v5966, %v5966
    %v5975 = vmul.f32 %v5967, %v5967
    %v5976 = vmul.f32 %v5968, %v5968
    %v5977 = vmul.f32 %v5969, %v5969
    %v5978 = vmul.f32 %v5970, %v5970
    %v5979 = vmul.f32 %v5971, %v5971
    %v5980 = vsub.f32 1.0, %v5972
    %v5981 = vsub.f32 1.0, %v5973
    %v5982 = vsub.f32 1.0, %v5974
    %v5983 = vsub.f32 1.0, %v5975
    %v5984 = vsub.f32 1.0, %v5976
    %v5985 = vsub.f32 1.0, %v5977
    %v5986 = vsub.f32 1.0, %v5978
    %v5987 = vsub.f32 1.0, %v5979
    %5988 = vmatpush.msra.mxu0 %v77
    %5989 = vmatpush.msra.mxu0 %v76
    %5990 = vmatpush.msra.mxu0 %v75
    %5991 = vmatpush.msra.mxu0 %v74
    %5992 = vmatpush.msra.mxu0 %v73
    %5993 = vmatpush.msra.mxu0 %v72
    %5994 = vmatpush.msra.mxu0 %v71
    %5995 = vmatpush.msra.mxu0 %v70
    %5996 = vmatpush.msra.mxu0 %v69
    %5997 = vmatpush.msra.mxu0 %v68
    %5998 = vmatpush.msra.mxu0 %v67
    %5999 = vmatpush.msra.mxu0 %v66
    %6000 = vmatpush.msra.mxu0 %v65
    %6001 = vmatpush.msra.mxu0 %v64
    %6002 = vmatpush.msra.mxu0 %v63
    %6003 = vmatpush.msra.mxu0 %v62
    %6004 = vmatmul.f32.gmra.mxu0 %v5964
    %v6005 = vpop.f32.mrf.mxu0
    %v6006 = vadd.f32 0.0, %v6005
    %6007 = vmatmul.f32.gmra.mxu0 %v5965
    %v6008 = vpop.f32.mrf.mxu0
    %v6009 = vadd.f32 0.0, %v6008
    %6010 = vmatmul.f32.gmra.mxu0 %v5966
    %v6011 = vpop.f32.mrf.mxu0
    %v6012 = vadd.f32 0.0, %v6011
    %6013 = vmatmul.f32.gmra.mxu0 %v5967
    %v6014 = vpop.f32.mrf.mxu0
    %v6015 = vadd.f32 0.0, %v6014
    %6016 = vmatmul.f32.gmra.mxu0 %v5968
    %v6017 = vpop.f32.mrf.mxu0
    %v6018 = vadd.f32 0.0, %v6017
    %6019 = vmatmul.f32.gmra.mxu0 %v5969
    %v6020 = vpop.f32.mrf.mxu0
    %v6021 = vadd.f32 0.0, %v6020
    %6022 = vmatmul.f32.gmra.mxu0 %v5970
    %v6023 = vpop.f32.mrf.mxu0
    %v6024 = vadd.f32 0.0, %v6023
    %6025 = vmatmul.f32.gmra.mxu0 %v5971
    %v6026 = vpop.f32.mrf.mxu0
    %v6027 = vadd.f32 0.0, %v6026
    %6028 = vmatmul.f32.gmra.mxu0 %v5980
    %v6029 = vpop.f32.mrf.mxu0
    %v6030 = vadd.f32 0.0, %v6029
    %6031 = vmatmul.f32.gmra.mxu0 %v5981
    %v6032 = vpop.f32.mrf.mxu0
    %v6033 = vadd.f32 0.0, %v6032
    %6034 = vmatmul.f32.gmra.mxu0 %v5982
    %v6035 = vpop.f32.mrf.mxu0
    %v6036 = vadd.f32 0.0, %v6035
    %6037 = vmatmul.f32.gmra.mxu0 %v5983
    %v6038 = vpop.f32.mrf.mxu0
    %v6039 = vadd.f32 0.0, %v6038
    %6040 = vmatmul.f32.gmra.mxu0 %v5984
    %v6041 = vpop.f32.mrf.mxu0
    %v6042 = vadd.f32 0.0, %v6041
    %6043 = vmatmul.f32.gmra.mxu0 %v5985
    %v6044 = vpop.f32.mrf.mxu0
    %v6045 = vadd.f32 0.0, %v6044
    %6046 = vmatmul.f32.gmra.mxu0 %v5986
    %v6047 = vpop.f32.mrf.mxu0
    %v6048 = vadd.f32 0.0, %v6047
    %6049 = vmatmul.f32.gmra.mxu0 %v5987
    %v6050 = vpop.f32.mrf.mxu0
    %v6051 = vadd.f32 0.0, %v6050
    %6052 = vdwg.mxu0
    %v6053 = vmul.f32 %v262, %v6006
    %v6054 = vmul.f32 %v262, %v6009
    %v6055 = vmul.f32 %v262, %v6012
    %v6056 = vmul.f32 %v262, %v6015
    %v6057 = vmul.f32 %v262, %v6018
    %v6058 = vmul.f32 %v262, %v6021
    %v6059 = vmul.f32 %v262, %v6024
    %v6060 = vmul.f32 %v262, %v6027
    %v6061 = vadd.f32 %v5790, %v6053
    %v6062 = vadd.f32 %v5791, %v6054
    %v6063 = vadd.f32 %v5792, %v6055
    %v6064 = vadd.f32 %v5793, %v6056
    %v6065 = vadd.f32 %v5794, %v6057
    %v6066 = vadd.f32 %v5795, %v6058
    %v6067 = vadd.f32 %v5796, %v6059
    %v6068 = vadd.f32 %v5797, %v6060
    %v6070 = vperm.slane %v5892, 0
    %v6073 = vsel %vm107, %v6061, 0
    %v6076 = vsel %vm107, %v6062, 0
    %v6079 = vsel %vm107, %v6063, 0
    %v6082 = vsel %vm107, %v6064, 0
    %v6085 = vsel %vm107, %v6065, 0
    %v6088 = vsel %vm107, %v6066, 0
    %v6091 = vsel %vm107, %v6067, 0
    %v6094 = vsel %vm107, %v6068, 0
    %6096 = vmatpush.msra.mxu0 0.0
    %6097 = vmatpush.msra.mxu0 0.0
    %6098 = vmatpush.msra.mxu0 0.0
    %6099 = vmatpush.msra.mxu0 0.0
    %6100 = vmatpush.msra.mxu0 0.0
    %6101 = vmatpush.msra.mxu0 0.0
    %6102 = vmatpush.msra.mxu0 0.0
    %6103 = vmatpush.msra.mxu0 0.0
    %6104 = vmatpush.msra.mxu0 0.0
    %6105 = vmatpush.msra.mxu0 0.0
    %6106 = vmatpush.msra.mxu0 0.0
    %6107 = vmatpush.msra.mxu0 0.0
    %6108 = vmatpush.msra.mxu0 0.0
    %6109 = vmatpush.msra.mxu0 0.0
    %6110 = vmatpush.msra.mxu0 0.0
    %6111 = vmatpush.msra.mxu0 %v60
    %6112 = vmatmul.f32.gmra.mxu0 %v6073
    %v6113 = vpop.f32.mrf.mxu0
    %v6114 = vadd.f32 %v6070, %v6113
    %6115 = vmatmul.f32.gmra.mxu0 %v6076
    %v6116 = vpop.f32.mrf.mxu0
    %v6117 = vadd.f32 %v6070, %v6116
    %6118 = vmatmul.f32.gmra.mxu0 %v6079
    %v6119 = vpop.f32.mrf.mxu0
    %v6120 = vadd.f32 %v6070, %v6119
    %6121 = vmatmul.f32.gmra.mxu0 %v6082
    %v6122 = vpop.f32.mrf.mxu0
    %v6123 = vadd.f32 %v6070, %v6122
    %6124 = vmatmul.f32.gmra.mxu0 %v6085
    %v6125 = vpop.f32.mrf.mxu0
    %v6126 = vadd.f32 %v6070, %v6125
    %6127 = vmatmul.f32.gmra.mxu0 %v6088
    %v6128 = vpop.f32.mrf.mxu0
    %v6129 = vadd.f32 %v6070, %v6128
    %6130 = vmatmul.f32.gmra.mxu0 %v6091
    %v6131 = vpop.f32.mrf.mxu0
    %v6132 = vadd.f32 %v6070, %v6131
    %6133 = vmatmul.f32.gmra.mxu0 %v6094
    %v6134 = vpop.f32.mrf.mxu0
    %v6135 = vadd.f32 %v6070, %v6134
    %6136 = vdwg.mxu0
    %v6137 = vtanh.pop %v6114
    %v6138 = vtanh.pop %v6117
    %v6139 = vtanh.pop %v6120
    %v6140 = vtanh.pop %v6123
    %v6141 = vtanh.pop %v6126
    %v6142 = vtanh.pop %v6129
    %v6143 = vtanh.pop %v6132
    %v6144 = vtanh.pop %v6135
    %v6145 = vmul.f32 %v6137, %v6137
    %v6146 = vmul.f32 %v6138, %v6138
    %v6147 = vmul.f32 %v6139, %v6139
    %v6148 = vmul.f32 %v6140, %v6140
    %v6149 = vmul.f32 %v6141, %v6141
    %v6150 = vmul.f32 %v6142, %v6142
    %v6151 = vmul.f32 %v6143, %v6143
    %v6152 = vmul.f32 %v6144, %v6144
    %v6153 = vsub.f32 1.0, %v6145
    %v6154 = vsub.f32 1.0, %v6146
    %v6155 = vsub.f32 1.0, %v6147
    %v6156 = vsub.f32 1.0, %v6148
    %v6157 = vsub.f32 1.0, %v6149
    %v6158 = vsub.f32 1.0, %v6150
    %v6159 = vsub.f32 1.0, %v6151
    %v6160 = vsub.f32 1.0, %v6152
    %6161 = vmatpush.msra.mxu0 %v77
    %6162 = vmatpush.msra.mxu0 %v76
    %6163 = vmatpush.msra.mxu0 %v75
    %6164 = vmatpush.msra.mxu0 %v74
    %6165 = vmatpush.msra.mxu0 %v73
    %6166 = vmatpush.msra.mxu0 %v72
    %6167 = vmatpush.msra.mxu0 %v71
    %6168 = vmatpush.msra.mxu0 %v70
    %6169 = vmatpush.msra.mxu0 %v69
    %6170 = vmatpush.msra.mxu0 %v68
    %6171 = vmatpush.msra.mxu0 %v67
    %6172 = vmatpush.msra.mxu0 %v66
    %6173 = vmatpush.msra.mxu0 %v65
    %6174 = vmatpush.msra.mxu0 %v64
    %6175 = vmatpush.msra.mxu0 %v63
    %6176 = vmatpush.msra.mxu0 %v62
    %6177 = vmatmul.f32.gmra.mxu0 %v6137
    %v6178 = vpop.f32.mrf.mxu0
    %v6179 = vadd.f32 0.0, %v6178
    %6180 = vmatmul.f32.gmra.mxu0 %v6138
    %v6181 = vpop.f32.mrf.mxu0
    %v6182 = vadd.f32 0.0, %v6181
    %6183 = vmatmul.f32.gmra.mxu0 %v6139
    %v6184 = vpop.f32.mrf.mxu0
    %v6185 = vadd.f32 0.0, %v6184
    %6186 = vmatmul.f32.gmra.mxu0 %v6140
    %v6187 = vpop.f32.mrf.mxu0
    %v6188 = vadd.f32 0.0, %v6187
    %6189 = vmatmul.f32.gmra.mxu0 %v6141
    %v6190 = vpop.f32.mrf.mxu0
    %v6191 = vadd.f32 0.0, %v6190
    %6192 = vmatmul.f32.gmra.mxu0 %v6142
    %v6193 = vpop.f32.mrf.mxu0
    %v6194 = vadd.f32 0.0, %v6193
    %6195 = vmatmul.f32.gmra.mxu0 %v6143
    %v6196 = vpop.f32.mrf.mxu0
    %v6197 = vadd.f32 0.0, %v6196
    %6198 = vmatmul.f32.gmra.mxu0 %v6144
    %v6199 = vpop.f32.mrf.mxu0
    %v6200 = vadd.f32 0.0, %v6199
    %6201 = vmatmul.f32.gmra.mxu0 %v6153
    %v6202 = vpop.f32.mrf.mxu0
    %v6203 = vadd.f32 0.0, %v6202
    %6204 = vmatmul.f32.gmra.mxu0 %v6154
    %v6205 = vpop.f32.mrf.mxu0
    %v6206 = vadd.f32 0.0, %v6205
    %6207 = vmatmul.f32.gmra.mxu0 %v6155
    %v6208 = vpop.f32.mrf.mxu0
    %v6209 = vadd.f32 0.0, %v6208
    %6210 = vmatmul.f32.gmra.mxu0 %v6156
    %v6211 = vpop.f32.mrf.mxu0
    %v6212 = vadd.f32 0.0, %v6211
    %6213 = vmatmul.f32.gmra.mxu0 %v6157
    %v6214 = vpop.f32.mrf.mxu0
    %v6215 = vadd.f32 0.0, %v6214
    %6216 = vmatmul.f32.gmra.mxu0 %v6158
    %v6217 = vpop.f32.mrf.mxu0
    %v6218 = vadd.f32 0.0, %v6217
    %6219 = vmatmul.f32.gmra.mxu0 %v6159
    %v6220 = vpop.f32.mrf.mxu0
    %v6221 = vadd.f32 0.0, %v6220
    %6222 = vmatmul.f32.gmra.mxu0 %v6160
    %v6223 = vpop.f32.mrf.mxu0
    %v6224 = vadd.f32 0.0, %v6223
    %6225 = vdwg.mxu0
    %v6226 = vmul.f32 %v262, %v6179
    %v6227 = vmul.f32 %v262, %v6182
    %v6228 = vmul.f32 %v262, %v6185
    %v6229 = vmul.f32 %v262, %v6188
    %v6230 = vmul.f32 %v262, %v6191
    %v6231 = vmul.f32 %v262, %v6194
    %v6232 = vmul.f32 %v262, %v6197
    %v6233 = vmul.f32 %v262, %v6200
    %v6234 = vadd.f32 %v5790, %v6226
    %v6235 = vadd.f32 %v5791, %v6227
    %v6236 = vadd.f32 %v5792, %v6228
    %v6237 = vadd.f32 %v5793, %v6229
    %v6238 = vadd.f32 %v5794, %v6230
    %v6239 = vadd.f32 %v5795, %v6231
    %v6240 = vadd.f32 %v5796, %v6232
    %v6241 = vadd.f32 %v5797, %v6233
    %v6243 = vsel %vm107, %v6234, 0
    %v6246 = vsel %vm107, %v6235, 0
    %v6249 = vsel %vm107, %v6236, 0
    %v6252 = vsel %vm107, %v6237, 0
    %v6255 = vsel %vm107, %v6238, 0
    %v6258 = vsel %vm107, %v6239, 0
    %v6261 = vsel %vm107, %v6240, 0
    %v6264 = vsel %vm107, %v6241, 0
    %6266 = vmatpush.msra.mxu0 0.0
    %6267 = vmatpush.msra.mxu0 0.0
    %6268 = vmatpush.msra.mxu0 0.0
    %6269 = vmatpush.msra.mxu0 0.0
    %6270 = vmatpush.msra.mxu0 0.0
    %6271 = vmatpush.msra.mxu0 0.0
    %6272 = vmatpush.msra.mxu0 0.0
    %6273 = vmatpush.msra.mxu0 0.0
    %6274 = vmatpush.msra.mxu0 0.0
    %6275 = vmatpush.msra.mxu0 0.0
    %6276 = vmatpush.msra.mxu0 0.0
    %6277 = vmatpush.msra.mxu0 0.0
    %6278 = vmatpush.msra.mxu0 0.0
    %6279 = vmatpush.msra.mxu0 0.0
    %6280 = vmatpush.msra.mxu0 0.0
    %6281 = vmatpush.msra.mxu0 %v60
    %6282 = vmatmul.f32.gmra.mxu0 %v6243
    %v6283 = vpop.f32.mrf.mxu0
    %v6284 = vadd.f32 %v6070, %v6283
    %6285 = vmatmul.f32.gmra.mxu0 %v6246
    %v6286 = vpop.f32.mrf.mxu0
    %v6287 = vadd.f32 %v6070, %v6286
    %6288 = vmatmul.f32.gmra.mxu0 %v6249
    %v6289 = vpop.f32.mrf.mxu0
    %v6290 = vadd.f32 %v6070, %v6289
    %6291 = vmatmul.f32.gmra.mxu0 %v6252
    %v6292 = vpop.f32.mrf.mxu0
    %v6293 = vadd.f32 %v6070, %v6292
    %6294 = vmatmul.f32.gmra.mxu0 %v6255
    %v6295 = vpop.f32.mrf.mxu0
    %v6296 = vadd.f32 %v6070, %v6295
    %6297 = vmatmul.f32.gmra.mxu0 %v6258
    %v6298 = vpop.f32.mrf.mxu0
    %v6299 = vadd.f32 %v6070, %v6298
    %6300 = vmatmul.f32.gmra.mxu0 %v6261
    %v6301 = vpop.f32.mrf.mxu0
    %v6302 = vadd.f32 %v6070, %v6301
    %6303 = vmatmul.f32.gmra.mxu0 %v6264
    %v6304 = vpop.f32.mrf.mxu0
    %v6305 = vadd.f32 %v6070, %v6304
    %6306 = vdwg.mxu0
    %v6307 = vtanh.pop %v6284
    %v6308 = vtanh.pop %v6287
    %v6309 = vtanh.pop %v6290
    %v6310 = vtanh.pop %v6293
    %v6311 = vtanh.pop %v6296
    %v6312 = vtanh.pop %v6299
    %v6313 = vtanh.pop %v6302
    %v6314 = vtanh.pop %v6305
    %v6315 = vmul.f32 %v6307, %v6307
    %v6316 = vmul.f32 %v6308, %v6308
    %v6317 = vmul.f32 %v6309, %v6309
    %v6318 = vmul.f32 %v6310, %v6310
    %v6319 = vmul.f32 %v6311, %v6311
    %v6320 = vmul.f32 %v6312, %v6312
    %v6321 = vmul.f32 %v6313, %v6313
    %v6322 = vmul.f32 %v6314, %v6314
    %v6323 = vsub.f32 1.0, %v6315
    %v6324 = vsub.f32 1.0, %v6316
    %v6325 = vsub.f32 1.0, %v6317
    %v6326 = vsub.f32 1.0, %v6318
    %v6327 = vsub.f32 1.0, %v6319
    %v6328 = vsub.f32 1.0, %v6320
    %v6329 = vsub.f32 1.0, %v6321
    %v6330 = vsub.f32 1.0, %v6322
    %6331 = vmatpush.msra.mxu0 %v77
    %6332 = vmatpush.msra.mxu0 %v76
    %6333 = vmatpush.msra.mxu0 %v75
    %6334 = vmatpush.msra.mxu0 %v74
    %6335 = vmatpush.msra.mxu0 %v73
    %6336 = vmatpush.msra.mxu0 %v72
    %6337 = vmatpush.msra.mxu0 %v71
    %6338 = vmatpush.msra.mxu0 %v70
    %6339 = vmatpush.msra.mxu0 %v69
    %6340 = vmatpush.msra.mxu0 %v68
    %6341 = vmatpush.msra.mxu0 %v67
    %6342 = vmatpush.msra.mxu0 %v66
    %6343 = vmatpush.msra.mxu0 %v65
    %6344 = vmatpush.msra.mxu0 %v64
    %6345 = vmatpush.msra.mxu0 %v63
    %6346 = vmatpush.msra.mxu0 %v62
    %6347 = vmatmul.f32.gmra.mxu0 %v6307
    %v6348 = vpop.f32.mrf.mxu0
    %v6349 = vadd.f32 0.0, %v6348
    %6350 = vmatmul.f32.gmra.mxu0 %v6308
    %v6351 = vpop.f32.mrf.mxu0
    %v6352 = vadd.f32 0.0, %v6351
    %6353 = vmatmul.f32.gmra.mxu0 %v6309
    %v6354 = vpop.f32.mrf.mxu0
    %v6355 = vadd.f32 0.0, %v6354
    %6356 = vmatmul.f32.gmra.mxu0 %v6310
    %v6357 = vpop.f32.mrf.mxu0
    %v6358 = vadd.f32 0.0, %v6357
    %6359 = vmatmul.f32.gmra.mxu0 %v6311
    %v6360 = vpop.f32.mrf.mxu0
    %v6361 = vadd.f32 0.0, %v6360
    %6362 = vmatmul.f32.gmra.mxu0 %v6312
    %v6363 = vpop.f32.mrf.mxu0
    %v6364 = vadd.f32 0.0, %v6363
    %6365 = vmatmul.f32.gmra.mxu0 %v6313
    %v6366 = vpop.f32.mrf.mxu0
    %v6367 = vadd.f32 0.0, %v6366
    %6368 = vmatmul.f32.gmra.mxu0 %v6314
    %v6369 = vpop.f32.mrf.mxu0
    %v6370 = vadd.f32 0.0, %v6369
    %6371 = vmatmul.f32.gmra.mxu0 %v6323
    %v6372 = vpop.f32.mrf.mxu0
    %v6373 = vadd.f32 0.0, %v6372
    %6374 = vmatmul.f32.gmra.mxu0 %v6324
    %v6375 = vpop.f32.mrf.mxu0
    %v6376 = vadd.f32 0.0, %v6375
    %6377 = vmatmul.f32.gmra.mxu0 %v6325
    %v6378 = vpop.f32.mrf.mxu0
    %v6379 = vadd.f32 0.0, %v6378
    %6380 = vmatmul.f32.gmra.mxu0 %v6326
    %v6381 = vpop.f32.mrf.mxu0
    %v6382 = vadd.f32 0.0, %v6381
    %6383 = vmatmul.f32.gmra.mxu0 %v6327
    %v6384 = vpop.f32.mrf.mxu0
    %v6385 = vadd.f32 0.0, %v6384
    %6386 = vmatmul.f32.gmra.mxu0 %v6328
    %v6387 = vpop.f32.mrf.mxu0
    %v6388 = vadd.f32 0.0, %v6387
    %6389 = vmatmul.f32.gmra.mxu0 %v6329
    %v6390 = vpop.f32.mrf.mxu0
    %v6391 = vadd.f32 0.0, %v6390
    %6392 = vmatmul.f32.gmra.mxu0 %v6330
    %v6393 = vpop.f32.mrf.mxu0
    %v6394 = vadd.f32 0.0, %v6393
    %6395 = vdwg.mxu0
    %v6396 = vmul.f32 %v606, %v6349
    %v6397 = vmul.f32 %v606, %v6352
    %v6398 = vmul.f32 %v606, %v6355
    %v6399 = vmul.f32 %v606, %v6358
    %v6400 = vmul.f32 %v606, %v6361
    %v6401 = vmul.f32 %v606, %v6364
    %v6402 = vmul.f32 %v606, %v6367
    %v6403 = vmul.f32 %v606, %v6370
    %v6404 = vadd.f32 %v5790, %v6396
    %v6405 = vadd.f32 %v5791, %v6397
    %v6406 = vadd.f32 %v5792, %v6398
    %v6407 = vadd.f32 %v5793, %v6399
    %v6408 = vadd.f32 %v5794, %v6400
    %v6409 = vadd.f32 %v5795, %v6401
    %v6410 = vadd.f32 %v5796, %v6402
    %v6411 = vadd.f32 %v5797, %v6403
    %v6413 = vperm.slane %v5895, 0
    %v6416 = vsel %vm107, %v6404, 0
    %v6419 = vsel %vm107, %v6405, 0
    %v6422 = vsel %vm107, %v6406, 0
    %v6425 = vsel %vm107, %v6407, 0
    %v6428 = vsel %vm107, %v6408, 0
    %v6431 = vsel %vm107, %v6409, 0
    %v6434 = vsel %vm107, %v6410, 0
    %v6437 = vsel %vm107, %v6411, 0
    %6439 = vmatpush.msra.mxu0 0.0
    %6440 = vmatpush.msra.mxu0 0.0
    %6441 = vmatpush.msra.mxu0 0.0
    %6442 = vmatpush.msra.mxu0 0.0
    %6443 = vmatpush.msra.mxu0 0.0
    %6444 = vmatpush.msra.mxu0 0.0
    %6445 = vmatpush.msra.mxu0 0.0
    %6446 = vmatpush.msra.mxu0 0.0
    %6447 = vmatpush.msra.mxu0 0.0
    %6448 = vmatpush.msra.mxu0 0.0
    %6449 = vmatpush.msra.mxu0 0.0
    %6450 = vmatpush.msra.mxu0 0.0
    %6451 = vmatpush.msra.mxu0 0.0
    %6452 = vmatpush.msra.mxu0 0.0
    %6453 = vmatpush.msra.mxu0 0.0
    %6454 = vmatpush.msra.mxu0 %v60
    %6455 = vmatmul.f32.gmra.mxu0 %v6416
    %v6456 = vpop.f32.mrf.mxu0
    %v6457 = vadd.f32 %v6413, %v6456
    %6458 = vmatmul.f32.gmra.mxu0 %v6419
    %v6459 = vpop.f32.mrf.mxu0
    %v6460 = vadd.f32 %v6413, %v6459
    %6461 = vmatmul.f32.gmra.mxu0 %v6422
    %v6462 = vpop.f32.mrf.mxu0
    %v6463 = vadd.f32 %v6413, %v6462
    %6464 = vmatmul.f32.gmra.mxu0 %v6425
    %v6465 = vpop.f32.mrf.mxu0
    %v6466 = vadd.f32 %v6413, %v6465
    %6467 = vmatmul.f32.gmra.mxu0 %v6428
    %v6468 = vpop.f32.mrf.mxu0
    %v6469 = vadd.f32 %v6413, %v6468
    %6470 = vmatmul.f32.gmra.mxu0 %v6431
    %v6471 = vpop.f32.mrf.mxu0
    %v6472 = vadd.f32 %v6413, %v6471
    %6473 = vmatmul.f32.gmra.mxu0 %v6434
    %v6474 = vpop.f32.mrf.mxu0
    %v6475 = vadd.f32 %v6413, %v6474
    %6476 = vmatmul.f32.gmra.mxu0 %v6437
    %v6477 = vpop.f32.mrf.mxu0
    %v6478 = vadd.f32 %v6413, %v6477
    %6479 = vdwg.mxu0
    %v6480 = vtanh.pop %v6457
    %v6481 = vtanh.pop %v6460
    %v6482 = vtanh.pop %v6463
    %v6483 = vtanh.pop %v6466
    %v6484 = vtanh.pop %v6469
    %v6485 = vtanh.pop %v6472
    %v6486 = vtanh.pop %v6475
    %v6487 = vtanh.pop %v6478
    %v6488 = vmul.f32 %v6480, %v6480
    %v6489 = vmul.f32 %v6481, %v6481
    %v6490 = vmul.f32 %v6482, %v6482
    %v6491 = vmul.f32 %v6483, %v6483
    %v6492 = vmul.f32 %v6484, %v6484
    %v6493 = vmul.f32 %v6485, %v6485
    %v6494 = vmul.f32 %v6486, %v6486
    %v6495 = vmul.f32 %v6487, %v6487
    %v6496 = vsub.f32 1.0, %v6488
    %v6497 = vsub.f32 1.0, %v6489
    %v6498 = vsub.f32 1.0, %v6490
    %v6499 = vsub.f32 1.0, %v6491
    %v6500 = vsub.f32 1.0, %v6492
    %v6501 = vsub.f32 1.0, %v6493
    %v6502 = vsub.f32 1.0, %v6494
    %v6503 = vsub.f32 1.0, %v6495
    %6504 = vmatpush.msra.mxu0 %v77
    %6505 = vmatpush.msra.mxu0 %v76
    %6506 = vmatpush.msra.mxu0 %v75
    %6507 = vmatpush.msra.mxu0 %v74
    %6508 = vmatpush.msra.mxu0 %v73
    %6509 = vmatpush.msra.mxu0 %v72
    %6510 = vmatpush.msra.mxu0 %v71
    %6511 = vmatpush.msra.mxu0 %v70
    %6512 = vmatpush.msra.mxu0 %v69
    %6513 = vmatpush.msra.mxu0 %v68
    %6514 = vmatpush.msra.mxu0 %v67
    %6515 = vmatpush.msra.mxu0 %v66
    %6516 = vmatpush.msra.mxu0 %v65
    %6517 = vmatpush.msra.mxu0 %v64
    %6518 = vmatpush.msra.mxu0 %v63
    %6519 = vmatpush.msra.mxu0 %v62
    %6520 = vmatmul.f32.gmra.mxu0 %v6480
    %v6521 = vpop.f32.mrf.mxu0
    %v6522 = vadd.f32 0.0, %v6521
    %6523 = vmatmul.f32.gmra.mxu0 %v6481
    %v6524 = vpop.f32.mrf.mxu0
    %v6525 = vadd.f32 0.0, %v6524
    %6526 = vmatmul.f32.gmra.mxu0 %v6482
    %v6527 = vpop.f32.mrf.mxu0
    %v6528 = vadd.f32 0.0, %v6527
    %6529 = vmatmul.f32.gmra.mxu0 %v6483
    %v6530 = vpop.f32.mrf.mxu0
    %v6531 = vadd.f32 0.0, %v6530
    %6532 = vmatmul.f32.gmra.mxu0 %v6484
    %v6533 = vpop.f32.mrf.mxu0
    %v6534 = vadd.f32 0.0, %v6533
    %6535 = vmatmul.f32.gmra.mxu0 %v6485
    %v6536 = vpop.f32.mrf.mxu0
    %v6537 = vadd.f32 0.0, %v6536
    %6538 = vmatmul.f32.gmra.mxu0 %v6486
    %v6539 = vpop.f32.mrf.mxu0
    %v6540 = vadd.f32 0.0, %v6539
    %6541 = vmatmul.f32.gmra.mxu0 %v6487
    %v6542 = vpop.f32.mrf.mxu0
    %v6543 = vadd.f32 0.0, %v6542
    %6544 = vmatmul.f32.gmra.mxu0 %v6496
    %v6545 = vpop.f32.mrf.mxu0
    %v6546 = vadd.f32 0.0, %v6545
    %6547 = vmatmul.f32.gmra.mxu0 %v6497
    %v6548 = vpop.f32.mrf.mxu0
    %v6549 = vadd.f32 0.0, %v6548
    %6550 = vmatmul.f32.gmra.mxu0 %v6498
    %v6551 = vpop.f32.mrf.mxu0
    %v6552 = vadd.f32 0.0, %v6551
    %6553 = vmatmul.f32.gmra.mxu0 %v6499
    %v6554 = vpop.f32.mrf.mxu0
    %v6555 = vadd.f32 0.0, %v6554
    %6556 = vmatmul.f32.gmra.mxu0 %v6500
    %v6557 = vpop.f32.mrf.mxu0
    %v6558 = vadd.f32 0.0, %v6557
    %6559 = vmatmul.f32.gmra.mxu0 %v6501
    %v6560 = vpop.f32.mrf.mxu0
    %v6561 = vadd.f32 0.0, %v6560
    %6562 = vmatmul.f32.gmra.mxu0 %v6502
    %v6563 = vpop.f32.mrf.mxu0
    %v6564 = vadd.f32 0.0, %v6563
    %6565 = vmatmul.f32.gmra.mxu0 %v6503
    %v6566 = vpop.f32.mrf.mxu0
    %v6567 = vadd.f32 0.0, %v6566
    %6568 = vdwg.mxu0
    %v6569 = vmul.f32 %v6179, 2.0
    %v6570 = vmul.f32 %v6182, 2.0
    %v6571 = vmul.f32 %v6185, 2.0
    %v6572 = vmul.f32 %v6188, 2.0
    %v6573 = vmul.f32 %v6191, 2.0
    %v6574 = vmul.f32 %v6194, 2.0
    %v6575 = vmul.f32 %v6197, 2.0
    %v6576 = vmul.f32 %v6200, 2.0
    %v6577 = vadd.f32 %v6006, %v6569
    %v6578 = vadd.f32 %v6009, %v6570
    %v6579 = vadd.f32 %v6012, %v6571
    %v6580 = vadd.f32 %v6015, %v6572
    %v6581 = vadd.f32 %v6018, %v6573
    %v6582 = vadd.f32 %v6021, %v6574
    %v6583 = vadd.f32 %v6024, %v6575
    %v6584 = vadd.f32 %v6027, %v6576
    %v6585 = vmul.f32 %v6349, 2.0
    %v6586 = vmul.f32 %v6352, 2.0
    %v6587 = vmul.f32 %v6355, 2.0
    %v6588 = vmul.f32 %v6358, 2.0
    %v6589 = vmul.f32 %v6361, 2.0
    %v6590 = vmul.f32 %v6364, 2.0
    %v6591 = vmul.f32 %v6367, 2.0
    %v6592 = vmul.f32 %v6370, 2.0
    %v6593 = vadd.f32 %v6577, %v6585
    %v6594 = vadd.f32 %v6578, %v6586
    %v6595 = vadd.f32 %v6579, %v6587
    %v6596 = vadd.f32 %v6580, %v6588
    %v6597 = vadd.f32 %v6581, %v6589
    %v6598 = vadd.f32 %v6582, %v6590
    %v6599 = vadd.f32 %v6583, %v6591
    %v6600 = vadd.f32 %v6584, %v6592
    %v6601 = vadd.f32 %v6593, %v6522
    %v6602 = vadd.f32 %v6594, %v6525
    %v6603 = vadd.f32 %v6595, %v6528
    %v6604 = vadd.f32 %v6596, %v6531
    %v6605 = vadd.f32 %v6597, %v6534
    %v6606 = vadd.f32 %v6598, %v6537
    %v6607 = vadd.f32 %v6599, %v6540
    %v6608 = vadd.f32 %v6600, %v6543
    %v6609 = vmul.f32 %v820, %v6601
    %v6610 = vmul.f32 %v820, %v6602
    %v6611 = vmul.f32 %v820, %v6603
    %v6612 = vmul.f32 %v820, %v6604
    %v6613 = vmul.f32 %v820, %v6605
    %v6614 = vmul.f32 %v820, %v6606
    %v6615 = vmul.f32 %v820, %v6607
    %v6616 = vmul.f32 %v820, %v6608
    %v6617 = vadd.f32 %v5790, %v6609
    %v6618 = vadd.f32 %v5791, %v6610
    %v6619 = vadd.f32 %v5792, %v6611
    %v6620 = vadd.f32 %v5793, %v6612
    %v6621 = vadd.f32 %v5794, %v6613
    %v6622 = vadd.f32 %v5795, %v6614
    %v6623 = vadd.f32 %v5796, %v6615
    %v6624 = vadd.f32 %v5797, %v6616
    %v6625 = vmul.f32 %v6203, 2.0
    %v6626 = vmul.f32 %v6206, 2.0
    %v6627 = vmul.f32 %v6209, 2.0
    %v6628 = vmul.f32 %v6212, 2.0
    %v6629 = vmul.f32 %v6215, 2.0
    %v6630 = vmul.f32 %v6218, 2.0
    %v6631 = vmul.f32 %v6221, 2.0
    %v6632 = vmul.f32 %v6224, 2.0
    %v6633 = vadd.f32 %v6030, %v6625
    %v6634 = vadd.f32 %v6033, %v6626
    %v6635 = vadd.f32 %v6036, %v6627
    %v6636 = vadd.f32 %v6039, %v6628
    %v6637 = vadd.f32 %v6042, %v6629
    %v6638 = vadd.f32 %v6045, %v6630
    %v6639 = vadd.f32 %v6048, %v6631
    %v6640 = vadd.f32 %v6051, %v6632
    %v6641 = vmul.f32 %v6373, 2.0
    %v6642 = vmul.f32 %v6376, 2.0
    %v6643 = vmul.f32 %v6379, 2.0
    %v6644 = vmul.f32 %v6382, 2.0
    %v6645 = vmul.f32 %v6385, 2.0
    %v6646 = vmul.f32 %v6388, 2.0
    %v6647 = vmul.f32 %v6391, 2.0
    %v6648 = vmul.f32 %v6394, 2.0
    %v6649 = vadd.f32 %v6633, %v6641
    %v6650 = vadd.f32 %v6634, %v6642
    %v6651 = vadd.f32 %v6635, %v6643
    %v6652 = vadd.f32 %v6636, %v6644
    %v6653 = vadd.f32 %v6637, %v6645
    %v6654 = vadd.f32 %v6638, %v6646
    %v6655 = vadd.f32 %v6639, %v6647
    %v6656 = vadd.f32 %v6640, %v6648
    %v6657 = vadd.f32 %v6649, %v6546
    %v6658 = vadd.f32 %v6650, %v6549
    %v6659 = vadd.f32 %v6651, %v6552
    %v6660 = vadd.f32 %v6652, %v6555
    %v6661 = vadd.f32 %v6653, %v6558
    %v6662 = vadd.f32 %v6654, %v6561
    %v6663 = vadd.f32 %v6655, %v6564
    %v6664 = vadd.f32 %v6656, %v6567
    %v6665 = vmul.f32 %v820, %v6657
    %v6666 = vmul.f32 %v820, %v6658
    %v6667 = vmul.f32 %v820, %v6659
    %v6668 = vmul.f32 %v820, %v6660
    %v6669 = vmul.f32 %v820, %v6661
    %v6670 = vmul.f32 %v820, %v6662
    %v6671 = vmul.f32 %v820, %v6663
    %v6672 = vmul.f32 %v820, %v6664
    %6681 = vrot.lane.b32.xlu0 %v6665, 120
    %v6682 = vpop.permute.xlu0 %6681
    %6683 = vrot.lane.b32.xlu0 %v6666, 120
    %v6684 = vpop.permute.xlu0 %6683
    %6685 = vrot.lane.b32.xlu0 %v6667, 120
    %v6686 = vpop.permute.xlu0 %6685
    %6687 = vrot.lane.b32.xlu0 %v6668, 120
    %v6688 = vpop.permute.xlu0 %6687
    %6689 = vrot.lane.b32.xlu0 %v6669, 120
    %v6690 = vpop.permute.xlu0 %6689
    %6691 = vrot.lane.b32.xlu0 %v6670, 120
    %v6692 = vpop.permute.xlu0 %6691
    %6693 = vrot.lane.b32.xlu0 %v6671, 120
    %v6694 = vpop.permute.xlu0 %6693
    %6695 = vrot.lane.b32.xlu0 %v6672, 120
    %v6696 = vpop.permute.xlu0 %6695
    %v6705 = vadd.f32 %v5878, %v6682
    %v6706 = vadd.f32 %v5879, %v6684
    %v6707 = vadd.f32 %v5880, %v6686
    %v6708 = vadd.f32 %v5881, %v6688
    %v6709 = vadd.f32 %v5882, %v6690
    %v6710 = vadd.f32 %v5883, %v6692
    %v6711 = vadd.f32 %v5884, %v6694
    %v6712 = vadd.f32 %v5885, %v6696
    %6713 = vst.msk [vmem:[%s6] sm:$0xff] %vm107, %v6617
    %6714 = vst.msk [vmem:[%s6 + $0x8] sm:$0xff] %vm107, %v6618
    %6715 = vst.msk [vmem:[%s6 + $0x10] sm:$0xff] %vm107, %v6619
    %6716 = vst.msk [vmem:[%s6 + $0x18] sm:$0xff] %vm107, %v6620
    %6717 = vst.msk [vmem:[%s6 + $0x20] sm:$0xff] %vm107, %v6621
    %6718 = vst.msk [vmem:[%s6 + $0x28] sm:$0xff] %vm107, %v6622
    %6719 = vst.msk [vmem:[%s6 + $0x30] sm:$0xff] %vm107, %v6623
    %6720 = vst.msk [vmem:[%s6 + $0x38] sm:$0xff] %vm107, %v6624
    %vm6721 = vcmask 7168
    %6722 = vst.msk [vmem:[%s7] sm:$0xff] %vm6721, %v6705
    %6723 = vst.msk [vmem:[%s7 + $0x8] sm:$0xff] %vm6721, %v6706
    %6724 = vst.msk [vmem:[%s7 + $0x10] sm:$0xff] %vm6721, %v6707
    %6725 = vst.msk [vmem:[%s7 + $0x18] sm:$0xff] %vm6721, %v6708
    %6726 = vst.msk [vmem:[%s7 + $0x20] sm:$0xff] %vm6721, %v6709
    %6727 = vst.msk [vmem:[%s7 + $0x28] sm:$0xff] %vm6721, %v6710
    %6728 = vst.msk [vmem:[%s7 + $0x30] sm:$0xff] %vm6721, %v6711
    %6729 = vst.msk [vmem:[%s7 + $0x38] sm:$0xff] %vm6721, %v6712
    // Predicated region
    $region30: #{tpu_custom_call.1} parent=1 // pred_check
      _
    $region31: #{tpu_custom_call.1} parent=1 // pred_check_branch
      %6731 = sbr.rel (0) target = $region33
    $region32: #{tpu_custom_call.1} parent=1 // pred_region
      _
    $region33: #{tpu_custom_call.1} parent=1 // pred_fallthru
      _
    // Predicated region
    $region34: #{tpu_custom_call.1} parent=1 // pred_check
      _
    $region35: #{tpu_custom_call.1} parent=1 // pred_check_branch
      %6733 = sbr.rel (0) target = $region37
    $region36: #{tpu_custom_call.1} parent=1 // pred_region
      _
    $region37: #{tpu_custom_call.1} parent=1 // pred_fallthru
      _
    // Predicated region
    $region38: #{tpu_custom_call.1} parent=1 // pred_check
      _
    $region39: #{tpu_custom_call.1} parent=1 // pred_check_branch
      %6735 = sbr.rel (0) target = $region41
    $region40: #{tpu_custom_call.1} parent=1 // pred_region
      _
    $region41: #{tpu_custom_call.1} parent=1 // pred_fallthru
      _
    // Predicated region
    $region42: #{tpu_custom_call.1} parent=1 // pred_check
      _
    $region43: #{tpu_custom_call.1} parent=1 // pred_check_branch
      %6737 = sbr.rel (0) target = $region45
    $region44: #{tpu_custom_call.1} parent=1 // pred_region
      _
    $region45: #{tpu_custom_call.1} parent=1 // pred_fallthru
      _
    %6738 = vsyncpa [#allocation3], 1

</llo_original>
